<compile_context>
chip_gen: v7x
topology: tpu7x:2x2x1
jax: 0.10.0
libtpu: 0.0.40
codegen_flags: <defaults>
</compile_context>

<pallas_src>
import functools

import jax
import jax.numpy as jnp
from jax.experimental import pallas as pl
from jax.experimental.pallas import tpu as pltpu


# ---------------------------------------------------------------------------
# Fused inception kernel (one image per grid step)
# ---------------------------------------------------------------------------
def _inception_kernel(x_ref, w1_ref, b1_ref, w3_ref, b3_ref, w5_ref, b5_ref,
                      w4_ref, b4_ref, o_ref,
                      t2pad_ref, t3pad_ref, xpad_ref,
                      *, H, W, Cin, C1, M3, C3, M5, C5, CP):
    R = H * W                                   # pixels in this block (1 image)

    x = x_ref[...]                              # (1, H, W, Cin) f32
    x_flat = x.reshape(R, Cin)

    # ---- branches 1/2/3 entry: merged 1x1 convs -> single MXU matmul -------
    t = jnp.dot(x_flat, w1_ref[...], preferred_element_type=jnp.float32)
    t = jnp.maximum(t + b1_ref[...], 0.0)       # (R, C1 + M3 + M5)
    out1 = t[:, :C1]                            # branch-1 output
    t2 = t[:, C1:C1 + M3]                       # branch-2 intermediate
    t3 = t[:, C1 + M3:C1 + M3 + M5]             # branch-3 intermediate

    # ---- branch 2: 3x3 conv (pad 1) as one (R, 9*M3) x (9*M3, C3) matmul ---
    t2pad_ref[...] = jnp.zeros(t2pad_ref.shape, t2pad_ref.dtype)
    t2pad_ref[:, 1:1 + H, 1:1 + W, :] = t2.reshape(1, H, W, M3)
    t2p = t2pad_ref[...]
    p3 = jnp.concatenate(
        [t2p[:, kh:kh + H, kw:kw + W, :].reshape(R, M3)
         for kh in range(3) for kw in range(3)], axis=1)         # (R, 9*M3)
    out2 = jnp.maximum(
        jnp.dot(p3, w3_ref[...], preferred_element_type=jnp.float32)
        + b3_ref[...], 0.0)                                      # (R, C3)

    # ---- branch 3: 5x5 conv (pad 2) as one (R, 25*M5) x (25*M5, C5) matmul -
    t3pad_ref[...] = jnp.zeros(t3pad_ref.shape, t3pad_ref.dtype)
    t3pad_ref[:, 2:2 + H, 2:2 + W, :] = t3.reshape(1, H, W, M5)
    t3p = t3pad_ref[...]
    p5 = jnp.concatenate(
        [t3p[:, kh:kh + H, kw:kw + W, :].reshape(R, M5)
         for kh in range(5) for kw in range(5)], axis=1)         # (R, 25*M5)
    out3 = jnp.maximum(
        jnp.dot(p5, w5_ref[...], preferred_element_type=jnp.float32)
        + b5_ref[...], 0.0)                                      # (R, C5)

    # ---- branch 4: 3x3 maxpool (s1, p1) on RAW x, then 1x1 conv + ReLU -----
    xpad_ref[...] = jnp.full(xpad_ref.shape, -jnp.inf, xpad_ref.dtype)
    xpad_ref[:, 1:1 + H, 1:1 + W, :] = x
    xp = xpad_ref[...]
    m = xp[:, 1:1 + H, 1:1 + W, :]              # center tap
    for kh in range(3):
        for kw in range(3):
            if kh == 1 and kw == 1:
                continue
            m = jnp.maximum(m, xp[:, kh:kh + H, kw:kw + W, :])
    pooled = m.reshape(R, Cin)
    out4 = jnp.maximum(
        jnp.dot(pooled, w4_ref[...], preferred_element_type=jnp.float32)
        + b4_ref[...], 0.0)                                      # (R, CP)

    # ---- channel concat [b1 | b2 | b3 | b4] and single store ---------------
    out = jnp.concatenate([out1, out2, out3, out4], axis=1)      # (R, Ctot)
    o_ref[...] = out.reshape(1, H, W, C1 + C3 + C5 + CP).astype(o_ref.dtype)


# ---------------------------------------------------------------------------
# Wrapper: weight packing + pallas_call plumbing
# ---------------------------------------------------------------------------
def inception_pallas(x_nhwc, params):
    N, H, W, Cin = x_nhwc.shape
    w1_1, b1_1 = params["b1_1x1"]    # (1,1,Cin,C1), (C1,)
    w2_1, b2_1 = params["b2_1x1"]    # (1,1,Cin,M3)
    w2_3, b2_3 = params["b2_3x3"]    # (3,3,M3,C3)
    w3_1, b3_1 = params["b3_1x1"]    # (1,1,Cin,M5)
    w3_5, b3_5 = params["b3_5x5"]    # (5,5,M5,C5)
    w4_1, b4_1 = params["b4_1x1"]    # (1,1,Cin,CP)

    C1 = w1_1.shape[3]
    M3, C3 = w2_1.shape[3], w2_3.shape[3]
    M5, C5 = w3_1.shape[3], w3_5.shape[3]
    CP = w4_1.shape[3]
    Ctot = C1 + C3 + C5 + CP

    # Merge the three branch-entry 1x1 convs into one (Cin, C1+M3+M5) matmul.
    w1m = jnp.concatenate([w1_1.reshape(Cin, C1),
                           w2_1.reshape(Cin, M3),
                           w3_1.reshape(Cin, M5)], axis=1)
    b1m = jnp.concatenate([b1_1, b2_1, b3_1]).reshape(1, C1 + M3 + M5)
    # HWIO -> (K*K*Cin, Cout); row order (kh*K + kw)*Cin + cin matches the
    # patch-matrix column order built in the kernel.
    w3f = w2_3.reshape(9 * M3, C3)
    b3f = b2_3.reshape(1, C3)
    w5f = w3_5.reshape(25 * M5, C5)
    b5f = b3_5.reshape(1, C5)
    w4f = w4_1.reshape(Cin, CP)
    b4f = b4_1.reshape(1, CP)

    kernel = functools.partial(_inception_kernel, H=H, W=W, Cin=Cin,
                               C1=C1, M3=M3, C3=C3, M5=M5, C5=C5, CP=CP)
    full2d = lambda n: (0, 0)

    return pl.pallas_call(
        kernel,
        out_shape=jax.ShapeDtypeStruct((N, H, W, Ctot), x_nhwc.dtype),
        grid=(N,),
        in_specs=[
            pl.BlockSpec((1, H, W, Cin), lambda n: (n, 0, 0, 0)),
            pl.BlockSpec(w1m.shape, full2d),
            pl.BlockSpec(b1m.shape, full2d),
            pl.BlockSpec(w3f.shape, full2d),
            pl.BlockSpec(b3f.shape, full2d),
            pl.BlockSpec(w5f.shape, full2d),
            pl.BlockSpec(b5f.shape, full2d),
            pl.BlockSpec(w4f.shape, full2d),
            pl.BlockSpec(b4f.shape, full2d),
        ],
        out_specs=pl.BlockSpec((1, H, W, Ctot), lambda n: (n, 0, 0, 0)),
        scratch_shapes=[
            pltpu.VMEM((1, H + 2, W + 2, M3), jnp.float32),   # padded t2
            pltpu.VMEM((1, H + 4, W + 4, M5), jnp.float32),   # padded t3
            pltpu.VMEM((1, H + 2, W + 2, Cin), jnp.float32),  # -inf padded x
        ],
        compiler_params=pltpu.CompilerParams(
            dimension_semantics=("parallel",)),   # v7x: both TensorCores
    )(x_nhwc, w1m, b1m, w3f, b3f, w5f, b5f, w4f, b4f)


@jax.jit
def inception_forward(params, x_nchw):
    # layout plumbing only: NCHW -> NHWC -> kernel -> NCHW
    x = jnp.transpose(x_nchw, (0, 2, 3, 1))
    out = inception_pallas(x, params)
    return jnp.transpose(out, (0, 3, 1, 2))


# ---------------------------------------------------------------------------
# Parameters (deterministic synthetic init, PyTorch-shaped then HWIO)
# ---------------------------------------------------------------------------
def init_conv_params(key, in_c, out_c, k):
    kw_key, kb_key = jax.random.split(key)
    w_oihw = 0.1 * jax.random.normal(kw_key, (out_c, in_c, k, k), jnp.float32)
    b = 0.1 * jax.random.normal(kb_key, (out_c,), jnp.float32)
    w_hwio = jnp.transpose(w_oihw, (2, 3, 1, 0))
    return w_hwio, b


def make_inception_params(key, in_dim, out_dim_1, mid_dim_3, out_dim_3,
                          mid_dim_5, out_dim_5, pool_dim):
    keys = jax.random.split(key, 6)
    return {
        "b1_1x1": init_conv_params(keys[0], in_dim, out_dim_1, 1),
        "b2_1x1": init_conv_params(keys[1], in_dim, mid_dim_3, 1),
        "b2_3x3": init_conv_params(keys[2], mid_dim_3, out_dim_3, 3),
        "b3_1x1": init_conv_params(keys[3], in_dim, mid_dim_5, 1),
        "b3_5x5": init_conv_params(keys[4], mid_dim_5, out_dim_5, 5),
        "b4_1x1": init_conv_params(keys[5], in_dim, pool_dim, 1),
    }


# ---------------------------------------------------------------------------
# Pure-JAX reference (correctness check)
# ---------------------------------------------------------------------------
def _ref_conv_relu(x_nchw, w_hwio, bias, pad):
    w_oihw = jnp.transpose(w_hwio, (3, 2, 0, 1))
    y = jax.lax.conv_general_dilated(
        x_nchw, w_oihw, window_strides=(1, 1),
        padding=[(pad, pad), (pad, pad)],
        dimension_numbers=("NCHW", "OIHW", "NCHW"))
    return jnp.maximum(y + bias[None, :, None, None], 0.0)


def inception_reference(params, x_nchw):
    w, b = params["b1_1x1"]
    o1 = _ref_conv_relu(x_nchw, w, b, 0)
    w, b = params["b2_1x1"]
    t = _ref_conv_relu(x_nchw, w, b, 0)
    w, b = params["b2_3x3"]
    o2 = _ref_conv_relu(t, w, b, 1)
    w, b = params["b3_1x1"]
    t = _ref_conv_relu(x_nchw, w, b, 0)
    w, b = params["b3_5x5"]
    o3 = _ref_conv_relu(t, w, b, 2)
    p = jax.lax.reduce_window(x_nchw, -jnp.inf, jax.lax.max,
                              (1, 1, 3, 3), (1, 1, 1, 1),
                              [(0, 0), (0, 0), (1, 1), (1, 1)])
    w, b = params["b4_1x1"]
    o4 = _ref_conv_relu(p, w, b, 0)
    return jnp.concatenate([o1, o2, o3, o4], axis=1)


if __name__ == "__main__":
    # inception(in_dim=4, out_dim_1=8, mid_dim_3=8, out_dim_3=16,
    #           mid_dim_5=4, out_dim_5=8, pool_dim=8)
    in_dim, out_dim_1 = 4, 8
    mid_dim_3, out_dim_3 = 8, 16
    mid_dim_5, out_dim_5 = 4, 8
    pool_dim = 8

    key = jax.random.PRNGKey(0)
    pkey, xkey = jax.random.split(key)
    params = make_inception_params(pkey, in_dim, out_dim_1, mid_dim_3,
                                   out_dim_3, mid_dim_5, out_dim_5, pool_dim)

    x = jax.random.normal(xkey, (2, in_dim, 16, 16), jnp.float32)  # NCHW

    out = inception_forward(params, x)
    out = jax.block_until_ready(out)

    expected_channels = out_dim_1 + out_dim_3 + out_dim_5 + pool_dim
    assert out.shape == (2, expected_channels, 16, 16), out.shape

    ref = inception_reference(params, x)
    assert jnp.allclose(out, ref, atol=1e-4, rtol=1e-4), \
        float(jnp.max(jnp.abs(out - ref)))

    print("KERNEL_OK")
</pallas_src>

<mosaic_0001>
module attributes {stable_mosaic.version = 11 : i64} {
  func.func @_inception_kernel(%arg0: i32, %arg1: memref<1x16x16x4xf32, #tpu.memory_space<vmem>>, %arg2: memref<4x20xf32, #tpu.memory_space<vmem>>, %arg3: memref<1x20xf32, #tpu.memory_space<vmem>>, %arg4: memref<72x16xf32, #tpu.memory_space<vmem>>, %arg5: memref<1x16xf32, #tpu.memory_space<vmem>>, %arg6: memref<100x8xf32, #tpu.memory_space<vmem>>, %arg7: memref<1x8xf32, #tpu.memory_space<vmem>>, %arg8: memref<4x8xf32, #tpu.memory_space<vmem>>, %arg9: memref<1x8xf32, #tpu.memory_space<vmem>>, %arg10: memref<1x16x16x40xf32, #tpu.memory_space<vmem>>, %arg11: memref<1x18x18x8xf32, #tpu.memory_space<vmem>>, %arg12: memref<1x20x20x4xf32, #tpu.memory_space<vmem>>, %arg13: memref<1x18x18x4xf32, #tpu.memory_space<vmem>>) attributes {dimension_semantics = [#tpu.dimension_semantics<parallel>], iteration_bounds = array<i64: 2>, scalar_prefetch = 0 : i64, scratch_operands = 3 : i64, tpu.core_type = #tpu.core_type<tc>, window_params = [{transform_indices = @transform_0, window_bounds = array<i64: 1, 16, 16, 4>}, {pipeline_mode = #tpu.pipeline_mode<synchronous>, transform_indices = @transform_1, window_bounds = array<i64: 4, 20>}, {pipeline_mode = #tpu.pipeline_mode<synchronous>, transform_indices = @transform_2, window_bounds = array<i64: 1, 20>}, {pipeline_mode = #tpu.pipeline_mode<synchronous>, transform_indices = @transform_3, window_bounds = array<i64: 72, 16>}, {pipeline_mode = #tpu.pipeline_mode<synchronous>, transform_indices = @transform_4, window_bounds = array<i64: 1, 16>}, {pipeline_mode = #tpu.pipeline_mode<synchronous>, transform_indices = @transform_5, window_bounds = array<i64: 100, 8>}, {pipeline_mode = #tpu.pipeline_mode<synchronous>, transform_indices = @transform_6, window_bounds = array<i64: 1, 8>}, {pipeline_mode = #tpu.pipeline_mode<synchronous>, transform_indices = @transform_7, window_bounds = array<i64: 4, 8>}, {pipeline_mode = #tpu.pipeline_mode<synchronous>, transform_indices = @transform_8, window_bounds = array<i64: 1, 8>}, {transform_indices = @transform_9, window_bounds = array<i64: 1, 16, 16, 40>}]} {
    %c0 = arith.constant 0 : index
    %c0_0 = arith.constant 0 : index
    %c0_1 = arith.constant 0 : index
    %c0_2 = arith.constant 0 : index
    %0 = vector.load %arg1[%c0, %c0_0, %c0_1, %c0_2] : memref<1x16x16x4xf32, #tpu.memory_space<vmem>>, vector<1x16x16x4xf32>
    %1 = vector.shape_cast %0 : vector<1x16x16x4xf32> to vector<256x4xf32>
    %c0_3 = arith.constant 0 : index
    %c0_4 = arith.constant 0 : index
    %2 = vector.load %arg2[%c0_3, %c0_4] : memref<4x20xf32, #tpu.memory_space<vmem>>, vector<4x20xf32>
    %cst = arith.constant dense<0.000000e+00> : vector<256x20xf32>
    %3 = tpu.matmul %1, %2, %cst {dimension_numbers = #tpu.dot_dimension_numbers<[1], [0], [0], [1], [0, 0, 1, 1], [], []>} : vector<256x4xf32>, vector<4x20xf32>, vector<256x20xf32> -> vector<256x20xf32>
    %c0_5 = arith.constant 0 : index
    %c0_6 = arith.constant 0 : index
    %4 = vector.load %arg3[%c0_5, %c0_6] : memref<1x20xf32, #tpu.memory_space<vmem>>, vector<1x20xf32>
    %5 = vector.broadcast %4 : vector<1x20xf32> to vector<256x20xf32>
    %6 = arith.addf %3, %5 : vector<256x20xf32>
    %cst_7 = arith.constant 0.000000e+00 : f32
    %7 = vector.broadcast %cst_7 : f32 to vector<256x20xf32>
    %8 = arith.maximumf %6, %7 : vector<256x20xf32>
    %9 = vector.extract_strided_slice %8 {offsets = [0, 0], sizes = [256, 8], strides = [1, 1]} : vector<256x20xf32> to vector<256x8xf32>
    %10 = vector.extract_strided_slice %8 {offsets = [0, 8], sizes = [256, 8], strides = [1, 1]} : vector<256x20xf32> to vector<256x8xf32>
    %11 = vector.extract_strided_slice %8 {offsets = [0, 16], sizes = [256, 4], strides = [1, 1]} : vector<256x20xf32> to vector<256x4xf32>
    %cst_8 = arith.constant 0.000000e+00 : f32
    %12 = vector.broadcast %cst_8 : f32 to vector<1x18x18x8xf32>
    %c0_9 = arith.constant 0 : index
    %c0_10 = arith.constant 0 : index
    %c0_11 = arith.constant 0 : index
    %c0_12 = arith.constant 0 : index
    %13 = vector.load %arg11[%c0_9, %c0_10, %c0_11, %c0_12] : memref<1x18x18x8xf32, #tpu.memory_space<vmem>>, vector<1x18x18x8xf32>
    tpu.vector_store %arg11[%c0_9, %c0_10, %c0_11, %c0_12], %12 {strides = array<i32>} : memref<1x18x18x8xf32, #tpu.memory_space<vmem>>, vector<1x18x18x8xf32>,
    %14 = vector.shape_cast %10 : vector<256x8xf32> to vector<1x16x16x8xf32>
    %c0_13 = arith.constant 0 : index
    %c1 = arith.constant 1 : index
    %c1_14 = arith.constant 1 : index
    %c0_15 = arith.constant 0 : index
    %15 = vector.load %arg11[%c0_13, %c1, %c1_14, %c0_15] : memref<1x18x18x8xf32, #tpu.memory_space<vmem>>, vector<1x16x16x8xf32>
    tpu.vector_store %arg11[%c0_13, %c1, %c1_14, %c0_15], %14 {strides = array<i32>} : memref<1x18x18x8xf32, #tpu.memory_space<vmem>>, vector<1x16x16x8xf32>,
    %c0_16 = arith.constant 0 : index
    %c0_17 = arith.constant 0 : index
    %c0_18 = arith.constant 0 : index
    %c0_19 = arith.constant 0 : index
    %16 = vector.load %arg11[%c0_16, %c0_17, %c0_18, %c0_19] : memref<1x18x18x8xf32, #tpu.memory_space<vmem>>, vector<1x18x18x8xf32>
    %17 = vector.extract_strided_slice %16 {offsets = [0, 0, 0, 0], sizes = [1, 16, 16, 8], strides = [1, 1, 1, 1]} : vector<1x18x18x8xf32> to vector<1x16x16x8xf32>
    %18 = vector.shape_cast %17 : vector<1x16x16x8xf32> to vector<256x8xf32>
    %19 = vector.extract_strided_slice %16 {offsets = [0, 0, 1, 0], sizes = [1, 16, 16, 8], strides = [1, 1, 1, 1]} : vector<1x18x18x8xf32> to vector<1x16x16x8xf32>
    %20 = vector.shape_cast %19 : vector<1x16x16x8xf32> to vector<256x8xf32>
    %21 = vector.extract_strided_slice %16 {offsets = [0, 0, 2, 0], sizes = [1, 16, 16, 8], strides = [1, 1, 1, 1]} : vector<1x18x18x8xf32> to vector<1x16x16x8xf32>
    %22 = vector.shape_cast %21 : vector<1x16x16x8xf32> to vector<256x8xf32>
    %23 = vector.extract_strided_slice %16 {offsets = [0, 1, 0, 0], sizes = [1, 16, 16, 8], strides = [1, 1, 1, 1]} : vector<1x18x18x8xf32> to vector<1x16x16x8xf32>
    %24 = vector.shape_cast %23 : vector<1x16x16x8xf32> to vector<256x8xf32>
    %25 = vector.extract_strided_slice %16 {offsets = [0, 1, 1, 0], sizes = [1, 16, 16, 8], strides = [1, 1, 1, 1]} : vector<1x18x18x8xf32> to vector<1x16x16x8xf32>
    %26 = vector.shape_cast %25 : vector<1x16x16x8xf32> to vector<256x8xf32>
    %27 = vector.extract_strided_slice %16 {offsets = [0, 1, 2, 0], sizes = [1, 16, 16, 8], strides = [1, 1, 1, 1]} : vector<1x18x18x8xf32> to vector<1x16x16x8xf32>
    %28 = vector.shape_cast %27 : vector<1x16x16x8xf32> to vector<256x8xf32>
    %29 = vector.extract_strided_slice %16 {offsets = [0, 2, 0, 0], sizes = [1, 16, 16, 8], strides = [1, 1, 1, 1]} : vector<1x18x18x8xf32> to vector<1x16x16x8xf32>
    %30 = vector.shape_cast %29 : vector<1x16x16x8xf32> to vector<256x8xf32>
    %31 = vector.extract_strided_slice %16 {offsets = [0, 2, 1, 0], sizes = [1, 16, 16, 8], strides = [1, 1, 1, 1]} : vector<1x18x18x8xf32> to vector<1x16x16x8xf32>
    %32 = vector.shape_cast %31 : vector<1x16x16x8xf32> to vector<256x8xf32>
    %33 = vector.extract_strided_slice %16 {offsets = [0, 2, 2, 0], sizes = [1, 16, 16, 8], strides = [1, 1, 1, 1]} : vector<1x18x18x8xf32> to vector<1x16x16x8xf32>
    %34 = vector.shape_cast %33 : vector<1x16x16x8xf32> to vector<256x8xf32>
    %35 = tpu.concatenate %18, %20, %22, %24, %26, %28, %30, %32, %34 in 1 : vector<256x8xf32>, vector<256x8xf32>, vector<256x8xf32>, vector<256x8xf32>, vector<256x8xf32>, vector<256x8xf32>, vector<256x8xf32>, vector<256x8xf32>, vector<256x8xf32> -> vector<256x72xf32>
    %c0_20 = arith.constant 0 : index
    %c0_21 = arith.constant 0 : index
    %36 = vector.load %arg4[%c0_20, %c0_21] : memref<72x16xf32, #tpu.memory_space<vmem>>, vector<72x16xf32>
    %cst_22 = arith.constant dense<0.000000e+00> : vector<256x16xf32>
    %37 = tpu.matmul %35, %36, %cst_22 {dimension_numbers = #tpu.dot_dimension_numbers<[1], [0], [0], [1], [0, 0, 1, 1], [], []>} : vector<256x72xf32>, vector<72x16xf32>, vector<256x16xf32> -> vector<256x16xf32>
    %c0_23 = arith.constant 0 : index
    %c0_24 = arith.constant 0 : index
    %38 = vector.load %arg5[%c0_23, %c0_24] : memref<1x16xf32, #tpu.memory_space<vmem>>, vector<1x16xf32>
    %39 = vector.broadcast %38 : vector<1x16xf32> to vector<256x16xf32>
    %40 = arith.addf %37, %39 : vector<256x16xf32>
    %cst_25 = arith.constant 0.000000e+00 : f32
    %41 = vector.broadcast %cst_25 : f32 to vector<256x16xf32>
    %42 = arith.maximumf %40, %41 : vector<256x16xf32>
    %cst_26 = arith.constant 0.000000e+00 : f32
    %43 = vector.broadcast %cst_26 : f32 to vector<1x20x20x4xf32>
    %c0_27 = arith.constant 0 : index
    %c0_28 = arith.constant 0 : index
    %c0_29 = arith.constant 0 : index
    %c0_30 = arith.constant 0 : index
    %44 = vector.load %arg12[%c0_27, %c0_28, %c0_29, %c0_30] : memref<1x20x20x4xf32, #tpu.memory_space<vmem>>, vector<1x20x20x4xf32>
    tpu.vector_store %arg12[%c0_27, %c0_28, %c0_29, %c0_30], %43 {strides = array<i32>} : memref<1x20x20x4xf32, #tpu.memory_space<vmem>>, vector<1x20x20x4xf32>,
    %45 = vector.shape_cast %11 : vector<256x4xf32> to vector<1x16x16x4xf32>
    %c0_31 = arith.constant 0 : index
    %c2 = arith.constant 2 : index
    %c2_32 = arith.constant 2 : index
    %c0_33 = arith.constant 0 : index
    %46 = vector.load %arg12[%c0_31, %c2, %c2_32, %c0_33] : memref<1x20x20x4xf32, #tpu.memory_space<vmem>>, vector<1x16x16x4xf32>
    tpu.vector_store %arg12[%c0_31, %c2, %c2_32, %c0_33], %45 {strides = array<i32>} : memref<1x20x20x4xf32, #tpu.memory_space<vmem>>, vector<1x16x16x4xf32>,
    %c0_34 = arith.constant 0 : index
    %c0_35 = arith.constant 0 : index
    %c0_36 = arith.constant 0 : index
    %c0_37 = arith.constant 0 : index
    %47 = vector.load %arg12[%c0_34, %c0_35, %c0_36, %c0_37] : memref<1x20x20x4xf32, #tpu.memory_space<vmem>>, vector<1x20x20x4xf32>
    %48 = vector.extract_strided_slice %47 {offsets = [0, 0, 0, 0], sizes = [1, 16, 16, 4], strides = [1, 1, 1, 1]} : vector<1x20x20x4xf32> to vector<1x16x16x4xf32>
    %49 = vector.shape_cast %48 : vector<1x16x16x4xf32> to vector<256x4xf32>
    %50 = vector.extract_strided_slice %47 {offsets = [0, 0, 1, 0], sizes = [1, 16, 16, 4], strides = [1, 1, 1, 1]} : vector<1x20x20x4xf32> to vector<1x16x16x4xf32>
    %51 = vector.shape_cast %50 : vector<1x16x16x4xf32> to vector<256x4xf32>
    %52 = vector.extract_strided_slice %47 {offsets = [0, 0, 2, 0], sizes = [1, 16, 16, 4], strides = [1, 1, 1, 1]} : vector<1x20x20x4xf32> to vector<1x16x16x4xf32>
    %53 = vector.shape_cast %52 : vector<1x16x16x4xf32> to vector<256x4xf32>
    %54 = vector.extract_strided_slice %47 {offsets = [0, 0, 3, 0], sizes = [1, 16, 16, 4], strides = [1, 1, 1, 1]} : vector<1x20x20x4xf32> to vector<1x16x16x4xf32>
    %55 = vector.shape_cast %54 : vector<1x16x16x4xf32> to vector<256x4xf32>
    %56 = vector.extract_strided_slice %47 {offsets = [0, 0, 4, 0], sizes = [1, 16, 16, 4], strides = [1, 1, 1, 1]} : vector<1x20x20x4xf32> to vector<1x16x16x4xf32>
    %57 = vector.shape_cast %56 : vector<1x16x16x4xf32> to vector<256x4xf32>
    %58 = vector.extract_strided_slice %47 {offsets = [0, 1, 0, 0], sizes = [1, 16, 16, 4], strides = [1, 1, 1, 1]} : vector<1x20x20x4xf32> to vector<1x16x16x4xf32>
    %59 = vector.shape_cast %58 : vector<1x16x16x4xf32> to vector<256x4xf32>
    %60 = vector.extract_strided_slice %47 {offsets = [0, 1, 1, 0], sizes = [1, 16, 16, 4], strides = [1, 1, 1, 1]} : vector<1x20x20x4xf32> to vector<1x16x16x4xf32>
    %61 = vector.shape_cast %60 : vector<1x16x16x4xf32> to vector<256x4xf32>
    %62 = vector.extract_strided_slice %47 {offsets = [0, 1, 2, 0], sizes = [1, 16, 16, 4], strides = [1, 1, 1, 1]} : vector<1x20x20x4xf32> to vector<1x16x16x4xf32>
    %63 = vector.shape_cast %62 : vector<1x16x16x4xf32> to vector<256x4xf32>
    %64 = vector.extract_strided_slice %47 {offsets = [0, 1, 3, 0], sizes = [1, 16, 16, 4], strides = [1, 1, 1, 1]} : vector<1x20x20x4xf32> to vector<1x16x16x4xf32>
    %65 = vector.shape_cast %64 : vector<1x16x16x4xf32> to vector<256x4xf32>
    %66 = vector.extract_strided_slice %47 {offsets = [0, 1, 4, 0], sizes = [1, 16, 16, 4], strides = [1, 1, 1, 1]} : vector<1x20x20x4xf32> to vector<1x16x16x4xf32>
    %67 = vector.shape_cast %66 : vector<1x16x16x4xf32> to vector<256x4xf32>
    %68 = vector.extract_strided_slice %47 {offsets = [0, 2, 0, 0], sizes = [1, 16, 16, 4], strides = [1, 1, 1, 1]} : vector<1x20x20x4xf32> to vector<1x16x16x4xf32>
    %69 = vector.shape_cast %68 : vector<1x16x16x4xf32> to vector<256x4xf32>
    %70 = vector.extract_strided_slice %47 {offsets = [0, 2, 1, 0], sizes = [1, 16, 16, 4], strides = [1, 1, 1, 1]} : vector<1x20x20x4xf32> to vector<1x16x16x4xf32>
    %71 = vector.shape_cast %70 : vector<1x16x16x4xf32> to vector<256x4xf32>
    %72 = vector.extract_strided_slice %47 {offsets = [0, 2, 2, 0], sizes = [1, 16, 16, 4], strides = [1, 1, 1, 1]} : vector<1x20x20x4xf32> to vector<1x16x16x4xf32>
    %73 = vector.shape_cast %72 : vector<1x16x16x4xf32> to vector<256x4xf32>
    %74 = vector.extract_strided_slice %47 {offsets = [0, 2, 3, 0], sizes = [1, 16, 16, 4], strides = [1, 1, 1, 1]} : vector<1x20x20x4xf32> to vector<1x16x16x4xf32>
    %75 = vector.shape_cast %74 : vector<1x16x16x4xf32> to vector<256x4xf32>
    %76 = vector.extract_strided_slice %47 {offsets = [0, 2, 4, 0], sizes = [1, 16, 16, 4], strides = [1, 1, 1, 1]} : vector<1x20x20x4xf32> to vector<1x16x16x4xf32>
    %77 = vector.shape_cast %76 : vector<1x16x16x4xf32> to vector<256x4xf32>
    %78 = vector.extract_strided_slice %47 {offsets = [0, 3, 0, 0], sizes = [1, 16, 16, 4], strides = [1, 1, 1, 1]} : vector<1x20x20x4xf32> to vector<1x16x16x4xf32>
    %79 = vector.shape_cast %78 : vector<1x16x16x4xf32> to vector<256x4xf32>
    %80 = vector.extract_strided_slice %47 {offsets = [0, 3, 1, 0], sizes = [1, 16, 16, 4], strides = [1, 1, 1, 1]} : vector<1x20x20x4xf32> to vector<1x16x16x4xf32>
    %81 = vector.shape_cast %80 : vector<1x16x16x4xf32> to vector<256x4xf32>
    %82 = vector.extract_strided_slice %47 {offsets = [0, 3, 2, 0], sizes = [1, 16, 16, 4], strides = [1, 1, 1, 1]} : vector<1x20x20x4xf32> to vector<1x16x16x4xf32>
    %83 = vector.shape_cast %82 : vector<1x16x16x4xf32> to vector<256x4xf32>
    %84 = vector.extract_strided_slice %47 {offsets = [0, 3, 3, 0], sizes = [1, 16, 16, 4], strides = [1, 1, 1, 1]} : vector<1x20x20x4xf32> to vector<1x16x16x4xf32>
    %85 = vector.shape_cast %84 : vector<1x16x16x4xf32> to vector<256x4xf32>
    %86 = vector.extract_strided_slice %47 {offsets = [0, 3, 4, 0], sizes = [1, 16, 16, 4], strides = [1, 1, 1, 1]} : vector<1x20x20x4xf32> to vector<1x16x16x4xf32>
    %87 = vector.shape_cast %86 : vector<1x16x16x4xf32> to vector<256x4xf32>
    %88 = vector.extract_strided_slice %47 {offsets = [0, 4, 0, 0], sizes = [1, 16, 16, 4], strides = [1, 1, 1, 1]} : vector<1x20x20x4xf32> to vector<1x16x16x4xf32>
    %89 = vector.shape_cast %88 : vector<1x16x16x4xf32> to vector<256x4xf32>
    %90 = vector.extract_strided_slice %47 {offsets = [0, 4, 1, 0], sizes = [1, 16, 16, 4], strides = [1, 1, 1, 1]} : vector<1x20x20x4xf32> to vector<1x16x16x4xf32>
    %91 = vector.shape_cast %90 : vector<1x16x16x4xf32> to vector<256x4xf32>
    %92 = vector.extract_strided_slice %47 {offsets = [0, 4, 2, 0], sizes = [1, 16, 16, 4], strides = [1, 1, 1, 1]} : vector<1x20x20x4xf32> to vector<1x16x16x4xf32>
    %93 = vector.shape_cast %92 : vector<1x16x16x4xf32> to vector<256x4xf32>
    %94 = vector.extract_strided_slice %47 {offsets = [0, 4, 3, 0], sizes = [1, 16, 16, 4], strides = [1, 1, 1, 1]} : vector<1x20x20x4xf32> to vector<1x16x16x4xf32>
    %95 = vector.shape_cast %94 : vector<1x16x16x4xf32> to vector<256x4xf32>
    %96 = vector.extract_strided_slice %47 {offsets = [0, 4, 4, 0], sizes = [1, 16, 16, 4], strides = [1, 1, 1, 1]} : vector<1x20x20x4xf32> to vector<1x16x16x4xf32>
    %97 = vector.shape_cast %96 : vector<1x16x16x4xf32> to vector<256x4xf32>
    %98 = tpu.concatenate %49, %51, %53, %55, %57, %59, %61, %63, %65, %67, %69, %71, %73, %75, %77, %79 in 1 : vector<256x4xf32>, vector<256x4xf32>, vector<256x4xf32>, vector<256x4xf32>, vector<256x4xf32>, vector<256x4xf32>, vector<256x4xf32>, vector<256x4xf32>, vector<256x4xf32>, vector<256x4xf32>, vector<256x4xf32>, vector<256x4xf32>, vector<256x4xf32>, vector<256x4xf32>, vector<256x4xf32>, vector<256x4xf32> -> vector<256x64xf32>
    %99 = tpu.concatenate %81, %83, %85, %87, %89, %91, %93, %95, %97 in 1 : vector<256x4xf32>, vector<256x4xf32>, vector<256x4xf32>, vector<256x4xf32>, vector<256x4xf32>, vector<256x4xf32>, vector<256x4xf32>, vector<256x4xf32>, vector<256x4xf32> -> vector<256x36xf32>
    %100 = tpu.concatenate %98, %99 in 1 : vector<256x64xf32>, vector<256x36xf32> -> vector<256x100xf32>
    %c0_38 = arith.constant 0 : index
    %c0_39 = arith.constant 0 : index
    %101 = vector.load %arg6[%c0_38, %c0_39] : memref<100x8xf32, #tpu.memory_space<vmem>>, vector<100x8xf32>
    %cst_40 = arith.constant dense<0.000000e+00> : vector<256x8xf32>
    %102 = tpu.matmul %100, %101, %cst_40 {dimension_numbers = #tpu.dot_dimension_numbers<[1], [0], [0], [1], [0, 0, 1, 1], [], []>} : vector<256x100xf32>, vector<100x8xf32>, vector<256x8xf32> -> vector<256x8xf32>
    %c0_41 = arith.constant 0 : index
    %c0_42 = arith.constant 0 : index
    %103 = vector.load %arg7[%c0_41, %c0_42] : memref<1x8xf32, #tpu.memory_space<vmem>>, vector<1x8xf32>
    %104 = vector.broadcast %103 : vector<1x8xf32> to vector<256x8xf32>
    %105 = arith.addf %102, %104 : vector<256x8xf32>
    %cst_43 = arith.constant 0.000000e+00 : f32
    %106 = vector.broadcast %cst_43 : f32 to vector<256x8xf32>
    %107 = arith.maximumf %105, %106 : vector<256x8xf32>
    %cst_44 = arith.constant 0xFF800000 : f32
    %108 = vector.broadcast %cst_44 : f32 to vector<1x18x18x4xf32>
    %c0_45 = arith.constant 0 : index
    %c0_46 = arith.constant 0 : index
    %c0_47 = arith.constant 0 : index
    %c0_48 = arith.constant 0 : index
    %109 = vector.load %arg13[%c0_45, %c0_46, %c0_47, %c0_48] : memref<1x18x18x4xf32, #tpu.memory_space<vmem>>, vector<1x18x18x4xf32>
    tpu.vector_store %arg13[%c0_45, %c0_46, %c0_47, %c0_48], %108 {strides = array<i32>} : memref<1x18x18x4xf32, #tpu.memory_space<vmem>>, vector<1x18x18x4xf32>,
    %c0_49 = arith.constant 0 : index
    %c1_50 = arith.constant 1 : index
    %c1_51 = arith.constant 1 : index
    %c0_52 = arith.constant 0 : index
    %110 = vector.load %arg13[%c0_49, %c1_50, %c1_51, %c0_52] : memref<1x18x18x4xf32, #tpu.memory_space<vmem>>, vector<1x16x16x4xf32>
    tpu.vector_store %arg13[%c0_49, %c1_50, %c1_51, %c0_52], %0 {strides = array<i32>} : memref<1x18x18x4xf32, #tpu.memory_space<vmem>>, vector<1x16x16x4xf32>,
    %c0_53 = arith.constant 0 : index
    %c0_54 = arith.constant 0 : index
    %c0_55 = arith.constant 0 : index
    %c0_56 = arith.constant 0 : index
    %111 = vector.load %arg13[%c0_53, %c0_54, %c0_55, %c0_56] : memref<1x18x18x4xf32, #tpu.memory_space<vmem>>, vector<1x18x18x4xf32>
    %112 = vector.extract_strided_slice %111 {offsets = [0, 1, 1, 0], sizes = [1, 16, 16, 4], strides = [1, 1, 1, 1]} : vector<1x18x18x4xf32> to vector<1x16x16x4xf32>
    %113 = vector.extract_strided_slice %111 {offsets = [0, 0, 0, 0], sizes = [1, 16, 16, 4], strides = [1, 1, 1, 1]} : vector<1x18x18x4xf32> to vector<1x16x16x4xf32>
    %114 = arith.maximumf %112, %113 : vector<1x16x16x4xf32>
    %115 = vector.extract_strided_slice %111 {offsets = [0, 0, 1, 0], sizes = [1, 16, 16, 4], strides = [1, 1, 1, 1]} : vector<1x18x18x4xf32> to vector<1x16x16x4xf32>
    %116 = arith.maximumf %114, %115 : vector<1x16x16x4xf32>
    %117 = vector.extract_strided_slice %111 {offsets = [0, 0, 2, 0], sizes = [1, 16, 16, 4], strides = [1, 1, 1, 1]} : vector<1x18x18x4xf32> to vector<1x16x16x4xf32>
    %118 = arith.maximumf %116, %117 : vector<1x16x16x4xf32>
    %119 = vector.extract_strided_slice %111 {offsets = [0, 1, 0, 0], sizes = [1, 16, 16, 4], strides = [1, 1, 1, 1]} : vector<1x18x18x4xf32> to vector<1x16x16x4xf32>
    %120 = arith.maximumf %118, %119 : vector<1x16x16x4xf32>
    %121 = vector.extract_strided_slice %111 {offsets = [0, 1, 2, 0], sizes = [1, 16, 16, 4], strides = [1, 1, 1, 1]} : vector<1x18x18x4xf32> to vector<1x16x16x4xf32>
    %122 = arith.maximumf %120, %121 : vector<1x16x16x4xf32>
    %123 = vector.extract_strided_slice %111 {offsets = [0, 2, 0, 0], sizes = [1, 16, 16, 4], strides = [1, 1, 1, 1]} : vector<1x18x18x4xf32> to vector<1x16x16x4xf32>
    %124 = arith.maximumf %122, %123 : vector<1x16x16x4xf32>
    %125 = vector.extract_strided_slice %111 {offsets = [0, 2, 1, 0], sizes = [1, 16, 16, 4], strides = [1, 1, 1, 1]} : vector<1x18x18x4xf32> to vector<1x16x16x4xf32>
    %126 = arith.maximumf %124, %125 : vector<1x16x16x4xf32>
    %127 = vector.extract_strided_slice %111 {offsets = [0, 2, 2, 0], sizes = [1, 16, 16, 4], strides = [1, 1, 1, 1]} : vector<1x18x18x4xf32> to vector<1x16x16x4xf32>
    %128 = arith.maximumf %126, %127 : vector<1x16x16x4xf32>
    %129 = vector.shape_cast %128 : vector<1x16x16x4xf32> to vector<256x4xf32>
    %c0_57 = arith.constant 0 : index
    %c0_58 = arith.constant 0 : index
    %130 = vector.load %arg8[%c0_57, %c0_58] : memref<4x8xf32, #tpu.memory_space<vmem>>, vector<4x8xf32>
    %cst_59 = arith.constant dense<0.000000e+00> : vector<256x8xf32>
    %131 = tpu.matmul %129, %130, %cst_59 {dimension_numbers = #tpu.dot_dimension_numbers<[1], [0], [0], [1], [0, 0, 1, 1], [], []>} : vector<256x4xf32>, vector<4x8xf32>, vector<256x8xf32> -> vector<256x8xf32>
    %c0_60 = arith.constant 0 : index
    %c0_61 = arith.constant 0 : index
    %132 = vector.load %arg9[%c0_60, %c0_61] : memref<1x8xf32, #tpu.memory_space<vmem>>, vector<1x8xf32>
    %133 = vector.broadcast %132 : vector<1x8xf32> to vector<256x8xf32>
    %134 = arith.addf %131, %133 : vector<256x8xf32>
    %cst_62 = arith.constant 0.000000e+00 : f32
    %135 = vector.broadcast %cst_62 : f32 to vector<256x8xf32>
    %136 = arith.maximumf %134, %135 : vector<256x8xf32>
    %137 = tpu.concatenate %9, %42, %107, %136 in 1 : vector<256x8xf32>, vector<256x16xf32>, vector<256x8xf32>, vector<256x8xf32> -> vector<256x40xf32>
    %138 = vector.shape_cast %137 : vector<256x40xf32> to vector<1x16x16x40xf32>
    %c0_63 = arith.constant 0 : index
    %c0_64 = arith.constant 0 : index
    %c0_65 = arith.constant 0 : index
    %c0_66 = arith.constant 0 : index
    %139 = vector.load %arg10[%c0_63, %c0_64, %c0_65, %c0_66] : memref<1x16x16x40xf32, #tpu.memory_space<vmem>>, vector<1x16x16x40xf32>
    tpu.vector_store %arg10[%c0_63, %c0_64, %c0_65, %c0_66], %138 {strides = array<i32>} : memref<1x16x16x40xf32, #tpu.memory_space<vmem>>, vector<1x16x16x40xf32>,
    return
  }
  func.func @transform_0(%arg0: i32) -> (i32, i32, i32, i32) {
    %c0_i32 = arith.constant 0 : i32
    %c0_i32_0 = arith.constant 0 : i32
    %c0_i32_1 = arith.constant 0 : i32
    %c0_i32_2 = arith.constant 0 : i32
    return %arg0, %c0_i32, %c0_i32_0, %c0_i32_1 : i32, i32, i32, i32
  }
  func.func @transform_1(%arg0: i32) -> (i32, i32) {
    %c0_i32 = arith.constant 0 : i32
    %c0_i32_0 = arith.constant 0 : i32
    %c0_i32_1 = arith.constant 0 : i32
    return %c0_i32, %c0_i32_0 : i32, i32
  }
  func.func @transform_2(%arg0: i32) -> (i32, i32) {
    %c0_i32 = arith.constant 0 : i32
    %c0_i32_0 = arith.constant 0 : i32
    %c0_i32_1 = arith.constant 0 : i32
    return %c0_i32, %c0_i32_0 : i32, i32
  }
  func.func @transform_3(%arg0: i32) -> (i32, i32) {
    %c0_i32 = arith.constant 0 : i32
    %c0_i32_0 = arith.constant 0 : i32
    %c0_i32_1 = arith.constant 0 : i32
    return %c0_i32, %c0_i32_0 : i32, i32
  }
  func.func @transform_4(%arg0: i32) -> (i32, i32) {
    %c0_i32 = arith.constant 0 : i32
    %c0_i32_0 = arith.constant 0 : i32
    %c0_i32_1 = arith.constant 0 : i32
    return %c0_i32, %c0_i32_0 : i32, i32
  }
  func.func @transform_5(%arg0: i32) -> (i32, i32) {
    %c0_i32 = arith.constant 0 : i32
    %c0_i32_0 = arith.constant 0 : i32
    %c0_i32_1 = arith.constant 0 : i32
    return %c0_i32, %c0_i32_0 : i32, i32
  }
  func.func @transform_6(%arg0: i32) -> (i32, i32) {
    %c0_i32 = arith.constant 0 : i32
    %c0_i32_0 = arith.constant 0 : i32
    %c0_i32_1 = arith.constant 0 : i32
    return %c0_i32, %c0_i32_0 : i32, i32
  }
  func.func @transform_7(%arg0: i32) -> (i32, i32) {
    %c0_i32 = arith.constant 0 : i32
    %c0_i32_0 = arith.constant 0 : i32
    %c0_i32_1 = arith.constant 0 : i32
    return %c0_i32, %c0_i32_0 : i32, i32
  }
  func.func @transform_8(%arg0: i32) -> (i32, i32) {
    %c0_i32 = arith.constant 0 : i32
    %c0_i32_0 = arith.constant 0 : i32
    %c0_i32_1 = arith.constant 0 : i32
    return %c0_i32, %c0_i32_0 : i32, i32
  }
  func.func @transform_9(%arg0: i32) -> (i32, i32, i32, i32) {
    %c0_i32 = arith.constant 0 : i32
    %c0_i32_0 = arith.constant 0 : i32
    %c0_i32_1 = arith.constant 0 : i32
    %c0_i32_2 = arith.constant 0 : i32
    return %arg0, %c0_i32, %c0_i32_0, %c0_i32_1 : i32, i32, i32, i32
  }
}

</mosaic_0001>

<llo_original>
// kernel: inception_forward.1
$region0: #{inception_forward.1}
  #allocation0 [shape = 'u32[]', space=smem, size = 0x4, offset = 0x4, fixed_abs, tag = 'smem constant byte address 0x4 - core index']
  #allocation1 [shape = 'u32[144,128]{1,0:T(1,128)}', space=vmem, size = 0x12000, scoped, tag = 'internal scratch']
  #allocation2 [shape = 'f32[1,18,18,8]{3,2,1,0:T(8,128)}', space=vmem, size = 0x36000, scoped, tag = 'scratch operand']
  #allocation3 [shape = 'f32[1,20,20,4]{3,2,1,0:T(8,128)}', space=vmem, size = 0x3c000, scoped, tag = 'scratch operand']
  #allocation4 [shape = 'f32[1,18,18,4]{3,2,1,0:T(8,128)}', space=vmem, size = 0x36000, scoped, tag = 'scratch operand']
  %s0 = inlined_call_operand.vmem [shape: f32[2,16,16,4], index: 0, kind: input, shape index: {}]
  %s1 = inlined_call_operand.vmem [shape: f32[4,20], index: 1, kind: input, shape index: {}]
  %s2 = inlined_call_operand.vmem [shape: f32[1,20], index: 2, kind: input, shape index: {}]
  %s3 = inlined_call_operand.vmem [shape: f32[72,16], index: 3, kind: input, shape index: {}]
  %s4 = inlined_call_operand.vmem [shape: f32[1,16], index: 4, kind: input, shape index: {}]
  %s5 = inlined_call_operand.vmem [shape: f32[100,8], index: 5, kind: input, shape index: {}]
  %s6 = inlined_call_operand.vmem [shape: f32[1,8], index: 6, kind: input, shape index: {}]
  %s7 = inlined_call_operand.vmem [shape: f32[4,8], index: 7, kind: input, shape index: {}]
  %s8 = inlined_call_operand.vmem [shape: f32[1,8], index: 8, kind: input, shape index: {}]
  %s9 = inlined_call_operand.hbm [shape: f32[2,16,16,40], index: 9, kind: output, shape index: {}]
  %s10 = sld [smem:[#allocation0]]
  $region69: #{inception_forward.1} parent=0
    _
  %s12 = ssub.s32 1, %s10
  %s13 = scalar_select 0, %s12, %s10
  $region1: #{inception_forward.1} parent=0
    #allocation5 [shape = 'u8[262144]{0}', space=vmem, size = 0x40000, scoped, tag = 'output window, operand 0']
    #allocation6 [shape = 's32[2]{0}', space=sflag, size = 0x8, scoped, tag = 'scoped memory for inception_forward.1']
    %14 = vsyncpa [#allocation6], 0
    %s15 = scalar_lea.sflag [#allocation6], 1
    %16 = vsyncpa %s15, 0
    loop: start=0, step=1, limit=4
    $region2: #{inception_forward.1} parent=1 // loop_pre_header
      _
    $region3: #{inception_forward.1} parent=1 // loop_header
      %s18 = sphi 0, %s22
      %p19 = scmp.ge.s32.totalorder %s18, 4
      %s28 = sphi 0, %s30
      %s31 = sphi 0, %s28
      %s32 = sphi 0, %s31
      %s48 = sphi 0, %s32
      %s52 = sphi 0, %s52
      %s54 = sphi 0, %s52
      %s55 = sphi 0, %s54
      %s69 = sphi 0, %s55
      %s73 = sphi 0, %s73
      %s75 = sphi 0, %s73
      %s76 = sphi 0, %s75
      %s90 = sphi 0, %s76
      %s94 = sphi 0, %s94
      %s96 = sphi 0, %s94
      %s97 = sphi 0, %s96
      %s111 = sphi 0, %s97
      %s115 = sphi 0, %s115
      %s117 = sphi 0, %s115
      %s118 = sphi 0, %s117
      %s132 = sphi 0, %s118
      %s136 = sphi 0, %s136
      %s138 = sphi 0, %s136
      %s139 = sphi 0, %s138
      %s153 = sphi 0, %s139
      %s157 = sphi 0, %s157
      %s159 = sphi 0, %s157
      %s160 = sphi 0, %s159
      %s174 = sphi 0, %s160
      %s178 = sphi 0, %s178
      %s180 = sphi 0, %s178
      %s181 = sphi 0, %s180
      %s195 = sphi 0, %s181
      %s199 = sphi 0, %s199
      %s201 = sphi 0, %s199
      %s202 = sphi 0, %s201
      %s216 = sphi 0, %s202
      %s222 = sphi 0, %s224
      %s225 = sphi 0, %s222
      %s226 = sphi 0, %s225
      %s242 = sphi 0, %s226
    $region4: #{inception_forward.1} parent=1 // loop_header_branch
      %21 = sbr.rel (%p19) target = $region8
    $region5: #{inception_forward.1} parent=1 // loop_body
      %s23 = ssub.s32 %s18, 1
      %s24 = ssub.s32 %s18, 2
      %s25 = sadd.s32 %s18, 1
      %s26 = ssub.s32 %s18, %s25
      %p27 = scmp.eq.s32.totalorder %s26, 0
      %s29 = sadd.s32 %s28, 1
      %s30 = scalar_select %p27, %s28, %s29
      %p33 = pneg %p27
      %p34 = scmp.eq.s32.totalorder %s18, 1
      %p35 = por %p33, %p34
      %p36 = scmp.ne.s32.totalorder %s28, %s31
      %p37 = scmp.eq.s32.totalorder %s18, 0
      %p38 = por %p36, %p37
      %p39 = scmp.ne.s32.totalorder %s28, %s31
      %p40 = scmp.eq.s32.totalorder %s23, 1
      %p41 = por %p39, %p40
      %p42 = scmp.ne.s32.totalorder %s31, %s32
      %p43 = scmp.eq.s32.totalorder %s23, 0
      %p44 = por %p42, %p43
      %p45 = scmp.ne.s32.totalorder %s31, %s32
      %p46 = scmp.eq.s32.totalorder %s24, 1
      %p47 = por %p45, %p46
      %p49 = scmp.ne.s32.totalorder %s32, %s48
      %p50 = scmp.eq.s32.totalorder %s24, 0
      %p51 = por %p49, %p50
      %s53 = sadd.s32 %s52, 1
      %p56 = scmp.eq.s32.totalorder %s18, 1
      %p57 = scmp.ne.s32.totalorder %s52, %s54
      %p58 = scmp.eq.s32.totalorder %s18, 0
      %p59 = por %p57, %p58
      %p60 = scmp.ne.s32.totalorder %s52, %s54
      %p61 = scmp.eq.s32.totalorder %s23, 1
      %p62 = por %p60, %p61
      %p63 = scmp.ne.s32.totalorder %s54, %s55
      %p64 = scmp.eq.s32.totalorder %s23, 0
      %p65 = por %p63, %p64
      %p66 = scmp.ne.s32.totalorder %s54, %s55
      %p67 = scmp.eq.s32.totalorder %s24, 1
      %p68 = por %p66, %p67
      %p70 = scmp.ne.s32.totalorder %s55, %s69
      %p71 = scmp.eq.s32.totalorder %s24, 0
      %p72 = por %p70, %p71
      %s74 = sadd.s32 %s73, 1
      %p77 = scmp.eq.s32.totalorder %s18, 1
      %p78 = scmp.ne.s32.totalorder %s73, %s75
      %p79 = scmp.eq.s32.totalorder %s18, 0
      %p80 = por %p78, %p79
      %p81 = scmp.ne.s32.totalorder %s73, %s75
      %p82 = scmp.eq.s32.totalorder %s23, 1
      %p83 = por %p81, %p82
      %p84 = scmp.ne.s32.totalorder %s75, %s76
      %p85 = scmp.eq.s32.totalorder %s23, 0
      %p86 = por %p84, %p85
      %p87 = scmp.ne.s32.totalorder %s75, %s76
      %p88 = scmp.eq.s32.totalorder %s24, 1
      %p89 = por %p87, %p88
      %p91 = scmp.ne.s32.totalorder %s76, %s90
      %p92 = scmp.eq.s32.totalorder %s24, 0
      %p93 = por %p91, %p92
      %s95 = sadd.s32 %s94, 1
      %p98 = scmp.eq.s32.totalorder %s18, 1
      %p99 = scmp.ne.s32.totalorder %s94, %s96
      %p100 = scmp.eq.s32.totalorder %s18, 0
      %p101 = por %p99, %p100
      %p102 = scmp.ne.s32.totalorder %s94, %s96
      %p103 = scmp.eq.s32.totalorder %s23, 1
      %p104 = por %p102, %p103
      %p105 = scmp.ne.s32.totalorder %s96, %s97
      %p106 = scmp.eq.s32.totalorder %s23, 0
      %p107 = por %p105, %p106
      %p108 = scmp.ne.s32.totalorder %s96, %s97
      %p109 = scmp.eq.s32.totalorder %s24, 1
      %p110 = por %p108, %p109
      %p112 = scmp.ne.s32.totalorder %s97, %s111
      %p113 = scmp.eq.s32.totalorder %s24, 0
      %p114 = por %p112, %p113
      %s116 = sadd.s32 %s115, 1
      %p119 = scmp.eq.s32.totalorder %s18, 1
      %p120 = scmp.ne.s32.totalorder %s115, %s117
      %p121 = scmp.eq.s32.totalorder %s18, 0
      %p122 = por %p120, %p121
      %p123 = scmp.ne.s32.totalorder %s115, %s117
      %p124 = scmp.eq.s32.totalorder %s23, 1
      %p125 = por %p123, %p124
      %p126 = scmp.ne.s32.totalorder %s117, %s118
      %p127 = scmp.eq.s32.totalorder %s23, 0
      %p128 = por %p126, %p127
      %p129 = scmp.ne.s32.totalorder %s117, %s118
      %p130 = scmp.eq.s32.totalorder %s24, 1
      %p131 = por %p129, %p130
      %p133 = scmp.ne.s32.totalorder %s118, %s132
      %p134 = scmp.eq.s32.totalorder %s24, 0
      %p135 = por %p133, %p134
      %s137 = sadd.s32 %s136, 1
      %p140 = scmp.eq.s32.totalorder %s18, 1
      %p141 = scmp.ne.s32.totalorder %s136, %s138
      %p142 = scmp.eq.s32.totalorder %s18, 0
      %p143 = por %p141, %p142
      %p144 = scmp.ne.s32.totalorder %s136, %s138
      %p145 = scmp.eq.s32.totalorder %s23, 1
      %p146 = por %p144, %p145
      %p147 = scmp.ne.s32.totalorder %s138, %s139
      %p148 = scmp.eq.s32.totalorder %s23, 0
      %p149 = por %p147, %p148
      %p150 = scmp.ne.s32.totalorder %s138, %s139
      %p151 = scmp.eq.s32.totalorder %s24, 1
      %p152 = por %p150, %p151
      %p154 = scmp.ne.s32.totalorder %s139, %s153
      %p155 = scmp.eq.s32.totalorder %s24, 0
      %p156 = por %p154, %p155
      %s158 = sadd.s32 %s157, 1
      %p161 = scmp.eq.s32.totalorder %s18, 1
      %p162 = scmp.ne.s32.totalorder %s157, %s159
      %p163 = scmp.eq.s32.totalorder %s18, 0
      %p164 = por %p162, %p163
      %p165 = scmp.ne.s32.totalorder %s157, %s159
      %p166 = scmp.eq.s32.totalorder %s23, 1
      %p167 = por %p165, %p166
      %p168 = scmp.ne.s32.totalorder %s159, %s160
      %p169 = scmp.eq.s32.totalorder %s23, 0
      %p170 = por %p168, %p169
      %p171 = scmp.ne.s32.totalorder %s159, %s160
      %p172 = scmp.eq.s32.totalorder %s24, 1
      %p173 = por %p171, %p172
      %p175 = scmp.ne.s32.totalorder %s160, %s174
      %p176 = scmp.eq.s32.totalorder %s24, 0
      %p177 = por %p175, %p176
      %s179 = sadd.s32 %s178, 1
      %p182 = scmp.eq.s32.totalorder %s18, 1
      %p183 = scmp.ne.s32.totalorder %s178, %s180
      %p184 = scmp.eq.s32.totalorder %s18, 0
      %p185 = por %p183, %p184
      %p186 = scmp.ne.s32.totalorder %s178, %s180
      %p187 = scmp.eq.s32.totalorder %s23, 1
      %p188 = por %p186, %p187
      %p189 = scmp.ne.s32.totalorder %s180, %s181
      %p190 = scmp.eq.s32.totalorder %s23, 0
      %p191 = por %p189, %p190
      %p192 = scmp.ne.s32.totalorder %s180, %s181
      %p193 = scmp.eq.s32.totalorder %s24, 1
      %p194 = por %p192, %p193
      %p196 = scmp.ne.s32.totalorder %s181, %s195
      %p197 = scmp.eq.s32.totalorder %s24, 0
      %p198 = por %p196, %p197
      %s200 = sadd.s32 %s199, 1
      %p203 = scmp.eq.s32.totalorder %s18, 1
      %p204 = scmp.ne.s32.totalorder %s199, %s201
      %p205 = scmp.eq.s32.totalorder %s18, 0
      %p206 = por %p204, %p205
      %p207 = scmp.ne.s32.totalorder %s199, %s201
      %p208 = scmp.eq.s32.totalorder %s23, 1
      %p209 = por %p207, %p208
      %p210 = scmp.ne.s32.totalorder %s201, %s202
      %p211 = scmp.eq.s32.totalorder %s23, 0
      %p212 = por %p210, %p211
      %p213 = scmp.ne.s32.totalorder %s201, %s202
      %p214 = scmp.eq.s32.totalorder %s24, 1
      %p215 = por %p213, %p214
      %p217 = scmp.ne.s32.totalorder %s202, %s216
      %p218 = scmp.eq.s32.totalorder %s24, 0
      %p219 = por %p217, %p218
      %s220 = ssub.s32 %s18, %s25
      %p221 = scmp.eq.s32.totalorder %s220, 0
      %s223 = sadd.s32 %s222, 1
      %s224 = scalar_select %p221, %s222, %s223
      %p227 = pneg %p221
      %p228 = scmp.eq.s32.totalorder %s18, 1
      %p229 = por %p227, %p228
      %p230 = scmp.ne.s32.totalorder %s222, %s225
      %p231 = scmp.eq.s32.totalorder %s18, 0
      %p232 = por %p230, %p231
      %p233 = scmp.ne.s32.totalorder %s222, %s225
      %p234 = scmp.eq.s32.totalorder %s23, 1
      %p235 = por %p233, %p234
      %p236 = scmp.ne.s32.totalorder %s225, %s226
      %p237 = scmp.eq.s32.totalorder %s23, 0
      %p238 = por %p236, %p237
      %p239 = scmp.ne.s32.totalorder %s225, %s226
      %p240 = scmp.eq.s32.totalorder %s24, 1
      %p241 = por %p239, %p240
      %p243 = scmp.ne.s32.totalorder %s226, %s242
      %p244 = scmp.eq.s32.totalorder %s24, 0
      %p245 = por %p243, %p244
      %p246 = scmp.le.s32.totalorder 1, %s18
      %p247 = scmp.lt.s32.totalorder %s18, 3
      %p248 = pnand %p246, %p247
      %p249 = pneg %p248
      // Predicated region
      $region9: #{inception_forward.1} parent=5 // pred_check
        _
      $region10: #{inception_forward.1} parent=5 // pred_check_branch
        %251 = sbr.rel (%p248) target = $region12
      $region11: #{inception_forward.1} parent=5 // pred_region
        %s252 = ssub.s32 %s18, 1
        // Predicated region
        $region13: #{inception_forward.1} parent=11 // pred_check
          %p253 = pneg %p65
        $region14: #{inception_forward.1} parent=11 // pred_check_branch
          %255 = sbr.rel (%p253) target = $region16
        $region15: #{inception_forward.1} parent=11 // pred_region
          _
        $region16: #{inception_forward.1} parent=11 // pred_fallthru
          _
        // Predicated region
        $region17: #{inception_forward.1} parent=11 // pred_check
          %p256 = pneg %p86
        $region18: #{inception_forward.1} parent=11 // pred_check_branch
          %258 = sbr.rel (%p256) target = $region20
        $region19: #{inception_forward.1} parent=11 // pred_region
          _
        $region20: #{inception_forward.1} parent=11 // pred_fallthru
          _
        // Predicated region
        $region21: #{inception_forward.1} parent=11 // pred_check
          %p259 = pneg %p107
        $region22: #{inception_forward.1} parent=11 // pred_check_branch
          %261 = sbr.rel (%p259) target = $region24
        $region23: #{inception_forward.1} parent=11 // pred_region
          _
        $region24: #{inception_forward.1} parent=11 // pred_fallthru
          _
        // Predicated region
        $region25: #{inception_forward.1} parent=11 // pred_check
          %p262 = pneg %p128
        $region26: #{inception_forward.1} parent=11 // pred_check_branch
          %264 = sbr.rel (%p262) target = $region28
        $region27: #{inception_forward.1} parent=11 // pred_region
          _
        $region28: #{inception_forward.1} parent=11 // pred_fallthru
          _
        // Predicated region
        $region29: #{inception_forward.1} parent=11 // pred_check
          %p265 = pneg %p149
        $region30: #{inception_forward.1} parent=11 // pred_check_branch
          %267 = sbr.rel (%p265) target = $region32
        $region31: #{inception_forward.1} parent=11 // pred_region
          _
        $region32: #{inception_forward.1} parent=11 // pred_fallthru
          _
        // Predicated region
        $region33: #{inception_forward.1} parent=11 // pred_check
          %p268 = pneg %p170
        $region34: #{inception_forward.1} parent=11 // pred_check_branch
          %270 = sbr.rel (%p268) target = $region36
        $region35: #{inception_forward.1} parent=11 // pred_region
          _
        $region36: #{inception_forward.1} parent=11 // pred_fallthru
          _
        // Predicated region
        $region37: #{inception_forward.1} parent=11 // pred_check
          %p271 = pneg %p191
        $region38: #{inception_forward.1} parent=11 // pred_check_branch
          %273 = sbr.rel (%p271) target = $region40
        $region39: #{inception_forward.1} parent=11 // pred_region
          _
        $region40: #{inception_forward.1} parent=11 // pred_fallthru
          _
        // Predicated region
        $region41: #{inception_forward.1} parent=11 // pred_check
          %p274 = pneg %p212
        $region42: #{inception_forward.1} parent=11 // pred_check_branch
          %276 = sbr.rel (%p274) target = $region44
        $region43: #{inception_forward.1} parent=11 // pred_region
          _
        $region44: #{inception_forward.1} parent=11 // pred_fallthru
          _
      $region12: #{inception_forward.1} parent=5 // pred_fallthru
        _
      %p277 = scmp.lt.s32.totalorder %s18, 2
      // Predicated region
      $region45: #{inception_forward.1} parent=5 // pred_check
        %p278 = pneg %p277
      $region46: #{inception_forward.1} parent=5 // pred_check_branch
        %280 = sbr.rel (%p278) target = $region48
      $region47: #{inception_forward.1} parent=5 // pred_region
        // Predicated region
        $region49: #{inception_forward.1} parent=47 // pred_check
          %p281 = pneg %p38
        $region50: #{inception_forward.1} parent=47 // pred_check_branch
          %283 = sbr.rel (%p281) target = $region52
        $region51: #{inception_forward.1} parent=47 // pred_region
          %p284 = scmp.lt.s32.totalorder %s18, 1
          %s285 = scalar_select %p284, %s18, 1
          %s286 = smul.addr %s285, 32
          %s287 = smul.addr %s286, 8
          %s288 = scalar_lea.vmem %s0, %s287
        $region52: #{inception_forward.1} parent=47 // pred_fallthru
          _
      $region48: #{inception_forward.1} parent=5 // pred_fallthru
        _
      %p289 = scmp.le.s32.totalorder 1, %s18
      %p290 = scmp.lt.s32.totalorder %s18, 3
      %p291 = pnand %p289, %p290
      %p292 = pneg %p291
      // Predicated region
      $region53: #{inception_forward.1} parent=5 // pred_check
        _
      $region54: #{inception_forward.1} parent=5 // pred_check_branch
        %294 = sbr.rel (%p291) target = $region56
      $region55: #{inception_forward.1} parent=5 // pred_region
        %s295 = ssub.s32 %s18, 1
        %p296 = scmp.lt.s32.totalorder %s23, 1
        %s297 = scalar_select %p296, %s23, 1
        %s298 = smul.addr %s297, 32
        %s299 = smul.addr %s298, 8
        %s300 = scalar_lea.vmem %s0, %s299
        %p301 = pneg %p44
        %p302 = pneg %p41
        %p303 = pneg %p65
        %p304 = pneg %p62
        %p305 = pneg %p86
        %p306 = pneg %p83
        %p307 = pneg %p107
        %p308 = pneg %p104
        %p309 = pneg %p128
        %p310 = pneg %p125
        %p311 = pneg %p149
        %p312 = pneg %p146
        %p313 = pneg %p170
        %p314 = pneg %p167
        %p315 = pneg %p191
        %p316 = pneg %p188
        %p317 = pneg %p212
        %p318 = pneg %p209
        %p319 = pneg %p238
        %p320 = pneg %p235
        %s321 = sand.u32 %s225, 1
        %s322 = scalar_lea.sflag [#allocation6], %s321
        %s323 = sand.u32 %s225, 1
        %s324 = smul.addr %s323, 256
        %s325 = scalar_lea.vmem [#allocation5], %s324
        %p326 = scmp.lt.s32.totalorder %s23, 1
        %s327 = scalar_select %p326, %s23, 1
        %s328 = smul.addr %s327, 32
        %s329 = smul.addr %s328, 8
        %s330 = scalar_lea.vmem %s0, %s329
        %v331 = vld [vmem:[%s330] sm:$0xff]
        %v332 = vld [vmem:[%s330 + $0x8] sm:$0xff]
        %v333 = vld [vmem:[%s330 + $0x10] sm:$0xff]
        %v334 = vld [vmem:[%s330 + $0x18] sm:$0xff]
        %v335 = vld [vmem:[%s330 + $0x20] sm:$0xff]
        %v336 = vld [vmem:[%s330 + $0x28] sm:$0xff]
        %v337 = vld [vmem:[%s330 + $0x30] sm:$0xff]
        %v338 = vld [vmem:[%s330 + $0x38] sm:$0xff]
        %v339 = vld [vmem:[%s330 + $0x40] sm:$0xff]
        %v340 = vld [vmem:[%s330 + $0x48] sm:$0xff]
        %v341 = vld [vmem:[%s330 + $0x50] sm:$0xff]
        %v342 = vld [vmem:[%s330 + $0x58] sm:$0xff]
        %v343 = vld [vmem:[%s330 + $0x60] sm:$0xff]
        %v344 = vld [vmem:[%s330 + $0x68] sm:$0xff]
        %v345 = vld [vmem:[%s330 + $0x70] sm:$0xff]
        %v346 = vld [vmem:[%s330 + $0x78] sm:$0xff]
        %v347 = vld [vmem:[%s330 + $0x80] sm:$0xff]
        %v348 = vld [vmem:[%s330 + $0x88] sm:$0xff]
        %v349 = vld [vmem:[%s330 + $0x90] sm:$0xff]
        %v350 = vld [vmem:[%s330 + $0x98] sm:$0xff]
        %v351 = vld [vmem:[%s330 + $0xa0] sm:$0xff]
        %v352 = vld [vmem:[%s330 + $0xa8] sm:$0xff]
        %v353 = vld [vmem:[%s330 + $0xb0] sm:$0xff]
        %v354 = vld [vmem:[%s330 + $0xb8] sm:$0xff]
        %v355 = vld [vmem:[%s330 + $0xc0] sm:$0xff]
        %v356 = vld [vmem:[%s330 + $0xc8] sm:$0xff]
        %v357 = vld [vmem:[%s330 + $0xd0] sm:$0xff]
        %v358 = vld [vmem:[%s330 + $0xd8] sm:$0xff]
        %v359 = vld [vmem:[%s330 + $0xe0] sm:$0xff]
        %v360 = vld [vmem:[%s330 + $0xe8] sm:$0xff]
        %v361 = vld [vmem:[%s330 + $0xf0] sm:$0xff]
        %v362 = vld [vmem:[%s330 + $0xf8] sm:$0xff]
        %v363 = vld [vmem:[%s1] sm:$0xf]
        %v364 = vld [vmem:[%s2] sm:$0x1]
        %v366 = vlaneseq
        %v367 = vshrl.u32 %v366, 7
        %v368 = vsub.s32 0, %v367
        %v369 = vrot.slane %v364, %v368
        %vm371 = vcmask 31744
        %v373 = vsel %vm371, %v331, 0
        %v376 = vsel %vm371, %v332, 0
        %v379 = vsel %vm371, %v333, 0
        %v382 = vsel %vm371, %v334, 0
        %v385 = vsel %vm371, %v335, 0
        %v388 = vsel %vm371, %v336, 0
        %v391 = vsel %vm371, %v337, 0
        %v394 = vsel %vm371, %v338, 0
        %v397 = vsel %vm371, %v339, 0
        %v400 = vsel %vm371, %v340, 0
        %v403 = vsel %vm371, %v341, 0
        %v406 = vsel %vm371, %v342, 0
        %v409 = vsel %vm371, %v343, 0
        %v412 = vsel %vm371, %v344, 0
        %v415 = vsel %vm371, %v345, 0
        %v418 = vsel %vm371, %v346, 0
        %v421 = vsel %vm371, %v347, 0
        %v424 = vsel %vm371, %v348, 0
        %v427 = vsel %vm371, %v349, 0
        %v430 = vsel %vm371, %v350, 0
        %v433 = vsel %vm371, %v351, 0
        %v436 = vsel %vm371, %v352, 0
        %v439 = vsel %vm371, %v353, 0
        %v442 = vsel %vm371, %v354, 0
        %v445 = vsel %vm371, %v355, 0
        %v448 = vsel %vm371, %v356, 0
        %v451 = vsel %vm371, %v357, 0
        %v454 = vsel %vm371, %v358, 0
        %v457 = vsel %vm371, %v359, 0
        %v460 = vsel %vm371, %v360, 0
        %v463 = vsel %vm371, %v361, 0
        %v466 = vsel %vm371, %v362, 0
        %vm468 = vcmask 1043456
        %v470 = vsel %vm468, %v363, 0
        %472 = vmatprep.subr.mxu0 0.0
        %473 = vmatpush1.msra.mxu0 %v470
        %474 = vmatprep.subr.mxu0 0.0
        %475 = vmatpush1.msra.mxu0 0.0
        %476 = vmatprep.subr.mxu0 0.0
        %477 = vmatpush1.msra.mxu0 0.0
        %478 = vmatprep.subr.mxu0 0.0
        %479 = vmatpush1.msra.mxu0 0.0
        %480 = vmatprep.subr.mxu0 0.0
        %481 = vmatpush1.msra.mxu0 0.0
        %482 = vmatprep.subr.mxu0 0.0
        %483 = vmatpush1.msra.mxu0 0.0
        %484 = vmatprep.subr.mxu0 0.0
        %485 = vmatpush1.msra.mxu0 0.0
        %486 = vmatprep.subr.mxu0 0.0
        %487 = vmatpush1.msra.mxu0 0.0
        %488 = vmatprep.subr.mxu0 0.0
        %489 = vmatpush1.msra.mxu0 0.0
        %490 = vmatprep.subr.mxu0 0.0
        %491 = vmatpush1.msra.mxu0 0.0
        %492 = vmatprep.subr.mxu0 0.0
        %493 = vmatpush1.msra.mxu0 0.0
        %494 = vmatprep.subr.mxu0 0.0
        %495 = vmatpush1.msra.mxu0 0.0
        %496 = vmatprep.subr.mxu0 0.0
        %497 = vmatpush1.msra.mxu0 0.0
        %498 = vmatprep.subr.mxu0 0.0
        %499 = vmatpush1.msra.mxu0 0.0
        %500 = vmatprep.subr.mxu0 0.0
        %501 = vmatpush1.msra.mxu0 0.0
        %502 = vmatprep.subr.mxu0 0.0
        %503 = vmatpush1.msra.mxu0 0.0
        %504 = vmatprep.subr.mxu0 0.0
        %505 = vmatpush1.msra.mxu0 0.0
        %506 = vmatprep.subr.mxu0 0.0
        %507 = vmatpush1.msra.mxu0 0.0
        %508 = vmatprep.subr.mxu0 0.0
        %509 = vmatpush1.msra.mxu0 0.0
        %510 = vmatprep.subr.mxu0 0.0
        %511 = vmatpush1.msra.mxu0 0.0
        %512 = vmatprep.subr.mxu0 0.0
        %513 = vmatpush1.msra.mxu0 0.0
        %514 = vmatprep.subr.mxu0 0.0
        %515 = vmatpush1.msra.mxu0 0.0
        %516 = vmatprep.subr.mxu0 0.0
        %517 = vmatpush1.msra.mxu0 0.0
        %518 = vmatprep.subr.mxu0 0.0
        %519 = vmatpush1.msra.mxu0 0.0
        %520 = vmatprep.subr.mxu0 0.0
        %521 = vmatpush1.msra.mxu0 0.0
        %522 = vmatprep.subr.mxu0 0.0
        %523 = vmatpush1.msra.mxu0 0.0
        %524 = vmatprep.subr.mxu0 0.0
        %525 = vmatpush1.msra.mxu0 0.0
        %526 = vmatprep.subr.mxu0 0.0
        %527 = vmatpush1.msra.mxu0 0.0
        %528 = vmatprep.subr.mxu0 0.0
        %529 = vmatpush1.msra.mxu0 0.0
        %530 = vmatprep.subr.mxu0 0.0
        %531 = vmatpush1.msra.mxu0 0.0
        %532 = vmatprep.subr.mxu0 0.0
        %533 = vmatpush1.msra.mxu0 0.0
        %534 = vmatprep.subr.mxu0 0.0
        %535 = vmatpush1.msra.mxu0 0.0
        %536 = vmatprep.mubr.f32.mxu0 0.0
        %537 = vmatmul.mubr.f32.gmra.mrb[0].mxu0 %v373
        %v538 = vpop.f32.mrb[0].mxu0
        %v539 = vadd.f32 %v369, %v538
        %v540 = vpop.f32.mrb[0].mxu0
        %541 = vmatprep.mubr.f32.mxu0 0.0
        %542 = vmatmul.mubr.f32.gmra.mrb[0].mxu0 %v376
        %v543 = vpop.f32.mrb[0].mxu0
        %v544 = vadd.f32 %v369, %v543
        %v545 = vpop.f32.mrb[0].mxu0
        %546 = vmatprep.mubr.f32.mxu0 0.0
        %547 = vmatmul.mubr.f32.gmra.mrb[0].mxu0 %v379
        %v548 = vpop.f32.mrb[0].mxu0
        %v549 = vadd.f32 %v369, %v548
        %v550 = vpop.f32.mrb[0].mxu0
        %551 = vmatprep.mubr.f32.mxu0 0.0
        %552 = vmatmul.mubr.f32.gmra.mrb[0].mxu0 %v382
        %v553 = vpop.f32.mrb[0].mxu0
        %v554 = vadd.f32 %v369, %v553
        %v555 = vpop.f32.mrb[0].mxu0
        %556 = vmatprep.mubr.f32.mxu0 0.0
        %557 = vmatmul.mubr.f32.gmra.mrb[0].mxu0 %v385
        %v558 = vpop.f32.mrb[0].mxu0
        %v559 = vadd.f32 %v369, %v558
        %v560 = vpop.f32.mrb[0].mxu0
        %561 = vmatprep.mubr.f32.mxu0 0.0
        %562 = vmatmul.mubr.f32.gmra.mrb[0].mxu0 %v388
        %v563 = vpop.f32.mrb[0].mxu0
        %v564 = vadd.f32 %v369, %v563
        %v565 = vpop.f32.mrb[0].mxu0
        %566 = vmatprep.mubr.f32.mxu0 0.0
        %567 = vmatmul.mubr.f32.gmra.mrb[0].mxu0 %v391
        %v568 = vpop.f32.mrb[0].mxu0
        %v569 = vadd.f32 %v369, %v568
        %v570 = vpop.f32.mrb[0].mxu0
        %571 = vmatprep.mubr.f32.mxu0 0.0
        %572 = vmatmul.mubr.f32.gmra.mrb[0].mxu0 %v394
        %v573 = vpop.f32.mrb[0].mxu0
        %v574 = vadd.f32 %v369, %v573
        %v575 = vpop.f32.mrb[0].mxu0
        %576 = vmatprep.mubr.f32.mxu0 0.0
        %577 = vmatmul.mubr.f32.gmra.mrb[0].mxu0 %v397
        %v578 = vpop.f32.mrb[0].mxu0
        %v579 = vadd.f32 %v369, %v578
        %v580 = vpop.f32.mrb[0].mxu0
        %581 = vmatprep.mubr.f32.mxu0 0.0
        %582 = vmatmul.mubr.f32.gmra.mrb[0].mxu0 %v400
        %v583 = vpop.f32.mrb[0].mxu0
        %v584 = vadd.f32 %v369, %v583
        %v585 = vpop.f32.mrb[0].mxu0
        %586 = vmatprep.mubr.f32.mxu0 0.0
        %587 = vmatmul.mubr.f32.gmra.mrb[0].mxu0 %v403
        %v588 = vpop.f32.mrb[0].mxu0
        %v589 = vadd.f32 %v369, %v588
        %v590 = vpop.f32.mrb[0].mxu0
        %591 = vmatprep.mubr.f32.mxu0 0.0
        %592 = vmatmul.mubr.f32.gmra.mrb[0].mxu0 %v406
        %v593 = vpop.f32.mrb[0].mxu0
        %v594 = vadd.f32 %v369, %v593
        %v595 = vpop.f32.mrb[0].mxu0
        %596 = vmatprep.mubr.f32.mxu0 0.0
        %597 = vmatmul.mubr.f32.gmra.mrb[0].mxu0 %v409
        %v598 = vpop.f32.mrb[0].mxu0
        %v599 = vadd.f32 %v369, %v598
        %v600 = vpop.f32.mrb[0].mxu0
        %601 = vmatprep.mubr.f32.mxu0 0.0
        %602 = vmatmul.mubr.f32.gmra.mrb[0].mxu0 %v412
        %v603 = vpop.f32.mrb[0].mxu0
        %v604 = vadd.f32 %v369, %v603
        %v605 = vpop.f32.mrb[0].mxu0
        %606 = vmatprep.mubr.f32.mxu0 0.0
        %607 = vmatmul.mubr.f32.gmra.mrb[0].mxu0 %v415
        %v608 = vpop.f32.mrb[0].mxu0
        %v609 = vadd.f32 %v369, %v608
        %v610 = vpop.f32.mrb[0].mxu0
        %611 = vmatprep.mubr.f32.mxu0 0.0
        %612 = vmatmul.mubr.f32.gmra.mrb[0].mxu0 %v418
        %v613 = vpop.f32.mrb[0].mxu0
        %v614 = vadd.f32 %v369, %v613
        %v615 = vpop.f32.mrb[0].mxu0
        %616 = vmatprep.mubr.f32.mxu0 0.0
        %617 = vmatmul.mubr.f32.gmra.mrb[0].mxu0 %v421
        %v618 = vpop.f32.mrb[0].mxu0
        %v619 = vadd.f32 %v369, %v618
        %v620 = vpop.f32.mrb[0].mxu0
        %621 = vmatprep.mubr.f32.mxu0 0.0
        %622 = vmatmul.mubr.f32.gmra.mrb[0].mxu0 %v424
        %v623 = vpop.f32.mrb[0].mxu0
        %v624 = vadd.f32 %v369, %v623
        %v625 = vpop.f32.mrb[0].mxu0
        %626 = vmatprep.mubr.f32.mxu0 0.0
        %627 = vmatmul.mubr.f32.gmra.mrb[0].mxu0 %v427
        %v628 = vpop.f32.mrb[0].mxu0
        %v629 = vadd.f32 %v369, %v628
        %v630 = vpop.f32.mrb[0].mxu0
        %631 = vmatprep.mubr.f32.mxu0 0.0
        %632 = vmatmul.mubr.f32.gmra.mrb[0].mxu0 %v430
        %v633 = vpop.f32.mrb[0].mxu0
        %v634 = vadd.f32 %v369, %v633
        %v635 = vpop.f32.mrb[0].mxu0
        %636 = vmatprep.mubr.f32.mxu0 0.0
        %637 = vmatmul.mubr.f32.gmra.mrb[0].mxu0 %v433
        %v638 = vpop.f32.mrb[0].mxu0
        %v639 = vadd.f32 %v369, %v638
        %v640 = vpop.f32.mrb[0].mxu0
        %641 = vmatprep.mubr.f32.mxu0 0.0
        %642 = vmatmul.mubr.f32.gmra.mrb[0].mxu0 %v436
        %v643 = vpop.f32.mrb[0].mxu0
        %v644 = vadd.f32 %v369, %v643
        %v645 = vpop.f32.mrb[0].mxu0
        %646 = vmatprep.mubr.f32.mxu0 0.0
        %647 = vmatmul.mubr.f32.gmra.mrb[0].mxu0 %v439
        %v648 = vpop.f32.mrb[0].mxu0
        %v649 = vadd.f32 %v369, %v648
        %v650 = vpop.f32.mrb[0].mxu0
        %651 = vmatprep.mubr.f32.mxu0 0.0
        %652 = vmatmul.mubr.f32.gmra.mrb[0].mxu0 %v442
        %v653 = vpop.f32.mrb[0].mxu0
        %v654 = vadd.f32 %v369, %v653
        %v655 = vpop.f32.mrb[0].mxu0
        %656 = vmatprep.mubr.f32.mxu0 0.0
        %657 = vmatmul.mubr.f32.gmra.mrb[0].mxu0 %v445
        %v658 = vpop.f32.mrb[0].mxu0
        %v659 = vadd.f32 %v369, %v658
        %v660 = vpop.f32.mrb[0].mxu0
        %661 = vmatprep.mubr.f32.mxu0 0.0
        %662 = vmatmul.mubr.f32.gmra.mrb[0].mxu0 %v448
        %v663 = vpop.f32.mrb[0].mxu0
        %v664 = vadd.f32 %v369, %v663
        %v665 = vpop.f32.mrb[0].mxu0
        %666 = vmatprep.mubr.f32.mxu0 0.0
        %667 = vmatmul.mubr.f32.gmra.mrb[0].mxu0 %v451
        %v668 = vpop.f32.mrb[0].mxu0
        %v669 = vadd.f32 %v369, %v668
        %v670 = vpop.f32.mrb[0].mxu0
        %671 = vmatprep.mubr.f32.mxu0 0.0
        %672 = vmatmul.mubr.f32.gmra.mrb[0].mxu0 %v454
        %v673 = vpop.f32.mrb[0].mxu0
        %v674 = vadd.f32 %v369, %v673
        %v675 = vpop.f32.mrb[0].mxu0
        %676 = vmatprep.mubr.f32.mxu0 0.0
        %677 = vmatmul.mubr.f32.gmra.mrb[0].mxu0 %v457
        %v678 = vpop.f32.mrb[0].mxu0
        %v679 = vadd.f32 %v369, %v678
        %v680 = vpop.f32.mrb[0].mxu0
        %681 = vmatprep.mubr.f32.mxu0 0.0
        %682 = vmatmul.mubr.f32.gmra.mrb[0].mxu0 %v460
        %v683 = vpop.f32.mrb[0].mxu0
        %v684 = vadd.f32 %v369, %v683
        %v685 = vpop.f32.mrb[0].mxu0
        %686 = vmatprep.mubr.f32.mxu0 0.0
        %687 = vmatmul.mubr.f32.gmra.mrb[0].mxu0 %v463
        %v688 = vpop.f32.mrb[0].mxu0
        %v689 = vadd.f32 %v369, %v688
        %v690 = vpop.f32.mrb[0].mxu0
        %691 = vmatprep.mubr.f32.mxu0 0.0
        %692 = vmatmul.mubr.f32.gmra.mrb[0].mxu0 %v466
        %v693 = vpop.f32.mrb[0].mxu0
        %v694 = vadd.f32 %v369, %v693
        %v695 = vpop.f32.mrb[0].mxu0
        %696 = vdwg.mxu0
        %v697 = vmax.f32 %v539, 0.0
        %v698 = vmax.f32 %v544, 0.0
        %v699 = vmax.f32 %v549, 0.0
        %v700 = vmax.f32 %v554, 0.0
        %v701 = vmax.f32 %v559, 0.0
        %v702 = vmax.f32 %v564, 0.0
        %v703 = vmax.f32 %v569, 0.0
        %v704 = vmax.f32 %v574, 0.0
        %v705 = vmax.f32 %v579, 0.0
        %v706 = vmax.f32 %v584, 0.0
        %v707 = vmax.f32 %v589, 0.0
        %v708 = vmax.f32 %v594, 0.0
        %v709 = vmax.f32 %v599, 0.0
        %v710 = vmax.f32 %v604, 0.0
        %v711 = vmax.f32 %v609, 0.0
        %v712 = vmax.f32 %v614, 0.0
        %v713 = vmax.f32 %v619, 0.0
        %v714 = vmax.f32 %v624, 0.0
        %v715 = vmax.f32 %v629, 0.0
        %v716 = vmax.f32 %v634, 0.0
        %v717 = vmax.f32 %v639, 0.0
        %v718 = vmax.f32 %v644, 0.0
        %v719 = vmax.f32 %v649, 0.0
        %v720 = vmax.f32 %v654, 0.0
        %v721 = vmax.f32 %v659, 0.0
        %v722 = vmax.f32 %v664, 0.0
        %v723 = vmax.f32 %v669, 0.0
        %v724 = vmax.f32 %v674, 0.0
        %v725 = vmax.f32 %v679, 0.0
        %v726 = vmax.f32 %v684, 0.0
        %v727 = vmax.f32 %v689, 0.0
        %v728 = vmax.f32 %v694, 0.0
        %vm729 = vcmask 64512
        %730 = vst.msk [vmem:[#allocation2] sm:$0xff] %vm729, 0.0
        %731 = vst.msk [vmem:[#allocation2 + $0x8] sm:$0xff] %vm729, 0.0
        %vm732 = vcmask 58368
        %733 = vst.msk [vmem:[#allocation2 + $0x10] sm:$0x3] %vm732, 0.0
        %734 = vst.msk [vmem:[#allocation2 + $0x18] sm:$0xff] %vm729, 0.0
        %735 = vst.msk [vmem:[#allocation2 + $0x20] sm:$0xff] %vm729, 0.0
        %736 = vst.msk [vmem:[#allocation2 + $0x28] sm:$0x3] %vm732, 0.0
        %737 = vst.msk [vmem:[#allocation2 + $0x30] sm:$0xff] %vm729, 0.0
        %738 = vst.msk [vmem:[#allocation2 + $0x38] sm:$0xff] %vm729, 0.0
        %739 = vst.msk [vmem:[#allocation2 + $0x40] sm:$0x3] %vm732, 0.0
        %740 = vst.msk [vmem:[#allocation2 + $0x48] sm:$0xff] %vm729, 0.0
        %741 = vst.msk [vmem:[#allocation2 + $0x50] sm:$0xff] %vm729, 0.0
        %742 = vst.msk [vmem:[#allocation2 + $0x58] sm:$0x3] %vm732, 0.0
        %743 = vst.msk [vmem:[#allocation2 + $0x60] sm:$0xff] %vm729, 0.0
        %744 = vst.msk [vmem:[#allocation2 + $0x68] sm:$0xff] %vm729, 0.0
        %745 = vst.msk [vmem:[#allocation2 + $0x70] sm:$0x3] %vm732, 0.0
        %746 = vst.msk [vmem:[#allocation2 + $0x78] sm:$0xff] %vm729, 0.0
        %747 = vst.msk [vmem:[#allocation2 + $0x80] sm:$0xff] %vm729, 0.0
        %748 = vst.msk [vmem:[#allocation2 + $0x88] sm:$0x3] %vm732, 0.0
        %749 = vst.msk [vmem:[#allocation2 + $0x90] sm:$0xff] %vm729, 0.0
        %750 = vst.msk [vmem:[#allocation2 + $0x98] sm:$0xff] %vm729, 0.0
        %751 = vst.msk [vmem:[#allocation2 + $0xa0] sm:$0x3] %vm732, 0.0
        %752 = vst.msk [vmem:[#allocation2 + $0xa8] sm:$0xff] %vm729, 0.0
        %753 = vst.msk [vmem:[#allocation2 + $0xb0] sm:$0xff] %vm729, 0.0
        %754 = vst.msk [vmem:[#allocation2 + $0xb8] sm:$0x3] %vm732, 0.0
        %755 = vst.msk [vmem:[#allocation2 + $0xc0] sm:$0xff] %vm729, 0.0
        %756 = vst.msk [vmem:[#allocation2 + $0xc8] sm:$0xff] %vm729, 0.0
        %757 = vst.msk [vmem:[#allocation2 + $0xd0] sm:$0x3] %vm732, 0.0
        %758 = vst.msk [vmem:[#allocation2 + $0xd8] sm:$0xff] %vm729, 0.0
        %759 = vst.msk [vmem:[#allocation2 + $0xe0] sm:$0xff] %vm729, 0.0
        %760 = vst.msk [vmem:[#allocation2 + $0xe8] sm:$0x3] %vm732, 0.0
        %761 = vst.msk [vmem:[#allocation2 + $0xf0] sm:$0xff] %vm729, 0.0
        %762 = vst.msk [vmem:[#allocation2 + $0xf8] sm:$0xff] %vm729, 0.0
        %763 = vst.msk [vmem:[#allocation2 + $0x100] sm:$0x3] %vm732, 0.0
        %764 = vst.msk [vmem:[#allocation2 + $0x108] sm:$0xff] %vm729, 0.0
        %765 = vst.msk [vmem:[#allocation2 + $0x110] sm:$0xff] %vm729, 0.0
        %766 = vst.msk [vmem:[#allocation2 + $0x118] sm:$0x3] %vm732, 0.0
        %767 = vst.msk [vmem:[#allocation2 + $0x120] sm:$0xff] %vm729, 0.0
        %768 = vst.msk [vmem:[#allocation2 + $0x128] sm:$0xff] %vm729, 0.0
        %769 = vst.msk [vmem:[#allocation2 + $0x130] sm:$0x3] %vm732, 0.0
        %770 = vst.msk [vmem:[#allocation2 + $0x138] sm:$0xff] %vm729, 0.0
        %771 = vst.msk [vmem:[#allocation2 + $0x140] sm:$0xff] %vm729, 0.0
        %772 = vst.msk [vmem:[#allocation2 + $0x148] sm:$0x3] %vm732, 0.0
        %773 = vst.msk [vmem:[#allocation2 + $0x150] sm:$0xff] %vm729, 0.0
        %774 = vst.msk [vmem:[#allocation2 + $0x158] sm:$0xff] %vm729, 0.0
        %775 = vst.msk [vmem:[#allocation2 + $0x160] sm:$0x3] %vm732, 0.0
        %776 = vst.msk [vmem:[#allocation2 + $0x168] sm:$0xff] %vm729, 0.0
        %777 = vst.msk [vmem:[#allocation2 + $0x170] sm:$0xff] %vm729, 0.0
        %778 = vst.msk [vmem:[#allocation2 + $0x178] sm:$0x3] %vm732, 0.0
        %779 = vst.msk [vmem:[#allocation2 + $0x180] sm:$0xff] %vm729, 0.0
        %780 = vst.msk [vmem:[#allocation2 + $0x188] sm:$0xff] %vm729, 0.0
        %781 = vst.msk [vmem:[#allocation2 + $0x190] sm:$0x3] %vm732, 0.0
        %782 = vst.msk [vmem:[#allocation2 + $0x198] sm:$0xff] %vm729, 0.0
        %783 = vst.msk [vmem:[#allocation2 + $0x1a0] sm:$0xff] %vm729, 0.0
        %784 = vst.msk [vmem:[#allocation2 + $0x1a8] sm:$0x3] %vm732, 0.0
        %817 = vrot.lane.b32.xlu0 %v697, 120
        %v818 = vpop.permute.xlu0 %817
        %819 = vrot.lane.b32.xlu0 %v698, 120
        %v820 = vpop.permute.xlu0 %819
        %821 = vrot.lane.b32.xlu0 %v699, 120
        %v822 = vpop.permute.xlu0 %821
        %823 = vrot.lane.b32.xlu0 %v700, 120
        %v824 = vpop.permute.xlu0 %823
        %825 = vrot.lane.b32.xlu0 %v701, 120
        %v826 = vpop.permute.xlu0 %825
        %827 = vrot.lane.b32.xlu0 %v702, 120
        %v828 = vpop.permute.xlu0 %827
        %829 = vrot.lane.b32.xlu0 %v703, 120
        %v830 = vpop.permute.xlu0 %829
        %831 = vrot.lane.b32.xlu0 %v704, 120
        %v832 = vpop.permute.xlu0 %831
        %833 = vrot.lane.b32.xlu0 %v705, 120
        %v834 = vpop.permute.xlu0 %833
        %835 = vrot.lane.b32.xlu0 %v706, 120
        %v836 = vpop.permute.xlu0 %835
        %837 = vrot.lane.b32.xlu0 %v707, 120
        %v838 = vpop.permute.xlu0 %837
        %839 = vrot.lane.b32.xlu0 %v708, 120
        %v840 = vpop.permute.xlu0 %839
        %841 = vrot.lane.b32.xlu0 %v709, 120
        %v842 = vpop.permute.xlu0 %841
        %843 = vrot.lane.b32.xlu0 %v710, 120
        %v844 = vpop.permute.xlu0 %843
        %845 = vrot.lane.b32.xlu0 %v711, 120
        %v846 = vpop.permute.xlu0 %845
        %847 = vrot.lane.b32.xlu0 %v712, 120
        %v848 = vpop.permute.xlu0 %847
        %849 = vrot.lane.b32.xlu0 %v713, 120
        %v850 = vpop.permute.xlu0 %849
        %851 = vrot.lane.b32.xlu0 %v714, 120
        %v852 = vpop.permute.xlu0 %851
        %853 = vrot.lane.b32.xlu0 %v715, 120
        %v854 = vpop.permute.xlu0 %853
        %855 = vrot.lane.b32.xlu0 %v716, 120
        %v856 = vpop.permute.xlu0 %855
        %857 = vrot.lane.b32.xlu0 %v717, 120
        %v858 = vpop.permute.xlu0 %857
        %859 = vrot.lane.b32.xlu0 %v718, 120
        %v860 = vpop.permute.xlu0 %859
        %861 = vrot.lane.b32.xlu0 %v719, 120
        %v862 = vpop.permute.xlu0 %861
        %863 = vrot.lane.b32.xlu0 %v720, 120
        %v864 = vpop.permute.xlu0 %863
        %865 = vrot.lane.b32.xlu0 %v721, 120
        %v866 = vpop.permute.xlu0 %865
        %867 = vrot.lane.b32.xlu0 %v722, 120
        %v868 = vpop.permute.xlu0 %867
        %869 = vrot.lane.b32.xlu0 %v723, 120
        %v870 = vpop.permute.xlu0 %869
        %871 = vrot.lane.b32.xlu0 %v724, 120
        %v872 = vpop.permute.xlu0 %871
        %873 = vrot.lane.b32.xlu0 %v725, 120
        %v874 = vpop.permute.xlu0 %873
        %875 = vrot.lane.b32.xlu0 %v726, 120
        %v876 = vpop.permute.xlu0 %875
        %877 = vrot.lane.b32.xlu0 %v727, 120
        %v878 = vpop.permute.xlu0 %877
        %879 = vrot.lane.b32.xlu0 %v728, 120
        %v880 = vpop.permute.xlu0 %879
        %s913 = scalar_lea.vmem [#allocation2], 24
        %914 = vst.msk [vmem:[%s913 + $0x1] sm:$0xff] %vm729, %v818
        %915 = vst.msk [vmem:[%s913 + $0x9] sm:$0xff] %vm729, %v820
        %916 = vst.msk [vmem:[%s913 + $0x19] sm:$0xff] %vm729, %v822
        %917 = vst.msk [vmem:[%s913 + $0x21] sm:$0xff] %vm729, %v824
        %918 = vst.msk [vmem:[%s913 + $0x31] sm:$0xff] %vm729, %v826
        %919 = vst.msk [vmem:[%s913 + $0x39] sm:$0xff] %vm729, %v828
        %920 = vst.msk [vmem:[%s913 + $0x49] sm:$0xff] %vm729, %v830
        %921 = vst.msk [vmem:[%s913 + $0x51] sm:$0xff] %vm729, %v832
        %922 = vst.msk [vmem:[%s913 + $0x61] sm:$0xff] %vm729, %v834
        %923 = vst.msk [vmem:[%s913 + $0x69] sm:$0xff] %vm729, %v836
        %924 = vst.msk [vmem:[%s913 + $0x79] sm:$0xff] %vm729, %v838
        %925 = vst.msk [vmem:[%s913 + $0x81] sm:$0xff] %vm729, %v840
        %926 = vst.msk [vmem:[%s913 + $0x91] sm:$0xff] %vm729, %v842
        %927 = vst.msk [vmem:[%s913 + $0x99] sm:$0xff] %vm729, %v844
        %928 = vst.msk [vmem:[%s913 + $0xa9] sm:$0xff] %vm729, %v846
        %929 = vst.msk [vmem:[%s913 + $0xb1] sm:$0xff] %vm729, %v848
        %930 = vst.msk [vmem:[%s913 + $0xc1] sm:$0xff] %vm729, %v850
        %931 = vst.msk [vmem:[%s913 + $0xc9] sm:$0xff] %vm729, %v852
        %932 = vst.msk [vmem:[%s913 + $0xd9] sm:$0xff] %vm729, %v854
        %933 = vst.msk [vmem:[%s913 + $0xe1] sm:$0xff] %vm729, %v856
        %934 = vst.msk [vmem:[%s913 + $0xf1] sm:$0xff] %vm729, %v858
        %935 = vst.msk [vmem:[%s913 + $0xf9] sm:$0xff] %vm729, %v860
        %936 = vst.msk [vmem:[%s913 + $0x109] sm:$0xff] %vm729, %v862
        %937 = vst.msk [vmem:[%s913 + $0x111] sm:$0xff] %vm729, %v864
        %938 = vst.msk [vmem:[%s913 + $0x121] sm:$0xff] %vm729, %v866
        %939 = vst.msk [vmem:[%s913 + $0x129] sm:$0xff] %vm729, %v868
        %940 = vst.msk [vmem:[%s913 + $0x139] sm:$0xff] %vm729, %v870
        %941 = vst.msk [vmem:[%s913 + $0x141] sm:$0xff] %vm729, %v872
        %942 = vst.msk [vmem:[%s913 + $0x151] sm:$0xff] %vm729, %v874
        %943 = vst.msk [vmem:[%s913 + $0x159] sm:$0xff] %vm729, %v876
        %944 = vst.msk [vmem:[%s913 + $0x169] sm:$0xff] %vm729, %v878
        %945 = vst.msk [vmem:[%s913 + $0x171] sm:$0xff] %vm729, %v880
        %v946 = vld [vmem:[#allocation2] sm:$0xff]
        %v947 = vld [vmem:[#allocation2 + $0x8] sm:$0xff]
        %v948 = vld [vmem:[#allocation2 + $0x10] sm:$0x3]
        %v949 = vld [vmem:[#allocation2 + $0x18] sm:$0xff]
        %v950 = vld [vmem:[#allocation2 + $0x20] sm:$0xff]
        %v951 = vld [vmem:[#allocation2 + $0x28] sm:$0x3]
        %v952 = vld [vmem:[#allocation2 + $0x30] sm:$0xff]
        %v953 = vld [vmem:[#allocation2 + $0x38] sm:$0xff]
        %v954 = vld [vmem:[#allocation2 + $0x40] sm:$0x3]
        %v955 = vld [vmem:[#allocation2 + $0x48] sm:$0xff]
        %v956 = vld [vmem:[#allocation2 + $0x50] sm:$0xff]
        %v957 = vld [vmem:[#allocation2 + $0x58] sm:$0x3]
        %v958 = vld [vmem:[#allocation2 + $0x60] sm:$0xff]
        %v959 = vld [vmem:[#allocation2 + $0x68] sm:$0xff]
        %v960 = vld [vmem:[#allocation2 + $0x70] sm:$0x3]
        %v961 = vld [vmem:[#allocation2 + $0x78] sm:$0xff]
        %v962 = vld [vmem:[#allocation2 + $0x80] sm:$0xff]
        %v963 = vld [vmem:[#allocation2 + $0x88] sm:$0x3]
        %v964 = vld [vmem:[#allocation2 + $0x90] sm:$0xff]
        %v965 = vld [vmem:[#allocation2 + $0x98] sm:$0xff]
        %v966 = vld [vmem:[#allocation2 + $0xa0] sm:$0x3]
        %v967 = vld [vmem:[#allocation2 + $0xa8] sm:$0xff]
        %v968 = vld [vmem:[#allocation2 + $0xb0] sm:$0xff]
        %v969 = vld [vmem:[#allocation2 + $0xb8] sm:$0x3]
        %v970 = vld [vmem:[#allocation2 + $0xc0] sm:$0xff]
        %v971 = vld [vmem:[#allocation2 + $0xc8] sm:$0xff]
        %v972 = vld [vmem:[#allocation2 + $0xd0] sm:$0x3]
        %v973 = vld [vmem:[#allocation2 + $0xd8] sm:$0xff]
        %v974 = vld [vmem:[#allocation2 + $0xe0] sm:$0xff]
        %v975 = vld [vmem:[#allocation2 + $0xe8] sm:$0x3]
        %v976 = vld [vmem:[#allocation2 + $0xf0] sm:$0xff]
        %v977 = vld [vmem:[#allocation2 + $0xf8] sm:$0xff]
        %v978 = vld [vmem:[#allocation2 + $0x100] sm:$0x3]
        %v979 = vld [vmem:[#allocation2 + $0x108] sm:$0xff]
        %v980 = vld [vmem:[#allocation2 + $0x110] sm:$0xff]
        %v981 = vld [vmem:[#allocation2 + $0x118] sm:$0x3]
        %v982 = vld [vmem:[#allocation2 + $0x120] sm:$0xff]
        %v983 = vld [vmem:[#allocation2 + $0x128] sm:$0xff]
        %v984 = vld [vmem:[#allocation2 + $0x130] sm:$0x3]
        %v985 = vld [vmem:[#allocation2 + $0x138] sm:$0xff]
        %v986 = vld [vmem:[#allocation2 + $0x140] sm:$0xff]
        %v987 = vld [vmem:[#allocation2 + $0x148] sm:$0x3]
        %v988 = vld [vmem:[#allocation2 + $0x150] sm:$0xff]
        %v989 = vld [vmem:[#allocation2 + $0x158] sm:$0xff]
        %v990 = vld [vmem:[#allocation2 + $0x160] sm:$0x3]
        %v991 = vld [vmem:[#allocation2 + $0x168] sm:$0xff]
        %v992 = vld [vmem:[#allocation2 + $0x170] sm:$0xff]
        %v993 = vld [vmem:[#allocation2 + $0x178] sm:$0x3]
        %v994 = vld [vmem:[#allocation2 + $0x180] sm:$0xff]
        %v995 = vld [vmem:[#allocation2 + $0x188] sm:$0xff]
        %v996 = vld [vmem:[#allocation2 + $0x190] sm:$0x3]
        %v997 = vld [vmem:[#allocation2 + $0x198] sm:$0xff]
        %v998 = vld [vmem:[#allocation2 + $0x1a0] sm:$0xff]
        %v999 = vld [vmem:[#allocation2 + $0x1a8] sm:$0x3]
        %vm1048 = vcmask 1046528
        %v1049 = vrot.slane %v946, 1
        %v1050 = vrot.slane %v947, 1
        %v1051 = vsel %vm1048, %v1049, %v1050
        %v1052 = vrot.slane %v948, 1
        %v1053 = vsel %vm1048, %v1050, %v1052
        %v1054 = vrot.slane %v949, 1
        %v1055 = vrot.slane %v950, 1
        %v1056 = vsel %vm1048, %v1054, %v1055
        %v1057 = vrot.slane %v951, 1
        %v1058 = vsel %vm1048, %v1055, %v1057
        %v1059 = vrot.slane %v952, 1
        %v1060 = vrot.slane %v953, 1
        %v1061 = vsel %vm1048, %v1059, %v1060
        %v1062 = vrot.slane %v954, 1
        %v1063 = vsel %vm1048, %v1060, %v1062
        %v1064 = vrot.slane %v955, 1
        %v1065 = vrot.slane %v956, 1
        %v1066 = vsel %vm1048, %v1064, %v1065
        %v1067 = vrot.slane %v957, 1
        %v1068 = vsel %vm1048, %v1065, %v1067
        %v1069 = vrot.slane %v958, 1
        %v1070 = vrot.slane %v959, 1
        %v1071 = vsel %vm1048, %v1069, %v1070
        %v1072 = vrot.slane %v960, 1
        %v1073 = vsel %vm1048, %v1070, %v1072
        %v1074 = vrot.slane %v961, 1
        %v1075 = vrot.slane %v962, 1
        %v1076 = vsel %vm1048, %v1074, %v1075
        %v1077 = vrot.slane %v963, 1
        %v1078 = vsel %vm1048, %v1075, %v1077
        %v1079 = vrot.slane %v964, 1
        %v1080 = vrot.slane %v965, 1
        %v1081 = vsel %vm1048, %v1079, %v1080
        %v1082 = vrot.slane %v966, 1
        %v1083 = vsel %vm1048, %v1080, %v1082
        %v1084 = vrot.slane %v967, 1
        %v1085 = vrot.slane %v968, 1
        %v1086 = vsel %vm1048, %v1084, %v1085
        %v1087 = vrot.slane %v969, 1
        %v1088 = vsel %vm1048, %v1085, %v1087
        %v1089 = vrot.slane %v970, 1
        %v1090 = vrot.slane %v971, 1
        %v1091 = vsel %vm1048, %v1089, %v1090
        %v1092 = vrot.slane %v972, 1
        %v1093 = vsel %vm1048, %v1090, %v1092
        %v1094 = vrot.slane %v973, 1
        %v1095 = vrot.slane %v974, 1
        %v1096 = vsel %vm1048, %v1094, %v1095
        %v1097 = vrot.slane %v975, 1
        %v1098 = vsel %vm1048, %v1095, %v1097
        %v1099 = vrot.slane %v976, 1
        %v1100 = vrot.slane %v977, 1
        %v1101 = vsel %vm1048, %v1099, %v1100
        %v1102 = vrot.slane %v978, 1
        %v1103 = vsel %vm1048, %v1100, %v1102
        %v1104 = vrot.slane %v979, 1
        %v1105 = vrot.slane %v980, 1
        %v1106 = vsel %vm1048, %v1104, %v1105
        %v1107 = vrot.slane %v981, 1
        %v1108 = vsel %vm1048, %v1105, %v1107
        %v1109 = vrot.slane %v982, 1
        %v1110 = vrot.slane %v983, 1
        %v1111 = vsel %vm1048, %v1109, %v1110
        %v1112 = vrot.slane %v984, 1
        %v1113 = vsel %vm1048, %v1110, %v1112
        %v1114 = vrot.slane %v985, 1
        %v1115 = vrot.slane %v986, 1
        %v1116 = vsel %vm1048, %v1114, %v1115
        %v1117 = vrot.slane %v987, 1
        %v1118 = vsel %vm1048, %v1115, %v1117
        %v1119 = vrot.slane %v988, 1
        %v1120 = vrot.slane %v989, 1
        %v1121 = vsel %vm1048, %v1119, %v1120
        %v1122 = vrot.slane %v990, 1
        %v1123 = vsel %vm1048, %v1120, %v1122
        %v1124 = vrot.slane %v991, 1
        %v1125 = vrot.slane %v992, 1
        %v1126 = vsel %vm1048, %v1124, %v1125
        %v1127 = vrot.slane %v993, 1
        %v1128 = vsel %vm1048, %v1125, %v1127
        %vm1129 = vcmask 1045504
        %v1130 = vrot.slane %v946, 2
        %v1131 = vrot.slane %v947, 2
        %v1132 = vsel %vm1129, %v1130, %v1131
        %v1133 = vrot.slane %v948, 2
        %v1134 = vsel %vm1129, %v1131, %v1133
        %v1135 = vrot.slane %v949, 2
        %v1136 = vrot.slane %v950, 2
        %v1137 = vsel %vm1129, %v1135, %v1136
        %v1138 = vrot.slane %v951, 2
        %v1139 = vsel %vm1129, %v1136, %v1138
        %v1140 = vrot.slane %v952, 2
        %v1141 = vrot.slane %v953, 2
        %v1142 = vsel %vm1129, %v1140, %v1141
        %v1143 = vrot.slane %v954, 2
        %v1144 = vsel %vm1129, %v1141, %v1143
        %v1145 = vrot.slane %v955, 2
        %v1146 = vrot.slane %v956, 2
        %v1147 = vsel %vm1129, %v1145, %v1146
        %v1148 = vrot.slane %v957, 2
        %v1149 = vsel %vm1129, %v1146, %v1148
        %v1150 = vrot.slane %v958, 2
        %v1151 = vrot.slane %v959, 2
        %v1152 = vsel %vm1129, %v1150, %v1151
        %v1153 = vrot.slane %v960, 2
        %v1154 = vsel %vm1129, %v1151, %v1153
        %v1155 = vrot.slane %v961, 2
        %v1156 = vrot.slane %v962, 2
        %v1157 = vsel %vm1129, %v1155, %v1156
        %v1158 = vrot.slane %v963, 2
        %v1159 = vsel %vm1129, %v1156, %v1158
        %v1160 = vrot.slane %v964, 2
        %v1161 = vrot.slane %v965, 2
        %v1162 = vsel %vm1129, %v1160, %v1161
        %v1163 = vrot.slane %v966, 2
        %v1164 = vsel %vm1129, %v1161, %v1163
        %v1165 = vrot.slane %v967, 2
        %v1166 = vrot.slane %v968, 2
        %v1167 = vsel %vm1129, %v1165, %v1166
        %v1168 = vrot.slane %v969, 2
        %v1169 = vsel %vm1129, %v1166, %v1168
        %v1170 = vrot.slane %v970, 2
        %v1171 = vrot.slane %v971, 2
        %v1172 = vsel %vm1129, %v1170, %v1171
        %v1173 = vrot.slane %v972, 2
        %v1174 = vsel %vm1129, %v1171, %v1173
        %v1175 = vrot.slane %v973, 2
        %v1176 = vrot.slane %v974, 2
        %v1177 = vsel %vm1129, %v1175, %v1176
        %v1178 = vrot.slane %v975, 2
        %v1179 = vsel %vm1129, %v1176, %v1178
        %v1180 = vrot.slane %v976, 2
        %v1181 = vrot.slane %v977, 2
        %v1182 = vsel %vm1129, %v1180, %v1181
        %v1183 = vrot.slane %v978, 2
        %v1184 = vsel %vm1129, %v1181, %v1183
        %v1185 = vrot.slane %v979, 2
        %v1186 = vrot.slane %v980, 2
        %v1187 = vsel %vm1129, %v1185, %v1186
        %v1188 = vrot.slane %v981, 2
        %v1189 = vsel %vm1129, %v1186, %v1188
        %v1190 = vrot.slane %v982, 2
        %v1191 = vrot.slane %v983, 2
        %v1192 = vsel %vm1129, %v1190, %v1191
        %v1193 = vrot.slane %v984, 2
        %v1194 = vsel %vm1129, %v1191, %v1193
        %v1195 = vrot.slane %v985, 2
        %v1196 = vrot.slane %v986, 2
        %v1197 = vsel %vm1129, %v1195, %v1196
        %v1198 = vrot.slane %v987, 2
        %v1199 = vsel %vm1129, %v1196, %v1198
        %v1200 = vrot.slane %v988, 2
        %v1201 = vrot.slane %v989, 2
        %v1202 = vsel %vm1129, %v1200, %v1201
        %v1203 = vrot.slane %v990, 2
        %v1204 = vsel %vm1129, %v1201, %v1203
        %v1205 = vrot.slane %v991, 2
        %v1206 = vrot.slane %v992, 2
        %v1207 = vsel %vm1129, %v1205, %v1206
        %v1208 = vrot.slane %v993, 2
        %v1209 = vsel %vm1129, %v1206, %v1208
        %v1213 = vrot.slane %v994, 1
        %v1214 = vrot.slane %v995, 1
        %v1215 = vsel %vm1048, %v1213, %v1214
        %v1216 = vrot.slane %v996, 1
        %v1217 = vsel %vm1048, %v1214, %v1216
        %v1218 = vrot.slane %v994, 2
        %v1219 = vrot.slane %v995, 2
        %v1220 = vsel %vm1129, %v1218, %v1219
        %v1221 = vrot.slane %v996, 2
        %v1222 = vsel %vm1129, %v1219, %v1221
        %v1226 = vrot.slane %v997, 1
        %v1227 = vrot.slane %v998, 1
        %v1228 = vsel %vm1048, %v1226, %v1227
        %v1229 = vrot.slane %v999, 1
        %v1230 = vsel %vm1048, %v1227, %v1229
        %v1231 = vrot.slane %v997, 2
        %v1232 = vrot.slane %v998, 2
        %v1233 = vsel %vm1129, %v1231, %v1232
        %v1234 = vrot.slane %v999, 2
        %v1235 = vsel %vm1129, %v1232, %v1234
        %1236 = vrot.lane.b32.xlu0 %v1051, 8
        %v1237 = vpop.permute.xlu0 %1236
        %1238 = vrot.lane.b32.xlu0 %v1053, 8
        %v1239 = vpop.permute.xlu0 %1238
        %1240 = vrot.lane.b32.xlu0 %v1056, 8
        %v1241 = vpop.permute.xlu0 %1240
        %1242 = vrot.lane.b32.xlu0 %v1058, 8
        %v1243 = vpop.permute.xlu0 %1242
        %1244 = vrot.lane.b32.xlu0 %v1061, 8
        %v1245 = vpop.permute.xlu0 %1244
        %1246 = vrot.lane.b32.xlu0 %v1063, 8
        %v1247 = vpop.permute.xlu0 %1246
        %1248 = vrot.lane.b32.xlu0 %v1066, 8
        %v1249 = vpop.permute.xlu0 %1248
        %1250 = vrot.lane.b32.xlu0 %v1068, 8
        %v1251 = vpop.permute.xlu0 %1250
        %1252 = vrot.lane.b32.xlu0 %v1071, 8
        %v1253 = vpop.permute.xlu0 %1252
        %1254 = vrot.lane.b32.xlu0 %v1073, 8
        %v1255 = vpop.permute.xlu0 %1254
        %1256 = vrot.lane.b32.xlu0 %v1076, 8
        %v1257 = vpop.permute.xlu0 %1256
        %1258 = vrot.lane.b32.xlu0 %v1078, 8
        %v1259 = vpop.permute.xlu0 %1258
        %1260 = vrot.lane.b32.xlu0 %v1081, 8
        %v1261 = vpop.permute.xlu0 %1260
        %1262 = vrot.lane.b32.xlu0 %v1083, 8
        %v1263 = vpop.permute.xlu0 %1262
        %1264 = vrot.lane.b32.xlu0 %v1086, 8
        %v1265 = vpop.permute.xlu0 %1264
        %1266 = vrot.lane.b32.xlu0 %v1088, 8
        %v1267 = vpop.permute.xlu0 %1266
        %1268 = vrot.lane.b32.xlu0 %v1091, 8
        %v1269 = vpop.permute.xlu0 %1268
        %1270 = vrot.lane.b32.xlu0 %v1093, 8
        %v1271 = vpop.permute.xlu0 %1270
        %1272 = vrot.lane.b32.xlu0 %v1096, 8
        %v1273 = vpop.permute.xlu0 %1272
        %1274 = vrot.lane.b32.xlu0 %v1098, 8
        %v1275 = vpop.permute.xlu0 %1274
        %1276 = vrot.lane.b32.xlu0 %v1101, 8
        %v1277 = vpop.permute.xlu0 %1276
        %1278 = vrot.lane.b32.xlu0 %v1103, 8
        %v1279 = vpop.permute.xlu0 %1278
        %1280 = vrot.lane.b32.xlu0 %v1106, 8
        %v1281 = vpop.permute.xlu0 %1280
        %1282 = vrot.lane.b32.xlu0 %v1108, 8
        %v1283 = vpop.permute.xlu0 %1282
        %1284 = vrot.lane.b32.xlu0 %v1111, 8
        %v1285 = vpop.permute.xlu0 %1284
        %1286 = vrot.lane.b32.xlu0 %v1113, 8
        %v1287 = vpop.permute.xlu0 %1286
        %1288 = vrot.lane.b32.xlu0 %v1116, 8
        %v1289 = vpop.permute.xlu0 %1288
        %1290 = vrot.lane.b32.xlu0 %v1118, 8
        %v1291 = vpop.permute.xlu0 %1290
        %1292 = vrot.lane.b32.xlu0 %v1121, 8
        %v1293 = vpop.permute.xlu0 %1292
        %1294 = vrot.lane.b32.xlu0 %v1123, 8
        %v1295 = vpop.permute.xlu0 %1294
        %1296 = vrot.lane.b32.xlu0 %v1126, 8
        %v1297 = vpop.permute.xlu0 %1296
        %1298 = vrot.lane.b32.xlu0 %v1128, 8
        %v1299 = vpop.permute.xlu0 %1298
        %1332 = vrot.lane.b32.xlu0 %v1132, 16
        %v1333 = vpop.permute.xlu0 %1332
        %1334 = vrot.lane.b32.xlu0 %v1134, 16
        %v1335 = vpop.permute.xlu0 %1334
        %1336 = vrot.lane.b32.xlu0 %v1137, 16
        %v1337 = vpop.permute.xlu0 %1336
        %1338 = vrot.lane.b32.xlu0 %v1139, 16
        %v1339 = vpop.permute.xlu0 %1338
        %1340 = vrot.lane.b32.xlu0 %v1142, 16
        %v1341 = vpop.permute.xlu0 %1340
        %1342 = vrot.lane.b32.xlu0 %v1144, 16
        %v1343 = vpop.permute.xlu0 %1342
        %1344 = vrot.lane.b32.xlu0 %v1147, 16
        %v1345 = vpop.permute.xlu0 %1344
        %1346 = vrot.lane.b32.xlu0 %v1149, 16
        %v1347 = vpop.permute.xlu0 %1346
        %1348 = vrot.lane.b32.xlu0 %v1152, 16
        %v1349 = vpop.permute.xlu0 %1348
        %1350 = vrot.lane.b32.xlu0 %v1154, 16
        %v1351 = vpop.permute.xlu0 %1350
        %1352 = vrot.lane.b32.xlu0 %v1157, 16
        %v1353 = vpop.permute.xlu0 %1352
        %1354 = vrot.lane.b32.xlu0 %v1159, 16
        %v1355 = vpop.permute.xlu0 %1354
        %1356 = vrot.lane.b32.xlu0 %v1162, 16
        %v1357 = vpop.permute.xlu0 %1356
        %1358 = vrot.lane.b32.xlu0 %v1164, 16
        %v1359 = vpop.permute.xlu0 %1358
        %1360 = vrot.lane.b32.xlu0 %v1167, 16
        %v1361 = vpop.permute.xlu0 %1360
        %1362 = vrot.lane.b32.xlu0 %v1169, 16
        %v1363 = vpop.permute.xlu0 %1362
        %1364 = vrot.lane.b32.xlu0 %v1172, 16
        %v1365 = vpop.permute.xlu0 %1364
        %1366 = vrot.lane.b32.xlu0 %v1174, 16
        %v1367 = vpop.permute.xlu0 %1366
        %1368 = vrot.lane.b32.xlu0 %v1177, 16
        %v1369 = vpop.permute.xlu0 %1368
        %1370 = vrot.lane.b32.xlu0 %v1179, 16
        %v1371 = vpop.permute.xlu0 %1370
        %1372 = vrot.lane.b32.xlu0 %v1182, 16
        %v1373 = vpop.permute.xlu0 %1372
        %1374 = vrot.lane.b32.xlu0 %v1184, 16
        %v1375 = vpop.permute.xlu0 %1374
        %1376 = vrot.lane.b32.xlu0 %v1187, 16
        %v1377 = vpop.permute.xlu0 %1376
        %1378 = vrot.lane.b32.xlu0 %v1189, 16
        %v1379 = vpop.permute.xlu0 %1378
        %1380 = vrot.lane.b32.xlu0 %v1192, 16
        %v1381 = vpop.permute.xlu0 %1380
        %1382 = vrot.lane.b32.xlu0 %v1194, 16
        %v1383 = vpop.permute.xlu0 %1382
        %1384 = vrot.lane.b32.xlu0 %v1197, 16
        %v1385 = vpop.permute.xlu0 %1384
        %1386 = vrot.lane.b32.xlu0 %v1199, 16
        %v1387 = vpop.permute.xlu0 %1386
        %1388 = vrot.lane.b32.xlu0 %v1202, 16
        %v1389 = vpop.permute.xlu0 %1388
        %1390 = vrot.lane.b32.xlu0 %v1204, 16
        %v1391 = vpop.permute.xlu0 %1390
        %1392 = vrot.lane.b32.xlu0 %v1207, 16
        %v1393 = vpop.permute.xlu0 %1392
        %1394 = vrot.lane.b32.xlu0 %v1209, 16
        %v1395 = vpop.permute.xlu0 %1394
        %1428 = vrot.lane.b32.xlu0 %v949, 24
        %v1429 = vpop.permute.xlu0 %1428
        %1430 = vrot.lane.b32.xlu0 %v950, 24
        %v1431 = vpop.permute.xlu0 %1430
        %1432 = vrot.lane.b32.xlu0 %v952, 24
        %v1433 = vpop.permute.xlu0 %1432
        %1434 = vrot.lane.b32.xlu0 %v953, 24
        %v1435 = vpop.permute.xlu0 %1434
        %1436 = vrot.lane.b32.xlu0 %v955, 24
        %v1437 = vpop.permute.xlu0 %1436
        %1438 = vrot.lane.b32.xlu0 %v956, 24
        %v1439 = vpop.permute.xlu0 %1438
        %1440 = vrot.lane.b32.xlu0 %v958, 24
        %v1441 = vpop.permute.xlu0 %1440
        %1442 = vrot.lane.b32.xlu0 %v959, 24
        %v1443 = vpop.permute.xlu0 %1442
        %1444 = vrot.lane.b32.xlu0 %v961, 24
        %v1445 = vpop.permute.xlu0 %1444
        %1446 = vrot.lane.b32.xlu0 %v962, 24
        %v1447 = vpop.permute.xlu0 %1446
        %1448 = vrot.lane.b32.xlu0 %v964, 24
        %v1449 = vpop.permute.xlu0 %1448
        %1450 = vrot.lane.b32.xlu0 %v965, 24
        %v1451 = vpop.permute.xlu0 %1450
        %1452 = vrot.lane.b32.xlu0 %v967, 24
        %v1453 = vpop.permute.xlu0 %1452
        %1454 = vrot.lane.b32.xlu0 %v968, 24
        %v1455 = vpop.permute.xlu0 %1454
        %1456 = vrot.lane.b32.xlu0 %v970, 24
        %v1457 = vpop.permute.xlu0 %1456
        %1458 = vrot.lane.b32.xlu0 %v971, 24
        %v1459 = vpop.permute.xlu0 %1458
        %1460 = vrot.lane.b32.xlu0 %v973, 24
        %v1461 = vpop.permute.xlu0 %1460
        %1462 = vrot.lane.b32.xlu0 %v974, 24
        %v1463 = vpop.permute.xlu0 %1462
        %1464 = vrot.lane.b32.xlu0 %v976, 24
        %v1465 = vpop.permute.xlu0 %1464
        %1466 = vrot.lane.b32.xlu0 %v977, 24
        %v1467 = vpop.permute.xlu0 %1466
        %1468 = vrot.lane.b32.xlu0 %v979, 24
        %v1469 = vpop.permute.xlu0 %1468
        %1470 = vrot.lane.b32.xlu0 %v980, 24
        %v1471 = vpop.permute.xlu0 %1470
        %1472 = vrot.lane.b32.xlu0 %v982, 24
        %v1473 = vpop.permute.xlu0 %1472
        %1474 = vrot.lane.b32.xlu0 %v983, 24
        %v1475 = vpop.permute.xlu0 %1474
        %1476 = vrot.lane.b32.xlu0 %v985, 24
        %v1477 = vpop.permute.xlu0 %1476
        %1478 = vrot.lane.b32.xlu0 %v986, 24
        %v1479 = vpop.permute.xlu0 %1478
        %1480 = vrot.lane.b32.xlu0 %v988, 24
        %v1481 = vpop.permute.xlu0 %1480
        %1482 = vrot.lane.b32.xlu0 %v989, 24
        %v1483 = vpop.permute.xlu0 %1482
        %1484 = vrot.lane.b32.xlu0 %v991, 24
        %v1485 = vpop.permute.xlu0 %1484
        %1486 = vrot.lane.b32.xlu0 %v992, 24
        %v1487 = vpop.permute.xlu0 %1486
        %1488 = vrot.lane.b32.xlu0 %v994, 24
        %v1489 = vpop.permute.xlu0 %1488
        %1490 = vrot.lane.b32.xlu0 %v995, 24
        %v1491 = vpop.permute.xlu0 %1490
        %1524 = vrot.lane.b32.xlu0 %v1056, 32
        %v1525 = vpop.permute.xlu0 %1524
        %1526 = vrot.lane.b32.xlu0 %v1058, 32
        %v1527 = vpop.permute.xlu0 %1526
        %1528 = vrot.lane.b32.xlu0 %v1061, 32
        %v1529 = vpop.permute.xlu0 %1528
        %1530 = vrot.lane.b32.xlu0 %v1063, 32
        %v1531 = vpop.permute.xlu0 %1530
        %1532 = vrot.lane.b32.xlu0 %v1066, 32
        %v1533 = vpop.permute.xlu0 %1532
        %1534 = vrot.lane.b32.xlu0 %v1068, 32
        %v1535 = vpop.permute.xlu0 %1534
        %1536 = vrot.lane.b32.xlu0 %v1071, 32
        %v1537 = vpop.permute.xlu0 %1536
        %1538 = vrot.lane.b32.xlu0 %v1073, 32
        %v1539 = vpop.permute.xlu0 %1538
        %1540 = vrot.lane.b32.xlu0 %v1076, 32
        %v1541 = vpop.permute.xlu0 %1540
        %1542 = vrot.lane.b32.xlu0 %v1078, 32
        %v1543 = vpop.permute.xlu0 %1542
        %1544 = vrot.lane.b32.xlu0 %v1081, 32
        %v1545 = vpop.permute.xlu0 %1544
        %1546 = vrot.lane.b32.xlu0 %v1083, 32
        %v1547 = vpop.permute.xlu0 %1546
        %1548 = vrot.lane.b32.xlu0 %v1086, 32
        %v1549 = vpop.permute.xlu0 %1548
        %1550 = vrot.lane.b32.xlu0 %v1088, 32
        %v1551 = vpop.permute.xlu0 %1550
        %1552 = vrot.lane.b32.xlu0 %v1091, 32
        %v1553 = vpop.permute.xlu0 %1552
        %1554 = vrot.lane.b32.xlu0 %v1093, 32
        %v1555 = vpop.permute.xlu0 %1554
        %1556 = vrot.lane.b32.xlu0 %v1096, 32
        %v1557 = vpop.permute.xlu0 %1556
        %1558 = vrot.lane.b32.xlu0 %v1098, 32
        %v1559 = vpop.permute.xlu0 %1558
        %1560 = vrot.lane.b32.xlu0 %v1101, 32
        %v1561 = vpop.permute.xlu0 %1560
        %1562 = vrot.lane.b32.xlu0 %v1103, 32
        %v1563 = vpop.permute.xlu0 %1562
        %1564 = vrot.lane.b32.xlu0 %v1106, 32
        %v1565 = vpop.permute.xlu0 %1564
        %1566 = vrot.lane.b32.xlu0 %v1108, 32
        %v1567 = vpop.permute.xlu0 %1566
        %1568 = vrot.lane.b32.xlu0 %v1111, 32
        %v1569 = vpop.permute.xlu0 %1568
        %1570 = vrot.lane.b32.xlu0 %v1113, 32
        %v1571 = vpop.permute.xlu0 %1570
        %1572 = vrot.lane.b32.xlu0 %v1116, 32
        %v1573 = vpop.permute.xlu0 %1572
        %1574 = vrot.lane.b32.xlu0 %v1118, 32
        %v1575 = vpop.permute.xlu0 %1574
        %1576 = vrot.lane.b32.xlu0 %v1121, 32
        %v1577 = vpop.permute.xlu0 %1576
        %1578 = vrot.lane.b32.xlu0 %v1123, 32
        %v1579 = vpop.permute.xlu0 %1578
        %1580 = vrot.lane.b32.xlu0 %v1126, 32
        %v1581 = vpop.permute.xlu0 %1580
        %1582 = vrot.lane.b32.xlu0 %v1128, 32
        %v1583 = vpop.permute.xlu0 %1582
        %1584 = vrot.lane.b32.xlu0 %v1215, 32
        %v1585 = vpop.permute.xlu0 %1584
        %1586 = vrot.lane.b32.xlu0 %v1217, 32
        %v1587 = vpop.permute.xlu0 %1586
        %1620 = vrot.lane.b32.xlu0 %v1137, 40
        %v1621 = vpop.permute.xlu0 %1620
        %1622 = vrot.lane.b32.xlu0 %v1139, 40
        %v1623 = vpop.permute.xlu0 %1622
        %1624 = vrot.lane.b32.xlu0 %v1142, 40
        %v1625 = vpop.permute.xlu0 %1624
        %1626 = vrot.lane.b32.xlu0 %v1144, 40
        %v1627 = vpop.permute.xlu0 %1626
        %1628 = vrot.lane.b32.xlu0 %v1147, 40
        %v1629 = vpop.permute.xlu0 %1628
        %1630 = vrot.lane.b32.xlu0 %v1149, 40
        %v1631 = vpop.permute.xlu0 %1630
        %1632 = vrot.lane.b32.xlu0 %v1152, 40
        %v1633 = vpop.permute.xlu0 %1632
        %1634 = vrot.lane.b32.xlu0 %v1154, 40
        %v1635 = vpop.permute.xlu0 %1634
        %1636 = vrot.lane.b32.xlu0 %v1157, 40
        %v1637 = vpop.permute.xlu0 %1636
        %1638 = vrot.lane.b32.xlu0 %v1159, 40
        %v1639 = vpop.permute.xlu0 %1638
        %1640 = vrot.lane.b32.xlu0 %v1162, 40
        %v1641 = vpop.permute.xlu0 %1640
        %1642 = vrot.lane.b32.xlu0 %v1164, 40
        %v1643 = vpop.permute.xlu0 %1642
        %1644 = vrot.lane.b32.xlu0 %v1167, 40
        %v1645 = vpop.permute.xlu0 %1644
        %1646 = vrot.lane.b32.xlu0 %v1169, 40
        %v1647 = vpop.permute.xlu0 %1646
        %1648 = vrot.lane.b32.xlu0 %v1172, 40
        %v1649 = vpop.permute.xlu0 %1648
        %1650 = vrot.lane.b32.xlu0 %v1174, 40
        %v1651 = vpop.permute.xlu0 %1650
        %1652 = vrot.lane.b32.xlu0 %v1177, 40
        %v1653 = vpop.permute.xlu0 %1652
        %1654 = vrot.lane.b32.xlu0 %v1179, 40
        %v1655 = vpop.permute.xlu0 %1654
        %1656 = vrot.lane.b32.xlu0 %v1182, 40
        %v1657 = vpop.permute.xlu0 %1656
        %1658 = vrot.lane.b32.xlu0 %v1184, 40
        %v1659 = vpop.permute.xlu0 %1658
        %1660 = vrot.lane.b32.xlu0 %v1187, 40
        %v1661 = vpop.permute.xlu0 %1660
        %1662 = vrot.lane.b32.xlu0 %v1189, 40
        %v1663 = vpop.permute.xlu0 %1662
        %1664 = vrot.lane.b32.xlu0 %v1192, 40
        %v1665 = vpop.permute.xlu0 %1664
        %1666 = vrot.lane.b32.xlu0 %v1194, 40
        %v1667 = vpop.permute.xlu0 %1666
        %1668 = vrot.lane.b32.xlu0 %v1197, 40
        %v1669 = vpop.permute.xlu0 %1668
        %1670 = vrot.lane.b32.xlu0 %v1199, 40
        %v1671 = vpop.permute.xlu0 %1670
        %1672 = vrot.lane.b32.xlu0 %v1202, 40
        %v1673 = vpop.permute.xlu0 %1672
        %1674 = vrot.lane.b32.xlu0 %v1204, 40
        %v1675 = vpop.permute.xlu0 %1674
        %1676 = vrot.lane.b32.xlu0 %v1207, 40
        %v1677 = vpop.permute.xlu0 %1676
        %1678 = vrot.lane.b32.xlu0 %v1209, 40
        %v1679 = vpop.permute.xlu0 %1678
        %1680 = vrot.lane.b32.xlu0 %v1220, 40
        %v1681 = vpop.permute.xlu0 %1680
        %1682 = vrot.lane.b32.xlu0 %v1222, 40
        %v1683 = vpop.permute.xlu0 %1682
        %1716 = vrot.lane.b32.xlu0 %v952, 48
        %v1717 = vpop.permute.xlu0 %1716
        %1718 = vrot.lane.b32.xlu0 %v953, 48
        %v1719 = vpop.permute.xlu0 %1718
        %1720 = vrot.lane.b32.xlu0 %v955, 48
        %v1721 = vpop.permute.xlu0 %1720
        %1722 = vrot.lane.b32.xlu0 %v956, 48
        %v1723 = vpop.permute.xlu0 %1722
        %1724 = vrot.lane.b32.xlu0 %v958, 48
        %v1725 = vpop.permute.xlu0 %1724
        %1726 = vrot.lane.b32.xlu0 %v959, 48
        %v1727 = vpop.permute.xlu0 %1726
        %1728 = vrot.lane.b32.xlu0 %v961, 48
        %v1729 = vpop.permute.xlu0 %1728
        %1730 = vrot.lane.b32.xlu0 %v962, 48
        %v1731 = vpop.permute.xlu0 %1730
        %1732 = vrot.lane.b32.xlu0 %v964, 48
        %v1733 = vpop.permute.xlu0 %1732
        %1734 = vrot.lane.b32.xlu0 %v965, 48
        %v1735 = vpop.permute.xlu0 %1734
        %1736 = vrot.lane.b32.xlu0 %v967, 48
        %v1737 = vpop.permute.xlu0 %1736
        %1738 = vrot.lane.b32.xlu0 %v968, 48
        %v1739 = vpop.permute.xlu0 %1738
        %1740 = vrot.lane.b32.xlu0 %v970, 48
        %v1741 = vpop.permute.xlu0 %1740
        %1742 = vrot.lane.b32.xlu0 %v971, 48
        %v1743 = vpop.permute.xlu0 %1742
        %1744 = vrot.lane.b32.xlu0 %v973, 48
        %v1745 = vpop.permute.xlu0 %1744
        %1746 = vrot.lane.b32.xlu0 %v974, 48
        %v1747 = vpop.permute.xlu0 %1746
        %1748 = vrot.lane.b32.xlu0 %v976, 48
        %v1749 = vpop.permute.xlu0 %1748
        %1750 = vrot.lane.b32.xlu0 %v977, 48
        %v1751 = vpop.permute.xlu0 %1750
        %1752 = vrot.lane.b32.xlu0 %v979, 48
        %v1753 = vpop.permute.xlu0 %1752
        %1754 = vrot.lane.b32.xlu0 %v980, 48
        %v1755 = vpop.permute.xlu0 %1754
        %1756 = vrot.lane.b32.xlu0 %v982, 48
        %v1757 = vpop.permute.xlu0 %1756
        %1758 = vrot.lane.b32.xlu0 %v983, 48
        %v1759 = vpop.permute.xlu0 %1758
        %1760 = vrot.lane.b32.xlu0 %v985, 48
        %v1761 = vpop.permute.xlu0 %1760
        %1762 = vrot.lane.b32.xlu0 %v986, 48
        %v1763 = vpop.permute.xlu0 %1762
        %1764 = vrot.lane.b32.xlu0 %v988, 48
        %v1765 = vpop.permute.xlu0 %1764
        %1766 = vrot.lane.b32.xlu0 %v989, 48
        %v1767 = vpop.permute.xlu0 %1766
        %1768 = vrot.lane.b32.xlu0 %v991, 48
        %v1769 = vpop.permute.xlu0 %1768
        %1770 = vrot.lane.b32.xlu0 %v992, 48
        %v1771 = vpop.permute.xlu0 %1770
        %1772 = vrot.lane.b32.xlu0 %v994, 48
        %v1773 = vpop.permute.xlu0 %1772
        %1774 = vrot.lane.b32.xlu0 %v995, 48
        %v1775 = vpop.permute.xlu0 %1774
        %1776 = vrot.lane.b32.xlu0 %v997, 48
        %v1777 = vpop.permute.xlu0 %1776
        %1778 = vrot.lane.b32.xlu0 %v998, 48
        %v1779 = vpop.permute.xlu0 %1778
        %1812 = vrot.lane.b32.xlu0 %v1061, 56
        %v1813 = vpop.permute.xlu0 %1812
        %1814 = vrot.lane.b32.xlu0 %v1063, 56
        %v1815 = vpop.permute.xlu0 %1814
        %1816 = vrot.lane.b32.xlu0 %v1066, 56
        %v1817 = vpop.permute.xlu0 %1816
        %1818 = vrot.lane.b32.xlu0 %v1068, 56
        %v1819 = vpop.permute.xlu0 %1818
        %1820 = vrot.lane.b32.xlu0 %v1071, 56
        %v1821 = vpop.permute.xlu0 %1820
        %1822 = vrot.lane.b32.xlu0 %v1073, 56
        %v1823 = vpop.permute.xlu0 %1822
        %1824 = vrot.lane.b32.xlu0 %v1076, 56
        %v1825 = vpop.permute.xlu0 %1824
        %1826 = vrot.lane.b32.xlu0 %v1078, 56
        %v1827 = vpop.permute.xlu0 %1826
        %1828 = vrot.lane.b32.xlu0 %v1081, 56
        %v1829 = vpop.permute.xlu0 %1828
        %1830 = vrot.lane.b32.xlu0 %v1083, 56
        %v1831 = vpop.permute.xlu0 %1830
        %1832 = vrot.lane.b32.xlu0 %v1086, 56
        %v1833 = vpop.permute.xlu0 %1832
        %1834 = vrot.lane.b32.xlu0 %v1088, 56
        %v1835 = vpop.permute.xlu0 %1834
        %1836 = vrot.lane.b32.xlu0 %v1091, 56
        %v1837 = vpop.permute.xlu0 %1836
        %1838 = vrot.lane.b32.xlu0 %v1093, 56
        %v1839 = vpop.permute.xlu0 %1838
        %1840 = vrot.lane.b32.xlu0 %v1096, 56
        %v1841 = vpop.permute.xlu0 %1840
        %1842 = vrot.lane.b32.xlu0 %v1098, 56
        %v1843 = vpop.permute.xlu0 %1842
        %1844 = vrot.lane.b32.xlu0 %v1101, 56
        %v1845 = vpop.permute.xlu0 %1844
        %1846 = vrot.lane.b32.xlu0 %v1103, 56
        %v1847 = vpop.permute.xlu0 %1846
        %1848 = vrot.lane.b32.xlu0 %v1106, 56
        %v1849 = vpop.permute.xlu0 %1848
        %1850 = vrot.lane.b32.xlu0 %v1108, 56
        %v1851 = vpop.permute.xlu0 %1850
        %1852 = vrot.lane.b32.xlu0 %v1111, 56
        %v1853 = vpop.permute.xlu0 %1852
        %1854 = vrot.lane.b32.xlu0 %v1113, 56
        %v1855 = vpop.permute.xlu0 %1854
        %1856 = vrot.lane.b32.xlu0 %v1116, 56
        %v1857 = vpop.permute.xlu0 %1856
        %1858 = vrot.lane.b32.xlu0 %v1118, 56
        %v1859 = vpop.permute.xlu0 %1858
        %1860 = vrot.lane.b32.xlu0 %v1121, 56
        %v1861 = vpop.permute.xlu0 %1860
        %1862 = vrot.lane.b32.xlu0 %v1123, 56
        %v1863 = vpop.permute.xlu0 %1862
        %1864 = vrot.lane.b32.xlu0 %v1126, 56
        %v1865 = vpop.permute.xlu0 %1864
        %1866 = vrot.lane.b32.xlu0 %v1128, 56
        %v1867 = vpop.permute.xlu0 %1866
        %1868 = vrot.lane.b32.xlu0 %v1215, 56
        %v1869 = vpop.permute.xlu0 %1868
        %1870 = vrot.lane.b32.xlu0 %v1217, 56
        %v1871 = vpop.permute.xlu0 %1870
        %1872 = vrot.lane.b32.xlu0 %v1228, 56
        %v1873 = vpop.permute.xlu0 %1872
        %1874 = vrot.lane.b32.xlu0 %v1230, 56
        %v1875 = vpop.permute.xlu0 %1874
        %1908 = vrot.lane.b32.xlu0 %v1142, 64
        %v1909 = vpop.permute.xlu0 %1908
        %1910 = vrot.lane.b32.xlu0 %v1144, 64
        %v1911 = vpop.permute.xlu0 %1910
        %1912 = vrot.lane.b32.xlu0 %v1147, 64
        %v1913 = vpop.permute.xlu0 %1912
        %1914 = vrot.lane.b32.xlu0 %v1149, 64
        %v1915 = vpop.permute.xlu0 %1914
        %1916 = vrot.lane.b32.xlu0 %v1152, 64
        %v1917 = vpop.permute.xlu0 %1916
        %1918 = vrot.lane.b32.xlu0 %v1154, 64
        %v1919 = vpop.permute.xlu0 %1918
        %1920 = vrot.lane.b32.xlu0 %v1157, 64
        %v1921 = vpop.permute.xlu0 %1920
        %1922 = vrot.lane.b32.xlu0 %v1159, 64
        %v1923 = vpop.permute.xlu0 %1922
        %1924 = vrot.lane.b32.xlu0 %v1162, 64
        %v1925 = vpop.permute.xlu0 %1924
        %1926 = vrot.lane.b32.xlu0 %v1164, 64
        %v1927 = vpop.permute.xlu0 %1926
        %1928 = vrot.lane.b32.xlu0 %v1167, 64
        %v1929 = vpop.permute.xlu0 %1928
        %1930 = vrot.lane.b32.xlu0 %v1169, 64
        %v1931 = vpop.permute.xlu0 %1930
        %1932 = vrot.lane.b32.xlu0 %v1172, 64
        %v1933 = vpop.permute.xlu0 %1932
        %1934 = vrot.lane.b32.xlu0 %v1174, 64
        %v1935 = vpop.permute.xlu0 %1934
        %1936 = vrot.lane.b32.xlu0 %v1177, 64
        %v1937 = vpop.permute.xlu0 %1936
        %1938 = vrot.lane.b32.xlu0 %v1179, 64
        %v1939 = vpop.permute.xlu0 %1938
        %1940 = vrot.lane.b32.xlu0 %v1182, 64
        %v1941 = vpop.permute.xlu0 %1940
        %1942 = vrot.lane.b32.xlu0 %v1184, 64
        %v1943 = vpop.permute.xlu0 %1942
        %1944 = vrot.lane.b32.xlu0 %v1187, 64
        %v1945 = vpop.permute.xlu0 %1944
        %1946 = vrot.lane.b32.xlu0 %v1189, 64
        %v1947 = vpop.permute.xlu0 %1946
        %1948 = vrot.lane.b32.xlu0 %v1192, 64
        %v1949 = vpop.permute.xlu0 %1948
        %1950 = vrot.lane.b32.xlu0 %v1194, 64
        %v1951 = vpop.permute.xlu0 %1950
        %1952 = vrot.lane.b32.xlu0 %v1197, 64
        %v1953 = vpop.permute.xlu0 %1952
        %1954 = vrot.lane.b32.xlu0 %v1199, 64
        %v1955 = vpop.permute.xlu0 %1954
        %1956 = vrot.lane.b32.xlu0 %v1202, 64
        %v1957 = vpop.permute.xlu0 %1956
        %1958 = vrot.lane.b32.xlu0 %v1204, 64
        %v1959 = vpop.permute.xlu0 %1958
        %1960 = vrot.lane.b32.xlu0 %v1207, 64
        %v1961 = vpop.permute.xlu0 %1960
        %1962 = vrot.lane.b32.xlu0 %v1209, 64
        %v1963 = vpop.permute.xlu0 %1962
        %1964 = vrot.lane.b32.xlu0 %v1220, 64
        %v1965 = vpop.permute.xlu0 %1964
        %1966 = vrot.lane.b32.xlu0 %v1222, 64
        %v1967 = vpop.permute.xlu0 %1966
        %1968 = vrot.lane.b32.xlu0 %v1233, 64
        %v1969 = vpop.permute.xlu0 %1968
        %1970 = vrot.lane.b32.xlu0 %v1235, 64
        %v1971 = vpop.permute.xlu0 %1970
        %v2004 = vsel %vm729, %v946, %v1237
        %v2005 = vsel %vm729, %v947, %v1239
        %v2006 = vsel %vm729, %v949, %v1241
        %v2007 = vsel %vm729, %v950, %v1243
        %v2008 = vsel %vm729, %v952, %v1245
        %v2009 = vsel %vm729, %v953, %v1247
        %v2010 = vsel %vm729, %v955, %v1249
        %v2011 = vsel %vm729, %v956, %v1251
        %v2012 = vsel %vm729, %v958, %v1253
        %v2013 = vsel %vm729, %v959, %v1255
        %v2014 = vsel %vm729, %v961, %v1257
        %v2015 = vsel %vm729, %v962, %v1259
        %v2016 = vsel %vm729, %v964, %v1261
        %v2017 = vsel %vm729, %v965, %v1263
        %v2018 = vsel %vm729, %v967, %v1265
        %v2019 = vsel %vm729, %v968, %v1267
        %v2020 = vsel %vm729, %v970, %v1269
        %v2021 = vsel %vm729, %v971, %v1271
        %v2022 = vsel %vm729, %v973, %v1273
        %v2023 = vsel %vm729, %v974, %v1275
        %v2024 = vsel %vm729, %v976, %v1277
        %v2025 = vsel %vm729, %v977, %v1279
        %v2026 = vsel %vm729, %v979, %v1281
        %v2027 = vsel %vm729, %v980, %v1283
        %v2028 = vsel %vm729, %v982, %v1285
        %v2029 = vsel %vm729, %v983, %v1287
        %v2030 = vsel %vm729, %v985, %v1289
        %v2031 = vsel %vm729, %v986, %v1291
        %v2032 = vsel %vm729, %v988, %v1293
        %v2033 = vsel %vm729, %v989, %v1295
        %v2034 = vsel %vm729, %v991, %v1297
        %v2035 = vsel %vm729, %v992, %v1299
        %vm2036 = vcmask 130048
        %v2037 = vsel %vm2036, %v2004, %v1333
        %v2038 = vsel %vm2036, %v2005, %v1335
        %v2039 = vsel %vm2036, %v2006, %v1337
        %v2040 = vsel %vm2036, %v2007, %v1339
        %v2041 = vsel %vm2036, %v2008, %v1341
        %v2042 = vsel %vm2036, %v2009, %v1343
        %v2043 = vsel %vm2036, %v2010, %v1345
        %v2044 = vsel %vm2036, %v2011, %v1347
        %v2045 = vsel %vm2036, %v2012, %v1349
        %v2046 = vsel %vm2036, %v2013, %v1351
        %v2047 = vsel %vm2036, %v2014, %v1353
        %v2048 = vsel %vm2036, %v2015, %v1355
        %v2049 = vsel %vm2036, %v2016, %v1357
        %v2050 = vsel %vm2036, %v2017, %v1359
        %v2051 = vsel %vm2036, %v2018, %v1361
        %v2052 = vsel %vm2036, %v2019, %v1363
        %v2053 = vsel %vm2036, %v2020, %v1365
        %v2054 = vsel %vm2036, %v2021, %v1367
        %v2055 = vsel %vm2036, %v2022, %v1369
        %v2056 = vsel %vm2036, %v2023, %v1371
        %v2057 = vsel %vm2036, %v2024, %v1373
        %v2058 = vsel %vm2036, %v2025, %v1375
        %v2059 = vsel %vm2036, %v2026, %v1377
        %v2060 = vsel %vm2036, %v2027, %v1379
        %v2061 = vsel %vm2036, %v2028, %v1381
        %v2062 = vsel %vm2036, %v2029, %v1383
        %v2063 = vsel %vm2036, %v2030, %v1385
        %v2064 = vsel %vm2036, %v2031, %v1387
        %v2065 = vsel %vm2036, %v2032, %v1389
        %v2066 = vsel %vm2036, %v2033, %v1391
        %v2067 = vsel %vm2036, %v2034, %v1393
        %v2068 = vsel %vm2036, %v2035, %v1395
        %vm2069 = vcmask 195584
        %v2070 = vsel %vm2069, %v2037, %v1429
        %v2071 = vsel %vm2069, %v2038, %v1431
        %v2072 = vsel %vm2069, %v2039, %v1433
        %v2073 = vsel %vm2069, %v2040, %v1435
        %v2074 = vsel %vm2069, %v2041, %v1437
        %v2075 = vsel %vm2069, %v2042, %v1439
        %v2076 = vsel %vm2069, %v2043, %v1441
        %v2077 = vsel %vm2069, %v2044, %v1443
        %v2078 = vsel %vm2069, %v2045, %v1445
        %v2079 = vsel %vm2069, %v2046, %v1447
        %v2080 = vsel %vm2069, %v2047, %v1449
        %v2081 = vsel %vm2069, %v2048, %v1451
        %v2082 = vsel %vm2069, %v2049, %v1453
        %v2083 = vsel %vm2069, %v2050, %v1455
        %v2084 = vsel %vm2069, %v2051, %v1457
        %v2085 = vsel %vm2069, %v2052, %v1459
        %v2086 = vsel %vm2069, %v2053, %v1461
        %v2087 = vsel %vm2069, %v2054, %v1463
        %v2088 = vsel %vm2069, %v2055, %v1465
        %v2089 = vsel %vm2069, %v2056, %v1467
        %v2090 = vsel %vm2069, %v2057, %v1469
        %v2091 = vsel %vm2069, %v2058, %v1471
        %v2092 = vsel %vm2069, %v2059, %v1473
        %v2093 = vsel %vm2069, %v2060, %v1475
        %v2094 = vsel %vm2069, %v2061, %v1477
        %v2095 = vsel %vm2069, %v2062, %v1479
        %v2096 = vsel %vm2069, %v2063, %v1481
        %v2097 = vsel %vm2069, %v2064, %v1483
        %v2098 = vsel %vm2069, %v2065, %v1485
        %v2099 = vsel %vm2069, %v2066, %v1487
        %v2100 = vsel %vm2069, %v2067, %v1489
        %v2101 = vsel %vm2069, %v2068, %v1491
        %vm2102 = vcmask 261120
        %v2103 = vsel %vm2102, %v2070, %v1525
        %v2104 = vsel %vm2102, %v2071, %v1527
        %v2105 = vsel %vm2102, %v2072, %v1529
        %v2106 = vsel %vm2102, %v2073, %v1531
        %v2107 = vsel %vm2102, %v2074, %v1533
        %v2108 = vsel %vm2102, %v2075, %v1535
        %v2109 = vsel %vm2102, %v2076, %v1537
        %v2110 = vsel %vm2102, %v2077, %v1539
        %v2111 = vsel %vm2102, %v2078, %v1541
        %v2112 = vsel %vm2102, %v2079, %v1543
        %v2113 = vsel %vm2102, %v2080, %v1545
        %v2114 = vsel %vm2102, %v2081, %v1547
        %v2115 = vsel %vm2102, %v2082, %v1549
        %v2116 = vsel %vm2102, %v2083, %v1551
        %v2117 = vsel %vm2102, %v2084, %v1553
        %v2118 = vsel %vm2102, %v2085, %v1555
        %v2119 = vsel %vm2102, %v2086, %v1557
        %v2120 = vsel %vm2102, %v2087, %v1559
        %v2121 = vsel %vm2102, %v2088, %v1561
        %v2122 = vsel %vm2102, %v2089, %v1563
        %v2123 = vsel %vm2102, %v2090, %v1565
        %v2124 = vsel %vm2102, %v2091, %v1567
        %v2125 = vsel %vm2102, %v2092, %v1569
        %v2126 = vsel %vm2102, %v2093, %v1571
        %v2127 = vsel %vm2102, %v2094, %v1573
        %v2128 = vsel %vm2102, %v2095, %v1575
        %v2129 = vsel %vm2102, %v2096, %v1577
        %v2130 = vsel %vm2102, %v2097, %v1579
        %v2131 = vsel %vm2102, %v2098, %v1581
        %v2132 = vsel %vm2102, %v2099, %v1583
        %v2133 = vsel %vm2102, %v2100, %v1585
        %v2134 = vsel %vm2102, %v2101, %v1587
        %vm2135 = vcmask 326656
        %v2136 = vsel %vm2135, %v2103, %v1621
        %v2137 = vsel %vm2135, %v2104, %v1623
        %v2138 = vsel %vm2135, %v2105, %v1625
        %v2139 = vsel %vm2135, %v2106, %v1627
        %v2140 = vsel %vm2135, %v2107, %v1629
        %v2141 = vsel %vm2135, %v2108, %v1631
        %v2142 = vsel %vm2135, %v2109, %v1633
        %v2143 = vsel %vm2135, %v2110, %v1635
        %v2144 = vsel %vm2135, %v2111, %v1637
        %v2145 = vsel %vm2135, %v2112, %v1639
        %v2146 = vsel %vm2135, %v2113, %v1641
        %v2147 = vsel %vm2135, %v2114, %v1643
        %v2148 = vsel %vm2135, %v2115, %v1645
        %v2149 = vsel %vm2135, %v2116, %v1647
        %v2150 = vsel %vm2135, %v2117, %v1649
        %v2151 = vsel %vm2135, %v2118, %v1651
        %v2152 = vsel %vm2135, %v2119, %v1653
        %v2153 = vsel %vm2135, %v2120, %v1655
        %v2154 = vsel %vm2135, %v2121, %v1657
        %v2155 = vsel %vm2135, %v2122, %v1659
        %v2156 = vsel %vm2135, %v2123, %v1661
        %v2157 = vsel %vm2135, %v2124, %v1663
        %v2158 = vsel %vm2135, %v2125, %v1665
        %v2159 = vsel %vm2135, %v2126, %v1667
        %v2160 = vsel %vm2135, %v2127, %v1669
        %v2161 = vsel %vm2135, %v2128, %v1671
        %v2162 = vsel %vm2135, %v2129, %v1673
        %v2163 = vsel %vm2135, %v2130, %v1675
        %v2164 = vsel %vm2135, %v2131, %v1677
        %v2165 = vsel %vm2135, %v2132, %v1679
        %v2166 = vsel %vm2135, %v2133, %v1681
        %v2167 = vsel %vm2135, %v2134, %v1683
        %vm2168 = vcmask 392192
        %v2169 = vsel %vm2168, %v2136, %v1717
        %v2170 = vsel %vm2168, %v2137, %v1719
        %v2171 = vsel %vm2168, %v2138, %v1721
        %v2172 = vsel %vm2168, %v2139, %v1723
        %v2173 = vsel %vm2168, %v2140, %v1725
        %v2174 = vsel %vm2168, %v2141, %v1727
        %v2175 = vsel %vm2168, %v2142, %v1729
        %v2176 = vsel %vm2168, %v2143, %v1731
        %v2177 = vsel %vm2168, %v2144, %v1733
        %v2178 = vsel %vm2168, %v2145, %v1735
        %v2179 = vsel %vm2168, %v2146, %v1737
        %v2180 = vsel %vm2168, %v2147, %v1739
        %v2181 = vsel %vm2168, %v2148, %v1741
        %v2182 = vsel %vm2168, %v2149, %v1743
        %v2183 = vsel %vm2168, %v2150, %v1745
        %v2184 = vsel %vm2168, %v2151, %v1747
        %v2185 = vsel %vm2168, %v2152, %v1749
        %v2186 = vsel %vm2168, %v2153, %v1751
        %v2187 = vsel %vm2168, %v2154, %v1753
        %v2188 = vsel %vm2168, %v2155, %v1755
        %v2189 = vsel %vm2168, %v2156, %v1757
        %v2190 = vsel %vm2168, %v2157, %v1759
        %v2191 = vsel %vm2168, %v2158, %v1761
        %v2192 = vsel %vm2168, %v2159, %v1763
        %v2193 = vsel %vm2168, %v2160, %v1765
        %v2194 = vsel %vm2168, %v2161, %v1767
        %v2195 = vsel %vm2168, %v2162, %v1769
        %v2196 = vsel %vm2168, %v2163, %v1771
        %v2197 = vsel %vm2168, %v2164, %v1773
        %v2198 = vsel %vm2168, %v2165, %v1775
        %v2199 = vsel %vm2168, %v2166, %v1777
        %v2200 = vsel %vm2168, %v2167, %v1779
        %vm2201 = vcmask 457728
        %v2202 = vsel %vm2201, %v2169, %v1813
        %v2203 = vsel %vm2201, %v2170, %v1815
        %v2204 = vsel %vm2201, %v2171, %v1817
        %v2205 = vsel %vm2201, %v2172, %v1819
        %v2206 = vsel %vm2201, %v2173, %v1821
        %v2207 = vsel %vm2201, %v2174, %v1823
        %v2208 = vsel %vm2201, %v2175, %v1825
        %v2209 = vsel %vm2201, %v2176, %v1827
        %v2210 = vsel %vm2201, %v2177, %v1829
        %v2211 = vsel %vm2201, %v2178, %v1831
        %v2212 = vsel %vm2201, %v2179, %v1833
        %v2213 = vsel %vm2201, %v2180, %v1835
        %v2214 = vsel %vm2201, %v2181, %v1837
        %v2215 = vsel %vm2201, %v2182, %v1839
        %v2216 = vsel %vm2201, %v2183, %v1841
        %v2217 = vsel %vm2201, %v2184, %v1843
        %v2218 = vsel %vm2201, %v2185, %v1845
        %v2219 = vsel %vm2201, %v2186, %v1847
        %v2220 = vsel %vm2201, %v2187, %v1849
        %v2221 = vsel %vm2201, %v2188, %v1851
        %v2222 = vsel %vm2201, %v2189, %v1853
        %v2223 = vsel %vm2201, %v2190, %v1855
        %v2224 = vsel %vm2201, %v2191, %v1857
        %v2225 = vsel %vm2201, %v2192, %v1859
        %v2226 = vsel %vm2201, %v2193, %v1861
        %v2227 = vsel %vm2201, %v2194, %v1863
        %v2228 = vsel %vm2201, %v2195, %v1865
        %v2229 = vsel %vm2201, %v2196, %v1867
        %v2230 = vsel %vm2201, %v2197, %v1869
        %v2231 = vsel %vm2201, %v2198, %v1871
        %v2232 = vsel %vm2201, %v2199, %v1873
        %v2233 = vsel %vm2201, %v2200, %v1875
        %vm2234 = vcmask 523264
        %v2235 = vsel %vm2234, %v2202, %v1909
        %v2236 = vsel %vm2234, %v2203, %v1911
        %v2237 = vsel %vm2234, %v2204, %v1913
        %v2238 = vsel %vm2234, %v2205, %v1915
        %v2239 = vsel %vm2234, %v2206, %v1917
        %v2240 = vsel %vm2234, %v2207, %v1919
        %v2241 = vsel %vm2234, %v2208, %v1921
        %v2242 = vsel %vm2234, %v2209, %v1923
        %v2243 = vsel %vm2234, %v2210, %v1925
        %v2244 = vsel %vm2234, %v2211, %v1927
        %v2245 = vsel %vm2234, %v2212, %v1929
        %v2246 = vsel %vm2234, %v2213, %v1931
        %v2247 = vsel %vm2234, %v2214, %v1933
        %v2248 = vsel %vm2234, %v2215, %v1935
        %v2249 = vsel %vm2234, %v2216, %v1937
        %v2250 = vsel %vm2234, %v2217, %v1939
        %v2251 = vsel %vm2234, %v2218, %v1941
        %v2252 = vsel %vm2234, %v2219, %v1943
        %v2253 = vsel %vm2234, %v2220, %v1945
        %v2254 = vsel %vm2234, %v2221, %v1947
        %v2255 = vsel %vm2234, %v2222, %v1949
        %v2256 = vsel %vm2234, %v2223, %v1951
        %v2257 = vsel %vm2234, %v2224, %v1953
        %v2258 = vsel %vm2234, %v2225, %v1955
        %v2259 = vsel %vm2234, %v2226, %v1957
        %v2260 = vsel %vm2234, %v2227, %v1959
        %v2261 = vsel %vm2234, %v2228, %v1961
        %v2262 = vsel %vm2234, %v2229, %v1963
        %v2263 = vsel %vm2234, %v2230, %v1965
        %v2264 = vsel %vm2234, %v2231, %v1967
        %v2265 = vsel %vm2234, %v2232, %v1969
        %v2266 = vsel %vm2234, %v2233, %v1971
        %v2267 = vld [vmem:[%s3] sm:$0xff]
        %v2268 = vld [vmem:[%s3 + $0x8] sm:$0xff]
        %v2269 = vld [vmem:[%s3 + $0x10] sm:$0xff]
        %v2270 = vld [vmem:[%s3 + $0x18] sm:$0xff]
        %v2271 = vld [vmem:[%s3 + $0x20] sm:$0xff]
        %v2272 = vld [vmem:[%s3 + $0x28] sm:$0xff]
        %v2273 = vld [vmem:[%s3 + $0x30] sm:$0xff]
        %v2274 = vld [vmem:[%s3 + $0x38] sm:$0xff]
        %v2275 = vld [vmem:[%s3 + $0x40] sm:$0xff]
        %v2276 = vld [vmem:[%s4] sm:$0x1]
        %v2278 = vlaneseq
        %v2279 = vshrl.u32 %v2278, 7
        %v2280 = vsub.s32 0, %v2279
        %v2281 = vrot.slane %v2276, %v2280
        %vm2283 = vcmask 588800
        %v2285 = vsel %vm2283, %v2235, 0
        %v2288 = vsel %vm2283, %v2236, 0
        %v2291 = vsel %vm2283, %v2237, 0
        %v2294 = vsel %vm2283, %v2238, 0
        %v2297 = vsel %vm2283, %v2239, 0
        %v2300 = vsel %vm2283, %v2240, 0
        %v2303 = vsel %vm2283, %v2241, 0
        %v2306 = vsel %vm2283, %v2242, 0
        %v2309 = vsel %vm2283, %v2243, 0
        %v2312 = vsel %vm2283, %v2244, 0
        %v2315 = vsel %vm2283, %v2245, 0
        %v2318 = vsel %vm2283, %v2246, 0
        %v2321 = vsel %vm2283, %v2247, 0
        %v2324 = vsel %vm2283, %v2248, 0
        %v2327 = vsel %vm2283, %v2249, 0
        %v2330 = vsel %vm2283, %v2250, 0
        %v2333 = vsel %vm2283, %v2251, 0
        %v2336 = vsel %vm2283, %v2252, 0
        %v2339 = vsel %vm2283, %v2253, 0
        %v2342 = vsel %vm2283, %v2254, 0
        %v2345 = vsel %vm2283, %v2255, 0
        %v2348 = vsel %vm2283, %v2256, 0
        %v2351 = vsel %vm2283, %v2257, 0
        %v2354 = vsel %vm2283, %v2258, 0
        %v2357 = vsel %vm2283, %v2259, 0
        %v2360 = vsel %vm2283, %v2260, 0
        %v2363 = vsel %vm2283, %v2261, 0
        %v2366 = vsel %vm2283, %v2262, 0
        %v2369 = vsel %vm2283, %v2263, 0
        %v2372 = vsel %vm2283, %v2264, 0
        %v2375 = vsel %vm2283, %v2265, 0
        %v2378 = vsel %vm2283, %v2266, 0
        %2380 = vmatprep.subr.mxu0 0.0
        %2381 = vmatpush1.msra.mxu0 %v2267
        %2382 = vmatprep.subr.mxu0 0.0
        %2383 = vmatpush1.msra.mxu0 %v2268
        %2384 = vmatprep.subr.mxu0 0.0
        %2385 = vmatpush1.msra.mxu0 %v2269
        %2386 = vmatprep.subr.mxu0 0.0
        %2387 = vmatpush1.msra.mxu0 %v2270
        %2388 = vmatprep.subr.mxu0 0.0
        %2389 = vmatpush1.msra.mxu0 %v2271
        %2390 = vmatprep.subr.mxu0 0.0
        %2391 = vmatpush1.msra.mxu0 %v2272
        %2392 = vmatprep.subr.mxu0 0.0
        %2393 = vmatpush1.msra.mxu0 %v2273
        %2394 = vmatprep.subr.mxu0 0.0
        %2395 = vmatpush1.msra.mxu0 %v2274
        %2396 = vmatprep.subr.mxu0 0.0
        %2397 = vmatpush1.msra.mxu0 %v2275
        %2398 = vmatprep.subr.mxu0 0.0
        %2399 = vmatpush1.msra.mxu0 0.0
        %2400 = vmatprep.subr.mxu0 0.0
        %2401 = vmatpush1.msra.mxu0 0.0
        %2402 = vmatprep.subr.mxu0 0.0
        %2403 = vmatpush1.msra.mxu0 0.0
        %2404 = vmatprep.subr.mxu0 0.0
        %2405 = vmatpush1.msra.mxu0 0.0
        %2406 = vmatprep.subr.mxu0 0.0
        %2407 = vmatpush1.msra.mxu0 0.0
        %2408 = vmatprep.subr.mxu0 0.0
        %2409 = vmatpush1.msra.mxu0 0.0
        %2410 = vmatprep.subr.mxu0 0.0
        %2411 = vmatpush1.msra.mxu0 0.0
        %2412 = vmatprep.subr.mxu0 0.0
        %2413 = vmatpush1.msra.mxu0 0.0
        %2414 = vmatprep.subr.mxu0 0.0
        %2415 = vmatpush1.msra.mxu0 0.0
        %2416 = vmatprep.subr.mxu0 0.0
        %2417 = vmatpush1.msra.mxu0 0.0
        %2418 = vmatprep.subr.mxu0 0.0
        %2419 = vmatpush1.msra.mxu0 0.0
        %2420 = vmatprep.subr.mxu0 0.0
        %2421 = vmatpush1.msra.mxu0 0.0
        %2422 = vmatprep.subr.mxu0 0.0
        %2423 = vmatpush1.msra.mxu0 0.0
        %2424 = vmatprep.subr.mxu0 0.0
        %2425 = vmatpush1.msra.mxu0 0.0
        %2426 = vmatprep.subr.mxu0 0.0
        %2427 = vmatpush1.msra.mxu0 0.0
        %2428 = vmatprep.subr.mxu0 0.0
        %2429 = vmatpush1.msra.mxu0 0.0
        %2430 = vmatprep.subr.mxu0 0.0
        %2431 = vmatpush1.msra.mxu0 0.0
        %2432 = vmatprep.subr.mxu0 0.0
        %2433 = vmatpush1.msra.mxu0 0.0
        %2434 = vmatprep.subr.mxu0 0.0
        %2435 = vmatpush1.msra.mxu0 0.0
        %2436 = vmatprep.subr.mxu0 0.0
        %2437 = vmatpush1.msra.mxu0 0.0
        %2438 = vmatprep.subr.mxu0 0.0
        %2439 = vmatpush1.msra.mxu0 0.0
        %2440 = vmatprep.subr.mxu0 0.0
        %2441 = vmatpush1.msra.mxu0 0.0
        %2442 = vmatprep.subr.mxu0 0.0
        %2443 = vmatpush1.msra.mxu0 0.0
        %2444 = vmatprep.mubr.f32.mxu0 0.0
        %2445 = vmatmul.mubr.f32.gmra.mrb[0].mxu0 %v2285
        %v2446 = vpop.f32.mrb[0].mxu0
        %v2447 = vadd.f32 %v2281, %v2446
        %v2448 = vpop.f32.mrb[0].mxu0
        %2449 = vmatprep.mubr.f32.mxu0 0.0
        %2450 = vmatmul.mubr.f32.gmra.mrb[0].mxu0 %v2288
        %v2451 = vpop.f32.mrb[0].mxu0
        %v2452 = vadd.f32 %v2281, %v2451
        %v2453 = vpop.f32.mrb[0].mxu0
        %2454 = vmatprep.mubr.f32.mxu0 0.0
        %2455 = vmatmul.mubr.f32.gmra.mrb[0].mxu0 %v2291
        %v2456 = vpop.f32.mrb[0].mxu0
        %v2457 = vadd.f32 %v2281, %v2456
        %v2458 = vpop.f32.mrb[0].mxu0
        %2459 = vmatprep.mubr.f32.mxu0 0.0
        %2460 = vmatmul.mubr.f32.gmra.mrb[0].mxu0 %v2294
        %v2461 = vpop.f32.mrb[0].mxu0
        %v2462 = vadd.f32 %v2281, %v2461
        %v2463 = vpop.f32.mrb[0].mxu0
        %2464 = vmatprep.mubr.f32.mxu0 0.0
        %2465 = vmatmul.mubr.f32.gmra.mrb[0].mxu0 %v2297
        %v2466 = vpop.f32.mrb[0].mxu0
        %v2467 = vadd.f32 %v2281, %v2466
        %v2468 = vpop.f32.mrb[0].mxu0
        %2469 = vmatprep.mubr.f32.mxu0 0.0
        %2470 = vmatmul.mubr.f32.gmra.mrb[0].mxu0 %v2300
        %v2471 = vpop.f32.mrb[0].mxu0
        %v2472 = vadd.f32 %v2281, %v2471
        %v2473 = vpop.f32.mrb[0].mxu0
        %2474 = vmatprep.mubr.f32.mxu0 0.0
        %2475 = vmatmul.mubr.f32.gmra.mrb[0].mxu0 %v2303
        %v2476 = vpop.f32.mrb[0].mxu0
        %v2477 = vadd.f32 %v2281, %v2476
        %v2478 = vpop.f32.mrb[0].mxu0
        %2479 = vmatprep.mubr.f32.mxu0 0.0
        %2480 = vmatmul.mubr.f32.gmra.mrb[0].mxu0 %v2306
        %v2481 = vpop.f32.mrb[0].mxu0
        %v2482 = vadd.f32 %v2281, %v2481
        %v2483 = vpop.f32.mrb[0].mxu0
        %2484 = vmatprep.mubr.f32.mxu0 0.0
        %2485 = vmatmul.mubr.f32.gmra.mrb[0].mxu0 %v2309
        %v2486 = vpop.f32.mrb[0].mxu0
        %v2487 = vadd.f32 %v2281, %v2486
        %v2488 = vpop.f32.mrb[0].mxu0
        %2489 = vmatprep.mubr.f32.mxu0 0.0
        %2490 = vmatmul.mubr.f32.gmra.mrb[0].mxu0 %v2312
        %v2491 = vpop.f32.mrb[0].mxu0
        %v2492 = vadd.f32 %v2281, %v2491
        %v2493 = vpop.f32.mrb[0].mxu0
        %2494 = vmatprep.mubr.f32.mxu0 0.0
        %2495 = vmatmul.mubr.f32.gmra.mrb[0].mxu0 %v2315
        %v2496 = vpop.f32.mrb[0].mxu0
        %v2497 = vadd.f32 %v2281, %v2496
        %v2498 = vpop.f32.mrb[0].mxu0
        %2499 = vmatprep.mubr.f32.mxu0 0.0
        %2500 = vmatmul.mubr.f32.gmra.mrb[0].mxu0 %v2318
        %v2501 = vpop.f32.mrb[0].mxu0
        %v2502 = vadd.f32 %v2281, %v2501
        %v2503 = vpop.f32.mrb[0].mxu0
        %2504 = vmatprep.mubr.f32.mxu0 0.0
        %2505 = vmatmul.mubr.f32.gmra.mrb[0].mxu0 %v2321
        %v2506 = vpop.f32.mrb[0].mxu0
        %v2507 = vadd.f32 %v2281, %v2506
        %v2508 = vpop.f32.mrb[0].mxu0
        %2509 = vmatprep.mubr.f32.mxu0 0.0
        %2510 = vmatmul.mubr.f32.gmra.mrb[0].mxu0 %v2324
        %v2511 = vpop.f32.mrb[0].mxu0
        %v2512 = vadd.f32 %v2281, %v2511
        %v2513 = vpop.f32.mrb[0].mxu0
        %2514 = vmatprep.mubr.f32.mxu0 0.0
        %2515 = vmatmul.mubr.f32.gmra.mrb[0].mxu0 %v2327
        %v2516 = vpop.f32.mrb[0].mxu0
        %v2517 = vadd.f32 %v2281, %v2516
        %v2518 = vpop.f32.mrb[0].mxu0
        %2519 = vmatprep.mubr.f32.mxu0 0.0
        %2520 = vmatmul.mubr.f32.gmra.mrb[0].mxu0 %v2330
        %v2521 = vpop.f32.mrb[0].mxu0
        %v2522 = vadd.f32 %v2281, %v2521
        %v2523 = vpop.f32.mrb[0].mxu0
        %2524 = vmatprep.mubr.f32.mxu0 0.0
        %2525 = vmatmul.mubr.f32.gmra.mrb[0].mxu0 %v2333
        %v2526 = vpop.f32.mrb[0].mxu0
        %v2527 = vadd.f32 %v2281, %v2526
        %v2528 = vpop.f32.mrb[0].mxu0
        %2529 = vmatprep.mubr.f32.mxu0 0.0
        %2530 = vmatmul.mubr.f32.gmra.mrb[0].mxu0 %v2336
        %v2531 = vpop.f32.mrb[0].mxu0
        %v2532 = vadd.f32 %v2281, %v2531
        %v2533 = vpop.f32.mrb[0].mxu0
        %2534 = vmatprep.mubr.f32.mxu0 0.0
        %2535 = vmatmul.mubr.f32.gmra.mrb[0].mxu0 %v2339
        %v2536 = vpop.f32.mrb[0].mxu0
        %v2537 = vadd.f32 %v2281, %v2536
        %v2538 = vpop.f32.mrb[0].mxu0
        %2539 = vmatprep.mubr.f32.mxu0 0.0
        %2540 = vmatmul.mubr.f32.gmra.mrb[0].mxu0 %v2342
        %v2541 = vpop.f32.mrb[0].mxu0
        %v2542 = vadd.f32 %v2281, %v2541
        %v2543 = vpop.f32.mrb[0].mxu0
        %2544 = vmatprep.mubr.f32.mxu0 0.0
        %2545 = vmatmul.mubr.f32.gmra.mrb[0].mxu0 %v2345
        %v2546 = vpop.f32.mrb[0].mxu0
        %v2547 = vadd.f32 %v2281, %v2546
        %v2548 = vpop.f32.mrb[0].mxu0
        %2549 = vmatprep.mubr.f32.mxu0 0.0
        %2550 = vmatmul.mubr.f32.gmra.mrb[0].mxu0 %v2348
        %v2551 = vpop.f32.mrb[0].mxu0
        %v2552 = vadd.f32 %v2281, %v2551
        %v2553 = vpop.f32.mrb[0].mxu0
        %2554 = vmatprep.mubr.f32.mxu0 0.0
        %2555 = vmatmul.mubr.f32.gmra.mrb[0].mxu0 %v2351
        %v2556 = vpop.f32.mrb[0].mxu0
        %v2557 = vadd.f32 %v2281, %v2556
        %v2558 = vpop.f32.mrb[0].mxu0
        %2559 = vmatprep.mubr.f32.mxu0 0.0
        %2560 = vmatmul.mubr.f32.gmra.mrb[0].mxu0 %v2354
        %v2561 = vpop.f32.mrb[0].mxu0
        %v2562 = vadd.f32 %v2281, %v2561
        %v2563 = vpop.f32.mrb[0].mxu0
        %2564 = vmatprep.mubr.f32.mxu0 0.0
        %2565 = vmatmul.mubr.f32.gmra.mrb[0].mxu0 %v2357
        %v2566 = vpop.f32.mrb[0].mxu0
        %v2567 = vadd.f32 %v2281, %v2566
        %v2568 = vpop.f32.mrb[0].mxu0
        %2569 = vmatprep.mubr.f32.mxu0 0.0
        %2570 = vmatmul.mubr.f32.gmra.mrb[0].mxu0 %v2360
        %v2571 = vpop.f32.mrb[0].mxu0
        %v2572 = vadd.f32 %v2281, %v2571
        %v2573 = vpop.f32.mrb[0].mxu0
        %2574 = vmatprep.mubr.f32.mxu0 0.0
        %2575 = vmatmul.mubr.f32.gmra.mrb[0].mxu0 %v2363
        %v2576 = vpop.f32.mrb[0].mxu0
        %v2577 = vadd.f32 %v2281, %v2576
        %v2578 = vpop.f32.mrb[0].mxu0
        %2579 = vmatprep.mubr.f32.mxu0 0.0
        %2580 = vmatmul.mubr.f32.gmra.mrb[0].mxu0 %v2366
        %v2581 = vpop.f32.mrb[0].mxu0
        %v2582 = vadd.f32 %v2281, %v2581
        %v2583 = vpop.f32.mrb[0].mxu0
        %2584 = vmatprep.mubr.f32.mxu0 0.0
        %2585 = vmatmul.mubr.f32.gmra.mrb[0].mxu0 %v2369
        %v2586 = vpop.f32.mrb[0].mxu0
        %v2587 = vadd.f32 %v2281, %v2586
        %v2588 = vpop.f32.mrb[0].mxu0
        %2589 = vmatprep.mubr.f32.mxu0 0.0
        %2590 = vmatmul.mubr.f32.gmra.mrb[0].mxu0 %v2372
        %v2591 = vpop.f32.mrb[0].mxu0
        %v2592 = vadd.f32 %v2281, %v2591
        %v2593 = vpop.f32.mrb[0].mxu0
        %2594 = vmatprep.mubr.f32.mxu0 0.0
        %2595 = vmatmul.mubr.f32.gmra.mrb[0].mxu0 %v2375
        %v2596 = vpop.f32.mrb[0].mxu0
        %v2597 = vadd.f32 %v2281, %v2596
        %v2598 = vpop.f32.mrb[0].mxu0
        %2599 = vmatprep.mubr.f32.mxu0 0.0
        %2600 = vmatmul.mubr.f32.gmra.mrb[0].mxu0 %v2378
        %v2601 = vpop.f32.mrb[0].mxu0
        %v2602 = vadd.f32 %v2281, %v2601
        %v2603 = vpop.f32.mrb[0].mxu0
        %2604 = vdwg.mxu0
        %v2605 = vmax.f32 %v2447, 0.0
        %v2606 = vmax.f32 %v2452, 0.0
        %v2607 = vmax.f32 %v2457, 0.0
        %v2608 = vmax.f32 %v2462, 0.0
        %v2609 = vmax.f32 %v2467, 0.0
        %v2610 = vmax.f32 %v2472, 0.0
        %v2611 = vmax.f32 %v2477, 0.0
        %v2612 = vmax.f32 %v2482, 0.0
        %v2613 = vmax.f32 %v2487, 0.0
        %v2614 = vmax.f32 %v2492, 0.0
        %v2615 = vmax.f32 %v2497, 0.0
        %v2616 = vmax.f32 %v2502, 0.0
        %v2617 = vmax.f32 %v2507, 0.0
        %v2618 = vmax.f32 %v2512, 0.0
        %v2619 = vmax.f32 %v2517, 0.0
        %v2620 = vmax.f32 %v2522, 0.0
        %v2621 = vmax.f32 %v2527, 0.0
        %v2622 = vmax.f32 %v2532, 0.0
        %v2623 = vmax.f32 %v2537, 0.0
        %v2624 = vmax.f32 %v2542, 0.0
        %v2625 = vmax.f32 %v2547, 0.0
        %v2626 = vmax.f32 %v2552, 0.0
        %v2627 = vmax.f32 %v2557, 0.0
        %v2628 = vmax.f32 %v2562, 0.0
        %v2629 = vmax.f32 %v2567, 0.0
        %v2630 = vmax.f32 %v2572, 0.0
        %v2631 = vmax.f32 %v2577, 0.0
        %v2632 = vmax.f32 %v2582, 0.0
        %v2633 = vmax.f32 %v2587, 0.0
        %v2634 = vmax.f32 %v2592, 0.0
        %v2635 = vmax.f32 %v2597, 0.0
        %v2636 = vmax.f32 %v2602, 0.0
        %2637 = vst.msk [vmem:[#allocation3] sm:$0xff] %vm371, 0.0
        %2638 = vst.msk [vmem:[#allocation3 + $0x8] sm:$0xff] %vm371, 0.0
        %vm2639 = vcmask 27648
        %2640 = vst.msk [vmem:[#allocation3 + $0x10] sm:$0xf] %vm2639, 0.0
        %2641 = vst.msk [vmem:[#allocation3 + $0x18] sm:$0xff] %vm371, 0.0
        %2642 = vst.msk [vmem:[#allocation3 + $0x20] sm:$0xff] %vm371, 0.0
        %2643 = vst.msk [vmem:[#allocation3 + $0x28] sm:$0xf] %vm2639, 0.0
        %2644 = vst.msk [vmem:[#allocation3 + $0x30] sm:$0xff] %vm371, 0.0
        %2645 = vst.msk [vmem:[#allocation3 + $0x38] sm:$0xff] %vm371, 0.0
        %2646 = vst.msk [vmem:[#allocation3 + $0x40] sm:$0xf] %vm2639, 0.0
        %2647 = vst.msk [vmem:[#allocation3 + $0x48] sm:$0xff] %vm371, 0.0
        %2648 = vst.msk [vmem:[#allocation3 + $0x50] sm:$0xff] %vm371, 0.0
        %2649 = vst.msk [vmem:[#allocation3 + $0x58] sm:$0xf] %vm2639, 0.0
        %2650 = vst.msk [vmem:[#allocation3 + $0x60] sm:$0xff] %vm371, 0.0
        %2651 = vst.msk [vmem:[#allocation3 + $0x68] sm:$0xff] %vm371, 0.0
        %2652 = vst.msk [vmem:[#allocation3 + $0x70] sm:$0xf] %vm2639, 0.0
        %2653 = vst.msk [vmem:[#allocation3 + $0x78] sm:$0xff] %vm371, 0.0
        %2654 = vst.msk [vmem:[#allocation3 + $0x80] sm:$0xff] %vm371, 0.0
        %2655 = vst.msk [vmem:[#allocation3 + $0x88] sm:$0xf] %vm2639, 0.0
        %2656 = vst.msk [vmem:[#allocation3 + $0x90] sm:$0xff] %vm371, 0.0
        %2657 = vst.msk [vmem:[#allocation3 + $0x98] sm:$0xff] %vm371, 0.0
        %2658 = vst.msk [vmem:[#allocation3 + $0xa0] sm:$0xf] %vm2639, 0.0
        %2659 = vst.msk [vmem:[#allocation3 + $0xa8] sm:$0xff] %vm371, 0.0
        %2660 = vst.msk [vmem:[#allocation3 + $0xb0] sm:$0xff] %vm371, 0.0
        %2661 = vst.msk [vmem:[#allocation3 + $0xb8] sm:$0xf] %vm2639, 0.0
        %2662 = vst.msk [vmem:[#allocation3 + $0xc0] sm:$0xff] %vm371, 0.0
        %2663 = vst.msk [vmem:[#allocation3 + $0xc8] sm:$0xff] %vm371, 0.0
        %2664 = vst.msk [vmem:[#allocation3 + $0xd0] sm:$0xf] %vm2639, 0.0
        %2665 = vst.msk [vmem:[#allocation3 + $0xd8] sm:$0xff] %vm371, 0.0
        %2666 = vst.msk [vmem:[#allocation3 + $0xe0] sm:$0xff] %vm371, 0.0
        %2667 = vst.msk [vmem:[#allocation3 + $0xe8] sm:$0xf] %vm2639, 0.0
        %2668 = vst.msk [vmem:[#allocation3 + $0xf0] sm:$0xff] %vm371, 0.0
        %2669 = vst.msk [vmem:[#allocation3 + $0xf8] sm:$0xff] %vm371, 0.0
        %2670 = vst.msk [vmem:[#allocation3 + $0x100] sm:$0xf] %vm2639, 0.0
        %2671 = vst.msk [vmem:[#allocation3 + $0x108] sm:$0xff] %vm371, 0.0
        %2672 = vst.msk [vmem:[#allocation3 + $0x110] sm:$0xff] %vm371, 0.0
        %2673 = vst.msk [vmem:[#allocation3 + $0x118] sm:$0xf] %vm2639, 0.0
        %2674 = vst.msk [vmem:[#allocation3 + $0x120] sm:$0xff] %vm371, 0.0
        %2675 = vst.msk [vmem:[#allocation3 + $0x128] sm:$0xff] %vm371, 0.0
        %2676 = vst.msk [vmem:[#allocation3 + $0x130] sm:$0xf] %vm2639, 0.0
        %2677 = vst.msk [vmem:[#allocation3 + $0x138] sm:$0xff] %vm371, 0.0
        %2678 = vst.msk [vmem:[#allocation3 + $0x140] sm:$0xff] %vm371, 0.0
        %2679 = vst.msk [vmem:[#allocation3 + $0x148] sm:$0xf] %vm2639, 0.0
        %2680 = vst.msk [vmem:[#allocation3 + $0x150] sm:$0xff] %vm371, 0.0
        %2681 = vst.msk [vmem:[#allocation3 + $0x158] sm:$0xff] %vm371, 0.0
        %2682 = vst.msk [vmem:[#allocation3 + $0x160] sm:$0xf] %vm2639, 0.0
        %2683 = vst.msk [vmem:[#allocation3 + $0x168] sm:$0xff] %vm371, 0.0
        %2684 = vst.msk [vmem:[#allocation3 + $0x170] sm:$0xff] %vm371, 0.0
        %2685 = vst.msk [vmem:[#allocation3 + $0x178] sm:$0xf] %vm2639, 0.0
        %2686 = vst.msk [vmem:[#allocation3 + $0x180] sm:$0xff] %vm371, 0.0
        %2687 = vst.msk [vmem:[#allocation3 + $0x188] sm:$0xff] %vm371, 0.0
        %2688 = vst.msk [vmem:[#allocation3 + $0x190] sm:$0xf] %vm2639, 0.0
        %2689 = vst.msk [vmem:[#allocation3 + $0x198] sm:$0xff] %vm371, 0.0
        %2690 = vst.msk [vmem:[#allocation3 + $0x1a0] sm:$0xff] %vm371, 0.0
        %2691 = vst.msk [vmem:[#allocation3 + $0x1a8] sm:$0xf] %vm2639, 0.0
        %2692 = vst.msk [vmem:[#allocation3 + $0x1b0] sm:$0xff] %vm371, 0.0
        %2693 = vst.msk [vmem:[#allocation3 + $0x1b8] sm:$0xff] %vm371, 0.0
        %2694 = vst.msk [vmem:[#allocation3 + $0x1c0] sm:$0xf] %vm2639, 0.0
        %2695 = vst.msk [vmem:[#allocation3 + $0x1c8] sm:$0xff] %vm371, 0.0
        %2696 = vst.msk [vmem:[#allocation3 + $0x1d0] sm:$0xff] %vm371, 0.0
        %2697 = vst.msk [vmem:[#allocation3 + $0x1d8] sm:$0xf] %vm2639, 0.0
        %2698 = vrot.lane.b32.xlu0 %v697, 112
        %v2699 = vpop.permute.xlu0 %2698
        %2700 = vrot.lane.b32.xlu0 %v698, 112
        %v2701 = vpop.permute.xlu0 %2700
        %2702 = vrot.lane.b32.xlu0 %v699, 112
        %v2703 = vpop.permute.xlu0 %2702
        %2704 = vrot.lane.b32.xlu0 %v700, 112
        %v2705 = vpop.permute.xlu0 %2704
        %2706 = vrot.lane.b32.xlu0 %v701, 112
        %v2707 = vpop.permute.xlu0 %2706
        %2708 = vrot.lane.b32.xlu0 %v702, 112
        %v2709 = vpop.permute.xlu0 %2708
        %2710 = vrot.lane.b32.xlu0 %v703, 112
        %v2711 = vpop.permute.xlu0 %2710
        %2712 = vrot.lane.b32.xlu0 %v704, 112
        %v2713 = vpop.permute.xlu0 %2712
        %2714 = vrot.lane.b32.xlu0 %v705, 112
        %v2715 = vpop.permute.xlu0 %2714
        %2716 = vrot.lane.b32.xlu0 %v706, 112
        %v2717 = vpop.permute.xlu0 %2716
        %2718 = vrot.lane.b32.xlu0 %v707, 112
        %v2719 = vpop.permute.xlu0 %2718
        %2720 = vrot.lane.b32.xlu0 %v708, 112
        %v2721 = vpop.permute.xlu0 %2720
        %2722 = vrot.lane.b32.xlu0 %v709, 112
        %v2723 = vpop.permute.xlu0 %2722
        %2724 = vrot.lane.b32.xlu0 %v710, 112
        %v2725 = vpop.permute.xlu0 %2724
        %2726 = vrot.lane.b32.xlu0 %v711, 112
        %v2727 = vpop.permute.xlu0 %2726
        %2728 = vrot.lane.b32.xlu0 %v712, 112
        %v2729 = vpop.permute.xlu0 %2728
        %2730 = vrot.lane.b32.xlu0 %v713, 112
        %v2731 = vpop.permute.xlu0 %2730
        %2732 = vrot.lane.b32.xlu0 %v714, 112
        %v2733 = vpop.permute.xlu0 %2732
        %2734 = vrot.lane.b32.xlu0 %v715, 112
        %v2735 = vpop.permute.xlu0 %2734
        %2736 = vrot.lane.b32.xlu0 %v716, 112
        %v2737 = vpop.permute.xlu0 %2736
        %2738 = vrot.lane.b32.xlu0 %v717, 112
        %v2739 = vpop.permute.xlu0 %2738
        %2740 = vrot.lane.b32.xlu0 %v718, 112
        %v2741 = vpop.permute.xlu0 %2740
        %2742 = vrot.lane.b32.xlu0 %v719, 112
        %v2743 = vpop.permute.xlu0 %2742
        %2744 = vrot.lane.b32.xlu0 %v720, 112
        %v2745 = vpop.permute.xlu0 %2744
        %2746 = vrot.lane.b32.xlu0 %v721, 112
        %v2747 = vpop.permute.xlu0 %2746
        %2748 = vrot.lane.b32.xlu0 %v722, 112
        %v2749 = vpop.permute.xlu0 %2748
        %2750 = vrot.lane.b32.xlu0 %v723, 112
        %v2751 = vpop.permute.xlu0 %2750
        %2752 = vrot.lane.b32.xlu0 %v724, 112
        %v2753 = vpop.permute.xlu0 %2752
        %2754 = vrot.lane.b32.xlu0 %v725, 112
        %v2755 = vpop.permute.xlu0 %2754
        %2756 = vrot.lane.b32.xlu0 %v726, 112
        %v2757 = vpop.permute.xlu0 %2756
        %2758 = vrot.lane.b32.xlu0 %v727, 112
        %v2759 = vpop.permute.xlu0 %2758
        %2760 = vrot.lane.b32.xlu0 %v728, 112
        %v2761 = vpop.permute.xlu0 %2760
        %s2794 = scalar_lea.vmem [#allocation3], 48
        %2795 = vst.msk [vmem:[%s2794 + $0x2] sm:$0xff] %vm371, %v2699
        %2796 = vst.msk [vmem:[%s2794 + $0xa] sm:$0xff] %vm371, %v2701
        %2797 = vst.msk [vmem:[%s2794 + $0x1a] sm:$0xff] %vm371, %v2703
        %2798 = vst.msk [vmem:[%s2794 + $0x22] sm:$0xff] %vm371, %v2705
        %2799 = vst.msk [vmem:[%s2794 + $0x32] sm:$0xff] %vm371, %v2707
        %2800 = vst.msk [vmem:[%s2794 + $0x3a] sm:$0xff] %vm371, %v2709
        %2801 = vst.msk [vmem:[%s2794 + $0x4a] sm:$0xff] %vm371, %v2711
        %2802 = vst.msk [vmem:[%s2794 + $0x52] sm:$0xff] %vm371, %v2713
        %2803 = vst.msk [vmem:[%s2794 + $0x62] sm:$0xff] %vm371, %v2715
        %2804 = vst.msk [vmem:[%s2794 + $0x6a] sm:$0xff] %vm371, %v2717
        %2805 = vst.msk [vmem:[%s2794 + $0x7a] sm:$0xff] %vm371, %v2719
        %2806 = vst.msk [vmem:[%s2794 + $0x82] sm:$0xff] %vm371, %v2721
        %2807 = vst.msk [vmem:[%s2794 + $0x92] sm:$0xff] %vm371, %v2723
        %2808 = vst.msk [vmem:[%s2794 + $0x9a] sm:$0xff] %vm371, %v2725
        %2809 = vst.msk [vmem:[%s2794 + $0xaa] sm:$0xff] %vm371, %v2727
        %2810 = vst.msk [vmem:[%s2794 + $0xb2] sm:$0xff] %vm371, %v2729
        %2811 = vst.msk [vmem:[%s2794 + $0xc2] sm:$0xff] %vm371, %v2731
        %2812 = vst.msk [vmem:[%s2794 + $0xca] sm:$0xff] %vm371, %v2733
        %2813 = vst.msk [vmem:[%s2794 + $0xda] sm:$0xff] %vm371, %v2735
        %2814 = vst.msk [vmem:[%s2794 + $0xe2] sm:$0xff] %vm371, %v2737
        %2815 = vst.msk [vmem:[%s2794 + $0xf2] sm:$0xff] %vm371, %v2739
        %2816 = vst.msk [vmem:[%s2794 + $0xfa] sm:$0xff] %vm371, %v2741
        %2817 = vst.msk [vmem:[%s2794 + $0x10a] sm:$0xff] %vm371, %v2743
        %2818 = vst.msk [vmem:[%s2794 + $0x112] sm:$0xff] %vm371, %v2745
        %2819 = vst.msk [vmem:[%s2794 + $0x122] sm:$0xff] %vm371, %v2747
        %2820 = vst.msk [vmem:[%s2794 + $0x12a] sm:$0xff] %vm371, %v2749
        %2821 = vst.msk [vmem:[%s2794 + $0x13a] sm:$0xff] %vm371, %v2751
        %2822 = vst.msk [vmem:[%s2794 + $0x142] sm:$0xff] %vm371, %v2753
        %2823 = vst.msk [vmem:[%s2794 + $0x152] sm:$0xff] %vm371, %v2755
        %2824 = vst.msk [vmem:[%s2794 + $0x15a] sm:$0xff] %vm371, %v2757
        %2825 = vst.msk [vmem:[%s2794 + $0x16a] sm:$0xff] %vm371, %v2759
        %2826 = vst.msk [vmem:[%s2794 + $0x172] sm:$0xff] %vm371, %v2761
        %v2827 = vld [vmem:[#allocation3] sm:$0xff]
        %v2828 = vld [vmem:[#allocation3 + $0x8] sm:$0xff]
        %v2829 = vld [vmem:[#allocation3 + $0x10] sm:$0xf]
        %v2830 = vld [vmem:[#allocation3 + $0x18] sm:$0xff]
        %v2831 = vld [vmem:[#allocation3 + $0x20] sm:$0xff]
        %v2832 = vld [vmem:[#allocation3 + $0x28] sm:$0xf]
        %v2833 = vld [vmem:[#allocation3 + $0x30] sm:$0xff]
        %v2834 = vld [vmem:[#allocation3 + $0x38] sm:$0xff]
        %v2835 = vld [vmem:[#allocation3 + $0x40] sm:$0xf]
        %v2836 = vld [vmem:[#allocation3 + $0x48] sm:$0xff]
        %v2837 = vld [vmem:[#allocation3 + $0x50] sm:$0xff]
        %v2838 = vld [vmem:[#allocation3 + $0x58] sm:$0xf]
        %v2839 = vld [vmem:[#allocation3 + $0x60] sm:$0xff]
        %v2840 = vld [vmem:[#allocation3 + $0x68] sm:$0xff]
        %v2841 = vld [vmem:[#allocation3 + $0x70] sm:$0xf]
        %v2842 = vld [vmem:[#allocation3 + $0x78] sm:$0xff]
        %v2843 = vld [vmem:[#allocation3 + $0x80] sm:$0xff]
        %v2844 = vld [vmem:[#allocation3 + $0x88] sm:$0xf]
        %v2845 = vld [vmem:[#allocation3 + $0x90] sm:$0xff]
        %v2846 = vld [vmem:[#allocation3 + $0x98] sm:$0xff]
        %v2847 = vld [vmem:[#allocation3 + $0xa0] sm:$0xf]
        %v2848 = vld [vmem:[#allocation3 + $0xa8] sm:$0xff]
        %v2849 = vld [vmem:[#allocation3 + $0xb0] sm:$0xff]
        %v2850 = vld [vmem:[#allocation3 + $0xb8] sm:$0xf]
        %v2851 = vld [vmem:[#allocation3 + $0xc0] sm:$0xff]
        %v2852 = vld [vmem:[#allocation3 + $0xc8] sm:$0xff]
        %v2853 = vld [vmem:[#allocation3 + $0xd0] sm:$0xf]
        %v2854 = vld [vmem:[#allocation3 + $0xd8] sm:$0xff]
        %v2855 = vld [vmem:[#allocation3 + $0xe0] sm:$0xff]
        %v2856 = vld [vmem:[#allocation3 + $0xe8] sm:$0xf]
        %v2857 = vld [vmem:[#allocation3 + $0xf0] sm:$0xff]
        %v2858 = vld [vmem:[#allocation3 + $0xf8] sm:$0xff]
        %v2859 = vld [vmem:[#allocation3 + $0x100] sm:$0xf]
        %v2860 = vld [vmem:[#allocation3 + $0x108] sm:$0xff]
        %v2861 = vld [vmem:[#allocation3 + $0x110] sm:$0xff]
        %v2862 = vld [vmem:[#allocation3 + $0x118] sm:$0xf]
        %v2863 = vld [vmem:[#allocation3 + $0x120] sm:$0xff]
        %v2864 = vld [vmem:[#allocation3 + $0x128] sm:$0xff]
        %v2865 = vld [vmem:[#allocation3 + $0x130] sm:$0xf]
        %v2866 = vld [vmem:[#allocation3 + $0x138] sm:$0xff]
        %v2867 = vld [vmem:[#allocation3 + $0x140] sm:$0xff]
        %v2868 = vld [vmem:[#allocation3 + $0x148] sm:$0xf]
        %v2869 = vld [vmem:[#allocation3 + $0x150] sm:$0xff]
        %v2870 = vld [vmem:[#allocation3 + $0x158] sm:$0xff]
        %v2871 = vld [vmem:[#allocation3 + $0x160] sm:$0xf]
        %v2872 = vld [vmem:[#allocation3 + $0x168] sm:$0xff]
        %v2873 = vld [vmem:[#allocation3 + $0x170] sm:$0xff]
        %v2874 = vld [vmem:[#allocation3 + $0x178] sm:$0xf]
        %v2875 = vld [vmem:[#allocation3 + $0x180] sm:$0xff]
        %v2876 = vld [vmem:[#allocation3 + $0x188] sm:$0xff]
        %v2877 = vld [vmem:[#allocation3 + $0x190] sm:$0xf]
        %v2878 = vld [vmem:[#allocation3 + $0x198] sm:$0xff]
        %v2879 = vld [vmem:[#allocation3 + $0x1a0] sm:$0xff]
        %v2880 = vld [vmem:[#allocation3 + $0x1a8] sm:$0xf]
        %v2881 = vld [vmem:[#allocation3 + $0x1b0] sm:$0xff]
        %v2882 = vld [vmem:[#allocation3 + $0x1b8] sm:$0xff]
        %v2883 = vld [vmem:[#allocation3 + $0x1c0] sm:$0xf]
        %v2884 = vld [vmem:[#allocation3 + $0x1c8] sm:$0xff]
        %v2885 = vld [vmem:[#allocation3 + $0x1d0] sm:$0xff]
        %v2886 = vld [vmem:[#allocation3 + $0x1d8] sm:$0xf]
        %v2935 = vrot.slane %v2827, 1
        %v2936 = vrot.slane %v2828, 1
        %v2937 = vsel %vm1048, %v2935, %v2936
        %v2938 = vrot.slane %v2829, 1
        %v2939 = vsel %vm1048, %v2936, %v2938
        %v2940 = vrot.slane %v2830, 1
        %v2941 = vrot.slane %v2831, 1
        %v2942 = vsel %vm1048, %v2940, %v2941
        %v2943 = vrot.slane %v2832, 1
        %v2944 = vsel %vm1048, %v2941, %v2943
        %v2945 = vrot.slane %v2833, 1
        %v2946 = vrot.slane %v2834, 1
        %v2947 = vsel %vm1048, %v2945, %v2946
        %v2948 = vrot.slane %v2835, 1
        %v2949 = vsel %vm1048, %v2946, %v2948
        %v2950 = vrot.slane %v2836, 1
        %v2951 = vrot.slane %v2837, 1
        %v2952 = vsel %vm1048, %v2950, %v2951
        %v2953 = vrot.slane %v2838, 1
        %v2954 = vsel %vm1048, %v2951, %v2953
        %v2955 = vrot.slane %v2839, 1
        %v2956 = vrot.slane %v2840, 1
        %v2957 = vsel %vm1048, %v2955, %v2956
        %v2958 = vrot.slane %v2841, 1
        %v2959 = vsel %vm1048, %v2956, %v2958
        %v2960 = vrot.slane %v2842, 1
        %v2961 = vrot.slane %v2843, 1
        %v2962 = vsel %vm1048, %v2960, %v2961
        %v2963 = vrot.slane %v2844, 1
        %v2964 = vsel %vm1048, %v2961, %v2963
        %v2965 = vrot.slane %v2845, 1
        %v2966 = vrot.slane %v2846, 1
        %v2967 = vsel %vm1048, %v2965, %v2966
        %v2968 = vrot.slane %v2847, 1
        %v2969 = vsel %vm1048, %v2966, %v2968
        %v2970 = vrot.slane %v2848, 1
        %v2971 = vrot.slane %v2849, 1
        %v2972 = vsel %vm1048, %v2970, %v2971
        %v2973 = vrot.slane %v2850, 1
        %v2974 = vsel %vm1048, %v2971, %v2973
        %v2975 = vrot.slane %v2851, 1
        %v2976 = vrot.slane %v2852, 1
        %v2977 = vsel %vm1048, %v2975, %v2976
        %v2978 = vrot.slane %v2853, 1
        %v2979 = vsel %vm1048, %v2976, %v2978
        %v2980 = vrot.slane %v2854, 1
        %v2981 = vrot.slane %v2855, 1
        %v2982 = vsel %vm1048, %v2980, %v2981
        %v2983 = vrot.slane %v2856, 1
        %v2984 = vsel %vm1048, %v2981, %v2983
        %v2985 = vrot.slane %v2857, 1
        %v2986 = vrot.slane %v2858, 1
        %v2987 = vsel %vm1048, %v2985, %v2986
        %v2988 = vrot.slane %v2859, 1
        %v2989 = vsel %vm1048, %v2986, %v2988
        %v2990 = vrot.slane %v2860, 1
        %v2991 = vrot.slane %v2861, 1
        %v2992 = vsel %vm1048, %v2990, %v2991
        %v2993 = vrot.slane %v2862, 1
        %v2994 = vsel %vm1048, %v2991, %v2993
        %v2995 = vrot.slane %v2863, 1
        %v2996 = vrot.slane %v2864, 1
        %v2997 = vsel %vm1048, %v2995, %v2996
        %v2998 = vrot.slane %v2865, 1
        %v2999 = vsel %vm1048, %v2996, %v2998
        %v3000 = vrot.slane %v2866, 1
        %v3001 = vrot.slane %v2867, 1
        %v3002 = vsel %vm1048, %v3000, %v3001
        %v3003 = vrot.slane %v2868, 1
        %v3004 = vsel %vm1048, %v3001, %v3003
        %v3005 = vrot.slane %v2869, 1
        %v3006 = vrot.slane %v2870, 1
        %v3007 = vsel %vm1048, %v3005, %v3006
        %v3008 = vrot.slane %v2871, 1
        %v3009 = vsel %vm1048, %v3006, %v3008
        %v3010 = vrot.slane %v2872, 1
        %v3011 = vrot.slane %v2873, 1
        %v3012 = vsel %vm1048, %v3010, %v3011
        %v3013 = vrot.slane %v2874, 1
        %v3014 = vsel %vm1048, %v3011, %v3013
        %v3015 = vrot.slane %v2827, 2
        %v3016 = vrot.slane %v2828, 2
        %v3017 = vsel %vm1129, %v3015, %v3016
        %v3018 = vrot.slane %v2829, 2
        %v3019 = vsel %vm1129, %v3016, %v3018
        %v3020 = vrot.slane %v2830, 2
        %v3021 = vrot.slane %v2831, 2
        %v3022 = vsel %vm1129, %v3020, %v3021
        %v3023 = vrot.slane %v2832, 2
        %v3024 = vsel %vm1129, %v3021, %v3023
        %v3025 = vrot.slane %v2833, 2
        %v3026 = vrot.slane %v2834, 2
        %v3027 = vsel %vm1129, %v3025, %v3026
        %v3028 = vrot.slane %v2835, 2
        %v3029 = vsel %vm1129, %v3026, %v3028
        %v3030 = vrot.slane %v2836, 2
        %v3031 = vrot.slane %v2837, 2
        %v3032 = vsel %vm1129, %v3030, %v3031
        %v3033 = vrot.slane %v2838, 2
        %v3034 = vsel %vm1129, %v3031, %v3033
        %v3035 = vrot.slane %v2839, 2
        %v3036 = vrot.slane %v2840, 2
        %v3037 = vsel %vm1129, %v3035, %v3036
        %v3038 = vrot.slane %v2841, 2
        %v3039 = vsel %vm1129, %v3036, %v3038
        %v3040 = vrot.slane %v2842, 2
        %v3041 = vrot.slane %v2843, 2
        %v3042 = vsel %vm1129, %v3040, %v3041
        %v3043 = vrot.slane %v2844, 2
        %v3044 = vsel %vm1129, %v3041, %v3043
        %v3045 = vrot.slane %v2845, 2
        %v3046 = vrot.slane %v2846, 2
        %v3047 = vsel %vm1129, %v3045, %v3046
        %v3048 = vrot.slane %v2847, 2
        %v3049 = vsel %vm1129, %v3046, %v3048
        %v3050 = vrot.slane %v2848, 2
        %v3051 = vrot.slane %v2849, 2
        %v3052 = vsel %vm1129, %v3050, %v3051
        %v3053 = vrot.slane %v2850, 2
        %v3054 = vsel %vm1129, %v3051, %v3053
        %v3055 = vrot.slane %v2851, 2
        %v3056 = vrot.slane %v2852, 2
        %v3057 = vsel %vm1129, %v3055, %v3056
        %v3058 = vrot.slane %v2853, 2
        %v3059 = vsel %vm1129, %v3056, %v3058
        %v3060 = vrot.slane %v2854, 2
        %v3061 = vrot.slane %v2855, 2
        %v3062 = vsel %vm1129, %v3060, %v3061
        %v3063 = vrot.slane %v2856, 2
        %v3064 = vsel %vm1129, %v3061, %v3063
        %v3065 = vrot.slane %v2857, 2
        %v3066 = vrot.slane %v2858, 2
        %v3067 = vsel %vm1129, %v3065, %v3066
        %v3068 = vrot.slane %v2859, 2
        %v3069 = vsel %vm1129, %v3066, %v3068
        %v3070 = vrot.slane %v2860, 2
        %v3071 = vrot.slane %v2861, 2
        %v3072 = vsel %vm1129, %v3070, %v3071
        %v3073 = vrot.slane %v2862, 2
        %v3074 = vsel %vm1129, %v3071, %v3073
        %v3075 = vrot.slane %v2863, 2
        %v3076 = vrot.slane %v2864, 2
        %v3077 = vsel %vm1129, %v3075, %v3076
        %v3078 = vrot.slane %v2865, 2
        %v3079 = vsel %vm1129, %v3076, %v3078
        %v3080 = vrot.slane %v2866, 2
        %v3081 = vrot.slane %v2867, 2
        %v3082 = vsel %vm1129, %v3080, %v3081
        %v3083 = vrot.slane %v2868, 2
        %v3084 = vsel %vm1129, %v3081, %v3083
        %v3085 = vrot.slane %v2869, 2
        %v3086 = vrot.slane %v2870, 2
        %v3087 = vsel %vm1129, %v3085, %v3086
        %v3088 = vrot.slane %v2871, 2
        %v3089 = vsel %vm1129, %v3086, %v3088
        %v3090 = vrot.slane %v2872, 2
        %v3091 = vrot.slane %v2873, 2
        %v3092 = vsel %vm1129, %v3090, %v3091
        %v3093 = vrot.slane %v2874, 2
        %v3094 = vsel %vm1129, %v3091, %v3093
        %vm3095 = vcmask 1044480
        %v3096 = vrot.slane %v2827, 3
        %v3097 = vrot.slane %v2828, 3
        %v3098 = vsel %vm3095, %v3096, %v3097
        %v3099 = vrot.slane %v2829, 3
        %v3100 = vsel %vm3095, %v3097, %v3099
        %v3101 = vrot.slane %v2830, 3
        %v3102 = vrot.slane %v2831, 3
        %v3103 = vsel %vm3095, %v3101, %v3102
        %v3104 = vrot.slane %v2832, 3
        %v3105 = vsel %vm3095, %v3102, %v3104
        %v3106 = vrot.slane %v2833, 3
        %v3107 = vrot.slane %v2834, 3
        %v3108 = vsel %vm3095, %v3106, %v3107
        %v3109 = vrot.slane %v2835, 3
        %v3110 = vsel %vm3095, %v3107, %v3109
        %v3111 = vrot.slane %v2836, 3
        %v3112 = vrot.slane %v2837, 3
        %v3113 = vsel %vm3095, %v3111, %v3112
        %v3114 = vrot.slane %v2838, 3
        %v3115 = vsel %vm3095, %v3112, %v3114
        %v3116 = vrot.slane %v2839, 3
        %v3117 = vrot.slane %v2840, 3
        %v3118 = vsel %vm3095, %v3116, %v3117
        %v3119 = vrot.slane %v2841, 3
        %v3120 = vsel %vm3095, %v3117, %v3119
        %v3121 = vrot.slane %v2842, 3
        %v3122 = vrot.slane %v2843, 3
        %v3123 = vsel %vm3095, %v3121, %v3122
        %v3124 = vrot.slane %v2844, 3
        %v3125 = vsel %vm3095, %v3122, %v3124
        %v3126 = vrot.slane %v2845, 3
        %v3127 = vrot.slane %v2846, 3
        %v3128 = vsel %vm3095, %v3126, %v3127
        %v3129 = vrot.slane %v2847, 3
        %v3130 = vsel %vm3095, %v3127, %v3129
        %v3131 = vrot.slane %v2848, 3
        %v3132 = vrot.slane %v2849, 3
        %v3133 = vsel %vm3095, %v3131, %v3132
        %v3134 = vrot.slane %v2850, 3
        %v3135 = vsel %vm3095, %v3132, %v3134
        %v3136 = vrot.slane %v2851, 3
        %v3137 = vrot.slane %v2852, 3
        %v3138 = vsel %vm3095, %v3136, %v3137
        %v3139 = vrot.slane %v2853, 3
        %v3140 = vsel %vm3095, %v3137, %v3139
        %v3141 = vrot.slane %v2854, 3
        %v3142 = vrot.slane %v2855, 3
        %v3143 = vsel %vm3095, %v3141, %v3142
        %v3144 = vrot.slane %v2856, 3
        %v3145 = vsel %vm3095, %v3142, %v3144
        %v3146 = vrot.slane %v2857, 3
        %v3147 = vrot.slane %v2858, 3
        %v3148 = vsel %vm3095, %v3146, %v3147
        %v3149 = vrot.slane %v2859, 3
        %v3150 = vsel %vm3095, %v3147, %v3149
        %v3151 = vrot.slane %v2860, 3
        %v3152 = vrot.slane %v2861, 3
        %v3153 = vsel %vm3095, %v3151, %v3152
        %v3154 = vrot.slane %v2862, 3
        %v3155 = vsel %vm3095, %v3152, %v3154
        %v3156 = vrot.slane %v2863, 3
        %v3157 = vrot.slane %v2864, 3
        %v3158 = vsel %vm3095, %v3156, %v3157
        %v3159 = vrot.slane %v2865, 3
        %v3160 = vsel %vm3095, %v3157, %v3159
        %v3161 = vrot.slane %v2866, 3
        %v3162 = vrot.slane %v2867, 3
        %v3163 = vsel %vm3095, %v3161, %v3162
        %v3164 = vrot.slane %v2868, 3
        %v3165 = vsel %vm3095, %v3162, %v3164
        %v3166 = vrot.slane %v2869, 3
        %v3167 = vrot.slane %v2870, 3
        %v3168 = vsel %vm3095, %v3166, %v3167
        %v3169 = vrot.slane %v2871, 3
        %v3170 = vsel %vm3095, %v3167, %v3169
        %v3171 = vrot.slane %v2872, 3
        %v3172 = vrot.slane %v2873, 3
        %v3173 = vsel %vm3095, %v3171, %v3172
        %v3174 = vrot.slane %v2874, 3
        %v3175 = vsel %vm3095, %v3172, %v3174
        %v3176 = vrot.slane %v2827, 4
        %v3177 = vrot.slane %v2828, 4
        %v3178 = vsel %vm468, %v3176, %v3177
        %v3179 = vrot.slane %v2829, 4
        %v3180 = vsel %vm468, %v3177, %v3179
        %v3181 = vrot.slane %v2830, 4
        %v3182 = vrot.slane %v2831, 4
        %v3183 = vsel %vm468, %v3181, %v3182
        %v3184 = vrot.slane %v2832, 4
        %v3185 = vsel %vm468, %v3182, %v3184
        %v3186 = vrot.slane %v2833, 4
        %v3187 = vrot.slane %v2834, 4
        %v3188 = vsel %vm468, %v3186, %v3187
        %v3189 = vrot.slane %v2835, 4
        %v3190 = vsel %vm468, %v3187, %v3189
        %v3191 = vrot.slane %v2836, 4
        %v3192 = vrot.slane %v2837, 4
        %v3193 = vsel %vm468, %v3191, %v3192
        %v3194 = vrot.slane %v2838, 4
        %v3195 = vsel %vm468, %v3192, %v3194
        %v3196 = vrot.slane %v2839, 4
        %v3197 = vrot.slane %v2840, 4
        %v3198 = vsel %vm468, %v3196, %v3197
        %v3199 = vrot.slane %v2841, 4
        %v3200 = vsel %vm468, %v3197, %v3199
        %v3201 = vrot.slane %v2842, 4
        %v3202 = vrot.slane %v2843, 4
        %v3203 = vsel %vm468, %v3201, %v3202
        %v3204 = vrot.slane %v2844, 4
        %v3205 = vsel %vm468, %v3202, %v3204
        %v3206 = vrot.slane %v2845, 4
        %v3207 = vrot.slane %v2846, 4
        %v3208 = vsel %vm468, %v3206, %v3207
        %v3209 = vrot.slane %v2847, 4
        %v3210 = vsel %vm468, %v3207, %v3209
        %v3211 = vrot.slane %v2848, 4
        %v3212 = vrot.slane %v2849, 4
        %v3213 = vsel %vm468, %v3211, %v3212
        %v3214 = vrot.slane %v2850, 4
        %v3215 = vsel %vm468, %v3212, %v3214
        %v3216 = vrot.slane %v2851, 4
        %v3217 = vrot.slane %v2852, 4
        %v3218 = vsel %vm468, %v3216, %v3217
        %v3219 = vrot.slane %v2853, 4
        %v3220 = vsel %vm468, %v3217, %v3219
        %v3221 = vrot.slane %v2854, 4
        %v3222 = vrot.slane %v2855, 4
        %v3223 = vsel %vm468, %v3221, %v3222
        %v3224 = vrot.slane %v2856, 4
        %v3225 = vsel %vm468, %v3222, %v3224
        %v3226 = vrot.slane %v2857, 4
        %v3227 = vrot.slane %v2858, 4
        %v3228 = vsel %vm468, %v3226, %v3227
        %v3229 = vrot.slane %v2859, 4
        %v3230 = vsel %vm468, %v3227, %v3229
        %v3231 = vrot.slane %v2860, 4
        %v3232 = vrot.slane %v2861, 4
        %v3233 = vsel %vm468, %v3231, %v3232
        %v3234 = vrot.slane %v2862, 4
        %v3235 = vsel %vm468, %v3232, %v3234
        %v3236 = vrot.slane %v2863, 4
        %v3237 = vrot.slane %v2864, 4
        %v3238 = vsel %vm468, %v3236, %v3237
        %v3239 = vrot.slane %v2865, 4
        %v3240 = vsel %vm468, %v3237, %v3239
        %v3241 = vrot.slane %v2866, 4
        %v3242 = vrot.slane %v2867, 4
        %v3243 = vsel %vm468, %v3241, %v3242
        %v3244 = vrot.slane %v2868, 4
        %v3245 = vsel %vm468, %v3242, %v3244
        %v3246 = vrot.slane %v2869, 4
        %v3247 = vrot.slane %v2870, 4
        %v3248 = vsel %vm468, %v3246, %v3247
        %v3249 = vrot.slane %v2871, 4
        %v3250 = vsel %vm468, %v3247, %v3249
        %v3251 = vrot.slane %v2872, 4
        %v3252 = vrot.slane %v2873, 4
        %v3253 = vsel %vm468, %v3251, %v3252
        %v3254 = vrot.slane %v2874, 4
        %v3255 = vsel %vm468, %v3252, %v3254
        %v3259 = vrot.slane %v2875, 1
        %v3260 = vrot.slane %v2876, 1
        %v3261 = vsel %vm1048, %v3259, %v3260
        %v3262 = vrot.slane %v2877, 1
        %v3263 = vsel %vm1048, %v3260, %v3262
        %v3264 = vrot.slane %v2875, 2
        %v3265 = vrot.slane %v2876, 2
        %v3266 = vsel %vm1129, %v3264, %v3265
        %v3267 = vrot.slane %v2877, 2
        %v3268 = vsel %vm1129, %v3265, %v3267
        %v3269 = vrot.slane %v2875, 3
        %v3270 = vrot.slane %v2876, 3
        %v3271 = vsel %vm3095, %v3269, %v3270
        %v3272 = vrot.slane %v2877, 3
        %v3273 = vsel %vm3095, %v3270, %v3272
        %v3274 = vrot.slane %v2875, 4
        %v3275 = vrot.slane %v2876, 4
        %v3276 = vsel %vm468, %v3274, %v3275
        %v3277 = vrot.slane %v2877, 4
        %v3278 = vsel %vm468, %v3275, %v3277
        %v3282 = vrot.slane %v2878, 1
        %v3283 = vrot.slane %v2879, 1
        %v3284 = vsel %vm1048, %v3282, %v3283
        %v3285 = vrot.slane %v2880, 1
        %v3286 = vsel %vm1048, %v3283, %v3285
        %v3287 = vrot.slane %v2878, 2
        %v3288 = vrot.slane %v2879, 2
        %v3289 = vsel %vm1129, %v3287, %v3288
        %v3290 = vrot.slane %v2880, 2
        %v3291 = vsel %vm1129, %v3288, %v3290
        %v3292 = vrot.slane %v2878, 3
        %v3293 = vrot.slane %v2879, 3
        %v3294 = vsel %vm3095, %v3292, %v3293
        %v3295 = vrot.slane %v2880, 3
        %v3296 = vsel %vm3095, %v3293, %v3295
        %v3297 = vrot.slane %v2878, 4
        %v3298 = vrot.slane %v2879, 4
        %v3299 = vsel %vm468, %v3297, %v3298
        %v3300 = vrot.slane %v2880, 4
        %v3301 = vsel %vm468, %v3298, %v3300
        %v3305 = vrot.slane %v2881, 1
        %v3306 = vrot.slane %v2882, 1
        %v3307 = vsel %vm1048, %v3305, %v3306
        %v3308 = vrot.slane %v2883, 1
        %v3309 = vsel %vm1048, %v3306, %v3308
        %v3342 = vrot.slane %v2881, 2
        %v3343 = vrot.slane %v2882, 2
        %v3344 = vsel %vm1129, %v3342, %v3343
        %v3345 = vrot.slane %v2883, 2
        %v3346 = vsel %vm1129, %v3343, %v3345
        %v3347 = vrot.slane %v2881, 3
        %v3348 = vrot.slane %v2882, 3
        %v3349 = vsel %vm3095, %v3347, %v3348
        %v3350 = vrot.slane %v2883, 3
        %v3351 = vsel %vm3095, %v3348, %v3350
        %v3352 = vrot.slane %v2881, 4
        %v3353 = vrot.slane %v2882, 4
        %v3354 = vsel %vm468, %v3352, %v3353
        %v3355 = vrot.slane %v2883, 4
        %v3356 = vsel %vm468, %v3353, %v3355
        %v3360 = vrot.slane %v2884, 1
        %v3361 = vrot.slane %v2885, 1
        %v3362 = vsel %vm1048, %v3360, %v3361
        %v3363 = vrot.slane %v2886, 1
        %v3364 = vsel %vm1048, %v3361, %v3363
        %v3365 = vrot.slane %v2884, 2
        %v3366 = vrot.slane %v2885, 2
        %v3367 = vsel %vm1129, %v3365, %v3366
        %v3368 = vrot.slane %v2886, 2
        %v3369 = vsel %vm1129, %v3366, %v3368
        %v3370 = vrot.slane %v2884, 3
        %v3371 = vrot.slane %v2885, 3
        %v3372 = vsel %vm3095, %v3370, %v3371
        %v3373 = vrot.slane %v2886, 3
        %v3374 = vsel %vm3095, %v3371, %v3373
        %v3375 = vrot.slane %v2884, 4
        %v3376 = vrot.slane %v2885, 4
        %v3377 = vsel %vm468, %v3375, %v3376
        %v3378 = vrot.slane %v2886, 4
        %v3379 = vsel %vm468, %v3376, %v3378
        %3380 = vrot.lane.b32.xlu0 %v2937, 4
        %v3381 = vpop.permute.xlu0 %3380
        %3382 = vrot.lane.b32.xlu0 %v2939, 4
        %v3383 = vpop.permute.xlu0 %3382
        %3384 = vrot.lane.b32.xlu0 %v2942, 4
        %v3385 = vpop.permute.xlu0 %3384
        %3386 = vrot.lane.b32.xlu0 %v2944, 4
        %v3387 = vpop.permute.xlu0 %3386
        %3388 = vrot.lane.b32.xlu0 %v2947, 4
        %v3389 = vpop.permute.xlu0 %3388
        %3390 = vrot.lane.b32.xlu0 %v2949, 4
        %v3391 = vpop.permute.xlu0 %3390
        %3392 = vrot.lane.b32.xlu0 %v2952, 4
        %v3393 = vpop.permute.xlu0 %3392
        %3394 = vrot.lane.b32.xlu0 %v2954, 4
        %v3395 = vpop.permute.xlu0 %3394
        %3396 = vrot.lane.b32.xlu0 %v2957, 4
        %v3397 = vpop.permute.xlu0 %3396
        %3398 = vrot.lane.b32.xlu0 %v2959, 4
        %v3399 = vpop.permute.xlu0 %3398
        %3400 = vrot.lane.b32.xlu0 %v2962, 4
        %v3401 = vpop.permute.xlu0 %3400
        %3402 = vrot.lane.b32.xlu0 %v2964, 4
        %v3403 = vpop.permute.xlu0 %3402
        %3404 = vrot.lane.b32.xlu0 %v2967, 4
        %v3405 = vpop.permute.xlu0 %3404
        %3406 = vrot.lane.b32.xlu0 %v2969, 4
        %v3407 = vpop.permute.xlu0 %3406
        %3408 = vrot.lane.b32.xlu0 %v2972, 4
        %v3409 = vpop.permute.xlu0 %3408
        %3410 = vrot.lane.b32.xlu0 %v2974, 4
        %v3411 = vpop.permute.xlu0 %3410
        %3412 = vrot.lane.b32.xlu0 %v2977, 4
        %v3413 = vpop.permute.xlu0 %3412
        %3414 = vrot.lane.b32.xlu0 %v2979, 4
        %v3415 = vpop.permute.xlu0 %3414
        %3416 = vrot.lane.b32.xlu0 %v2982, 4
        %v3417 = vpop.permute.xlu0 %3416
        %3418 = vrot.lane.b32.xlu0 %v2984, 4
        %v3419 = vpop.permute.xlu0 %3418
        %3420 = vrot.lane.b32.xlu0 %v2987, 4
        %v3421 = vpop.permute.xlu0 %3420
        %3422 = vrot.lane.b32.xlu0 %v2989, 4
        %v3423 = vpop.permute.xlu0 %3422
        %3424 = vrot.lane.b32.xlu0 %v2992, 4
        %v3425 = vpop.permute.xlu0 %3424
        %3426 = vrot.lane.b32.xlu0 %v2994, 4
        %v3427 = vpop.permute.xlu0 %3426
        %3428 = vrot.lane.b32.xlu0 %v2997, 4
        %v3429 = vpop.permute.xlu0 %3428
        %3430 = vrot.lane.b32.xlu0 %v2999, 4
        %v3431 = vpop.permute.xlu0 %3430
        %3432 = vrot.lane.b32.xlu0 %v3002, 4
        %v3433 = vpop.permute.xlu0 %3432
        %3434 = vrot.lane.b32.xlu0 %v3004, 4
        %v3435 = vpop.permute.xlu0 %3434
        %3436 = vrot.lane.b32.xlu0 %v3007, 4
        %v3437 = vpop.permute.xlu0 %3436
        %3438 = vrot.lane.b32.xlu0 %v3009, 4
        %v3439 = vpop.permute.xlu0 %3438
        %3440 = vrot.lane.b32.xlu0 %v3012, 4
        %v3441 = vpop.permute.xlu0 %3440
        %3442 = vrot.lane.b32.xlu0 %v3014, 4
        %v3443 = vpop.permute.xlu0 %3442
        %3476 = vrot.lane.b32.xlu0 %v3017, 8
        %v3477 = vpop.permute.xlu0 %3476
        %3478 = vrot.lane.b32.xlu0 %v3019, 8
        %v3479 = vpop.permute.xlu0 %3478
        %3480 = vrot.lane.b32.xlu0 %v3022, 8
        %v3481 = vpop.permute.xlu0 %3480
        %3482 = vrot.lane.b32.xlu0 %v3024, 8
        %v3483 = vpop.permute.xlu0 %3482
        %3484 = vrot.lane.b32.xlu0 %v3027, 8
        %v3485 = vpop.permute.xlu0 %3484
        %3486 = vrot.lane.b32.xlu0 %v3029, 8
        %v3487 = vpop.permute.xlu0 %3486
        %3488 = vrot.lane.b32.xlu0 %v3032, 8
        %v3489 = vpop.permute.xlu0 %3488
        %3490 = vrot.lane.b32.xlu0 %v3034, 8
        %v3491 = vpop.permute.xlu0 %3490
        %3492 = vrot.lane.b32.xlu0 %v3037, 8
        %v3493 = vpop.permute.xlu0 %3492
        %3494 = vrot.lane.b32.xlu0 %v3039, 8
        %v3495 = vpop.permute.xlu0 %3494
        %3496 = vrot.lane.b32.xlu0 %v3042, 8
        %v3497 = vpop.permute.xlu0 %3496
        %3498 = vrot.lane.b32.xlu0 %v3044, 8
        %v3499 = vpop.permute.xlu0 %3498
        %3500 = vrot.lane.b32.xlu0 %v3047, 8
        %v3501 = vpop.permute.xlu0 %3500
        %3502 = vrot.lane.b32.xlu0 %v3049, 8
        %v3503 = vpop.permute.xlu0 %3502
        %3504 = vrot.lane.b32.xlu0 %v3052, 8
        %v3505 = vpop.permute.xlu0 %3504
        %3506 = vrot.lane.b32.xlu0 %v3054, 8
        %v3507 = vpop.permute.xlu0 %3506
        %3508 = vrot.lane.b32.xlu0 %v3057, 8
        %v3509 = vpop.permute.xlu0 %3508
        %3510 = vrot.lane.b32.xlu0 %v3059, 8
        %v3511 = vpop.permute.xlu0 %3510
        %3512 = vrot.lane.b32.xlu0 %v3062, 8
        %v3513 = vpop.permute.xlu0 %3512
        %3514 = vrot.lane.b32.xlu0 %v3064, 8
        %v3515 = vpop.permute.xlu0 %3514
        %3516 = vrot.lane.b32.xlu0 %v3067, 8
        %v3517 = vpop.permute.xlu0 %3516
        %3518 = vrot.lane.b32.xlu0 %v3069, 8
        %v3519 = vpop.permute.xlu0 %3518
        %3520 = vrot.lane.b32.xlu0 %v3072, 8
        %v3521 = vpop.permute.xlu0 %3520
        %3522 = vrot.lane.b32.xlu0 %v3074, 8
        %v3523 = vpop.permute.xlu0 %3522
        %3524 = vrot.lane.b32.xlu0 %v3077, 8
        %v3525 = vpop.permute.xlu0 %3524
        %3526 = vrot.lane.b32.xlu0 %v3079, 8
        %v3527 = vpop.permute.xlu0 %3526
        %3528 = vrot.lane.b32.xlu0 %v3082, 8
        %v3529 = vpop.permute.xlu0 %3528
        %3530 = vrot.lane.b32.xlu0 %v3084, 8
        %v3531 = vpop.permute.xlu0 %3530
        %3532 = vrot.lane.b32.xlu0 %v3087, 8
        %v3533 = vpop.permute.xlu0 %3532
        %3534 = vrot.lane.b32.xlu0 %v3089, 8
        %v3535 = vpop.permute.xlu0 %3534
        %3536 = vrot.lane.b32.xlu0 %v3092, 8
        %v3537 = vpop.permute.xlu0 %3536
        %3538 = vrot.lane.b32.xlu0 %v3094, 8
        %v3539 = vpop.permute.xlu0 %3538
        %3572 = vrot.lane.b32.xlu0 %v3098, 12
        %v3573 = vpop.permute.xlu0 %3572
        %3574 = vrot.lane.b32.xlu0 %v3100, 12
        %v3575 = vpop.permute.xlu0 %3574
        %3576 = vrot.lane.b32.xlu0 %v3103, 12
        %v3577 = vpop.permute.xlu0 %3576
        %3578 = vrot.lane.b32.xlu0 %v3105, 12
        %v3579 = vpop.permute.xlu0 %3578
        %3580 = vrot.lane.b32.xlu0 %v3108, 12
        %v3581 = vpop.permute.xlu0 %3580
        %3582 = vrot.lane.b32.xlu0 %v3110, 12
        %v3583 = vpop.permute.xlu0 %3582
        %3584 = vrot.lane.b32.xlu0 %v3113, 12
        %v3585 = vpop.permute.xlu0 %3584
        %3586 = vrot.lane.b32.xlu0 %v3115, 12
        %v3587 = vpop.permute.xlu0 %3586
        %3588 = vrot.lane.b32.xlu0 %v3118, 12
        %v3589 = vpop.permute.xlu0 %3588
        %3590 = vrot.lane.b32.xlu0 %v3120, 12
        %v3591 = vpop.permute.xlu0 %3590
        %3592 = vrot.lane.b32.xlu0 %v3123, 12
        %v3593 = vpop.permute.xlu0 %3592
        %3594 = vrot.lane.b32.xlu0 %v3125, 12
        %v3595 = vpop.permute.xlu0 %3594
        %3596 = vrot.lane.b32.xlu0 %v3128, 12
        %v3597 = vpop.permute.xlu0 %3596
        %3598 = vrot.lane.b32.xlu0 %v3130, 12
        %v3599 = vpop.permute.xlu0 %3598
        %3600 = vrot.lane.b32.xlu0 %v3133, 12
        %v3601 = vpop.permute.xlu0 %3600
        %3602 = vrot.lane.b32.xlu0 %v3135, 12
        %v3603 = vpop.permute.xlu0 %3602
        %3604 = vrot.lane.b32.xlu0 %v3138, 12
        %v3605 = vpop.permute.xlu0 %3604
        %3606 = vrot.lane.b32.xlu0 %v3140, 12
        %v3607 = vpop.permute.xlu0 %3606
        %3608 = vrot.lane.b32.xlu0 %v3143, 12
        %v3609 = vpop.permute.xlu0 %3608
        %3610 = vrot.lane.b32.xlu0 %v3145, 12
        %v3611 = vpop.permute.xlu0 %3610
        %3612 = vrot.lane.b32.xlu0 %v3148, 12
        %v3613 = vpop.permute.xlu0 %3612
        %3614 = vrot.lane.b32.xlu0 %v3150, 12
        %v3615 = vpop.permute.xlu0 %3614
        %3616 = vrot.lane.b32.xlu0 %v3153, 12
        %v3617 = vpop.permute.xlu0 %3616
        %3618 = vrot.lane.b32.xlu0 %v3155, 12
        %v3619 = vpop.permute.xlu0 %3618
        %3620 = vrot.lane.b32.xlu0 %v3158, 12
        %v3621 = vpop.permute.xlu0 %3620
        %3622 = vrot.lane.b32.xlu0 %v3160, 12
        %v3623 = vpop.permute.xlu0 %3622
        %3624 = vrot.lane.b32.xlu0 %v3163, 12
        %v3625 = vpop.permute.xlu0 %3624
        %3626 = vrot.lane.b32.xlu0 %v3165, 12
        %v3627 = vpop.permute.xlu0 %3626
        %3628 = vrot.lane.b32.xlu0 %v3168, 12
        %v3629 = vpop.permute.xlu0 %3628
        %3630 = vrot.lane.b32.xlu0 %v3170, 12
        %v3631 = vpop.permute.xlu0 %3630
        %3632 = vrot.lane.b32.xlu0 %v3173, 12
        %v3633 = vpop.permute.xlu0 %3632
        %3634 = vrot.lane.b32.xlu0 %v3175, 12
        %v3635 = vpop.permute.xlu0 %3634
        %3668 = vrot.lane.b32.xlu0 %v3178, 16
        %v3669 = vpop.permute.xlu0 %3668
        %3670 = vrot.lane.b32.xlu0 %v3180, 16
        %v3671 = vpop.permute.xlu0 %3670
        %3672 = vrot.lane.b32.xlu0 %v3183, 16
        %v3673 = vpop.permute.xlu0 %3672
        %3674 = vrot.lane.b32.xlu0 %v3185, 16
        %v3675 = vpop.permute.xlu0 %3674
        %3676 = vrot.lane.b32.xlu0 %v3188, 16
        %v3677 = vpop.permute.xlu0 %3676
        %3678 = vrot.lane.b32.xlu0 %v3190, 16
        %v3679 = vpop.permute.xlu0 %3678
        %3680 = vrot.lane.b32.xlu0 %v3193, 16
        %v3681 = vpop.permute.xlu0 %3680
        %3682 = vrot.lane.b32.xlu0 %v3195, 16
        %v3683 = vpop.permute.xlu0 %3682
        %3684 = vrot.lane.b32.xlu0 %v3198, 16
        %v3685 = vpop.permute.xlu0 %3684
        %3686 = vrot.lane.b32.xlu0 %v3200, 16
        %v3687 = vpop.permute.xlu0 %3686
        %3688 = vrot.lane.b32.xlu0 %v3203, 16
        %v3689 = vpop.permute.xlu0 %3688
        %3690 = vrot.lane.b32.xlu0 %v3205, 16
        %v3691 = vpop.permute.xlu0 %3690
        %3692 = vrot.lane.b32.xlu0 %v3208, 16
        %v3693 = vpop.permute.xlu0 %3692
        %3694 = vrot.lane.b32.xlu0 %v3210, 16
        %v3695 = vpop.permute.xlu0 %3694
        %3696 = vrot.lane.b32.xlu0 %v3213, 16
        %v3697 = vpop.permute.xlu0 %3696
        %3698 = vrot.lane.b32.xlu0 %v3215, 16
        %v3699 = vpop.permute.xlu0 %3698
        %3700 = vrot.lane.b32.xlu0 %v3218, 16
        %v3701 = vpop.permute.xlu0 %3700
        %3702 = vrot.lane.b32.xlu0 %v3220, 16
        %v3703 = vpop.permute.xlu0 %3702
        %3704 = vrot.lane.b32.xlu0 %v3223, 16
        %v3705 = vpop.permute.xlu0 %3704
        %3706 = vrot.lane.b32.xlu0 %v3225, 16
        %v3707 = vpop.permute.xlu0 %3706
        %3708 = vrot.lane.b32.xlu0 %v3228, 16
        %v3709 = vpop.permute.xlu0 %3708
        %3710 = vrot.lane.b32.xlu0 %v3230, 16
        %v3711 = vpop.permute.xlu0 %3710
        %3712 = vrot.lane.b32.xlu0 %v3233, 16
        %v3713 = vpop.permute.xlu0 %3712
        %3714 = vrot.lane.b32.xlu0 %v3235, 16
        %v3715 = vpop.permute.xlu0 %3714
        %3716 = vrot.lane.b32.xlu0 %v3238, 16
        %v3717 = vpop.permute.xlu0 %3716
        %3718 = vrot.lane.b32.xlu0 %v3240, 16
        %v3719 = vpop.permute.xlu0 %3718
        %3720 = vrot.lane.b32.xlu0 %v3243, 16
        %v3721 = vpop.permute.xlu0 %3720
        %3722 = vrot.lane.b32.xlu0 %v3245, 16
        %v3723 = vpop.permute.xlu0 %3722
        %3724 = vrot.lane.b32.xlu0 %v3248, 16
        %v3725 = vpop.permute.xlu0 %3724
        %3726 = vrot.lane.b32.xlu0 %v3250, 16
        %v3727 = vpop.permute.xlu0 %3726
        %3728 = vrot.lane.b32.xlu0 %v3253, 16
        %v3729 = vpop.permute.xlu0 %3728
        %3730 = vrot.lane.b32.xlu0 %v3255, 16
        %v3731 = vpop.permute.xlu0 %3730
        %3764 = vrot.lane.b32.xlu0 %v2830, 20
        %v3765 = vpop.permute.xlu0 %3764
        %3766 = vrot.lane.b32.xlu0 %v2831, 20
        %v3767 = vpop.permute.xlu0 %3766
        %3768 = vrot.lane.b32.xlu0 %v2833, 20
        %v3769 = vpop.permute.xlu0 %3768
        %3770 = vrot.lane.b32.xlu0 %v2834, 20
        %v3771 = vpop.permute.xlu0 %3770
        %3772 = vrot.lane.b32.xlu0 %v2836, 20
        %v3773 = vpop.permute.xlu0 %3772
        %3774 = vrot.lane.b32.xlu0 %v2837, 20
        %v3775 = vpop.permute.xlu0 %3774
        %3776 = vrot.lane.b32.xlu0 %v2839, 20
        %v3777 = vpop.permute.xlu0 %3776
        %3778 = vrot.lane.b32.xlu0 %v2840, 20
        %v3779 = vpop.permute.xlu0 %3778
        %3780 = vrot.lane.b32.xlu0 %v2842, 20
        %v3781 = vpop.permute.xlu0 %3780
        %3782 = vrot.lane.b32.xlu0 %v2843, 20
        %v3783 = vpop.permute.xlu0 %3782
        %3784 = vrot.lane.b32.xlu0 %v2845, 20
        %v3785 = vpop.permute.xlu0 %3784
        %3786 = vrot.lane.b32.xlu0 %v2846, 20
        %v3787 = vpop.permute.xlu0 %3786
        %3788 = vrot.lane.b32.xlu0 %v2848, 20
        %v3789 = vpop.permute.xlu0 %3788
        %3790 = vrot.lane.b32.xlu0 %v2849, 20
        %v3791 = vpop.permute.xlu0 %3790
        %3792 = vrot.lane.b32.xlu0 %v2851, 20
        %v3793 = vpop.permute.xlu0 %3792
        %3794 = vrot.lane.b32.xlu0 %v2852, 20
        %v3795 = vpop.permute.xlu0 %3794
        %3796 = vrot.lane.b32.xlu0 %v2854, 20
        %v3797 = vpop.permute.xlu0 %3796
        %3798 = vrot.lane.b32.xlu0 %v2855, 20
        %v3799 = vpop.permute.xlu0 %3798
        %3800 = vrot.lane.b32.xlu0 %v2857, 20
        %v3801 = vpop.permute.xlu0 %3800
        %3802 = vrot.lane.b32.xlu0 %v2858, 20
        %v3803 = vpop.permute.xlu0 %3802
        %3804 = vrot.lane.b32.xlu0 %v2860, 20
        %v3805 = vpop.permute.xlu0 %3804
        %3806 = vrot.lane.b32.xlu0 %v2861, 20
        %v3807 = vpop.permute.xlu0 %3806
        %3808 = vrot.lane.b32.xlu0 %v2863, 20
        %v3809 = vpop.permute.xlu0 %3808
        %3810 = vrot.lane.b32.xlu0 %v2864, 20
        %v3811 = vpop.permute.xlu0 %3810
        %3812 = vrot.lane.b32.xlu0 %v2866, 20
        %v3813 = vpop.permute.xlu0 %3812
        %3814 = vrot.lane.b32.xlu0 %v2867, 20
        %v3815 = vpop.permute.xlu0 %3814
        %3816 = vrot.lane.b32.xlu0 %v2869, 20
        %v3817 = vpop.permute.xlu0 %3816
        %3818 = vrot.lane.b32.xlu0 %v2870, 20
        %v3819 = vpop.permute.xlu0 %3818
        %3820 = vrot.lane.b32.xlu0 %v2872, 20
        %v3821 = vpop.permute.xlu0 %3820
        %3822 = vrot.lane.b32.xlu0 %v2873, 20
        %v3823 = vpop.permute.xlu0 %3822
        %3824 = vrot.lane.b32.xlu0 %v2875, 20
        %v3825 = vpop.permute.xlu0 %3824
        %3826 = vrot.lane.b32.xlu0 %v2876, 20
        %v3827 = vpop.permute.xlu0 %3826
        %3860 = vrot.lane.b32.xlu0 %v2942, 24
        %v3861 = vpop.permute.xlu0 %3860
        %3862 = vrot.lane.b32.xlu0 %v2944, 24
        %v3863 = vpop.permute.xlu0 %3862
        %3864 = vrot.lane.b32.xlu0 %v2947, 24
        %v3865 = vpop.permute.xlu0 %3864
        %3866 = vrot.lane.b32.xlu0 %v2949, 24
        %v3867 = vpop.permute.xlu0 %3866
        %3868 = vrot.lane.b32.xlu0 %v2952, 24
        %v3869 = vpop.permute.xlu0 %3868
        %3870 = vrot.lane.b32.xlu0 %v2954, 24
        %v3871 = vpop.permute.xlu0 %3870
        %3872 = vrot.lane.b32.xlu0 %v2957, 24
        %v3873 = vpop.permute.xlu0 %3872
        %3874 = vrot.lane.b32.xlu0 %v2959, 24
        %v3875 = vpop.permute.xlu0 %3874
        %3876 = vrot.lane.b32.xlu0 %v2962, 24
        %v3877 = vpop.permute.xlu0 %3876
        %3878 = vrot.lane.b32.xlu0 %v2964, 24
        %v3879 = vpop.permute.xlu0 %3878
        %3880 = vrot.lane.b32.xlu0 %v2967, 24
        %v3881 = vpop.permute.xlu0 %3880
        %3882 = vrot.lane.b32.xlu0 %v2969, 24
        %v3883 = vpop.permute.xlu0 %3882
        %3884 = vrot.lane.b32.xlu0 %v2972, 24
        %v3885 = vpop.permute.xlu0 %3884
        %3886 = vrot.lane.b32.xlu0 %v2974, 24
        %v3887 = vpop.permute.xlu0 %3886
        %3888 = vrot.lane.b32.xlu0 %v2977, 24
        %v3889 = vpop.permute.xlu0 %3888
        %3890 = vrot.lane.b32.xlu0 %v2979, 24
        %v3891 = vpop.permute.xlu0 %3890
        %3892 = vrot.lane.b32.xlu0 %v2982, 24
        %v3893 = vpop.permute.xlu0 %3892
        %3894 = vrot.lane.b32.xlu0 %v2984, 24
        %v3895 = vpop.permute.xlu0 %3894
        %3896 = vrot.lane.b32.xlu0 %v2987, 24
        %v3897 = vpop.permute.xlu0 %3896
        %3898 = vrot.lane.b32.xlu0 %v2989, 24
        %v3899 = vpop.permute.xlu0 %3898
        %3900 = vrot.lane.b32.xlu0 %v2992, 24
        %v3901 = vpop.permute.xlu0 %3900
        %3902 = vrot.lane.b32.xlu0 %v2994, 24
        %v3903 = vpop.permute.xlu0 %3902
        %3904 = vrot.lane.b32.xlu0 %v2997, 24
        %v3905 = vpop.permute.xlu0 %3904
        %3906 = vrot.lane.b32.xlu0 %v2999, 24
        %v3907 = vpop.permute.xlu0 %3906
        %3908 = vrot.lane.b32.xlu0 %v3002, 24
        %v3909 = vpop.permute.xlu0 %3908
        %3910 = vrot.lane.b32.xlu0 %v3004, 24
        %v3911 = vpop.permute.xlu0 %3910
        %3912 = vrot.lane.b32.xlu0 %v3007, 24
        %v3913 = vpop.permute.xlu0 %3912
        %3914 = vrot.lane.b32.xlu0 %v3009, 24
        %v3915 = vpop.permute.xlu0 %3914
        %3916 = vrot.lane.b32.xlu0 %v3012, 24
        %v3917 = vpop.permute.xlu0 %3916
        %3918 = vrot.lane.b32.xlu0 %v3014, 24
        %v3919 = vpop.permute.xlu0 %3918
        %3920 = vrot.lane.b32.xlu0 %v3261, 24
        %v3921 = vpop.permute.xlu0 %3920
        %3922 = vrot.lane.b32.xlu0 %v3263, 24
        %v3923 = vpop.permute.xlu0 %3922
        %3956 = vrot.lane.b32.xlu0 %v3022, 28
        %v3957 = vpop.permute.xlu0 %3956
        %3958 = vrot.lane.b32.xlu0 %v3024, 28
        %v3959 = vpop.permute.xlu0 %3958
        %3960 = vrot.lane.b32.xlu0 %v3027, 28
        %v3961 = vpop.permute.xlu0 %3960
        %3962 = vrot.lane.b32.xlu0 %v3029, 28
        %v3963 = vpop.permute.xlu0 %3962
        %3964 = vrot.lane.b32.xlu0 %v3032, 28
        %v3965 = vpop.permute.xlu0 %3964
        %3966 = vrot.lane.b32.xlu0 %v3034, 28
        %v3967 = vpop.permute.xlu0 %3966
        %3968 = vrot.lane.b32.xlu0 %v3037, 28
        %v3969 = vpop.permute.xlu0 %3968
        %3970 = vrot.lane.b32.xlu0 %v3039, 28
        %v3971 = vpop.permute.xlu0 %3970
        %3972 = vrot.lane.b32.xlu0 %v3042, 28
        %v3973 = vpop.permute.xlu0 %3972
        %3974 = vrot.lane.b32.xlu0 %v3044, 28
        %v3975 = vpop.permute.xlu0 %3974
        %3976 = vrot.lane.b32.xlu0 %v3047, 28
        %v3977 = vpop.permute.xlu0 %3976
        %3978 = vrot.lane.b32.xlu0 %v3049, 28
        %v3979 = vpop.permute.xlu0 %3978
        %3980 = vrot.lane.b32.xlu0 %v3052, 28
        %v3981 = vpop.permute.xlu0 %3980
        %3982 = vrot.lane.b32.xlu0 %v3054, 28
        %v3983 = vpop.permute.xlu0 %3982
        %3984 = vrot.lane.b32.xlu0 %v3057, 28
        %v3985 = vpop.permute.xlu0 %3984
        %3986 = vrot.lane.b32.xlu0 %v3059, 28
        %v3987 = vpop.permute.xlu0 %3986
        %3988 = vrot.lane.b32.xlu0 %v3062, 28
        %v3989 = vpop.permute.xlu0 %3988
        %3990 = vrot.lane.b32.xlu0 %v3064, 28
        %v3991 = vpop.permute.xlu0 %3990
        %3992 = vrot.lane.b32.xlu0 %v3067, 28
        %v3993 = vpop.permute.xlu0 %3992
        %3994 = vrot.lane.b32.xlu0 %v3069, 28
        %v3995 = vpop.permute.xlu0 %3994
        %3996 = vrot.lane.b32.xlu0 %v3072, 28
        %v3997 = vpop.permute.xlu0 %3996
        %3998 = vrot.lane.b32.xlu0 %v3074, 28
        %v3999 = vpop.permute.xlu0 %3998
        %4000 = vrot.lane.b32.xlu0 %v3077, 28
        %v4001 = vpop.permute.xlu0 %4000
        %4002 = vrot.lane.b32.xlu0 %v3079, 28
        %v4003 = vpop.permute.xlu0 %4002
        %4004 = vrot.lane.b32.xlu0 %v3082, 28
        %v4005 = vpop.permute.xlu0 %4004
        %4006 = vrot.lane.b32.xlu0 %v3084, 28
        %v4007 = vpop.permute.xlu0 %4006
        %4008 = vrot.lane.b32.xlu0 %v3087, 28
        %v4009 = vpop.permute.xlu0 %4008
        %4010 = vrot.lane.b32.xlu0 %v3089, 28
        %v4011 = vpop.permute.xlu0 %4010
        %4012 = vrot.lane.b32.xlu0 %v3092, 28
        %v4013 = vpop.permute.xlu0 %4012
        %4014 = vrot.lane.b32.xlu0 %v3094, 28
        %v4015 = vpop.permute.xlu0 %4014
        %4016 = vrot.lane.b32.xlu0 %v3266, 28
        %v4017 = vpop.permute.xlu0 %4016
        %4018 = vrot.lane.b32.xlu0 %v3268, 28
        %v4019 = vpop.permute.xlu0 %4018
        %4052 = vrot.lane.b32.xlu0 %v3103, 32
        %v4053 = vpop.permute.xlu0 %4052
        %4054 = vrot.lane.b32.xlu0 %v3105, 32
        %v4055 = vpop.permute.xlu0 %4054
        %4056 = vrot.lane.b32.xlu0 %v3108, 32
        %v4057 = vpop.permute.xlu0 %4056
        %4058 = vrot.lane.b32.xlu0 %v3110, 32
        %v4059 = vpop.permute.xlu0 %4058
        %4060 = vrot.lane.b32.xlu0 %v3113, 32
        %v4061 = vpop.permute.xlu0 %4060
        %4062 = vrot.lane.b32.xlu0 %v3115, 32
        %v4063 = vpop.permute.xlu0 %4062
        %4064 = vrot.lane.b32.xlu0 %v3118, 32
        %v4065 = vpop.permute.xlu0 %4064
        %4066 = vrot.lane.b32.xlu0 %v3120, 32
        %v4067 = vpop.permute.xlu0 %4066
        %4068 = vrot.lane.b32.xlu0 %v3123, 32
        %v4069 = vpop.permute.xlu0 %4068
        %4070 = vrot.lane.b32.xlu0 %v3125, 32
        %v4071 = vpop.permute.xlu0 %4070
        %4072 = vrot.lane.b32.xlu0 %v3128, 32
        %v4073 = vpop.permute.xlu0 %4072
        %4074 = vrot.lane.b32.xlu0 %v3130, 32
        %v4075 = vpop.permute.xlu0 %4074
        %4076 = vrot.lane.b32.xlu0 %v3133, 32
        %v4077 = vpop.permute.xlu0 %4076
        %4078 = vrot.lane.b32.xlu0 %v3135, 32
        %v4079 = vpop.permute.xlu0 %4078
        %4080 = vrot.lane.b32.xlu0 %v3138, 32
        %v4081 = vpop.permute.xlu0 %4080
        %4082 = vrot.lane.b32.xlu0 %v3140, 32
        %v4083 = vpop.permute.xlu0 %4082
        %4084 = vrot.lane.b32.xlu0 %v3143, 32
        %v4085 = vpop.permute.xlu0 %4084
        %4086 = vrot.lane.b32.xlu0 %v3145, 32
        %v4087 = vpop.permute.xlu0 %4086
        %4088 = vrot.lane.b32.xlu0 %v3148, 32
        %v4089 = vpop.permute.xlu0 %4088
        %4090 = vrot.lane.b32.xlu0 %v3150, 32
        %v4091 = vpop.permute.xlu0 %4090
        %4092 = vrot.lane.b32.xlu0 %v3153, 32
        %v4093 = vpop.permute.xlu0 %4092
        %4094 = vrot.lane.b32.xlu0 %v3155, 32
        %v4095 = vpop.permute.xlu0 %4094
        %4096 = vrot.lane.b32.xlu0 %v3158, 32
        %v4097 = vpop.permute.xlu0 %4096
        %4098 = vrot.lane.b32.xlu0 %v3160, 32
        %v4099 = vpop.permute.xlu0 %4098
        %4100 = vrot.lane.b32.xlu0 %v3163, 32
        %v4101 = vpop.permute.xlu0 %4100
        %4102 = vrot.lane.b32.xlu0 %v3165, 32
        %v4103 = vpop.permute.xlu0 %4102
        %4104 = vrot.lane.b32.xlu0 %v3168, 32
        %v4105 = vpop.permute.xlu0 %4104
        %4106 = vrot.lane.b32.xlu0 %v3170, 32
        %v4107 = vpop.permute.xlu0 %4106
        %4108 = vrot.lane.b32.xlu0 %v3173, 32
        %v4109 = vpop.permute.xlu0 %4108
        %4110 = vrot.lane.b32.xlu0 %v3175, 32
        %v4111 = vpop.permute.xlu0 %4110
        %4112 = vrot.lane.b32.xlu0 %v3271, 32
        %v4113 = vpop.permute.xlu0 %4112
        %4114 = vrot.lane.b32.xlu0 %v3273, 32
        %v4115 = vpop.permute.xlu0 %4114
        %4148 = vrot.lane.b32.xlu0 %v3183, 36
        %v4149 = vpop.permute.xlu0 %4148
        %4150 = vrot.lane.b32.xlu0 %v3185, 36
        %v4151 = vpop.permute.xlu0 %4150
        %4152 = vrot.lane.b32.xlu0 %v3188, 36
        %v4153 = vpop.permute.xlu0 %4152
        %4154 = vrot.lane.b32.xlu0 %v3190, 36
        %v4155 = vpop.permute.xlu0 %4154
        %4156 = vrot.lane.b32.xlu0 %v3193, 36
        %v4157 = vpop.permute.xlu0 %4156
        %4158 = vrot.lane.b32.xlu0 %v3195, 36
        %v4159 = vpop.permute.xlu0 %4158
        %4160 = vrot.lane.b32.xlu0 %v3198, 36
        %v4161 = vpop.permute.xlu0 %4160
        %4162 = vrot.lane.b32.xlu0 %v3200, 36
        %v4163 = vpop.permute.xlu0 %4162
        %4164 = vrot.lane.b32.xlu0 %v3203, 36
        %v4165 = vpop.permute.xlu0 %4164
        %4166 = vrot.lane.b32.xlu0 %v3205, 36
        %v4167 = vpop.permute.xlu0 %4166
        %4168 = vrot.lane.b32.xlu0 %v3208, 36
        %v4169 = vpop.permute.xlu0 %4168
        %4170 = vrot.lane.b32.xlu0 %v3210, 36
        %v4171 = vpop.permute.xlu0 %4170
        %4172 = vrot.lane.b32.xlu0 %v3213, 36
        %v4173 = vpop.permute.xlu0 %4172
        %4174 = vrot.lane.b32.xlu0 %v3215, 36
        %v4175 = vpop.permute.xlu0 %4174
        %4176 = vrot.lane.b32.xlu0 %v3218, 36
        %v4177 = vpop.permute.xlu0 %4176
        %4178 = vrot.lane.b32.xlu0 %v3220, 36
        %v4179 = vpop.permute.xlu0 %4178
        %4180 = vrot.lane.b32.xlu0 %v3223, 36
        %v4181 = vpop.permute.xlu0 %4180
        %4182 = vrot.lane.b32.xlu0 %v3225, 36
        %v4183 = vpop.permute.xlu0 %4182
        %4184 = vrot.lane.b32.xlu0 %v3228, 36
        %v4185 = vpop.permute.xlu0 %4184
        %4186 = vrot.lane.b32.xlu0 %v3230, 36
        %v4187 = vpop.permute.xlu0 %4186
        %4188 = vrot.lane.b32.xlu0 %v3233, 36
        %v4189 = vpop.permute.xlu0 %4188
        %4190 = vrot.lane.b32.xlu0 %v3235, 36
        %v4191 = vpop.permute.xlu0 %4190
        %4192 = vrot.lane.b32.xlu0 %v3238, 36
        %v4193 = vpop.permute.xlu0 %4192
        %4194 = vrot.lane.b32.xlu0 %v3240, 36
        %v4195 = vpop.permute.xlu0 %4194
        %4196 = vrot.lane.b32.xlu0 %v3243, 36
        %v4197 = vpop.permute.xlu0 %4196
        %4198 = vrot.lane.b32.xlu0 %v3245, 36
        %v4199 = vpop.permute.xlu0 %4198
        %4200 = vrot.lane.b32.xlu0 %v3248, 36
        %v4201 = vpop.permute.xlu0 %4200
        %4202 = vrot.lane.b32.xlu0 %v3250, 36
        %v4203 = vpop.permute.xlu0 %4202
        %4204 = vrot.lane.b32.xlu0 %v3253, 36
        %v4205 = vpop.permute.xlu0 %4204
        %4206 = vrot.lane.b32.xlu0 %v3255, 36
        %v4207 = vpop.permute.xlu0 %4206
        %4208 = vrot.lane.b32.xlu0 %v3276, 36
        %v4209 = vpop.permute.xlu0 %4208
        %4210 = vrot.lane.b32.xlu0 %v3278, 36
        %v4211 = vpop.permute.xlu0 %4210
        %4244 = vrot.lane.b32.xlu0 %v2833, 40
        %v4245 = vpop.permute.xlu0 %4244
        %4246 = vrot.lane.b32.xlu0 %v2834, 40
        %v4247 = vpop.permute.xlu0 %4246
        %4248 = vrot.lane.b32.xlu0 %v2836, 40
        %v4249 = vpop.permute.xlu0 %4248
        %4250 = vrot.lane.b32.xlu0 %v2837, 40
        %v4251 = vpop.permute.xlu0 %4250
        %4252 = vrot.lane.b32.xlu0 %v2839, 40
        %v4253 = vpop.permute.xlu0 %4252
        %4254 = vrot.lane.b32.xlu0 %v2840, 40
        %v4255 = vpop.permute.xlu0 %4254
        %4256 = vrot.lane.b32.xlu0 %v2842, 40
        %v4257 = vpop.permute.xlu0 %4256
        %4258 = vrot.lane.b32.xlu0 %v2843, 40
        %v4259 = vpop.permute.xlu0 %4258
        %4260 = vrot.lane.b32.xlu0 %v2845, 40
        %v4261 = vpop.permute.xlu0 %4260
        %4262 = vrot.lane.b32.xlu0 %v2846, 40
        %v4263 = vpop.permute.xlu0 %4262
        %4264 = vrot.lane.b32.xlu0 %v2848, 40
        %v4265 = vpop.permute.xlu0 %4264
        %4266 = vrot.lane.b32.xlu0 %v2849, 40
        %v4267 = vpop.permute.xlu0 %4266
        %4268 = vrot.lane.b32.xlu0 %v2851, 40
        %v4269 = vpop.permute.xlu0 %4268
        %4270 = vrot.lane.b32.xlu0 %v2852, 40
        %v4271 = vpop.permute.xlu0 %4270
        %4272 = vrot.lane.b32.xlu0 %v2854, 40
        %v4273 = vpop.permute.xlu0 %4272
        %4274 = vrot.lane.b32.xlu0 %v2855, 40
        %v4275 = vpop.permute.xlu0 %4274
        %4276 = vrot.lane.b32.xlu0 %v2857, 40
        %v4277 = vpop.permute.xlu0 %4276
        %4278 = vrot.lane.b32.xlu0 %v2858, 40
        %v4279 = vpop.permute.xlu0 %4278
        %4280 = vrot.lane.b32.xlu0 %v2860, 40
        %v4281 = vpop.permute.xlu0 %4280
        %4282 = vrot.lane.b32.xlu0 %v2861, 40
        %v4283 = vpop.permute.xlu0 %4282
        %4284 = vrot.lane.b32.xlu0 %v2863, 40
        %v4285 = vpop.permute.xlu0 %4284
        %4286 = vrot.lane.b32.xlu0 %v2864, 40
        %v4287 = vpop.permute.xlu0 %4286
        %4288 = vrot.lane.b32.xlu0 %v2866, 40
        %v4289 = vpop.permute.xlu0 %4288
        %4290 = vrot.lane.b32.xlu0 %v2867, 40
        %v4291 = vpop.permute.xlu0 %4290
        %4292 = vrot.lane.b32.xlu0 %v2869, 40
        %v4293 = vpop.permute.xlu0 %4292
        %4294 = vrot.lane.b32.xlu0 %v2870, 40
        %v4295 = vpop.permute.xlu0 %4294
        %4296 = vrot.lane.b32.xlu0 %v2872, 40
        %v4297 = vpop.permute.xlu0 %4296
        %4298 = vrot.lane.b32.xlu0 %v2873, 40
        %v4299 = vpop.permute.xlu0 %4298
        %4300 = vrot.lane.b32.xlu0 %v2875, 40
        %v4301 = vpop.permute.xlu0 %4300
        %4302 = vrot.lane.b32.xlu0 %v2876, 40
        %v4303 = vpop.permute.xlu0 %4302
        %4304 = vrot.lane.b32.xlu0 %v2878, 40
        %v4305 = vpop.permute.xlu0 %4304
        %4306 = vrot.lane.b32.xlu0 %v2879, 40
        %v4307 = vpop.permute.xlu0 %4306
        %4340 = vrot.lane.b32.xlu0 %v2947, 44
        %v4341 = vpop.permute.xlu0 %4340
        %4342 = vrot.lane.b32.xlu0 %v2949, 44
        %v4343 = vpop.permute.xlu0 %4342
        %4344 = vrot.lane.b32.xlu0 %v2952, 44
        %v4345 = vpop.permute.xlu0 %4344
        %4346 = vrot.lane.b32.xlu0 %v2954, 44
        %v4347 = vpop.permute.xlu0 %4346
        %4348 = vrot.lane.b32.xlu0 %v2957, 44
        %v4349 = vpop.permute.xlu0 %4348
        %4350 = vrot.lane.b32.xlu0 %v2959, 44
        %v4351 = vpop.permute.xlu0 %4350
        %4352 = vrot.lane.b32.xlu0 %v2962, 44
        %v4353 = vpop.permute.xlu0 %4352
        %4354 = vrot.lane.b32.xlu0 %v2964, 44
        %v4355 = vpop.permute.xlu0 %4354
        %4356 = vrot.lane.b32.xlu0 %v2967, 44
        %v4357 = vpop.permute.xlu0 %4356
        %4358 = vrot.lane.b32.xlu0 %v2969, 44
        %v4359 = vpop.permute.xlu0 %4358
        %4360 = vrot.lane.b32.xlu0 %v2972, 44
        %v4361 = vpop.permute.xlu0 %4360
        %4362 = vrot.lane.b32.xlu0 %v2974, 44
        %v4363 = vpop.permute.xlu0 %4362
        %4364 = vrot.lane.b32.xlu0 %v2977, 44
        %v4365 = vpop.permute.xlu0 %4364
        %4366 = vrot.lane.b32.xlu0 %v2979, 44
        %v4367 = vpop.permute.xlu0 %4366
        %4368 = vrot.lane.b32.xlu0 %v2982, 44
        %v4369 = vpop.permute.xlu0 %4368
        %4370 = vrot.lane.b32.xlu0 %v2984, 44
        %v4371 = vpop.permute.xlu0 %4370
        %4372 = vrot.lane.b32.xlu0 %v2987, 44
        %v4373 = vpop.permute.xlu0 %4372
        %4374 = vrot.lane.b32.xlu0 %v2989, 44
        %v4375 = vpop.permute.xlu0 %4374
        %4376 = vrot.lane.b32.xlu0 %v2992, 44
        %v4377 = vpop.permute.xlu0 %4376
        %4378 = vrot.lane.b32.xlu0 %v2994, 44
        %v4379 = vpop.permute.xlu0 %4378
        %4380 = vrot.lane.b32.xlu0 %v2997, 44
        %v4381 = vpop.permute.xlu0 %4380
        %4382 = vrot.lane.b32.xlu0 %v2999, 44
        %v4383 = vpop.permute.xlu0 %4382
        %4384 = vrot.lane.b32.xlu0 %v3002, 44
        %v4385 = vpop.permute.xlu0 %4384
        %4386 = vrot.lane.b32.xlu0 %v3004, 44
        %v4387 = vpop.permute.xlu0 %4386
        %4388 = vrot.lane.b32.xlu0 %v3007, 44
        %v4389 = vpop.permute.xlu0 %4388
        %4390 = vrot.lane.b32.xlu0 %v3009, 44
        %v4391 = vpop.permute.xlu0 %4390
        %4392 = vrot.lane.b32.xlu0 %v3012, 44
        %v4393 = vpop.permute.xlu0 %4392
        %4394 = vrot.lane.b32.xlu0 %v3014, 44
        %v4395 = vpop.permute.xlu0 %4394
        %4396 = vrot.lane.b32.xlu0 %v3261, 44
        %v4397 = vpop.permute.xlu0 %4396
        %4398 = vrot.lane.b32.xlu0 %v3263, 44
        %v4399 = vpop.permute.xlu0 %4398
        %4400 = vrot.lane.b32.xlu0 %v3284, 44
        %v4401 = vpop.permute.xlu0 %4400
        %4402 = vrot.lane.b32.xlu0 %v3286, 44
        %v4403 = vpop.permute.xlu0 %4402
        %4436 = vrot.lane.b32.xlu0 %v3027, 48
        %v4437 = vpop.permute.xlu0 %4436
        %4438 = vrot.lane.b32.xlu0 %v3029, 48
        %v4439 = vpop.permute.xlu0 %4438
        %4440 = vrot.lane.b32.xlu0 %v3032, 48
        %v4441 = vpop.permute.xlu0 %4440
        %4442 = vrot.lane.b32.xlu0 %v3034, 48
        %v4443 = vpop.permute.xlu0 %4442
        %4444 = vrot.lane.b32.xlu0 %v3037, 48
        %v4445 = vpop.permute.xlu0 %4444
        %4446 = vrot.lane.b32.xlu0 %v3039, 48
        %v4447 = vpop.permute.xlu0 %4446
        %4448 = vrot.lane.b32.xlu0 %v3042, 48
        %v4449 = vpop.permute.xlu0 %4448
        %4450 = vrot.lane.b32.xlu0 %v3044, 48
        %v4451 = vpop.permute.xlu0 %4450
        %4452 = vrot.lane.b32.xlu0 %v3047, 48
        %v4453 = vpop.permute.xlu0 %4452
        %4454 = vrot.lane.b32.xlu0 %v3049, 48
        %v4455 = vpop.permute.xlu0 %4454
        %4456 = vrot.lane.b32.xlu0 %v3052, 48
        %v4457 = vpop.permute.xlu0 %4456
        %4458 = vrot.lane.b32.xlu0 %v3054, 48
        %v4459 = vpop.permute.xlu0 %4458
        %4460 = vrot.lane.b32.xlu0 %v3057, 48
        %v4461 = vpop.permute.xlu0 %4460
        %4462 = vrot.lane.b32.xlu0 %v3059, 48
        %v4463 = vpop.permute.xlu0 %4462
        %4464 = vrot.lane.b32.xlu0 %v3062, 48
        %v4465 = vpop.permute.xlu0 %4464
        %4466 = vrot.lane.b32.xlu0 %v3064, 48
        %v4467 = vpop.permute.xlu0 %4466
        %4468 = vrot.lane.b32.xlu0 %v3067, 48
        %v4469 = vpop.permute.xlu0 %4468
        %4470 = vrot.lane.b32.xlu0 %v3069, 48
        %v4471 = vpop.permute.xlu0 %4470
        %4472 = vrot.lane.b32.xlu0 %v3072, 48
        %v4473 = vpop.permute.xlu0 %4472
        %4474 = vrot.lane.b32.xlu0 %v3074, 48
        %v4475 = vpop.permute.xlu0 %4474
        %4476 = vrot.lane.b32.xlu0 %v3077, 48
        %v4477 = vpop.permute.xlu0 %4476
        %4478 = vrot.lane.b32.xlu0 %v3079, 48
        %v4479 = vpop.permute.xlu0 %4478
        %4480 = vrot.lane.b32.xlu0 %v3082, 48
        %v4481 = vpop.permute.xlu0 %4480
        %4482 = vrot.lane.b32.xlu0 %v3084, 48
        %v4483 = vpop.permute.xlu0 %4482
        %4484 = vrot.lane.b32.xlu0 %v3087, 48
        %v4485 = vpop.permute.xlu0 %4484
        %4486 = vrot.lane.b32.xlu0 %v3089, 48
        %v4487 = vpop.permute.xlu0 %4486
        %4488 = vrot.lane.b32.xlu0 %v3092, 48
        %v4489 = vpop.permute.xlu0 %4488
        %4490 = vrot.lane.b32.xlu0 %v3094, 48
        %v4491 = vpop.permute.xlu0 %4490
        %4492 = vrot.lane.b32.xlu0 %v3266, 48
        %v4493 = vpop.permute.xlu0 %4492
        %4494 = vrot.lane.b32.xlu0 %v3268, 48
        %v4495 = vpop.permute.xlu0 %4494
        %4496 = vrot.lane.b32.xlu0 %v3289, 48
        %v4497 = vpop.permute.xlu0 %4496
        %4498 = vrot.lane.b32.xlu0 %v3291, 48
        %v4499 = vpop.permute.xlu0 %4498
        %4532 = vrot.lane.b32.xlu0 %v3108, 52
        %v4533 = vpop.permute.xlu0 %4532
        %4534 = vrot.lane.b32.xlu0 %v3110, 52
        %v4535 = vpop.permute.xlu0 %4534
        %4536 = vrot.lane.b32.xlu0 %v3113, 52
        %v4537 = vpop.permute.xlu0 %4536
        %4538 = vrot.lane.b32.xlu0 %v3115, 52
        %v4539 = vpop.permute.xlu0 %4538
        %4540 = vrot.lane.b32.xlu0 %v3118, 52
        %v4541 = vpop.permute.xlu0 %4540
        %4542 = vrot.lane.b32.xlu0 %v3120, 52
        %v4543 = vpop.permute.xlu0 %4542
        %4544 = vrot.lane.b32.xlu0 %v3123, 52
        %v4545 = vpop.permute.xlu0 %4544
        %4546 = vrot.lane.b32.xlu0 %v3125, 52
        %v4547 = vpop.permute.xlu0 %4546
        %4548 = vrot.lane.b32.xlu0 %v3128, 52
        %v4549 = vpop.permute.xlu0 %4548
        %4550 = vrot.lane.b32.xlu0 %v3130, 52
        %v4551 = vpop.permute.xlu0 %4550
        %4552 = vrot.lane.b32.xlu0 %v3133, 52
        %v4553 = vpop.permute.xlu0 %4552
        %4554 = vrot.lane.b32.xlu0 %v3135, 52
        %v4555 = vpop.permute.xlu0 %4554
        %4556 = vrot.lane.b32.xlu0 %v3138, 52
        %v4557 = vpop.permute.xlu0 %4556
        %4558 = vrot.lane.b32.xlu0 %v3140, 52
        %v4559 = vpop.permute.xlu0 %4558
        %4560 = vrot.lane.b32.xlu0 %v3143, 52
        %v4561 = vpop.permute.xlu0 %4560
        %4562 = vrot.lane.b32.xlu0 %v3145, 52
        %v4563 = vpop.permute.xlu0 %4562
        %4564 = vrot.lane.b32.xlu0 %v3148, 52
        %v4565 = vpop.permute.xlu0 %4564
        %4566 = vrot.lane.b32.xlu0 %v3150, 52
        %v4567 = vpop.permute.xlu0 %4566
        %4568 = vrot.lane.b32.xlu0 %v3153, 52
        %v4569 = vpop.permute.xlu0 %4568
        %4570 = vrot.lane.b32.xlu0 %v3155, 52
        %v4571 = vpop.permute.xlu0 %4570
        %4572 = vrot.lane.b32.xlu0 %v3158, 52
        %v4573 = vpop.permute.xlu0 %4572
        %4574 = vrot.lane.b32.xlu0 %v3160, 52
        %v4575 = vpop.permute.xlu0 %4574
        %4576 = vrot.lane.b32.xlu0 %v3163, 52
        %v4577 = vpop.permute.xlu0 %4576
        %4578 = vrot.lane.b32.xlu0 %v3165, 52
        %v4579 = vpop.permute.xlu0 %4578
        %4580 = vrot.lane.b32.xlu0 %v3168, 52
        %v4581 = vpop.permute.xlu0 %4580
        %4582 = vrot.lane.b32.xlu0 %v3170, 52
        %v4583 = vpop.permute.xlu0 %4582
        %4584 = vrot.lane.b32.xlu0 %v3173, 52
        %v4585 = vpop.permute.xlu0 %4584
        %4586 = vrot.lane.b32.xlu0 %v3175, 52
        %v4587 = vpop.permute.xlu0 %4586
        %4588 = vrot.lane.b32.xlu0 %v3271, 52
        %v4589 = vpop.permute.xlu0 %4588
        %4590 = vrot.lane.b32.xlu0 %v3273, 52
        %v4591 = vpop.permute.xlu0 %4590
        %4592 = vrot.lane.b32.xlu0 %v3294, 52
        %v4593 = vpop.permute.xlu0 %4592
        %4594 = vrot.lane.b32.xlu0 %v3296, 52
        %v4595 = vpop.permute.xlu0 %4594
        %4628 = vrot.lane.b32.xlu0 %v3188, 56
        %v4629 = vpop.permute.xlu0 %4628
        %4630 = vrot.lane.b32.xlu0 %v3190, 56
        %v4631 = vpop.permute.xlu0 %4630
        %4632 = vrot.lane.b32.xlu0 %v3193, 56
        %v4633 = vpop.permute.xlu0 %4632
        %4634 = vrot.lane.b32.xlu0 %v3195, 56
        %v4635 = vpop.permute.xlu0 %4634
        %4636 = vrot.lane.b32.xlu0 %v3198, 56
        %v4637 = vpop.permute.xlu0 %4636
        %4638 = vrot.lane.b32.xlu0 %v3200, 56
        %v4639 = vpop.permute.xlu0 %4638
        %4640 = vrot.lane.b32.xlu0 %v3203, 56
        %v4641 = vpop.permute.xlu0 %4640
        %4642 = vrot.lane.b32.xlu0 %v3205, 56
        %v4643 = vpop.permute.xlu0 %4642
        %4644 = vrot.lane.b32.xlu0 %v3208, 56
        %v4645 = vpop.permute.xlu0 %4644
        %4646 = vrot.lane.b32.xlu0 %v3210, 56
        %v4647 = vpop.permute.xlu0 %4646
        %4648 = vrot.lane.b32.xlu0 %v3213, 56
        %v4649 = vpop.permute.xlu0 %4648
        %4650 = vrot.lane.b32.xlu0 %v3215, 56
        %v4651 = vpop.permute.xlu0 %4650
        %4652 = vrot.lane.b32.xlu0 %v3218, 56
        %v4653 = vpop.permute.xlu0 %4652
        %4654 = vrot.lane.b32.xlu0 %v3220, 56
        %v4655 = vpop.permute.xlu0 %4654
        %4656 = vrot.lane.b32.xlu0 %v3223, 56
        %v4657 = vpop.permute.xlu0 %4656
        %4658 = vrot.lane.b32.xlu0 %v3225, 56
        %v4659 = vpop.permute.xlu0 %4658
        %4660 = vrot.lane.b32.xlu0 %v3228, 56
        %v4661 = vpop.permute.xlu0 %4660
        %4662 = vrot.lane.b32.xlu0 %v3230, 56
        %v4663 = vpop.permute.xlu0 %4662
        %4664 = vrot.lane.b32.xlu0 %v3233, 56
        %v4665 = vpop.permute.xlu0 %4664
        %4666 = vrot.lane.b32.xlu0 %v3235, 56
        %v4667 = vpop.permute.xlu0 %4666
        %4668 = vrot.lane.b32.xlu0 %v3238, 56
        %v4669 = vpop.permute.xlu0 %4668
        %4670 = vrot.lane.b32.xlu0 %v3240, 56
        %v4671 = vpop.permute.xlu0 %4670
        %4672 = vrot.lane.b32.xlu0 %v3243, 56
        %v4673 = vpop.permute.xlu0 %4672
        %4674 = vrot.lane.b32.xlu0 %v3245, 56
        %v4675 = vpop.permute.xlu0 %4674
        %4676 = vrot.lane.b32.xlu0 %v3248, 56
        %v4677 = vpop.permute.xlu0 %4676
        %4678 = vrot.lane.b32.xlu0 %v3250, 56
        %v4679 = vpop.permute.xlu0 %4678
        %4680 = vrot.lane.b32.xlu0 %v3253, 56
        %v4681 = vpop.permute.xlu0 %4680
        %4682 = vrot.lane.b32.xlu0 %v3255, 56
        %v4683 = vpop.permute.xlu0 %4682
        %4684 = vrot.lane.b32.xlu0 %v3276, 56
        %v4685 = vpop.permute.xlu0 %4684
        %4686 = vrot.lane.b32.xlu0 %v3278, 56
        %v4687 = vpop.permute.xlu0 %4686
        %4688 = vrot.lane.b32.xlu0 %v3299, 56
        %v4689 = vpop.permute.xlu0 %4688
        %4690 = vrot.lane.b32.xlu0 %v3301, 56
        %v4691 = vpop.permute.xlu0 %4690
        %4724 = vrot.lane.b32.xlu0 %v2836, 60
        %v4725 = vpop.permute.xlu0 %4724
        %4726 = vrot.lane.b32.xlu0 %v2837, 60
        %v4727 = vpop.permute.xlu0 %4726
        %4728 = vrot.lane.b32.xlu0 %v2839, 60
        %v4729 = vpop.permute.xlu0 %4728
        %4730 = vrot.lane.b32.xlu0 %v2840, 60
        %v4731 = vpop.permute.xlu0 %4730
        %4732 = vrot.lane.b32.xlu0 %v2842, 60
        %v4733 = vpop.permute.xlu0 %4732
        %4734 = vrot.lane.b32.xlu0 %v2843, 60
        %v4735 = vpop.permute.xlu0 %4734
        %4736 = vrot.lane.b32.xlu0 %v2845, 60
        %v4737 = vpop.permute.xlu0 %4736
        %4738 = vrot.lane.b32.xlu0 %v2846, 60
        %v4739 = vpop.permute.xlu0 %4738
        %4740 = vrot.lane.b32.xlu0 %v2848, 60
        %v4741 = vpop.permute.xlu0 %4740
        %4742 = vrot.lane.b32.xlu0 %v2849, 60
        %v4743 = vpop.permute.xlu0 %4742
        %4744 = vrot.lane.b32.xlu0 %v2851, 60
        %v4745 = vpop.permute.xlu0 %4744
        %4746 = vrot.lane.b32.xlu0 %v2852, 60
        %v4747 = vpop.permute.xlu0 %4746
        %4748 = vrot.lane.b32.xlu0 %v2854, 60
        %v4749 = vpop.permute.xlu0 %4748
        %4750 = vrot.lane.b32.xlu0 %v2855, 60
        %v4751 = vpop.permute.xlu0 %4750
        %4752 = vrot.lane.b32.xlu0 %v2857, 60
        %v4753 = vpop.permute.xlu0 %4752
        %4754 = vrot.lane.b32.xlu0 %v2858, 60
        %v4755 = vpop.permute.xlu0 %4754
        %4756 = vrot.lane.b32.xlu0 %v2860, 60
        %v4757 = vpop.permute.xlu0 %4756
        %4758 = vrot.lane.b32.xlu0 %v2861, 60
        %v4759 = vpop.permute.xlu0 %4758
        %4760 = vrot.lane.b32.xlu0 %v2863, 60
        %v4761 = vpop.permute.xlu0 %4760
        %4762 = vrot.lane.b32.xlu0 %v2864, 60
        %v4763 = vpop.permute.xlu0 %4762
        %4764 = vrot.lane.b32.xlu0 %v2866, 60
        %v4765 = vpop.permute.xlu0 %4764
        %4766 = vrot.lane.b32.xlu0 %v2867, 60
        %v4767 = vpop.permute.xlu0 %4766
        %4768 = vrot.lane.b32.xlu0 %v2869, 60
        %v4769 = vpop.permute.xlu0 %4768
        %4770 = vrot.lane.b32.xlu0 %v2870, 60
        %v4771 = vpop.permute.xlu0 %4770
        %4772 = vrot.lane.b32.xlu0 %v2872, 60
        %v4773 = vpop.permute.xlu0 %4772
        %4774 = vrot.lane.b32.xlu0 %v2873, 60
        %v4775 = vpop.permute.xlu0 %4774
        %4776 = vrot.lane.b32.xlu0 %v2875, 60
        %v4777 = vpop.permute.xlu0 %4776
        %4778 = vrot.lane.b32.xlu0 %v2876, 60
        %v4779 = vpop.permute.xlu0 %4778
        %4780 = vrot.lane.b32.xlu0 %v2878, 60
        %v4781 = vpop.permute.xlu0 %4780
        %4782 = vrot.lane.b32.xlu0 %v2879, 60
        %v4783 = vpop.permute.xlu0 %4782
        %4784 = vrot.lane.b32.xlu0 %v2881, 60
        %v4785 = vpop.permute.xlu0 %4784
        %4786 = vrot.lane.b32.xlu0 %v2882, 60
        %v4787 = vpop.permute.xlu0 %4786
        %v4820 = vsel %vm371, %v2827, %v3381
        %v4821 = vsel %vm371, %v2828, %v3383
        %v4822 = vsel %vm371, %v2830, %v3385
        %v4823 = vsel %vm371, %v2831, %v3387
        %v4824 = vsel %vm371, %v2833, %v3389
        %v4825 = vsel %vm371, %v2834, %v3391
        %v4826 = vsel %vm371, %v2836, %v3393
        %v4827 = vsel %vm371, %v2837, %v3395
        %v4828 = vsel %vm371, %v2839, %v3397
        %v4829 = vsel %vm371, %v2840, %v3399
        %v4830 = vsel %vm371, %v2842, %v3401
        %v4831 = vsel %vm371, %v2843, %v3403
        %v4832 = vsel %vm371, %v2845, %v3405
        %v4833 = vsel %vm371, %v2846, %v3407
        %v4834 = vsel %vm371, %v2848, %v3409
        %v4835 = vsel %vm371, %v2849, %v3411
        %v4836 = vsel %vm371, %v2851, %v3413
        %v4837 = vsel %vm371, %v2852, %v3415
        %v4838 = vsel %vm371, %v2854, %v3417
        %v4839 = vsel %vm371, %v2855, %v3419
        %v4840 = vsel %vm371, %v2857, %v3421
        %v4841 = vsel %vm371, %v2858, %v3423
        %v4842 = vsel %vm371, %v2860, %v3425
        %v4843 = vsel %vm371, %v2861, %v3427
        %v4844 = vsel %vm371, %v2863, %v3429
        %v4845 = vsel %vm371, %v2864, %v3431
        %v4846 = vsel %vm371, %v2866, %v3433
        %v4847 = vsel %vm371, %v2867, %v3435
        %v4848 = vsel %vm371, %v2869, %v3437
        %v4849 = vsel %vm371, %v2870, %v3439
        %v4850 = vsel %vm371, %v2872, %v3441
        %v4851 = vsel %vm371, %v2873, %v3443
        %v4852 = vsel %vm729, %v4820, %v3477
        %v4853 = vsel %vm729, %v4821, %v3479
        %v4854 = vsel %vm729, %v4822, %v3481
        %v4855 = vsel %vm729, %v4823, %v3483
        %v4856 = vsel %vm729, %v4824, %v3485
        %v4857 = vsel %vm729, %v4825, %v3487
        %v4858 = vsel %vm729, %v4826, %v3489
        %v4859 = vsel %vm729, %v4827, %v3491
        %v4860 = vsel %vm729, %v4828, %v3493
        %v4861 = vsel %vm729, %v4829, %v3495
        %v4862 = vsel %vm729, %v4830, %v3497
        %v4863 = vsel %vm729, %v4831, %v3499
        %v4864 = vsel %vm729, %v4832, %v3501
        %v4865 = vsel %vm729, %v4833, %v3503
        %v4866 = vsel %vm729, %v4834, %v3505
        %v4867 = vsel %vm729, %v4835, %v3507
        %v4868 = vsel %vm729, %v4836, %v3509
        %v4869 = vsel %vm729, %v4837, %v3511
        %v4870 = vsel %vm729, %v4838, %v3513
        %v4871 = vsel %vm729, %v4839, %v3515
        %v4872 = vsel %vm729, %v4840, %v3517
        %v4873 = vsel %vm729, %v4841, %v3519
        %v4874 = vsel %vm729, %v4842, %v3521
        %v4875 = vsel %vm729, %v4843, %v3523
        %v4876 = vsel %vm729, %v4844, %v3525
        %v4877 = vsel %vm729, %v4845, %v3527
        %v4878 = vsel %vm729, %v4846, %v3529
        %v4879 = vsel %vm729, %v4847, %v3531
        %v4880 = vsel %vm729, %v4848, %v3533
        %v4881 = vsel %vm729, %v4849, %v3535
        %v4882 = vsel %vm729, %v4850, %v3537
        %v4883 = vsel %vm729, %v4851, %v3539
        %vm4884 = vcmask 97280
        %v4885 = vsel %vm4884, %v4852, %v3573
        %v4886 = vsel %vm4884, %v4853, %v3575
        %v4887 = vsel %vm4884, %v4854, %v3577
        %v4888 = vsel %vm4884, %v4855, %v3579
        %v4889 = vsel %vm4884, %v4856, %v3581
        %v4890 = vsel %vm4884, %v4857, %v3583
        %v4891 = vsel %vm4884, %v4858, %v3585
        %v4892 = vsel %vm4884, %v4859, %v3587
        %v4893 = vsel %vm4884, %v4860, %v3589
        %v4894 = vsel %vm4884, %v4861, %v3591
        %v4895 = vsel %vm4884, %v4862, %v3593
        %v4896 = vsel %vm4884, %v4863, %v3595
        %v4897 = vsel %vm4884, %v4864, %v3597
        %v4898 = vsel %vm4884, %v4865, %v3599
        %v4899 = vsel %vm4884, %v4866, %v3601
        %v4900 = vsel %vm4884, %v4867, %v3603
        %v4901 = vsel %vm4884, %v4868, %v3605
        %v4902 = vsel %vm4884, %v4869, %v3607
        %v4903 = vsel %vm4884, %v4870, %v3609
        %v4904 = vsel %vm4884, %v4871, %v3611
        %v4905 = vsel %vm4884, %v4872, %v3613
        %v4906 = vsel %vm4884, %v4873, %v3615
        %v4907 = vsel %vm4884, %v4874, %v3617
        %v4908 = vsel %vm4884, %v4875, %v3619
        %v4909 = vsel %vm4884, %v4876, %v3621
        %v4910 = vsel %vm4884, %v4877, %v3623
        %v4911 = vsel %vm4884, %v4878, %v3625
        %v4912 = vsel %vm4884, %v4879, %v3627
        %v4913 = vsel %vm4884, %v4880, %v3629
        %v4914 = vsel %vm4884, %v4881, %v3631
        %v4915 = vsel %vm4884, %v4882, %v3633
        %v4916 = vsel %vm4884, %v4883, %v3635
        %v4917 = vsel %vm2036, %v4885, %v3669
        %v4918 = vsel %vm2036, %v4886, %v3671
        %v4919 = vsel %vm2036, %v4887, %v3673
        %v4920 = vsel %vm2036, %v4888, %v3675
        %v4921 = vsel %vm2036, %v4889, %v3677
        %v4922 = vsel %vm2036, %v4890, %v3679
        %v4923 = vsel %vm2036, %v4891, %v3681
        %v4924 = vsel %vm2036, %v4892, %v3683
        %v4925 = vsel %vm2036, %v4893, %v3685
        %v4926 = vsel %vm2036, %v4894, %v3687
        %v4927 = vsel %vm2036, %v4895, %v3689
        %v4928 = vsel %vm2036, %v4896, %v3691
        %v4929 = vsel %vm2036, %v4897, %v3693
        %v4930 = vsel %vm2036, %v4898, %v3695
        %v4931 = vsel %vm2036, %v4899, %v3697
        %v4932 = vsel %vm2036, %v4900, %v3699
        %v4933 = vsel %vm2036, %v4901, %v3701
        %v4934 = vsel %vm2036, %v4902, %v3703
        %v4935 = vsel %vm2036, %v4903, %v3705
        %v4936 = vsel %vm2036, %v4904, %v3707
        %v4937 = vsel %vm2036, %v4905, %v3709
        %v4938 = vsel %vm2036, %v4906, %v3711
        %v4939 = vsel %vm2036, %v4907, %v3713
        %v4940 = vsel %vm2036, %v4908, %v3715
        %v4941 = vsel %vm2036, %v4909, %v3717
        %v4942 = vsel %vm2036, %v4910, %v3719
        %v4943 = vsel %vm2036, %v4911, %v3721
        %v4944 = vsel %vm2036, %v4912, %v3723
        %v4945 = vsel %vm2036, %v4913, %v3725
        %v4946 = vsel %vm2036, %v4914, %v3727
        %v4947 = vsel %vm2036, %v4915, %v3729
        %v4948 = vsel %vm2036, %v4916, %v3731
        %vm4949 = vcmask 162816
        %v4950 = vsel %vm4949, %v4917, %v3765
        %v4951 = vsel %vm4949, %v4918, %v3767
        %v4952 = vsel %vm4949, %v4919, %v3769
        %v4953 = vsel %vm4949, %v4920, %v3771
        %v4954 = vsel %vm4949, %v4921, %v3773
        %v4955 = vsel %vm4949, %v4922, %v3775
        %v4956 = vsel %vm4949, %v4923, %v3777
        %v4957 = vsel %vm4949, %v4924, %v3779
        %v4958 = vsel %vm4949, %v4925, %v3781
        %v4959 = vsel %vm4949, %v4926, %v3783
        %v4960 = vsel %vm4949, %v4927, %v3785
        %v4961 = vsel %vm4949, %v4928, %v3787
        %v4962 = vsel %vm4949, %v4929, %v3789
        %v4963 = vsel %vm4949, %v4930, %v3791
        %v4964 = vsel %vm4949, %v4931, %v3793
        %v4965 = vsel %vm4949, %v4932, %v3795
        %v4966 = vsel %vm4949, %v4933, %v3797
        %v4967 = vsel %vm4949, %v4934, %v3799
        %v4968 = vsel %vm4949, %v4935, %v3801
        %v4969 = vsel %vm4949, %v4936, %v3803
        %v4970 = vsel %vm4949, %v4937, %v3805
        %v4971 = vsel %vm4949, %v4938, %v3807
        %v4972 = vsel %vm4949, %v4939, %v3809
        %v4973 = vsel %vm4949, %v4940, %v3811
        %v4974 = vsel %vm4949, %v4941, %v3813
        %v4975 = vsel %vm4949, %v4942, %v3815
        %v4976 = vsel %vm4949, %v4943, %v3817
        %v4977 = vsel %vm4949, %v4944, %v3819
        %v4978 = vsel %vm4949, %v4945, %v3821
        %v4979 = vsel %vm4949, %v4946, %v3823
        %v4980 = vsel %vm4949, %v4947, %v3825
        %v4981 = vsel %vm4949, %v4948, %v3827
        %v4982 = vsel %vm2069, %v4950, %v3861
        %v4983 = vsel %vm2069, %v4951, %v3863
        %v4984 = vsel %vm2069, %v4952, %v3865
        %v4985 = vsel %vm2069, %v4953, %v3867
        %v4986 = vsel %vm2069, %v4954, %v3869
        %v4987 = vsel %vm2069, %v4955, %v3871
        %v4988 = vsel %vm2069, %v4956, %v3873
        %v4989 = vsel %vm2069, %v4957, %v3875
        %v4990 = vsel %vm2069, %v4958, %v3877
        %v4991 = vsel %vm2069, %v4959, %v3879
        %v4992 = vsel %vm2069, %v4960, %v3881
        %v4993 = vsel %vm2069, %v4961, %v3883
        %v4994 = vsel %vm2069, %v4962, %v3885
        %v4995 = vsel %vm2069, %v4963, %v3887
        %v4996 = vsel %vm2069, %v4964, %v3889
        %v4997 = vsel %vm2069, %v4965, %v3891
        %v4998 = vsel %vm2069, %v4966, %v3893
        %v4999 = vsel %vm2069, %v4967, %v3895
        %v5000 = vsel %vm2069, %v4968, %v3897
        %v5001 = vsel %vm2069, %v4969, %v3899
        %v5002 = vsel %vm2069, %v4970, %v3901
        %v5003 = vsel %vm2069, %v4971, %v3903
        %v5004 = vsel %vm2069, %v4972, %v3905
        %v5005 = vsel %vm2069, %v4973, %v3907
        %v5006 = vsel %vm2069, %v4974, %v3909
        %v5007 = vsel %vm2069, %v4975, %v3911
        %v5008 = vsel %vm2069, %v4976, %v3913
        %v5009 = vsel %vm2069, %v4977, %v3915
        %v5010 = vsel %vm2069, %v4978, %v3917
        %v5011 = vsel %vm2069, %v4979, %v3919
        %v5012 = vsel %vm2069, %v4980, %v3921
        %v5013 = vsel %vm2069, %v4981, %v3923
        %vm5014 = vcmask 228352
        %v5015 = vsel %vm5014, %v4982, %v3957
        %v5016 = vsel %vm5014, %v4983, %v3959
        %v5017 = vsel %vm5014, %v4984, %v3961
        %v5018 = vsel %vm5014, %v4985, %v3963
        %v5019 = vsel %vm5014, %v4986, %v3965
        %v5020 = vsel %vm5014, %v4987, %v3967
        %v5021 = vsel %vm5014, %v4988, %v3969
        %v5022 = vsel %vm5014, %v4989, %v3971
        %v5023 = vsel %vm5014, %v4990, %v3973
        %v5024 = vsel %vm5014, %v4991, %v3975
        %v5025 = vsel %vm5014, %v4992, %v3977
        %v5026 = vsel %vm5014, %v4993, %v3979
        %v5027 = vsel %vm5014, %v4994, %v3981
        %v5028 = vsel %vm5014, %v4995, %v3983
        %v5029 = vsel %vm5014, %v4996, %v3985
        %v5030 = vsel %vm5014, %v4997, %v3987
        %v5031 = vsel %vm5014, %v4998, %v3989
        %v5032 = vsel %vm5014, %v4999, %v3991
        %v5033 = vsel %vm5014, %v5000, %v3993
        %v5034 = vsel %vm5014, %v5001, %v3995
        %v5035 = vsel %vm5014, %v5002, %v3997
        %v5036 = vsel %vm5014, %v5003, %v3999
        %v5037 = vsel %vm5014, %v5004, %v4001
        %v5038 = vsel %vm5014, %v5005, %v4003
        %v5039 = vsel %vm5014, %v5006, %v4005
        %v5040 = vsel %vm5014, %v5007, %v4007
        %v5041 = vsel %vm5014, %v5008, %v4009
        %v5042 = vsel %vm5014, %v5009, %v4011
        %v5043 = vsel %vm5014, %v5010, %v4013
        %v5044 = vsel %vm5014, %v5011, %v4015
        %v5045 = vsel %vm5014, %v5012, %v4017
        %v5046 = vsel %vm5014, %v5013, %v4019
        %v5047 = vsel %vm2102, %v5015, %v4053
        %v5048 = vsel %vm2102, %v5016, %v4055
        %v5049 = vsel %vm2102, %v5017, %v4057
        %v5050 = vsel %vm2102, %v5018, %v4059
        %v5051 = vsel %vm2102, %v5019, %v4061
        %v5052 = vsel %vm2102, %v5020, %v4063
        %v5053 = vsel %vm2102, %v5021, %v4065
        %v5054 = vsel %vm2102, %v5022, %v4067
        %v5055 = vsel %vm2102, %v5023, %v4069
        %v5056 = vsel %vm2102, %v5024, %v4071
        %v5057 = vsel %vm2102, %v5025, %v4073
        %v5058 = vsel %vm2102, %v5026, %v4075
        %v5059 = vsel %vm2102, %v5027, %v4077
        %v5060 = vsel %vm2102, %v5028, %v4079
        %v5061 = vsel %vm2102, %v5029, %v4081
        %v5062 = vsel %vm2102, %v5030, %v4083
        %v5063 = vsel %vm2102, %v5031, %v4085
        %v5064 = vsel %vm2102, %v5032, %v4087
        %v5065 = vsel %vm2102, %v5033, %v4089
        %v5066 = vsel %vm2102, %v5034, %v4091
        %v5067 = vsel %vm2102, %v5035, %v4093
        %v5068 = vsel %vm2102, %v5036, %v4095
        %v5069 = vsel %vm2102, %v5037, %v4097
        %v5070 = vsel %vm2102, %v5038, %v4099
        %v5071 = vsel %vm2102, %v5039, %v4101
        %v5072 = vsel %vm2102, %v5040, %v4103
        %v5073 = vsel %vm2102, %v5041, %v4105
        %v5074 = vsel %vm2102, %v5042, %v4107
        %v5075 = vsel %vm2102, %v5043, %v4109
        %v5076 = vsel %vm2102, %v5044, %v4111
        %v5077 = vsel %vm2102, %v5045, %v4113
        %v5078 = vsel %vm2102, %v5046, %v4115
        %vm5079 = vcmask 293888
        %v5080 = vsel %vm5079, %v5047, %v4149
        %v5081 = vsel %vm5079, %v5048, %v4151
        %v5082 = vsel %vm5079, %v5049, %v4153
        %v5083 = vsel %vm5079, %v5050, %v4155
        %v5084 = vsel %vm5079, %v5051, %v4157
        %v5085 = vsel %vm5079, %v5052, %v4159
        %v5086 = vsel %vm5079, %v5053, %v4161
        %v5087 = vsel %vm5079, %v5054, %v4163
        %v5088 = vsel %vm5079, %v5055, %v4165
        %v5089 = vsel %vm5079, %v5056, %v4167
        %v5090 = vsel %vm5079, %v5057, %v4169
        %v5091 = vsel %vm5079, %v5058, %v4171
        %v5092 = vsel %vm5079, %v5059, %v4173
        %v5093 = vsel %vm5079, %v5060, %v4175
        %v5094 = vsel %vm5079, %v5061, %v4177
        %v5095 = vsel %vm5079, %v5062, %v4179
        %v5096 = vsel %vm5079, %v5063, %v4181
        %v5097 = vsel %vm5079, %v5064, %v4183
        %v5098 = vsel %vm5079, %v5065, %v4185
        %v5099 = vsel %vm5079, %v5066, %v4187
        %v5100 = vsel %vm5079, %v5067, %v4189
        %v5101 = vsel %vm5079, %v5068, %v4191
        %v5102 = vsel %vm5079, %v5069, %v4193
        %v5103 = vsel %vm5079, %v5070, %v4195
        %v5104 = vsel %vm5079, %v5071, %v4197
        %v5105 = vsel %vm5079, %v5072, %v4199
        %v5106 = vsel %vm5079, %v5073, %v4201
        %v5107 = vsel %vm5079, %v5074, %v4203
        %v5108 = vsel %vm5079, %v5075, %v4205
        %v5109 = vsel %vm5079, %v5076, %v4207
        %v5110 = vsel %vm5079, %v5077, %v4209
        %v5111 = vsel %vm5079, %v5078, %v4211
        %v5112 = vsel %vm2135, %v5080, %v4245
        %v5113 = vsel %vm2135, %v5081, %v4247
        %v5114 = vsel %vm2135, %v5082, %v4249
        %v5115 = vsel %vm2135, %v5083, %v4251
        %v5116 = vsel %vm2135, %v5084, %v4253
        %v5117 = vsel %vm2135, %v5085, %v4255
        %v5118 = vsel %vm2135, %v5086, %v4257
        %v5119 = vsel %vm2135, %v5087, %v4259
        %v5120 = vsel %vm2135, %v5088, %v4261
        %v5121 = vsel %vm2135, %v5089, %v4263
        %v5122 = vsel %vm2135, %v5090, %v4265
        %v5123 = vsel %vm2135, %v5091, %v4267
        %v5124 = vsel %vm2135, %v5092, %v4269
        %v5125 = vsel %vm2135, %v5093, %v4271
        %v5126 = vsel %vm2135, %v5094, %v4273
        %v5127 = vsel %vm2135, %v5095, %v4275
        %v5128 = vsel %vm2135, %v5096, %v4277
        %v5129 = vsel %vm2135, %v5097, %v4279
        %v5130 = vsel %vm2135, %v5098, %v4281
        %v5131 = vsel %vm2135, %v5099, %v4283
        %v5132 = vsel %vm2135, %v5100, %v4285
        %v5133 = vsel %vm2135, %v5101, %v4287
        %v5134 = vsel %vm2135, %v5102, %v4289
        %v5135 = vsel %vm2135, %v5103, %v4291
        %v5136 = vsel %vm2135, %v5104, %v4293
        %v5137 = vsel %vm2135, %v5105, %v4295
        %v5138 = vsel %vm2135, %v5106, %v4297
        %v5139 = vsel %vm2135, %v5107, %v4299
        %v5140 = vsel %vm2135, %v5108, %v4301
        %v5141 = vsel %vm2135, %v5109, %v4303
        %v5142 = vsel %vm2135, %v5110, %v4305
        %v5143 = vsel %vm2135, %v5111, %v4307
        %vm5144 = vcmask 359424
        %v5145 = vsel %vm5144, %v5112, %v4341
        %v5146 = vsel %vm5144, %v5113, %v4343
        %v5147 = vsel %vm5144, %v5114, %v4345
        %v5148 = vsel %vm5144, %v5115, %v4347
        %v5149 = vsel %vm5144, %v5116, %v4349
        %v5150 = vsel %vm5144, %v5117, %v4351
        %v5151 = vsel %vm5144, %v5118, %v4353
        %v5152 = vsel %vm5144, %v5119, %v4355
        %v5153 = vsel %vm5144, %v5120, %v4357
        %v5154 = vsel %vm5144, %v5121, %v4359
        %v5155 = vsel %vm5144, %v5122, %v4361
        %v5156 = vsel %vm5144, %v5123, %v4363
        %v5157 = vsel %vm5144, %v5124, %v4365
        %v5158 = vsel %vm5144, %v5125, %v4367
        %v5159 = vsel %vm5144, %v5126, %v4369
        %v5160 = vsel %vm5144, %v5127, %v4371
        %v5161 = vsel %vm5144, %v5128, %v4373
        %v5162 = vsel %vm5144, %v5129, %v4375
        %v5163 = vsel %vm5144, %v5130, %v4377
        %v5164 = vsel %vm5144, %v5131, %v4379
        %v5165 = vsel %vm5144, %v5132, %v4381
        %v5166 = vsel %vm5144, %v5133, %v4383
        %v5167 = vsel %vm5144, %v5134, %v4385
        %v5168 = vsel %vm5144, %v5135, %v4387
        %v5169 = vsel %vm5144, %v5136, %v4389
        %v5170 = vsel %vm5144, %v5137, %v4391
        %v5171 = vsel %vm5144, %v5138, %v4393
        %v5172 = vsel %vm5144, %v5139, %v4395
        %v5173 = vsel %vm5144, %v5140, %v4397
        %v5174 = vsel %vm5144, %v5141, %v4399
        %v5175 = vsel %vm5144, %v5142, %v4401
        %v5176 = vsel %vm5144, %v5143, %v4403
        %v5177 = vsel %vm2168, %v5145, %v4437
        %v5178 = vsel %vm2168, %v5146, %v4439
        %v5179 = vsel %vm2168, %v5147, %v4441
        %v5180 = vsel %vm2168, %v5148, %v4443
        %v5181 = vsel %vm2168, %v5149, %v4445
        %v5182 = vsel %vm2168, %v5150, %v4447
        %v5183 = vsel %vm2168, %v5151, %v4449
        %v5184 = vsel %vm2168, %v5152, %v4451
        %v5185 = vsel %vm2168, %v5153, %v4453
        %v5186 = vsel %vm2168, %v5154, %v4455
        %v5187 = vsel %vm2168, %v5155, %v4457
        %v5188 = vsel %vm2168, %v5156, %v4459
        %v5189 = vsel %vm2168, %v5157, %v4461
        %v5190 = vsel %vm2168, %v5158, %v4463
        %v5191 = vsel %vm2168, %v5159, %v4465
        %v5192 = vsel %vm2168, %v5160, %v4467
        %v5193 = vsel %vm2168, %v5161, %v4469
        %v5194 = vsel %vm2168, %v5162, %v4471
        %v5195 = vsel %vm2168, %v5163, %v4473
        %v5196 = vsel %vm2168, %v5164, %v4475
        %v5197 = vsel %vm2168, %v5165, %v4477
        %v5198 = vsel %vm2168, %v5166, %v4479
        %v5199 = vsel %vm2168, %v5167, %v4481
        %v5200 = vsel %vm2168, %v5168, %v4483
        %v5201 = vsel %vm2168, %v5169, %v4485
        %v5202 = vsel %vm2168, %v5170, %v4487
        %v5203 = vsel %vm2168, %v5171, %v4489
        %v5204 = vsel %vm2168, %v5172, %v4491
        %v5205 = vsel %vm2168, %v5173, %v4493
        %v5206 = vsel %vm2168, %v5174, %v4495
        %v5207 = vsel %vm2168, %v5175, %v4497
        %v5208 = vsel %vm2168, %v5176, %v4499
        %vm5209 = vcmask 424960
        %v5210 = vsel %vm5209, %v5177, %v4533
        %v5211 = vsel %vm5209, %v5178, %v4535
        %v5212 = vsel %vm5209, %v5179, %v4537
        %v5213 = vsel %vm5209, %v5180, %v4539
        %v5214 = vsel %vm5209, %v5181, %v4541
        %v5215 = vsel %vm5209, %v5182, %v4543
        %v5216 = vsel %vm5209, %v5183, %v4545
        %v5217 = vsel %vm5209, %v5184, %v4547
        %v5218 = vsel %vm5209, %v5185, %v4549
        %v5219 = vsel %vm5209, %v5186, %v4551
        %v5220 = vsel %vm5209, %v5187, %v4553
        %v5221 = vsel %vm5209, %v5188, %v4555
        %v5222 = vsel %vm5209, %v5189, %v4557
        %v5223 = vsel %vm5209, %v5190, %v4559
        %v5224 = vsel %vm5209, %v5191, %v4561
        %v5225 = vsel %vm5209, %v5192, %v4563
        %v5226 = vsel %vm5209, %v5193, %v4565
        %v5227 = vsel %vm5209, %v5194, %v4567
        %v5228 = vsel %vm5209, %v5195, %v4569
        %v5229 = vsel %vm5209, %v5196, %v4571
        %v5230 = vsel %vm5209, %v5197, %v4573
        %v5231 = vsel %vm5209, %v5198, %v4575
        %v5232 = vsel %vm5209, %v5199, %v4577
        %v5233 = vsel %vm5209, %v5200, %v4579
        %v5234 = vsel %vm5209, %v5201, %v4581
        %v5235 = vsel %vm5209, %v5202, %v4583
        %v5236 = vsel %vm5209, %v5203, %v4585
        %v5237 = vsel %vm5209, %v5204, %v4587
        %v5238 = vsel %vm5209, %v5205, %v4589
        %v5239 = vsel %vm5209, %v5206, %v4591
        %v5240 = vsel %vm5209, %v5207, %v4593
        %v5241 = vsel %vm5209, %v5208, %v4595
        %v5242 = vsel %vm2201, %v5210, %v4629
        %v5243 = vsel %vm2201, %v5211, %v4631
        %v5244 = vsel %vm2201, %v5212, %v4633
        %v5245 = vsel %vm2201, %v5213, %v4635
        %v5246 = vsel %vm2201, %v5214, %v4637
        %v5247 = vsel %vm2201, %v5215, %v4639
        %v5248 = vsel %vm2201, %v5216, %v4641
        %v5249 = vsel %vm2201, %v5217, %v4643
        %v5250 = vsel %vm2201, %v5218, %v4645
        %v5251 = vsel %vm2201, %v5219, %v4647
        %v5252 = vsel %vm2201, %v5220, %v4649
        %v5253 = vsel %vm2201, %v5221, %v4651
        %v5254 = vsel %vm2201, %v5222, %v4653
        %v5255 = vsel %vm2201, %v5223, %v4655
        %v5256 = vsel %vm2201, %v5224, %v4657
        %v5257 = vsel %vm2201, %v5225, %v4659
        %v5258 = vsel %vm2201, %v5226, %v4661
        %v5259 = vsel %vm2201, %v5227, %v4663
        %v5260 = vsel %vm2201, %v5228, %v4665
        %v5261 = vsel %vm2201, %v5229, %v4667
        %v5262 = vsel %vm2201, %v5230, %v4669
        %v5263 = vsel %vm2201, %v5231, %v4671
        %v5264 = vsel %vm2201, %v5232, %v4673
        %v5265 = vsel %vm2201, %v5233, %v4675
        %v5266 = vsel %vm2201, %v5234, %v4677
        %v5267 = vsel %vm2201, %v5235, %v4679
        %v5268 = vsel %vm2201, %v5236, %v4681
        %v5269 = vsel %vm2201, %v5237, %v4683
        %v5270 = vsel %vm2201, %v5238, %v4685
        %v5271 = vsel %vm2201, %v5239, %v4687
        %v5272 = vsel %vm2201, %v5240, %v4689
        %v5273 = vsel %vm2201, %v5241, %v4691
        %vm5274 = vcmask 490496
        %v5275 = vsel %vm5274, %v5242, %v4725
        %v5276 = vsel %vm5274, %v5243, %v4727
        %v5277 = vsel %vm5274, %v5244, %v4729
        %v5278 = vsel %vm5274, %v5245, %v4731
        %v5279 = vsel %vm5274, %v5246, %v4733
        %v5280 = vsel %vm5274, %v5247, %v4735
        %v5281 = vsel %vm5274, %v5248, %v4737
        %v5282 = vsel %vm5274, %v5249, %v4739
        %v5283 = vsel %vm5274, %v5250, %v4741
        %v5284 = vsel %vm5274, %v5251, %v4743
        %v5285 = vsel %vm5274, %v5252, %v4745
        %v5286 = vsel %vm5274, %v5253, %v4747
        %v5287 = vsel %vm5274, %v5254, %v4749
        %v5288 = vsel %vm5274, %v5255, %v4751
        %v5289 = vsel %vm5274, %v5256, %v4753
        %v5290 = vsel %vm5274, %v5257, %v4755
        %v5291 = vsel %vm5274, %v5258, %v4757
        %v5292 = vsel %vm5274, %v5259, %v4759
        %v5293 = vsel %vm5274, %v5260, %v4761
        %v5294 = vsel %vm5274, %v5261, %v4763
        %v5295 = vsel %vm5274, %v5262, %v4765
        %v5296 = vsel %vm5274, %v5263, %v4767
        %v5297 = vsel %vm5274, %v5264, %v4769
        %v5298 = vsel %vm5274, %v5265, %v4771
        %v5299 = vsel %vm5274, %v5266, %v4773
        %v5300 = vsel %vm5274, %v5267, %v4775
        %v5301 = vsel %vm5274, %v5268, %v4777
        %v5302 = vsel %vm5274, %v5269, %v4779
        %v5303 = vsel %vm5274, %v5270, %v4781
        %v5304 = vsel %vm5274, %v5271, %v4783
        %v5305 = vsel %vm5274, %v5272, %v4785
        %v5306 = vsel %vm5274, %v5273, %v4787
        %5307 = vrot.lane.b32.xlu0 %v3032, 4
        %v5308 = vpop.permute.xlu0 %5307
        %5309 = vrot.lane.b32.xlu0 %v3034, 4
        %v5310 = vpop.permute.xlu0 %5309
        %5311 = vrot.lane.b32.xlu0 %v3037, 4
        %v5312 = vpop.permute.xlu0 %5311
        %5313 = vrot.lane.b32.xlu0 %v3039, 4
        %v5314 = vpop.permute.xlu0 %5313
        %5315 = vrot.lane.b32.xlu0 %v3042, 4
        %v5316 = vpop.permute.xlu0 %5315
        %5317 = vrot.lane.b32.xlu0 %v3044, 4
        %v5318 = vpop.permute.xlu0 %5317
        %5319 = vrot.lane.b32.xlu0 %v3047, 4
        %v5320 = vpop.permute.xlu0 %5319
        %5321 = vrot.lane.b32.xlu0 %v3049, 4
        %v5322 = vpop.permute.xlu0 %5321
        %5323 = vrot.lane.b32.xlu0 %v3052, 4
        %v5324 = vpop.permute.xlu0 %5323
        %5325 = vrot.lane.b32.xlu0 %v3054, 4
        %v5326 = vpop.permute.xlu0 %5325
        %5327 = vrot.lane.b32.xlu0 %v3057, 4
        %v5328 = vpop.permute.xlu0 %5327
        %5329 = vrot.lane.b32.xlu0 %v3059, 4
        %v5330 = vpop.permute.xlu0 %5329
        %5331 = vrot.lane.b32.xlu0 %v3062, 4
        %v5332 = vpop.permute.xlu0 %5331
        %5333 = vrot.lane.b32.xlu0 %v3064, 4
        %v5334 = vpop.permute.xlu0 %5333
        %5335 = vrot.lane.b32.xlu0 %v3067, 4
        %v5336 = vpop.permute.xlu0 %5335
        %5337 = vrot.lane.b32.xlu0 %v3069, 4
        %v5338 = vpop.permute.xlu0 %5337
        %5339 = vrot.lane.b32.xlu0 %v3072, 4
        %v5340 = vpop.permute.xlu0 %5339
        %5341 = vrot.lane.b32.xlu0 %v3074, 4
        %v5342 = vpop.permute.xlu0 %5341
        %5343 = vrot.lane.b32.xlu0 %v3077, 4
        %v5344 = vpop.permute.xlu0 %5343
        %5345 = vrot.lane.b32.xlu0 %v3079, 4
        %v5346 = vpop.permute.xlu0 %5345
        %5347 = vrot.lane.b32.xlu0 %v3082, 4
        %v5348 = vpop.permute.xlu0 %5347
        %5349 = vrot.lane.b32.xlu0 %v3084, 4
        %v5350 = vpop.permute.xlu0 %5349
        %5351 = vrot.lane.b32.xlu0 %v3087, 4
        %v5352 = vpop.permute.xlu0 %5351
        %5353 = vrot.lane.b32.xlu0 %v3089, 4
        %v5354 = vpop.permute.xlu0 %5353
        %5355 = vrot.lane.b32.xlu0 %v3092, 4
        %v5356 = vpop.permute.xlu0 %5355
        %5357 = vrot.lane.b32.xlu0 %v3094, 4
        %v5358 = vpop.permute.xlu0 %5357
        %5359 = vrot.lane.b32.xlu0 %v3266, 4
        %v5360 = vpop.permute.xlu0 %5359
        %5361 = vrot.lane.b32.xlu0 %v3268, 4
        %v5362 = vpop.permute.xlu0 %5361
        %5363 = vrot.lane.b32.xlu0 %v3289, 4
        %v5364 = vpop.permute.xlu0 %5363
        %5365 = vrot.lane.b32.xlu0 %v3291, 4
        %v5366 = vpop.permute.xlu0 %5365
        %5367 = vrot.lane.b32.xlu0 %v3344, 4
        %v5368 = vpop.permute.xlu0 %5367
        %5369 = vrot.lane.b32.xlu0 %v3346, 4
        %v5370 = vpop.permute.xlu0 %5369
        %5403 = vrot.lane.b32.xlu0 %v3113, 8
        %v5404 = vpop.permute.xlu0 %5403
        %5405 = vrot.lane.b32.xlu0 %v3115, 8
        %v5406 = vpop.permute.xlu0 %5405
        %5407 = vrot.lane.b32.xlu0 %v3118, 8
        %v5408 = vpop.permute.xlu0 %5407
        %5409 = vrot.lane.b32.xlu0 %v3120, 8
        %v5410 = vpop.permute.xlu0 %5409
        %5411 = vrot.lane.b32.xlu0 %v3123, 8
        %v5412 = vpop.permute.xlu0 %5411
        %5413 = vrot.lane.b32.xlu0 %v3125, 8
        %v5414 = vpop.permute.xlu0 %5413
        %5415 = vrot.lane.b32.xlu0 %v3128, 8
        %v5416 = vpop.permute.xlu0 %5415
        %5417 = vrot.lane.b32.xlu0 %v3130, 8
        %v5418 = vpop.permute.xlu0 %5417
        %5419 = vrot.lane.b32.xlu0 %v3133, 8
        %v5420 = vpop.permute.xlu0 %5419
        %5421 = vrot.lane.b32.xlu0 %v3135, 8
        %v5422 = vpop.permute.xlu0 %5421
        %5423 = vrot.lane.b32.xlu0 %v3138, 8
        %v5424 = vpop.permute.xlu0 %5423
        %5425 = vrot.lane.b32.xlu0 %v3140, 8
        %v5426 = vpop.permute.xlu0 %5425
        %5427 = vrot.lane.b32.xlu0 %v3143, 8
        %v5428 = vpop.permute.xlu0 %5427
        %5429 = vrot.lane.b32.xlu0 %v3145, 8
        %v5430 = vpop.permute.xlu0 %5429
        %5431 = vrot.lane.b32.xlu0 %v3148, 8
        %v5432 = vpop.permute.xlu0 %5431
        %5433 = vrot.lane.b32.xlu0 %v3150, 8
        %v5434 = vpop.permute.xlu0 %5433
        %5435 = vrot.lane.b32.xlu0 %v3153, 8
        %v5436 = vpop.permute.xlu0 %5435
        %5437 = vrot.lane.b32.xlu0 %v3155, 8
        %v5438 = vpop.permute.xlu0 %5437
        %5439 = vrot.lane.b32.xlu0 %v3158, 8
        %v5440 = vpop.permute.xlu0 %5439
        %5441 = vrot.lane.b32.xlu0 %v3160, 8
        %v5442 = vpop.permute.xlu0 %5441
        %5443 = vrot.lane.b32.xlu0 %v3163, 8
        %v5444 = vpop.permute.xlu0 %5443
        %5445 = vrot.lane.b32.xlu0 %v3165, 8
        %v5446 = vpop.permute.xlu0 %5445
        %5447 = vrot.lane.b32.xlu0 %v3168, 8
        %v5448 = vpop.permute.xlu0 %5447
        %5449 = vrot.lane.b32.xlu0 %v3170, 8
        %v5450 = vpop.permute.xlu0 %5449
        %5451 = vrot.lane.b32.xlu0 %v3173, 8
        %v5452 = vpop.permute.xlu0 %5451
        %5453 = vrot.lane.b32.xlu0 %v3175, 8
        %v5454 = vpop.permute.xlu0 %5453
        %5455 = vrot.lane.b32.xlu0 %v3271, 8
        %v5456 = vpop.permute.xlu0 %5455
        %5457 = vrot.lane.b32.xlu0 %v3273, 8
        %v5458 = vpop.permute.xlu0 %5457
        %5459 = vrot.lane.b32.xlu0 %v3294, 8
        %v5460 = vpop.permute.xlu0 %5459
        %5461 = vrot.lane.b32.xlu0 %v3296, 8
        %v5462 = vpop.permute.xlu0 %5461
        %5463 = vrot.lane.b32.xlu0 %v3349, 8
        %v5464 = vpop.permute.xlu0 %5463
        %5465 = vrot.lane.b32.xlu0 %v3351, 8
        %v5466 = vpop.permute.xlu0 %5465
        %5499 = vrot.lane.b32.xlu0 %v3193, 12
        %v5500 = vpop.permute.xlu0 %5499
        %5501 = vrot.lane.b32.xlu0 %v3195, 12
        %v5502 = vpop.permute.xlu0 %5501
        %5503 = vrot.lane.b32.xlu0 %v3198, 12
        %v5504 = vpop.permute.xlu0 %5503
        %5505 = vrot.lane.b32.xlu0 %v3200, 12
        %v5506 = vpop.permute.xlu0 %5505
        %5507 = vrot.lane.b32.xlu0 %v3203, 12
        %v5508 = vpop.permute.xlu0 %5507
        %5509 = vrot.lane.b32.xlu0 %v3205, 12
        %v5510 = vpop.permute.xlu0 %5509
        %5511 = vrot.lane.b32.xlu0 %v3208, 12
        %v5512 = vpop.permute.xlu0 %5511
        %5513 = vrot.lane.b32.xlu0 %v3210, 12
        %v5514 = vpop.permute.xlu0 %5513
        %5515 = vrot.lane.b32.xlu0 %v3213, 12
        %v5516 = vpop.permute.xlu0 %5515
        %5517 = vrot.lane.b32.xlu0 %v3215, 12
        %v5518 = vpop.permute.xlu0 %5517
        %5519 = vrot.lane.b32.xlu0 %v3218, 12
        %v5520 = vpop.permute.xlu0 %5519
        %5521 = vrot.lane.b32.xlu0 %v3220, 12
        %v5522 = vpop.permute.xlu0 %5521
        %5523 = vrot.lane.b32.xlu0 %v3223, 12
        %v5524 = vpop.permute.xlu0 %5523
        %5525 = vrot.lane.b32.xlu0 %v3225, 12
        %v5526 = vpop.permute.xlu0 %5525
        %5527 = vrot.lane.b32.xlu0 %v3228, 12
        %v5528 = vpop.permute.xlu0 %5527
        %5529 = vrot.lane.b32.xlu0 %v3230, 12
        %v5530 = vpop.permute.xlu0 %5529
        %5531 = vrot.lane.b32.xlu0 %v3233, 12
        %v5532 = vpop.permute.xlu0 %5531
        %5533 = vrot.lane.b32.xlu0 %v3235, 12
        %v5534 = vpop.permute.xlu0 %5533
        %5535 = vrot.lane.b32.xlu0 %v3238, 12
        %v5536 = vpop.permute.xlu0 %5535
        %5537 = vrot.lane.b32.xlu0 %v3240, 12
        %v5538 = vpop.permute.xlu0 %5537
        %5539 = vrot.lane.b32.xlu0 %v3243, 12
        %v5540 = vpop.permute.xlu0 %5539
        %5541 = vrot.lane.b32.xlu0 %v3245, 12
        %v5542 = vpop.permute.xlu0 %5541
        %5543 = vrot.lane.b32.xlu0 %v3248, 12
        %v5544 = vpop.permute.xlu0 %5543
        %5545 = vrot.lane.b32.xlu0 %v3250, 12
        %v5546 = vpop.permute.xlu0 %5545
        %5547 = vrot.lane.b32.xlu0 %v3253, 12
        %v5548 = vpop.permute.xlu0 %5547
        %5549 = vrot.lane.b32.xlu0 %v3255, 12
        %v5550 = vpop.permute.xlu0 %5549
        %5551 = vrot.lane.b32.xlu0 %v3276, 12
        %v5552 = vpop.permute.xlu0 %5551
        %5553 = vrot.lane.b32.xlu0 %v3278, 12
        %v5554 = vpop.permute.xlu0 %5553
        %5555 = vrot.lane.b32.xlu0 %v3299, 12
        %v5556 = vpop.permute.xlu0 %5555
        %5557 = vrot.lane.b32.xlu0 %v3301, 12
        %v5558 = vpop.permute.xlu0 %5557
        %5559 = vrot.lane.b32.xlu0 %v3354, 12
        %v5560 = vpop.permute.xlu0 %5559
        %5561 = vrot.lane.b32.xlu0 %v3356, 12
        %v5562 = vpop.permute.xlu0 %5561
        %5595 = vrot.lane.b32.xlu0 %v2839, 16
        %v5596 = vpop.permute.xlu0 %5595
        %5597 = vrot.lane.b32.xlu0 %v2840, 16
        %v5598 = vpop.permute.xlu0 %5597
        %5599 = vrot.lane.b32.xlu0 %v2842, 16
        %v5600 = vpop.permute.xlu0 %5599
        %5601 = vrot.lane.b32.xlu0 %v2843, 16
        %v5602 = vpop.permute.xlu0 %5601
        %5603 = vrot.lane.b32.xlu0 %v2845, 16
        %v5604 = vpop.permute.xlu0 %5603
        %5605 = vrot.lane.b32.xlu0 %v2846, 16
        %v5606 = vpop.permute.xlu0 %5605
        %5607 = vrot.lane.b32.xlu0 %v2848, 16
        %v5608 = vpop.permute.xlu0 %5607
        %5609 = vrot.lane.b32.xlu0 %v2849, 16
        %v5610 = vpop.permute.xlu0 %5609
        %5611 = vrot.lane.b32.xlu0 %v2851, 16
        %v5612 = vpop.permute.xlu0 %5611
        %5613 = vrot.lane.b32.xlu0 %v2852, 16
        %v5614 = vpop.permute.xlu0 %5613
        %5615 = vrot.lane.b32.xlu0 %v2854, 16
        %v5616 = vpop.permute.xlu0 %5615
        %5617 = vrot.lane.b32.xlu0 %v2855, 16
        %v5618 = vpop.permute.xlu0 %5617
        %5619 = vrot.lane.b32.xlu0 %v2857, 16
        %v5620 = vpop.permute.xlu0 %5619
        %5621 = vrot.lane.b32.xlu0 %v2858, 16
        %v5622 = vpop.permute.xlu0 %5621
        %5623 = vrot.lane.b32.xlu0 %v2860, 16
        %v5624 = vpop.permute.xlu0 %5623
        %5625 = vrot.lane.b32.xlu0 %v2861, 16
        %v5626 = vpop.permute.xlu0 %5625
        %5627 = vrot.lane.b32.xlu0 %v2863, 16
        %v5628 = vpop.permute.xlu0 %5627
        %5629 = vrot.lane.b32.xlu0 %v2864, 16
        %v5630 = vpop.permute.xlu0 %5629
        %5631 = vrot.lane.b32.xlu0 %v2866, 16
        %v5632 = vpop.permute.xlu0 %5631
        %5633 = vrot.lane.b32.xlu0 %v2867, 16
        %v5634 = vpop.permute.xlu0 %5633
        %5635 = vrot.lane.b32.xlu0 %v2869, 16
        %v5636 = vpop.permute.xlu0 %5635
        %5637 = vrot.lane.b32.xlu0 %v2870, 16
        %v5638 = vpop.permute.xlu0 %5637
        %5639 = vrot.lane.b32.xlu0 %v2872, 16
        %v5640 = vpop.permute.xlu0 %5639
        %5641 = vrot.lane.b32.xlu0 %v2873, 16
        %v5642 = vpop.permute.xlu0 %5641
        %5643 = vrot.lane.b32.xlu0 %v2875, 16
        %v5644 = vpop.permute.xlu0 %5643
        %5645 = vrot.lane.b32.xlu0 %v2876, 16
        %v5646 = vpop.permute.xlu0 %5645
        %5647 = vrot.lane.b32.xlu0 %v2878, 16
        %v5648 = vpop.permute.xlu0 %5647
        %5649 = vrot.lane.b32.xlu0 %v2879, 16
        %v5650 = vpop.permute.xlu0 %5649
        %5651 = vrot.lane.b32.xlu0 %v2881, 16
        %v5652 = vpop.permute.xlu0 %5651
        %5653 = vrot.lane.b32.xlu0 %v2882, 16
        %v5654 = vpop.permute.xlu0 %5653
        %5655 = vrot.lane.b32.xlu0 %v2884, 16
        %v5656 = vpop.permute.xlu0 %5655
        %5657 = vrot.lane.b32.xlu0 %v2885, 16
        %v5658 = vpop.permute.xlu0 %5657
        %5691 = vrot.lane.b32.xlu0 %v2957, 20
        %v5692 = vpop.permute.xlu0 %5691
        %5693 = vrot.lane.b32.xlu0 %v2959, 20
        %v5694 = vpop.permute.xlu0 %5693
        %5695 = vrot.lane.b32.xlu0 %v2962, 20
        %v5696 = vpop.permute.xlu0 %5695
        %5697 = vrot.lane.b32.xlu0 %v2964, 20
        %v5698 = vpop.permute.xlu0 %5697
        %5699 = vrot.lane.b32.xlu0 %v2967, 20
        %v5700 = vpop.permute.xlu0 %5699
        %5701 = vrot.lane.b32.xlu0 %v2969, 20
        %v5702 = vpop.permute.xlu0 %5701
        %5703 = vrot.lane.b32.xlu0 %v2972, 20
        %v5704 = vpop.permute.xlu0 %5703
        %5705 = vrot.lane.b32.xlu0 %v2974, 20
        %v5706 = vpop.permute.xlu0 %5705
        %5707 = vrot.lane.b32.xlu0 %v2977, 20
        %v5708 = vpop.permute.xlu0 %5707
        %5709 = vrot.lane.b32.xlu0 %v2979, 20
        %v5710 = vpop.permute.xlu0 %5709
        %5711 = vrot.lane.b32.xlu0 %v2982, 20
        %v5712 = vpop.permute.xlu0 %5711
        %5713 = vrot.lane.b32.xlu0 %v2984, 20
        %v5714 = vpop.permute.xlu0 %5713
        %5715 = vrot.lane.b32.xlu0 %v2987, 20
        %v5716 = vpop.permute.xlu0 %5715
        %5717 = vrot.lane.b32.xlu0 %v2989, 20
        %v5718 = vpop.permute.xlu0 %5717
        %5719 = vrot.lane.b32.xlu0 %v2992, 20
        %v5720 = vpop.permute.xlu0 %5719
        %5721 = vrot.lane.b32.xlu0 %v2994, 20
        %v5722 = vpop.permute.xlu0 %5721
        %5723 = vrot.lane.b32.xlu0 %v2997, 20
        %v5724 = vpop.permute.xlu0 %5723
        %5725 = vrot.lane.b32.xlu0 %v2999, 20
        %v5726 = vpop.permute.xlu0 %5725
        %5727 = vrot.lane.b32.xlu0 %v3002, 20
        %v5728 = vpop.permute.xlu0 %5727
        %5729 = vrot.lane.b32.xlu0 %v3004, 20
        %v5730 = vpop.permute.xlu0 %5729
        %5731 = vrot.lane.b32.xlu0 %v3007, 20
        %v5732 = vpop.permute.xlu0 %5731
        %5733 = vrot.lane.b32.xlu0 %v3009, 20
        %v5734 = vpop.permute.xlu0 %5733
        %5735 = vrot.lane.b32.xlu0 %v3012, 20
        %v5736 = vpop.permute.xlu0 %5735
        %5737 = vrot.lane.b32.xlu0 %v3014, 20
        %v5738 = vpop.permute.xlu0 %5737
        %5739 = vrot.lane.b32.xlu0 %v3261, 20
        %v5740 = vpop.permute.xlu0 %5739
        %5741 = vrot.lane.b32.xlu0 %v3263, 20
        %v5742 = vpop.permute.xlu0 %5741
        %5743 = vrot.lane.b32.xlu0 %v3284, 20
        %v5744 = vpop.permute.xlu0 %5743
        %5745 = vrot.lane.b32.xlu0 %v3286, 20
        %v5746 = vpop.permute.xlu0 %5745
        %5747 = vrot.lane.b32.xlu0 %v3307, 20
        %v5748 = vpop.permute.xlu0 %5747
        %5749 = vrot.lane.b32.xlu0 %v3309, 20
        %v5750 = vpop.permute.xlu0 %5749
        %5751 = vrot.lane.b32.xlu0 %v3362, 20
        %v5752 = vpop.permute.xlu0 %5751
        %5753 = vrot.lane.b32.xlu0 %v3364, 20
        %v5754 = vpop.permute.xlu0 %5753
        %5787 = vrot.lane.b32.xlu0 %v3037, 24
        %v5788 = vpop.permute.xlu0 %5787
        %5789 = vrot.lane.b32.xlu0 %v3039, 24
        %v5790 = vpop.permute.xlu0 %5789
        %5791 = vrot.lane.b32.xlu0 %v3042, 24
        %v5792 = vpop.permute.xlu0 %5791
        %5793 = vrot.lane.b32.xlu0 %v3044, 24
        %v5794 = vpop.permute.xlu0 %5793
        %5795 = vrot.lane.b32.xlu0 %v3047, 24
        %v5796 = vpop.permute.xlu0 %5795
        %5797 = vrot.lane.b32.xlu0 %v3049, 24
        %v5798 = vpop.permute.xlu0 %5797
        %5799 = vrot.lane.b32.xlu0 %v3052, 24
        %v5800 = vpop.permute.xlu0 %5799
        %5801 = vrot.lane.b32.xlu0 %v3054, 24
        %v5802 = vpop.permute.xlu0 %5801
        %5803 = vrot.lane.b32.xlu0 %v3057, 24
        %v5804 = vpop.permute.xlu0 %5803
        %5805 = vrot.lane.b32.xlu0 %v3059, 24
        %v5806 = vpop.permute.xlu0 %5805
        %5807 = vrot.lane.b32.xlu0 %v3062, 24
        %v5808 = vpop.permute.xlu0 %5807
        %5809 = vrot.lane.b32.xlu0 %v3064, 24
        %v5810 = vpop.permute.xlu0 %5809
        %5811 = vrot.lane.b32.xlu0 %v3067, 24
        %v5812 = vpop.permute.xlu0 %5811
        %5813 = vrot.lane.b32.xlu0 %v3069, 24
        %v5814 = vpop.permute.xlu0 %5813
        %5815 = vrot.lane.b32.xlu0 %v3072, 24
        %v5816 = vpop.permute.xlu0 %5815
        %5817 = vrot.lane.b32.xlu0 %v3074, 24
        %v5818 = vpop.permute.xlu0 %5817
        %5819 = vrot.lane.b32.xlu0 %v3077, 24
        %v5820 = vpop.permute.xlu0 %5819
        %5821 = vrot.lane.b32.xlu0 %v3079, 24
        %v5822 = vpop.permute.xlu0 %5821
        %5823 = vrot.lane.b32.xlu0 %v3082, 24
        %v5824 = vpop.permute.xlu0 %5823
        %5825 = vrot.lane.b32.xlu0 %v3084, 24
        %v5826 = vpop.permute.xlu0 %5825
        %5827 = vrot.lane.b32.xlu0 %v3087, 24
        %v5828 = vpop.permute.xlu0 %5827
        %5829 = vrot.lane.b32.xlu0 %v3089, 24
        %v5830 = vpop.permute.xlu0 %5829
        %5831 = vrot.lane.b32.xlu0 %v3092, 24
        %v5832 = vpop.permute.xlu0 %5831
        %5833 = vrot.lane.b32.xlu0 %v3094, 24
        %v5834 = vpop.permute.xlu0 %5833
        %5835 = vrot.lane.b32.xlu0 %v3266, 24
        %v5836 = vpop.permute.xlu0 %5835
        %5837 = vrot.lane.b32.xlu0 %v3268, 24
        %v5838 = vpop.permute.xlu0 %5837
        %5839 = vrot.lane.b32.xlu0 %v3289, 24
        %v5840 = vpop.permute.xlu0 %5839
        %5841 = vrot.lane.b32.xlu0 %v3291, 24
        %v5842 = vpop.permute.xlu0 %5841
        %5843 = vrot.lane.b32.xlu0 %v3344, 24
        %v5844 = vpop.permute.xlu0 %5843
        %5845 = vrot.lane.b32.xlu0 %v3346, 24
        %v5846 = vpop.permute.xlu0 %5845
        %5847 = vrot.lane.b32.xlu0 %v3367, 24
        %v5848 = vpop.permute.xlu0 %5847
        %5849 = vrot.lane.b32.xlu0 %v3369, 24
        %v5850 = vpop.permute.xlu0 %5849
        %5883 = vrot.lane.b32.xlu0 %v3118, 28
        %v5884 = vpop.permute.xlu0 %5883
        %5885 = vrot.lane.b32.xlu0 %v3120, 28
        %v5886 = vpop.permute.xlu0 %5885
        %5887 = vrot.lane.b32.xlu0 %v3123, 28
        %v5888 = vpop.permute.xlu0 %5887
        %5889 = vrot.lane.b32.xlu0 %v3125, 28
        %v5890 = vpop.permute.xlu0 %5889
        %5891 = vrot.lane.b32.xlu0 %v3128, 28
        %v5892 = vpop.permute.xlu0 %5891
        %5893 = vrot.lane.b32.xlu0 %v3130, 28
        %v5894 = vpop.permute.xlu0 %5893
        %5895 = vrot.lane.b32.xlu0 %v3133, 28
        %v5896 = vpop.permute.xlu0 %5895
        %5897 = vrot.lane.b32.xlu0 %v3135, 28
        %v5898 = vpop.permute.xlu0 %5897
        %5899 = vrot.lane.b32.xlu0 %v3138, 28
        %v5900 = vpop.permute.xlu0 %5899
        %5901 = vrot.lane.b32.xlu0 %v3140, 28
        %v5902 = vpop.permute.xlu0 %5901
        %5903 = vrot.lane.b32.xlu0 %v3143, 28
        %v5904 = vpop.permute.xlu0 %5903
        %5905 = vrot.lane.b32.xlu0 %v3145, 28
        %v5906 = vpop.permute.xlu0 %5905
        %5907 = vrot.lane.b32.xlu0 %v3148, 28
        %v5908 = vpop.permute.xlu0 %5907
        %5909 = vrot.lane.b32.xlu0 %v3150, 28
        %v5910 = vpop.permute.xlu0 %5909
        %5911 = vrot.lane.b32.xlu0 %v3153, 28
        %v5912 = vpop.permute.xlu0 %5911
        %5913 = vrot.lane.b32.xlu0 %v3155, 28
        %v5914 = vpop.permute.xlu0 %5913
        %5915 = vrot.lane.b32.xlu0 %v3158, 28
        %v5916 = vpop.permute.xlu0 %5915
        %5917 = vrot.lane.b32.xlu0 %v3160, 28
        %v5918 = vpop.permute.xlu0 %5917
        %5919 = vrot.lane.b32.xlu0 %v3163, 28
        %v5920 = vpop.permute.xlu0 %5919
        %5921 = vrot.lane.b32.xlu0 %v3165, 28
        %v5922 = vpop.permute.xlu0 %5921
        %5923 = vrot.lane.b32.xlu0 %v3168, 28
        %v5924 = vpop.permute.xlu0 %5923
        %5925 = vrot.lane.b32.xlu0 %v3170, 28
        %v5926 = vpop.permute.xlu0 %5925
        %5927 = vrot.lane.b32.xlu0 %v3173, 28
        %v5928 = vpop.permute.xlu0 %5927
        %5929 = vrot.lane.b32.xlu0 %v3175, 28
        %v5930 = vpop.permute.xlu0 %5929
        %5931 = vrot.lane.b32.xlu0 %v3271, 28
        %v5932 = vpop.permute.xlu0 %5931
        %5933 = vrot.lane.b32.xlu0 %v3273, 28
        %v5934 = vpop.permute.xlu0 %5933
        %5935 = vrot.lane.b32.xlu0 %v3294, 28
        %v5936 = vpop.permute.xlu0 %5935
        %5937 = vrot.lane.b32.xlu0 %v3296, 28
        %v5938 = vpop.permute.xlu0 %5937
        %5939 = vrot.lane.b32.xlu0 %v3349, 28
        %v5940 = vpop.permute.xlu0 %5939
        %5941 = vrot.lane.b32.xlu0 %v3351, 28
        %v5942 = vpop.permute.xlu0 %5941
        %5943 = vrot.lane.b32.xlu0 %v3372, 28
        %v5944 = vpop.permute.xlu0 %5943
        %5945 = vrot.lane.b32.xlu0 %v3374, 28
        %v5946 = vpop.permute.xlu0 %5945
        %5979 = vrot.lane.b32.xlu0 %v3198, 32
        %v5980 = vpop.permute.xlu0 %5979
        %5981 = vrot.lane.b32.xlu0 %v3200, 32
        %v5982 = vpop.permute.xlu0 %5981
        %5983 = vrot.lane.b32.xlu0 %v3203, 32
        %v5984 = vpop.permute.xlu0 %5983
        %5985 = vrot.lane.b32.xlu0 %v3205, 32
        %v5986 = vpop.permute.xlu0 %5985
        %5987 = vrot.lane.b32.xlu0 %v3208, 32
        %v5988 = vpop.permute.xlu0 %5987
        %5989 = vrot.lane.b32.xlu0 %v3210, 32
        %v5990 = vpop.permute.xlu0 %5989
        %5991 = vrot.lane.b32.xlu0 %v3213, 32
        %v5992 = vpop.permute.xlu0 %5991
        %5993 = vrot.lane.b32.xlu0 %v3215, 32
        %v5994 = vpop.permute.xlu0 %5993
        %5995 = vrot.lane.b32.xlu0 %v3218, 32
        %v5996 = vpop.permute.xlu0 %5995
        %5997 = vrot.lane.b32.xlu0 %v3220, 32
        %v5998 = vpop.permute.xlu0 %5997
        %5999 = vrot.lane.b32.xlu0 %v3223, 32
        %v6000 = vpop.permute.xlu0 %5999
        %6001 = vrot.lane.b32.xlu0 %v3225, 32
        %v6002 = vpop.permute.xlu0 %6001
        %6003 = vrot.lane.b32.xlu0 %v3228, 32
        %v6004 = vpop.permute.xlu0 %6003
        %6005 = vrot.lane.b32.xlu0 %v3230, 32
        %v6006 = vpop.permute.xlu0 %6005
        %6007 = vrot.lane.b32.xlu0 %v3233, 32
        %v6008 = vpop.permute.xlu0 %6007
        %6009 = vrot.lane.b32.xlu0 %v3235, 32
        %v6010 = vpop.permute.xlu0 %6009
        %6011 = vrot.lane.b32.xlu0 %v3238, 32
        %v6012 = vpop.permute.xlu0 %6011
        %6013 = vrot.lane.b32.xlu0 %v3240, 32
        %v6014 = vpop.permute.xlu0 %6013
        %6015 = vrot.lane.b32.xlu0 %v3243, 32
        %v6016 = vpop.permute.xlu0 %6015
        %6017 = vrot.lane.b32.xlu0 %v3245, 32
        %v6018 = vpop.permute.xlu0 %6017
        %6019 = vrot.lane.b32.xlu0 %v3248, 32
        %v6020 = vpop.permute.xlu0 %6019
        %6021 = vrot.lane.b32.xlu0 %v3250, 32
        %v6022 = vpop.permute.xlu0 %6021
        %6023 = vrot.lane.b32.xlu0 %v3253, 32
        %v6024 = vpop.permute.xlu0 %6023
        %6025 = vrot.lane.b32.xlu0 %v3255, 32
        %v6026 = vpop.permute.xlu0 %6025
        %6027 = vrot.lane.b32.xlu0 %v3276, 32
        %v6028 = vpop.permute.xlu0 %6027
        %6029 = vrot.lane.b32.xlu0 %v3278, 32
        %v6030 = vpop.permute.xlu0 %6029
        %6031 = vrot.lane.b32.xlu0 %v3299, 32
        %v6032 = vpop.permute.xlu0 %6031
        %6033 = vrot.lane.b32.xlu0 %v3301, 32
        %v6034 = vpop.permute.xlu0 %6033
        %6035 = vrot.lane.b32.xlu0 %v3354, 32
        %v6036 = vpop.permute.xlu0 %6035
        %6037 = vrot.lane.b32.xlu0 %v3356, 32
        %v6038 = vpop.permute.xlu0 %6037
        %6039 = vrot.lane.b32.xlu0 %v3377, 32
        %v6040 = vpop.permute.xlu0 %6039
        %6041 = vrot.lane.b32.xlu0 %v3379, 32
        %v6042 = vpop.permute.xlu0 %6041
        %v6075 = vsel %vm371, %v2952, %v5308
        %v6076 = vsel %vm371, %v2954, %v5310
        %v6077 = vsel %vm371, %v2957, %v5312
        %v6078 = vsel %vm371, %v2959, %v5314
        %v6079 = vsel %vm371, %v2962, %v5316
        %v6080 = vsel %vm371, %v2964, %v5318
        %v6081 = vsel %vm371, %v2967, %v5320
        %v6082 = vsel %vm371, %v2969, %v5322
        %v6083 = vsel %vm371, %v2972, %v5324
        %v6084 = vsel %vm371, %v2974, %v5326
        %v6085 = vsel %vm371, %v2977, %v5328
        %v6086 = vsel %vm371, %v2979, %v5330
        %v6087 = vsel %vm371, %v2982, %v5332
        %v6088 = vsel %vm371, %v2984, %v5334
        %v6089 = vsel %vm371, %v2987, %v5336
        %v6090 = vsel %vm371, %v2989, %v5338
        %v6091 = vsel %vm371, %v2992, %v5340
        %v6092 = vsel %vm371, %v2994, %v5342
        %v6093 = vsel %vm371, %v2997, %v5344
        %v6094 = vsel %vm371, %v2999, %v5346
        %v6095 = vsel %vm371, %v3002, %v5348
        %v6096 = vsel %vm371, %v3004, %v5350
        %v6097 = vsel %vm371, %v3007, %v5352
        %v6098 = vsel %vm371, %v3009, %v5354
        %v6099 = vsel %vm371, %v3012, %v5356
        %v6100 = vsel %vm371, %v3014, %v5358
        %v6101 = vsel %vm371, %v3261, %v5360
        %v6102 = vsel %vm371, %v3263, %v5362
        %v6103 = vsel %vm371, %v3284, %v5364
        %v6104 = vsel %vm371, %v3286, %v5366
        %v6105 = vsel %vm371, %v3307, %v5368
        %v6106 = vsel %vm371, %v3309, %v5370
        %v6107 = vsel %vm729, %v6075, %v5404
        %v6108 = vsel %vm729, %v6076, %v5406
        %v6109 = vsel %vm729, %v6077, %v5408
        %v6110 = vsel %vm729, %v6078, %v5410
        %v6111 = vsel %vm729, %v6079, %v5412
        %v6112 = vsel %vm729, %v6080, %v5414
        %v6113 = vsel %vm729, %v6081, %v5416
        %v6114 = vsel %vm729, %v6082, %v5418
        %v6115 = vsel %vm729, %v6083, %v5420
        %v6116 = vsel %vm729, %v6084, %v5422
        %v6117 = vsel %vm729, %v6085, %v5424
        %v6118 = vsel %vm729, %v6086, %v5426
        %v6119 = vsel %vm729, %v6087, %v5428
        %v6120 = vsel %vm729, %v6088, %v5430
        %v6121 = vsel %vm729, %v6089, %v5432
        %v6122 = vsel %vm729, %v6090, %v5434
        %v6123 = vsel %vm729, %v6091, %v5436
        %v6124 = vsel %vm729, %v6092, %v5438
        %v6125 = vsel %vm729, %v6093, %v5440
        %v6126 = vsel %vm729, %v6094, %v5442
        %v6127 = vsel %vm729, %v6095, %v5444
        %v6128 = vsel %vm729, %v6096, %v5446
        %v6129 = vsel %vm729, %v6097, %v5448
        %v6130 = vsel %vm729, %v6098, %v5450
        %v6131 = vsel %vm729, %v6099, %v5452
        %v6132 = vsel %vm729, %v6100, %v5454
        %v6133 = vsel %vm729, %v6101, %v5456
        %v6134 = vsel %vm729, %v6102, %v5458
        %v6135 = vsel %vm729, %v6103, %v5460
        %v6136 = vsel %vm729, %v6104, %v5462
        %v6137 = vsel %vm729, %v6105, %v5464
        %v6138 = vsel %vm729, %v6106, %v5466
        %v6139 = vsel %vm4884, %v6107, %v5500
        %v6140 = vsel %vm4884, %v6108, %v5502
        %v6141 = vsel %vm4884, %v6109, %v5504
        %v6142 = vsel %vm4884, %v6110, %v5506
        %v6143 = vsel %vm4884, %v6111, %v5508
        %v6144 = vsel %vm4884, %v6112, %v5510
        %v6145 = vsel %vm4884, %v6113, %v5512
        %v6146 = vsel %vm4884, %v6114, %v5514
        %v6147 = vsel %vm4884, %v6115, %v5516
        %v6148 = vsel %vm4884, %v6116, %v5518
        %v6149 = vsel %vm4884, %v6117, %v5520
        %v6150 = vsel %vm4884, %v6118, %v5522
        %v6151 = vsel %vm4884, %v6119, %v5524
        %v6152 = vsel %vm4884, %v6120, %v5526
        %v6153 = vsel %vm4884, %v6121, %v5528
        %v6154 = vsel %vm4884, %v6122, %v5530
        %v6155 = vsel %vm4884, %v6123, %v5532
        %v6156 = vsel %vm4884, %v6124, %v5534
        %v6157 = vsel %vm4884, %v6125, %v5536
        %v6158 = vsel %vm4884, %v6126, %v5538
        %v6159 = vsel %vm4884, %v6127, %v5540
        %v6160 = vsel %vm4884, %v6128, %v5542
        %v6161 = vsel %vm4884, %v6129, %v5544
        %v6162 = vsel %vm4884, %v6130, %v5546
        %v6163 = vsel %vm4884, %v6131, %v5548
        %v6164 = vsel %vm4884, %v6132, %v5550
        %v6165 = vsel %vm4884, %v6133, %v5552
        %v6166 = vsel %vm4884, %v6134, %v5554
        %v6167 = vsel %vm4884, %v6135, %v5556
        %v6168 = vsel %vm4884, %v6136, %v5558
        %v6169 = vsel %vm4884, %v6137, %v5560
        %v6170 = vsel %vm4884, %v6138, %v5562
        %v6171 = vsel %vm2036, %v6139, %v5596
        %v6172 = vsel %vm2036, %v6140, %v5598
        %v6173 = vsel %vm2036, %v6141, %v5600
        %v6174 = vsel %vm2036, %v6142, %v5602
        %v6175 = vsel %vm2036, %v6143, %v5604
        %v6176 = vsel %vm2036, %v6144, %v5606
        %v6177 = vsel %vm2036, %v6145, %v5608
        %v6178 = vsel %vm2036, %v6146, %v5610
        %v6179 = vsel %vm2036, %v6147, %v5612
        %v6180 = vsel %vm2036, %v6148, %v5614
        %v6181 = vsel %vm2036, %v6149, %v5616
        %v6182 = vsel %vm2036, %v6150, %v5618
        %v6183 = vsel %vm2036, %v6151, %v5620
        %v6184 = vsel %vm2036, %v6152, %v5622
        %v6185 = vsel %vm2036, %v6153, %v5624
        %v6186 = vsel %vm2036, %v6154, %v5626
        %v6187 = vsel %vm2036, %v6155, %v5628
        %v6188 = vsel %vm2036, %v6156, %v5630
        %v6189 = vsel %vm2036, %v6157, %v5632
        %v6190 = vsel %vm2036, %v6158, %v5634
        %v6191 = vsel %vm2036, %v6159, %v5636
        %v6192 = vsel %vm2036, %v6160, %v5638
        %v6193 = vsel %vm2036, %v6161, %v5640
        %v6194 = vsel %vm2036, %v6162, %v5642
        %v6195 = vsel %vm2036, %v6163, %v5644
        %v6196 = vsel %vm2036, %v6164, %v5646
        %v6197 = vsel %vm2036, %v6165, %v5648
        %v6198 = vsel %vm2036, %v6166, %v5650
        %v6199 = vsel %vm2036, %v6167, %v5652
        %v6200 = vsel %vm2036, %v6168, %v5654
        %v6201 = vsel %vm2036, %v6169, %v5656
        %v6202 = vsel %vm2036, %v6170, %v5658
        %v6203 = vsel %vm4949, %v6171, %v5692
        %v6204 = vsel %vm4949, %v6172, %v5694
        %v6205 = vsel %vm4949, %v6173, %v5696
        %v6206 = vsel %vm4949, %v6174, %v5698
        %v6207 = vsel %vm4949, %v6175, %v5700
        %v6208 = vsel %vm4949, %v6176, %v5702
        %v6209 = vsel %vm4949, %v6177, %v5704
        %v6210 = vsel %vm4949, %v6178, %v5706
        %v6211 = vsel %vm4949, %v6179, %v5708
        %v6212 = vsel %vm4949, %v6180, %v5710
        %v6213 = vsel %vm4949, %v6181, %v5712
        %v6214 = vsel %vm4949, %v6182, %v5714
        %v6215 = vsel %vm4949, %v6183, %v5716
        %v6216 = vsel %vm4949, %v6184, %v5718
        %v6217 = vsel %vm4949, %v6185, %v5720
        %v6218 = vsel %vm4949, %v6186, %v5722
        %v6219 = vsel %vm4949, %v6187, %v5724
        %v6220 = vsel %vm4949, %v6188, %v5726
        %v6221 = vsel %vm4949, %v6189, %v5728
        %v6222 = vsel %vm4949, %v6190, %v5730
        %v6223 = vsel %vm4949, %v6191, %v5732
        %v6224 = vsel %vm4949, %v6192, %v5734
        %v6225 = vsel %vm4949, %v6193, %v5736
        %v6226 = vsel %vm4949, %v6194, %v5738
        %v6227 = vsel %vm4949, %v6195, %v5740
        %v6228 = vsel %vm4949, %v6196, %v5742
        %v6229 = vsel %vm4949, %v6197, %v5744
        %v6230 = vsel %vm4949, %v6198, %v5746
        %v6231 = vsel %vm4949, %v6199, %v5748
        %v6232 = vsel %vm4949, %v6200, %v5750
        %v6233 = vsel %vm4949, %v6201, %v5752
        %v6234 = vsel %vm4949, %v6202, %v5754
        %v6235 = vsel %vm2069, %v6203, %v5788
        %v6236 = vsel %vm2069, %v6204, %v5790
        %v6237 = vsel %vm2069, %v6205, %v5792
        %v6238 = vsel %vm2069, %v6206, %v5794
        %v6239 = vsel %vm2069, %v6207, %v5796
        %v6240 = vsel %vm2069, %v6208, %v5798
        %v6241 = vsel %vm2069, %v6209, %v5800
        %v6242 = vsel %vm2069, %v6210, %v5802
        %v6243 = vsel %vm2069, %v6211, %v5804
        %v6244 = vsel %vm2069, %v6212, %v5806
        %v6245 = vsel %vm2069, %v6213, %v5808
        %v6246 = vsel %vm2069, %v6214, %v5810
        %v6247 = vsel %vm2069, %v6215, %v5812
        %v6248 = vsel %vm2069, %v6216, %v5814
        %v6249 = vsel %vm2069, %v6217, %v5816
        %v6250 = vsel %vm2069, %v6218, %v5818
        %v6251 = vsel %vm2069, %v6219, %v5820
        %v6252 = vsel %vm2069, %v6220, %v5822
        %v6253 = vsel %vm2069, %v6221, %v5824
        %v6254 = vsel %vm2069, %v6222, %v5826
        %v6255 = vsel %vm2069, %v6223, %v5828
        %v6256 = vsel %vm2069, %v6224, %v5830
        %v6257 = vsel %vm2069, %v6225, %v5832
        %v6258 = vsel %vm2069, %v6226, %v5834
        %v6259 = vsel %vm2069, %v6227, %v5836
        %v6260 = vsel %vm2069, %v6228, %v5838
        %v6261 = vsel %vm2069, %v6229, %v5840
        %v6262 = vsel %vm2069, %v6230, %v5842
        %v6263 = vsel %vm2069, %v6231, %v5844
        %v6264 = vsel %vm2069, %v6232, %v5846
        %v6265 = vsel %vm2069, %v6233, %v5848
        %v6266 = vsel %vm2069, %v6234, %v5850
        %v6267 = vsel %vm5014, %v6235, %v5884
        %v6268 = vsel %vm5014, %v6236, %v5886
        %v6269 = vsel %vm5014, %v6237, %v5888
        %v6270 = vsel %vm5014, %v6238, %v5890
        %v6271 = vsel %vm5014, %v6239, %v5892
        %v6272 = vsel %vm5014, %v6240, %v5894
        %v6273 = vsel %vm5014, %v6241, %v5896
        %v6274 = vsel %vm5014, %v6242, %v5898
        %v6275 = vsel %vm5014, %v6243, %v5900
        %v6276 = vsel %vm5014, %v6244, %v5902
        %v6277 = vsel %vm5014, %v6245, %v5904
        %v6278 = vsel %vm5014, %v6246, %v5906
        %v6279 = vsel %vm5014, %v6247, %v5908
        %v6280 = vsel %vm5014, %v6248, %v5910
        %v6281 = vsel %vm5014, %v6249, %v5912
        %v6282 = vsel %vm5014, %v6250, %v5914
        %v6283 = vsel %vm5014, %v6251, %v5916
        %v6284 = vsel %vm5014, %v6252, %v5918
        %v6285 = vsel %vm5014, %v6253, %v5920
        %v6286 = vsel %vm5014, %v6254, %v5922
        %v6287 = vsel %vm5014, %v6255, %v5924
        %v6288 = vsel %vm5014, %v6256, %v5926
        %v6289 = vsel %vm5014, %v6257, %v5928
        %v6290 = vsel %vm5014, %v6258, %v5930
        %v6291 = vsel %vm5014, %v6259, %v5932
        %v6292 = vsel %vm5014, %v6260, %v5934
        %v6293 = vsel %vm5014, %v6261, %v5936
        %v6294 = vsel %vm5014, %v6262, %v5938
        %v6295 = vsel %vm5014, %v6263, %v5940
        %v6296 = vsel %vm5014, %v6264, %v5942
        %v6297 = vsel %vm5014, %v6265, %v5944
        %v6298 = vsel %vm5014, %v6266, %v5946
        %v6299 = vsel %vm2102, %v6267, %v5980
        %v6300 = vsel %vm2102, %v6268, %v5982
        %v6301 = vsel %vm2102, %v6269, %v5984
        %v6302 = vsel %vm2102, %v6270, %v5986
        %v6303 = vsel %vm2102, %v6271, %v5988
        %v6304 = vsel %vm2102, %v6272, %v5990
        %v6305 = vsel %vm2102, %v6273, %v5992
        %v6306 = vsel %vm2102, %v6274, %v5994
        %v6307 = vsel %vm2102, %v6275, %v5996
        %v6308 = vsel %vm2102, %v6276, %v5998
        %v6309 = vsel %vm2102, %v6277, %v6000
        %v6310 = vsel %vm2102, %v6278, %v6002
        %v6311 = vsel %vm2102, %v6279, %v6004
        %v6312 = vsel %vm2102, %v6280, %v6006
        %v6313 = vsel %vm2102, %v6281, %v6008
        %v6314 = vsel %vm2102, %v6282, %v6010
        %v6315 = vsel %vm2102, %v6283, %v6012
        %v6316 = vsel %vm2102, %v6284, %v6014
        %v6317 = vsel %vm2102, %v6285, %v6016
        %v6318 = vsel %vm2102, %v6286, %v6018
        %v6319 = vsel %vm2102, %v6287, %v6020
        %v6320 = vsel %vm2102, %v6288, %v6022
        %v6321 = vsel %vm2102, %v6289, %v6024
        %v6322 = vsel %vm2102, %v6290, %v6026
        %v6323 = vsel %vm2102, %v6291, %v6028
        %v6324 = vsel %vm2102, %v6292, %v6030
        %v6325 = vsel %vm2102, %v6293, %v6032
        %v6326 = vsel %vm2102, %v6294, %v6034
        %v6327 = vsel %vm2102, %v6295, %v6036
        %v6328 = vsel %vm2102, %v6296, %v6038
        %v6329 = vsel %vm2102, %v6297, %v6040
        %v6330 = vsel %vm2102, %v6298, %v6042
        %6363 = vrot.lane.b32.xlu0 %v6299, 64
        %v6364 = vpop.permute.xlu0 %6363
        %6365 = vrot.lane.b32.xlu0 %v6300, 64
        %v6366 = vpop.permute.xlu0 %6365
        %6367 = vrot.lane.b32.xlu0 %v6301, 64
        %v6368 = vpop.permute.xlu0 %6367
        %6369 = vrot.lane.b32.xlu0 %v6302, 64
        %v6370 = vpop.permute.xlu0 %6369
        %6371 = vrot.lane.b32.xlu0 %v6303, 64
        %v6372 = vpop.permute.xlu0 %6371
        %6373 = vrot.lane.b32.xlu0 %v6304, 64
        %v6374 = vpop.permute.xlu0 %6373
        %6375 = vrot.lane.b32.xlu0 %v6305, 64
        %v6376 = vpop.permute.xlu0 %6375
        %6377 = vrot.lane.b32.xlu0 %v6306, 64
        %v6378 = vpop.permute.xlu0 %6377
        %6379 = vrot.lane.b32.xlu0 %v6307, 64
        %v6380 = vpop.permute.xlu0 %6379
        %6381 = vrot.lane.b32.xlu0 %v6308, 64
        %v6382 = vpop.permute.xlu0 %6381
        %6383 = vrot.lane.b32.xlu0 %v6309, 64
        %v6384 = vpop.permute.xlu0 %6383
        %6385 = vrot.lane.b32.xlu0 %v6310, 64
        %v6386 = vpop.permute.xlu0 %6385
        %6387 = vrot.lane.b32.xlu0 %v6311, 64
        %v6388 = vpop.permute.xlu0 %6387
        %6389 = vrot.lane.b32.xlu0 %v6312, 64
        %v6390 = vpop.permute.xlu0 %6389
        %6391 = vrot.lane.b32.xlu0 %v6313, 64
        %v6392 = vpop.permute.xlu0 %6391
        %6393 = vrot.lane.b32.xlu0 %v6314, 64
        %v6394 = vpop.permute.xlu0 %6393
        %6395 = vrot.lane.b32.xlu0 %v6315, 64
        %v6396 = vpop.permute.xlu0 %6395
        %6397 = vrot.lane.b32.xlu0 %v6316, 64
        %v6398 = vpop.permute.xlu0 %6397
        %6399 = vrot.lane.b32.xlu0 %v6317, 64
        %v6400 = vpop.permute.xlu0 %6399
        %6401 = vrot.lane.b32.xlu0 %v6318, 64
        %v6402 = vpop.permute.xlu0 %6401
        %6403 = vrot.lane.b32.xlu0 %v6319, 64
        %v6404 = vpop.permute.xlu0 %6403
        %6405 = vrot.lane.b32.xlu0 %v6320, 64
        %v6406 = vpop.permute.xlu0 %6405
        %6407 = vrot.lane.b32.xlu0 %v6321, 64
        %v6408 = vpop.permute.xlu0 %6407
        %6409 = vrot.lane.b32.xlu0 %v6322, 64
        %v6410 = vpop.permute.xlu0 %6409
        %6411 = vrot.lane.b32.xlu0 %v6323, 64
        %v6412 = vpop.permute.xlu0 %6411
        %6413 = vrot.lane.b32.xlu0 %v6324, 64
        %v6414 = vpop.permute.xlu0 %6413
        %6415 = vrot.lane.b32.xlu0 %v6325, 64
        %v6416 = vpop.permute.xlu0 %6415
        %6417 = vrot.lane.b32.xlu0 %v6326, 64
        %v6418 = vpop.permute.xlu0 %6417
        %6419 = vrot.lane.b32.xlu0 %v6327, 64
        %v6420 = vpop.permute.xlu0 %6419
        %6421 = vrot.lane.b32.xlu0 %v6328, 64
        %v6422 = vpop.permute.xlu0 %6421
        %6423 = vrot.lane.b32.xlu0 %v6329, 64
        %v6424 = vpop.permute.xlu0 %6423
        %6425 = vrot.lane.b32.xlu0 %v6330, 64
        %v6426 = vpop.permute.xlu0 %6425
        %v6459 = vsel %vm2234, %v5275, %v6364
        %v6460 = vsel %vm2234, %v5276, %v6366
        %v6461 = vsel %vm2234, %v5277, %v6368
        %v6462 = vsel %vm2234, %v5278, %v6370
        %v6463 = vsel %vm2234, %v5279, %v6372
        %v6464 = vsel %vm2234, %v5280, %v6374
        %v6465 = vsel %vm2234, %v5281, %v6376
        %v6466 = vsel %vm2234, %v5282, %v6378
        %v6467 = vsel %vm2234, %v5283, %v6380
        %v6468 = vsel %vm2234, %v5284, %v6382
        %v6469 = vsel %vm2234, %v5285, %v6384
        %v6470 = vsel %vm2234, %v5286, %v6386
        %v6471 = vsel %vm2234, %v5287, %v6388
        %v6472 = vsel %vm2234, %v5288, %v6390
        %v6473 = vsel %vm2234, %v5289, %v6392
        %v6474 = vsel %vm2234, %v5290, %v6394
        %v6475 = vsel %vm2234, %v5291, %v6396
        %v6476 = vsel %vm2234, %v5292, %v6398
        %v6477 = vsel %vm2234, %v5293, %v6400
        %v6478 = vsel %vm2234, %v5294, %v6402
        %v6479 = vsel %vm2234, %v5295, %v6404
        %v6480 = vsel %vm2234, %v5296, %v6406
        %v6481 = vsel %vm2234, %v5297, %v6408
        %v6482 = vsel %vm2234, %v5298, %v6410
        %v6483 = vsel %vm2234, %v5299, %v6412
        %v6484 = vsel %vm2234, %v5300, %v6414
        %v6485 = vsel %vm2234, %v5301, %v6416
        %v6486 = vsel %vm2234, %v5302, %v6418
        %v6487 = vsel %vm2234, %v5303, %v6420
        %v6488 = vsel %vm2234, %v5304, %v6422
        %v6489 = vsel %vm2234, %v5305, %v6424
        %v6490 = vsel %vm2234, %v5306, %v6426
        %v6491 = vld [vmem:[%s5] sm:$0xff]
        %v6492 = vld [vmem:[%s5 + $0x8] sm:$0xff]
        %v6493 = vld [vmem:[%s5 + $0x10] sm:$0xff]
        %v6494 = vld [vmem:[%s5 + $0x18] sm:$0xff]
        %v6495 = vld [vmem:[%s5 + $0x20] sm:$0xff]
        %v6496 = vld [vmem:[%s5 + $0x28] sm:$0xff]
        %v6497 = vld [vmem:[%s5 + $0x30] sm:$0xff]
        %v6498 = vld [vmem:[%s5 + $0x38] sm:$0xff]
        %v6499 = vld [vmem:[%s5 + $0x40] sm:$0xff]
        %v6500 = vld [vmem:[%s5 + $0x48] sm:$0xff]
        %v6501 = vld [vmem:[%s5 + $0x50] sm:$0xff]
        %v6502 = vld [vmem:[%s5 + $0x58] sm:$0xff]
        %v6503 = vld [vmem:[%s5 + $0x60] sm:$0xf]
        %v6504 = vld [vmem:[%s6] sm:$0x1]
        %v6506 = vlaneseq
        %v6507 = vshrl.u32 %v6506, 7
        %v6508 = vsub.s32 0, %v6507
        %v6509 = vrot.slane %v6504, %v6508
        %vm6511 = vcmask 818176
        %v6513 = vsel %vm6511, %v6459, 0
        %v6516 = vsel %vm6511, %v6460, 0
        %v6519 = vsel %vm6511, %v6461, 0
        %v6522 = vsel %vm6511, %v6462, 0
        %v6525 = vsel %vm6511, %v6463, 0
        %v6528 = vsel %vm6511, %v6464, 0
        %v6531 = vsel %vm6511, %v6465, 0
        %v6534 = vsel %vm6511, %v6466, 0
        %v6537 = vsel %vm6511, %v6467, 0
        %v6540 = vsel %vm6511, %v6468, 0
        %v6543 = vsel %vm6511, %v6469, 0
        %v6546 = vsel %vm6511, %v6470, 0
        %v6549 = vsel %vm6511, %v6471, 0
        %v6552 = vsel %vm6511, %v6472, 0
        %v6555 = vsel %vm6511, %v6473, 0
        %v6558 = vsel %vm6511, %v6474, 0
        %v6561 = vsel %vm6511, %v6475, 0
        %v6564 = vsel %vm6511, %v6476, 0
        %v6567 = vsel %vm6511, %v6477, 0
        %v6570 = vsel %vm6511, %v6478, 0
        %v6573 = vsel %vm6511, %v6479, 0
        %v6576 = vsel %vm6511, %v6480, 0
        %v6579 = vsel %vm6511, %v6481, 0
        %v6582 = vsel %vm6511, %v6482, 0
        %v6585 = vsel %vm6511, %v6483, 0
        %v6588 = vsel %vm6511, %v6484, 0
        %v6591 = vsel %vm6511, %v6485, 0
        %v6594 = vsel %vm6511, %v6486, 0
        %v6597 = vsel %vm6511, %v6487, 0
        %v6600 = vsel %vm6511, %v6488, 0
        %v6603 = vsel %vm6511, %v6489, 0
        %v6606 = vsel %vm6511, %v6490, 0
        %v6609 = vsel %vm468, %v6503, 0
        %6611 = vmatprep.subr.mxu0 0.0
        %6612 = vmatpush1.msra.mxu0 %v6491
        %6613 = vmatprep.subr.mxu0 0.0
        %6614 = vmatpush1.msra.mxu0 %v6492
        %6615 = vmatprep.subr.mxu0 0.0
        %6616 = vmatpush1.msra.mxu0 %v6493
        %6617 = vmatprep.subr.mxu0 0.0
        %6618 = vmatpush1.msra.mxu0 %v6494
        %6619 = vmatprep.subr.mxu0 0.0
        %6620 = vmatpush1.msra.mxu0 %v6495
        %6621 = vmatprep.subr.mxu0 0.0
        %6622 = vmatpush1.msra.mxu0 %v6496
        %6623 = vmatprep.subr.mxu0 0.0
        %6624 = vmatpush1.msra.mxu0 %v6497
        %6625 = vmatprep.subr.mxu0 0.0
        %6626 = vmatpush1.msra.mxu0 %v6498
        %6627 = vmatprep.subr.mxu0 0.0
        %6628 = vmatpush1.msra.mxu0 %v6499
        %6629 = vmatprep.subr.mxu0 0.0
        %6630 = vmatpush1.msra.mxu0 %v6500
        %6631 = vmatprep.subr.mxu0 0.0
        %6632 = vmatpush1.msra.mxu0 %v6501
        %6633 = vmatprep.subr.mxu0 0.0
        %6634 = vmatpush1.msra.mxu0 %v6502
        %6635 = vmatprep.subr.mxu0 0.0
        %6636 = vmatpush1.msra.mxu0 %v6609
        %6637 = vmatprep.subr.mxu0 0.0
        %6638 = vmatpush1.msra.mxu0 0.0
        %6639 = vmatprep.subr.mxu0 0.0
        %6640 = vmatpush1.msra.mxu0 0.0
        %6641 = vmatprep.subr.mxu0 0.0
        %6642 = vmatpush1.msra.mxu0 0.0
        %6643 = vmatprep.subr.mxu0 0.0
        %6644 = vmatpush1.msra.mxu0 0.0
        %6645 = vmatprep.subr.mxu0 0.0
        %6646 = vmatpush1.msra.mxu0 0.0
        %6647 = vmatprep.subr.mxu0 0.0
        %6648 = vmatpush1.msra.mxu0 0.0
        %6649 = vmatprep.subr.mxu0 0.0
        %6650 = vmatpush1.msra.mxu0 0.0
        %6651 = vmatprep.subr.mxu0 0.0
        %6652 = vmatpush1.msra.mxu0 0.0
        %6653 = vmatprep.subr.mxu0 0.0
        %6654 = vmatpush1.msra.mxu0 0.0
        %6655 = vmatprep.subr.mxu0 0.0
        %6656 = vmatpush1.msra.mxu0 0.0
        %6657 = vmatprep.subr.mxu0 0.0
        %6658 = vmatpush1.msra.mxu0 0.0
        %6659 = vmatprep.subr.mxu0 0.0
        %6660 = vmatpush1.msra.mxu0 0.0
        %6661 = vmatprep.subr.mxu0 0.0
        %6662 = vmatpush1.msra.mxu0 0.0
        %6663 = vmatprep.subr.mxu0 0.0
        %6664 = vmatpush1.msra.mxu0 0.0
        %6665 = vmatprep.subr.mxu0 0.0
        %6666 = vmatpush1.msra.mxu0 0.0
        %6667 = vmatprep.subr.mxu0 0.0
        %6668 = vmatpush1.msra.mxu0 0.0
        %6669 = vmatprep.subr.mxu0 0.0
        %6670 = vmatpush1.msra.mxu0 0.0
        %6671 = vmatprep.subr.mxu0 0.0
        %6672 = vmatpush1.msra.mxu0 0.0
        %6673 = vmatprep.subr.mxu0 0.0
        %6674 = vmatpush1.msra.mxu0 0.0
        %6675 = vmatprep.mubr.f32.mxu0 0.0
        %6676 = vmatmul.mubr.f32.gmra.mrb[0].mxu0 %v6513
        %v6677 = vpop.f32.mrb[0].mxu0
        %v6678 = vadd.f32 %v6509, %v6677
        %v6679 = vpop.f32.mrb[0].mxu0
        %6680 = vmatprep.mubr.f32.mxu0 0.0
        %6681 = vmatmul.mubr.f32.gmra.mrb[0].mxu0 %v6516
        %v6682 = vpop.f32.mrb[0].mxu0
        %v6683 = vadd.f32 %v6509, %v6682
        %v6684 = vpop.f32.mrb[0].mxu0
        %6685 = vmatprep.mubr.f32.mxu0 0.0
        %6686 = vmatmul.mubr.f32.gmra.mrb[0].mxu0 %v6519
        %v6687 = vpop.f32.mrb[0].mxu0
        %v6688 = vadd.f32 %v6509, %v6687
        %v6689 = vpop.f32.mrb[0].mxu0
        %6690 = vmatprep.mubr.f32.mxu0 0.0
        %6691 = vmatmul.mubr.f32.gmra.mrb[0].mxu0 %v6522
        %v6692 = vpop.f32.mrb[0].mxu0
        %v6693 = vadd.f32 %v6509, %v6692
        %v6694 = vpop.f32.mrb[0].mxu0
        %6695 = vmatprep.mubr.f32.mxu0 0.0
        %6696 = vmatmul.mubr.f32.gmra.mrb[0].mxu0 %v6525
        %v6697 = vpop.f32.mrb[0].mxu0
        %v6698 = vadd.f32 %v6509, %v6697
        %v6699 = vpop.f32.mrb[0].mxu0
        %6700 = vmatprep.mubr.f32.mxu0 0.0
        %6701 = vmatmul.mubr.f32.gmra.mrb[0].mxu0 %v6528
        %v6702 = vpop.f32.mrb[0].mxu0
        %v6703 = vadd.f32 %v6509, %v6702
        %v6704 = vpop.f32.mrb[0].mxu0
        %6705 = vmatprep.mubr.f32.mxu0 0.0
        %6706 = vmatmul.mubr.f32.gmra.mrb[0].mxu0 %v6531
        %v6707 = vpop.f32.mrb[0].mxu0
        %v6708 = vadd.f32 %v6509, %v6707
        %v6709 = vpop.f32.mrb[0].mxu0
        %6710 = vmatprep.mubr.f32.mxu0 0.0
        %6711 = vmatmul.mubr.f32.gmra.mrb[0].mxu0 %v6534
        %v6712 = vpop.f32.mrb[0].mxu0
        %v6713 = vadd.f32 %v6509, %v6712
        %v6714 = vpop.f32.mrb[0].mxu0
        %6715 = vmatprep.mubr.f32.mxu0 0.0
        %6716 = vmatmul.mubr.f32.gmra.mrb[0].mxu0 %v6537
        %v6717 = vpop.f32.mrb[0].mxu0
        %v6718 = vadd.f32 %v6509, %v6717
        %v6719 = vpop.f32.mrb[0].mxu0
        %6720 = vmatprep.mubr.f32.mxu0 0.0
        %6721 = vmatmul.mubr.f32.gmra.mrb[0].mxu0 %v6540
        %v6722 = vpop.f32.mrb[0].mxu0
        %v6723 = vadd.f32 %v6509, %v6722
        %v6724 = vpop.f32.mrb[0].mxu0
        %6725 = vmatprep.mubr.f32.mxu0 0.0
        %6726 = vmatmul.mubr.f32.gmra.mrb[0].mxu0 %v6543
        %v6727 = vpop.f32.mrb[0].mxu0
        %v6728 = vadd.f32 %v6509, %v6727
        %v6729 = vpop.f32.mrb[0].mxu0
        %6730 = vmatprep.mubr.f32.mxu0 0.0
        %6731 = vmatmul.mubr.f32.gmra.mrb[0].mxu0 %v6546
        %v6732 = vpop.f32.mrb[0].mxu0
        %v6733 = vadd.f32 %v6509, %v6732
        %v6734 = vpop.f32.mrb[0].mxu0
        %6735 = vmatprep.mubr.f32.mxu0 0.0
        %6736 = vmatmul.mubr.f32.gmra.mrb[0].mxu0 %v6549
        %v6737 = vpop.f32.mrb[0].mxu0
        %v6738 = vadd.f32 %v6509, %v6737
        %v6739 = vpop.f32.mrb[0].mxu0
        %6740 = vmatprep.mubr.f32.mxu0 0.0
        %6741 = vmatmul.mubr.f32.gmra.mrb[0].mxu0 %v6552
        %v6742 = vpop.f32.mrb[0].mxu0
        %v6743 = vadd.f32 %v6509, %v6742
        %v6744 = vpop.f32.mrb[0].mxu0
        %6745 = vmatprep.mubr.f32.mxu0 0.0
        %6746 = vmatmul.mubr.f32.gmra.mrb[0].mxu0 %v6555
        %v6747 = vpop.f32.mrb[0].mxu0
        %v6748 = vadd.f32 %v6509, %v6747
        %v6749 = vpop.f32.mrb[0].mxu0
        %6750 = vmatprep.mubr.f32.mxu0 0.0
        %6751 = vmatmul.mubr.f32.gmra.mrb[0].mxu0 %v6558
        %v6752 = vpop.f32.mrb[0].mxu0
        %v6753 = vadd.f32 %v6509, %v6752
        %v6754 = vpop.f32.mrb[0].mxu0
        %6755 = vmatprep.mubr.f32.mxu0 0.0
        %6756 = vmatmul.mubr.f32.gmra.mrb[0].mxu0 %v6561
        %v6757 = vpop.f32.mrb[0].mxu0
        %v6758 = vadd.f32 %v6509, %v6757
        %v6759 = vpop.f32.mrb[0].mxu0
        %6760 = vmatprep.mubr.f32.mxu0 0.0
        %6761 = vmatmul.mubr.f32.gmra.mrb[0].mxu0 %v6564
        %v6762 = vpop.f32.mrb[0].mxu0
        %v6763 = vadd.f32 %v6509, %v6762
        %v6764 = vpop.f32.mrb[0].mxu0
        %6765 = vmatprep.mubr.f32.mxu0 0.0
        %6766 = vmatmul.mubr.f32.gmra.mrb[0].mxu0 %v6567
        %v6767 = vpop.f32.mrb[0].mxu0
        %v6768 = vadd.f32 %v6509, %v6767
        %v6769 = vpop.f32.mrb[0].mxu0
        %6770 = vmatprep.mubr.f32.mxu0 0.0
        %6771 = vmatmul.mubr.f32.gmra.mrb[0].mxu0 %v6570
        %v6772 = vpop.f32.mrb[0].mxu0
        %v6773 = vadd.f32 %v6509, %v6772
        %v6774 = vpop.f32.mrb[0].mxu0
        %6775 = vmatprep.mubr.f32.mxu0 0.0
        %6776 = vmatmul.mubr.f32.gmra.mrb[0].mxu0 %v6573
        %v6777 = vpop.f32.mrb[0].mxu0
        %v6778 = vadd.f32 %v6509, %v6777
        %v6779 = vpop.f32.mrb[0].mxu0
        %6780 = vmatprep.mubr.f32.mxu0 0.0
        %6781 = vmatmul.mubr.f32.gmra.mrb[0].mxu0 %v6576
        %v6782 = vpop.f32.mrb[0].mxu0
        %v6783 = vadd.f32 %v6509, %v6782
        %v6784 = vpop.f32.mrb[0].mxu0
        %6785 = vmatprep.mubr.f32.mxu0 0.0
        %6786 = vmatmul.mubr.f32.gmra.mrb[0].mxu0 %v6579
        %v6787 = vpop.f32.mrb[0].mxu0
        %v6788 = vadd.f32 %v6509, %v6787
        %v6789 = vpop.f32.mrb[0].mxu0
        %6790 = vmatprep.mubr.f32.mxu0 0.0
        %6791 = vmatmul.mubr.f32.gmra.mrb[0].mxu0 %v6582
        %v6792 = vpop.f32.mrb[0].mxu0
        %v6793 = vadd.f32 %v6509, %v6792
        %v6794 = vpop.f32.mrb[0].mxu0
        %6795 = vmatprep.mubr.f32.mxu0 0.0
        %6796 = vmatmul.mubr.f32.gmra.mrb[0].mxu0 %v6585
        %v6797 = vpop.f32.mrb[0].mxu0
        %v6798 = vadd.f32 %v6509, %v6797
        %v6799 = vpop.f32.mrb[0].mxu0
        %6800 = vmatprep.mubr.f32.mxu0 0.0
        %6801 = vmatmul.mubr.f32.gmra.mrb[0].mxu0 %v6588
        %v6802 = vpop.f32.mrb[0].mxu0
        %v6803 = vadd.f32 %v6509, %v6802
        %v6804 = vpop.f32.mrb[0].mxu0
        %6805 = vmatprep.mubr.f32.mxu0 0.0
        %6806 = vmatmul.mubr.f32.gmra.mrb[0].mxu0 %v6591
        %v6807 = vpop.f32.mrb[0].mxu0
        %v6808 = vadd.f32 %v6509, %v6807
        %v6809 = vpop.f32.mrb[0].mxu0
        %6810 = vmatprep.mubr.f32.mxu0 0.0
        %6811 = vmatmul.mubr.f32.gmra.mrb[0].mxu0 %v6594
        %v6812 = vpop.f32.mrb[0].mxu0
        %v6813 = vadd.f32 %v6509, %v6812
        %v6814 = vpop.f32.mrb[0].mxu0
        %6815 = vmatprep.mubr.f32.mxu0 0.0
        %6816 = vmatmul.mubr.f32.gmra.mrb[0].mxu0 %v6597
        %v6817 = vpop.f32.mrb[0].mxu0
        %v6818 = vadd.f32 %v6509, %v6817
        %v6819 = vpop.f32.mrb[0].mxu0
        %6820 = vmatprep.mubr.f32.mxu0 0.0
        %6821 = vmatmul.mubr.f32.gmra.mrb[0].mxu0 %v6600
        %v6822 = vpop.f32.mrb[0].mxu0
        %v6823 = vadd.f32 %v6509, %v6822
        %v6824 = vpop.f32.mrb[0].mxu0
        %6825 = vmatprep.mubr.f32.mxu0 0.0
        %6826 = vmatmul.mubr.f32.gmra.mrb[0].mxu0 %v6603
        %v6827 = vpop.f32.mrb[0].mxu0
        %v6828 = vadd.f32 %v6509, %v6827
        %v6829 = vpop.f32.mrb[0].mxu0
        %6830 = vmatprep.mubr.f32.mxu0 0.0
        %6831 = vmatmul.mubr.f32.gmra.mrb[0].mxu0 %v6606
        %v6832 = vpop.f32.mrb[0].mxu0
        %v6833 = vadd.f32 %v6509, %v6832
        %v6834 = vpop.f32.mrb[0].mxu0
        %6835 = vdwg.mxu0
        %v6836 = vmax.f32 %v6678, 0.0
        %v6837 = vmax.f32 %v6683, 0.0
        %v6838 = vmax.f32 %v6688, 0.0
        %v6839 = vmax.f32 %v6693, 0.0
        %v6840 = vmax.f32 %v6698, 0.0
        %v6841 = vmax.f32 %v6703, 0.0
        %v6842 = vmax.f32 %v6708, 0.0
        %v6843 = vmax.f32 %v6713, 0.0
        %v6844 = vmax.f32 %v6718, 0.0
        %v6845 = vmax.f32 %v6723, 0.0
        %v6846 = vmax.f32 %v6728, 0.0
        %v6847 = vmax.f32 %v6733, 0.0
        %v6848 = vmax.f32 %v6738, 0.0
        %v6849 = vmax.f32 %v6743, 0.0
        %v6850 = vmax.f32 %v6748, 0.0
        %v6851 = vmax.f32 %v6753, 0.0
        %v6852 = vmax.f32 %v6758, 0.0
        %v6853 = vmax.f32 %v6763, 0.0
        %v6854 = vmax.f32 %v6768, 0.0
        %v6855 = vmax.f32 %v6773, 0.0
        %v6856 = vmax.f32 %v6778, 0.0
        %v6857 = vmax.f32 %v6783, 0.0
        %v6858 = vmax.f32 %v6788, 0.0
        %v6859 = vmax.f32 %v6793, 0.0
        %v6860 = vmax.f32 %v6798, 0.0
        %v6861 = vmax.f32 %v6803, 0.0
        %v6862 = vmax.f32 %v6808, 0.0
        %v6863 = vmax.f32 %v6813, 0.0
        %v6864 = vmax.f32 %v6818, 0.0
        %v6865 = vmax.f32 %v6823, 0.0
        %v6866 = vmax.f32 %v6828, 0.0
        %v6867 = vmax.f32 %v6833, 0.0
        %6868 = vst.msk [vmem:[#allocation4] sm:$0xff] %vm371, -inf
        %6869 = vst.msk [vmem:[#allocation4 + $0x8] sm:$0xff] %vm371, -inf
        %vm6870 = vcmask 25600
        %6871 = vst.msk [vmem:[#allocation4 + $0x10] sm:$0x3] %vm6870, -inf
        %6872 = vst.msk [vmem:[#allocation4 + $0x18] sm:$0xff] %vm371, -inf
        %6873 = vst.msk [vmem:[#allocation4 + $0x20] sm:$0xff] %vm371, -inf
        %6874 = vst.msk [vmem:[#allocation4 + $0x28] sm:$0x3] %vm6870, -inf
        %6875 = vst.msk [vmem:[#allocation4 + $0x30] sm:$0xff] %vm371, -inf
        %6876 = vst.msk [vmem:[#allocation4 + $0x38] sm:$0xff] %vm371, -inf
        %6877 = vst.msk [vmem:[#allocation4 + $0x40] sm:$0x3] %vm6870, -inf
        %6878 = vst.msk [vmem:[#allocation4 + $0x48] sm:$0xff] %vm371, -inf
        %6879 = vst.msk [vmem:[#allocation4 + $0x50] sm:$0xff] %vm371, -inf
        %6880 = vst.msk [vmem:[#allocation4 + $0x58] sm:$0x3] %vm6870, -inf
        %6881 = vst.msk [vmem:[#allocation4 + $0x60] sm:$0xff] %vm371, -inf
        %6882 = vst.msk [vmem:[#allocation4 + $0x68] sm:$0xff] %vm371, -inf
        %6883 = vst.msk [vmem:[#allocation4 + $0x70] sm:$0x3] %vm6870, -inf
        %6884 = vst.msk [vmem:[#allocation4 + $0x78] sm:$0xff] %vm371, -inf
        %6885 = vst.msk [vmem:[#allocation4 + $0x80] sm:$0xff] %vm371, -inf
        %6886 = vst.msk [vmem:[#allocation4 + $0x88] sm:$0x3] %vm6870, -inf
        %6887 = vst.msk [vmem:[#allocation4 + $0x90] sm:$0xff] %vm371, -inf
        %6888 = vst.msk [vmem:[#allocation4 + $0x98] sm:$0xff] %vm371, -inf
        %6889 = vst.msk [vmem:[#allocation4 + $0xa0] sm:$0x3] %vm6870, -inf
        %6890 = vst.msk [vmem:[#allocation4 + $0xa8] sm:$0xff] %vm371, -inf
        %6891 = vst.msk [vmem:[#allocation4 + $0xb0] sm:$0xff] %vm371, -inf
        %6892 = vst.msk [vmem:[#allocation4 + $0xb8] sm:$0x3] %vm6870, -inf
        %6893 = vst.msk [vmem:[#allocation4 + $0xc0] sm:$0xff] %vm371, -inf
        %6894 = vst.msk [vmem:[#allocation4 + $0xc8] sm:$0xff] %vm371, -inf
        %6895 = vst.msk [vmem:[#allocation4 + $0xd0] sm:$0x3] %vm6870, -inf
        %6896 = vst.msk [vmem:[#allocation4 + $0xd8] sm:$0xff] %vm371, -inf
        %6897 = vst.msk [vmem:[#allocation4 + $0xe0] sm:$0xff] %vm371, -inf
        %6898 = vst.msk [vmem:[#allocation4 + $0xe8] sm:$0x3] %vm6870, -inf
        %6899 = vst.msk [vmem:[#allocation4 + $0xf0] sm:$0xff] %vm371, -inf
        %6900 = vst.msk [vmem:[#allocation4 + $0xf8] sm:$0xff] %vm371, -inf
        %6901 = vst.msk [vmem:[#allocation4 + $0x100] sm:$0x3] %vm6870, -inf
        %6902 = vst.msk [vmem:[#allocation4 + $0x108] sm:$0xff] %vm371, -inf
        %6903 = vst.msk [vmem:[#allocation4 + $0x110] sm:$0xff] %vm371, -inf
        %6904 = vst.msk [vmem:[#allocation4 + $0x118] sm:$0x3] %vm6870, -inf
        %6905 = vst.msk [vmem:[#allocation4 + $0x120] sm:$0xff] %vm371, -inf
        %6906 = vst.msk [vmem:[#allocation4 + $0x128] sm:$0xff] %vm371, -inf
        %6907 = vst.msk [vmem:[#allocation4 + $0x130] sm:$0x3] %vm6870, -inf
        %6908 = vst.msk [vmem:[#allocation4 + $0x138] sm:$0xff] %vm371, -inf
        %6909 = vst.msk [vmem:[#allocation4 + $0x140] sm:$0xff] %vm371, -inf
        %6910 = vst.msk [vmem:[#allocation4 + $0x148] sm:$0x3] %vm6870, -inf
        %6911 = vst.msk [vmem:[#allocation4 + $0x150] sm:$0xff] %vm371, -inf
        %6912 = vst.msk [vmem:[#allocation4 + $0x158] sm:$0xff] %vm371, -inf
        %6913 = vst.msk [vmem:[#allocation4 + $0x160] sm:$0x3] %vm6870, -inf
        %6914 = vst.msk [vmem:[#allocation4 + $0x168] sm:$0xff] %vm371, -inf
        %6915 = vst.msk [vmem:[#allocation4 + $0x170] sm:$0xff] %vm371, -inf
        %6916 = vst.msk [vmem:[#allocation4 + $0x178] sm:$0x3] %vm6870, -inf
        %6917 = vst.msk [vmem:[#allocation4 + $0x180] sm:$0xff] %vm371, -inf
        %6918 = vst.msk [vmem:[#allocation4 + $0x188] sm:$0xff] %vm371, -inf
        %6919 = vst.msk [vmem:[#allocation4 + $0x190] sm:$0x3] %vm6870, -inf
        %6920 = vst.msk [vmem:[#allocation4 + $0x198] sm:$0xff] %vm371, -inf
        %6921 = vst.msk [vmem:[#allocation4 + $0x1a0] sm:$0xff] %vm371, -inf
        %6922 = vst.msk [vmem:[#allocation4 + $0x1a8] sm:$0x3] %vm6870, -inf
        %s6923 = scalar_lea.vmem [#allocation4], 24
        %6924 = vst.msk [vmem:[%s6923 + $0x1] sm:$0xff] %vm371, %v331
        %6925 = vst.msk [vmem:[%s6923 + $0x9] sm:$0xff] %vm371, %v332
        %6926 = vst.msk [vmem:[%s6923 + $0x19] sm:$0xff] %vm371, %v333
        %6927 = vst.msk [vmem:[%s6923 + $0x21] sm:$0xff] %vm371, %v334
        %6928 = vst.msk [vmem:[%s6923 + $0x31] sm:$0xff] %vm371, %v335
        %6929 = vst.msk [vmem:[%s6923 + $0x39] sm:$0xff] %vm371, %v336
        %6930 = vst.msk [vmem:[%s6923 + $0x49] sm:$0xff] %vm371, %v337
        %6931 = vst.msk [vmem:[%s6923 + $0x51] sm:$0xff] %vm371, %v338
        %6932 = vst.msk [vmem:[%s6923 + $0x61] sm:$0xff] %vm371, %v339
        %6933 = vst.msk [vmem:[%s6923 + $0x69] sm:$0xff] %vm371, %v340
        %6934 = vst.msk [vmem:[%s6923 + $0x79] sm:$0xff] %vm371, %v341
        %6935 = vst.msk [vmem:[%s6923 + $0x81] sm:$0xff] %vm371, %v342
        %6936 = vst.msk [vmem:[%s6923 + $0x91] sm:$0xff] %vm371, %v343
        %6937 = vst.msk [vmem:[%s6923 + $0x99] sm:$0xff] %vm371, %v344
        %6938 = vst.msk [vmem:[%s6923 + $0xa9] sm:$0xff] %vm371, %v345
        %6939 = vst.msk [vmem:[%s6923 + $0xb1] sm:$0xff] %vm371, %v346
        %6940 = vst.msk [vmem:[%s6923 + $0xc1] sm:$0xff] %vm371, %v347
        %6941 = vst.msk [vmem:[%s6923 + $0xc9] sm:$0xff] %vm371, %v348
        %6942 = vst.msk [vmem:[%s6923 + $0xd9] sm:$0xff] %vm371, %v349
        %6943 = vst.msk [vmem:[%s6923 + $0xe1] sm:$0xff] %vm371, %v350
        %6944 = vst.msk [vmem:[%s6923 + $0xf1] sm:$0xff] %vm371, %v351
        %6945 = vst.msk [vmem:[%s6923 + $0xf9] sm:$0xff] %vm371, %v352
        %6946 = vst.msk [vmem:[%s6923 + $0x109] sm:$0xff] %vm371, %v353
        %6947 = vst.msk [vmem:[%s6923 + $0x111] sm:$0xff] %vm371, %v354
        %6948 = vst.msk [vmem:[%s6923 + $0x121] sm:$0xff] %vm371, %v355
        %6949 = vst.msk [vmem:[%s6923 + $0x129] sm:$0xff] %vm371, %v356
        %6950 = vst.msk [vmem:[%s6923 + $0x139] sm:$0xff] %vm371, %v357
        %6951 = vst.msk [vmem:[%s6923 + $0x141] sm:$0xff] %vm371, %v358
        %6952 = vst.msk [vmem:[%s6923 + $0x151] sm:$0xff] %vm371, %v359
        %6953 = vst.msk [vmem:[%s6923 + $0x159] sm:$0xff] %vm371, %v360
        %6954 = vst.msk [vmem:[%s6923 + $0x169] sm:$0xff] %vm371, %v361
        %6955 = vst.msk [vmem:[%s6923 + $0x171] sm:$0xff] %vm371, %v362
        %v6956 = vld [vmem:[#allocation4] sm:$0xff]
        %v6957 = vld [vmem:[#allocation4 + $0x8] sm:$0xff]
        %v6958 = vld [vmem:[#allocation4 + $0x10] sm:$0x3]
        %v6959 = vld [vmem:[#allocation4 + $0x18] sm:$0xff]
        %v6960 = vld [vmem:[#allocation4 + $0x20] sm:$0xff]
        %v6961 = vld [vmem:[#allocation4 + $0x28] sm:$0x3]
        %v6962 = vld [vmem:[#allocation4 + $0x30] sm:$0xff]
        %v6963 = vld [vmem:[#allocation4 + $0x38] sm:$0xff]
        %v6964 = vld [vmem:[#allocation4 + $0x40] sm:$0x3]
        %v6965 = vld [vmem:[#allocation4 + $0x48] sm:$0xff]
        %v6966 = vld [vmem:[#allocation4 + $0x50] sm:$0xff]
        %v6967 = vld [vmem:[#allocation4 + $0x58] sm:$0x3]
        %v6968 = vld [vmem:[#allocation4 + $0x60] sm:$0xff]
        %v6969 = vld [vmem:[#allocation4 + $0x68] sm:$0xff]
        %v6970 = vld [vmem:[#allocation4 + $0x70] sm:$0x3]
        %v6971 = vld [vmem:[#allocation4 + $0x78] sm:$0xff]
        %v6972 = vld [vmem:[#allocation4 + $0x80] sm:$0xff]
        %v6973 = vld [vmem:[#allocation4 + $0x88] sm:$0x3]
        %v6974 = vld [vmem:[#allocation4 + $0x90] sm:$0xff]
        %v6975 = vld [vmem:[#allocation4 + $0x98] sm:$0xff]
        %v6976 = vld [vmem:[#allocation4 + $0xa0] sm:$0x3]
        %v6977 = vld [vmem:[#allocation4 + $0xa8] sm:$0xff]
        %v6978 = vld [vmem:[#allocation4 + $0xb0] sm:$0xff]
        %v6979 = vld [vmem:[#allocation4 + $0xb8] sm:$0x3]
        %v6980 = vld [vmem:[#allocation4 + $0xc0] sm:$0xff]
        %v6981 = vld [vmem:[#allocation4 + $0xc8] sm:$0xff]
        %v6982 = vld [vmem:[#allocation4 + $0xd0] sm:$0x3]
        %v6983 = vld [vmem:[#allocation4 + $0xd8] sm:$0xff]
        %v6984 = vld [vmem:[#allocation4 + $0xe0] sm:$0xff]
        %v6985 = vld [vmem:[#allocation4 + $0xe8] sm:$0x3]
        %v6986 = vld [vmem:[#allocation4 + $0xf0] sm:$0xff]
        %v6987 = vld [vmem:[#allocation4 + $0xf8] sm:$0xff]
        %v6988 = vld [vmem:[#allocation4 + $0x100] sm:$0x3]
        %v6989 = vld [vmem:[#allocation4 + $0x108] sm:$0xff]
        %v6990 = vld [vmem:[#allocation4 + $0x110] sm:$0xff]
        %v6991 = vld [vmem:[#allocation4 + $0x118] sm:$0x3]
        %v6992 = vld [vmem:[#allocation4 + $0x120] sm:$0xff]
        %v6993 = vld [vmem:[#allocation4 + $0x128] sm:$0xff]
        %v6994 = vld [vmem:[#allocation4 + $0x130] sm:$0x3]
        %v6995 = vld [vmem:[#allocation4 + $0x138] sm:$0xff]
        %v6996 = vld [vmem:[#allocation4 + $0x140] sm:$0xff]
        %v6997 = vld [vmem:[#allocation4 + $0x148] sm:$0x3]
        %v6998 = vld [vmem:[#allocation4 + $0x150] sm:$0xff]
        %v6999 = vld [vmem:[#allocation4 + $0x158] sm:$0xff]
        %v7000 = vld [vmem:[#allocation4 + $0x160] sm:$0x3]
        %v7001 = vld [vmem:[#allocation4 + $0x168] sm:$0xff]
        %v7002 = vld [vmem:[#allocation4 + $0x170] sm:$0xff]
        %v7003 = vld [vmem:[#allocation4 + $0x178] sm:$0x3]
        %v7004 = vld [vmem:[#allocation4 + $0x180] sm:$0xff]
        %v7005 = vld [vmem:[#allocation4 + $0x188] sm:$0xff]
        %v7006 = vld [vmem:[#allocation4 + $0x190] sm:$0x3]
        %v7007 = vld [vmem:[#allocation4 + $0x198] sm:$0xff]
        %v7008 = vld [vmem:[#allocation4 + $0x1a0] sm:$0xff]
        %v7009 = vld [vmem:[#allocation4 + $0x1a8] sm:$0x3]
        %vm7042 = vcmask 1040384
        %v7043 = vrot.slane %v6956, 7
        %v7044 = vrot.slane %v6957, 7
        %v7045 = vsel %vm7042, %v7043, %v7044
        %v7046 = vrot.slane %v6959, 7
        %v7047 = vrot.slane %v6960, 7
        %v7048 = vsel %vm7042, %v7046, %v7047
        %v7049 = vrot.slane %v6962, 7
        %v7050 = vrot.slane %v6963, 7
        %v7051 = vsel %vm7042, %v7049, %v7050
        %v7052 = vrot.slane %v6965, 7
        %v7053 = vrot.slane %v6966, 7
        %v7054 = vsel %vm7042, %v7052, %v7053
        %v7055 = vrot.slane %v6968, 7
        %v7056 = vrot.slane %v6969, 7
        %v7057 = vsel %vm7042, %v7055, %v7056
        %v7058 = vrot.slane %v6971, 7
        %v7059 = vrot.slane %v6972, 7
        %v7060 = vsel %vm7042, %v7058, %v7059
        %v7061 = vrot.slane %v6974, 7
        %v7062 = vrot.slane %v6975, 7
        %v7063 = vsel %vm7042, %v7061, %v7062
        %v7064 = vrot.slane %v6977, 7
        %v7065 = vrot.slane %v6978, 7
        %v7066 = vsel %vm7042, %v7064, %v7065
        %v7067 = vrot.slane %v6980, 7
        %v7068 = vrot.slane %v6981, 7
        %v7069 = vsel %vm7042, %v7067, %v7068
        %v7070 = vrot.slane %v6983, 7
        %v7071 = vrot.slane %v6984, 7
        %v7072 = vsel %vm7042, %v7070, %v7071
        %v7073 = vrot.slane %v6986, 7
        %v7074 = vrot.slane %v6987, 7
        %v7075 = vsel %vm7042, %v7073, %v7074
        %v7076 = vrot.slane %v6989, 7
        %v7077 = vrot.slane %v6990, 7
        %v7078 = vsel %vm7042, %v7076, %v7077
        %v7079 = vrot.slane %v6992, 7
        %v7080 = vrot.slane %v6993, 7
        %v7081 = vsel %vm7042, %v7079, %v7080
        %v7082 = vrot.slane %v6995, 7
        %v7083 = vrot.slane %v6996, 7
        %v7084 = vsel %vm7042, %v7082, %v7083
        %v7085 = vrot.slane %v6998, 7
        %v7086 = vrot.slane %v6999, 7
        %v7087 = vsel %vm7042, %v7085, %v7086
        %v7088 = vrot.slane %v7001, 7
        %v7089 = vrot.slane %v7002, 7
        %v7090 = vsel %vm7042, %v7088, %v7089
        %v7139 = vmax.f32 %v6959, %v7043
        %v7140 = vmax.f32 %v6960, %v7045
        %v7141 = vmax.f32 %v6961, %v7044
        %v7142 = vmax.f32 %v6962, %v7046
        %v7143 = vmax.f32 %v6963, %v7048
        %v7144 = vmax.f32 %v6964, %v7047
        %v7145 = vmax.f32 %v6965, %v7049
        %v7146 = vmax.f32 %v6966, %v7051
        %v7147 = vmax.f32 %v6967, %v7050
        %v7148 = vmax.f32 %v6968, %v7052
        %v7149 = vmax.f32 %v6969, %v7054
        %v7150 = vmax.f32 %v6970, %v7053
        %v7151 = vmax.f32 %v6971, %v7055
        %v7152 = vmax.f32 %v6972, %v7057
        %v7153 = vmax.f32 %v6973, %v7056
        %v7154 = vmax.f32 %v6974, %v7058
        %v7155 = vmax.f32 %v6975, %v7060
        %v7156 = vmax.f32 %v6976, %v7059
        %v7157 = vmax.f32 %v6977, %v7061
        %v7158 = vmax.f32 %v6978, %v7063
        %v7159 = vmax.f32 %v6979, %v7062
        %v7160 = vmax.f32 %v6980, %v7064
        %v7161 = vmax.f32 %v6981, %v7066
        %v7162 = vmax.f32 %v6982, %v7065
        %v7163 = vmax.f32 %v6983, %v7067
        %v7164 = vmax.f32 %v6984, %v7069
        %v7165 = vmax.f32 %v6985, %v7068
        %v7166 = vmax.f32 %v6986, %v7070
        %v7167 = vmax.f32 %v6987, %v7072
        %v7168 = vmax.f32 %v6988, %v7071
        %v7169 = vmax.f32 %v6989, %v7073
        %v7170 = vmax.f32 %v6990, %v7075
        %v7171 = vmax.f32 %v6991, %v7074
        %v7172 = vmax.f32 %v6992, %v7076
        %v7173 = vmax.f32 %v6993, %v7078
        %v7174 = vmax.f32 %v6994, %v7077
        %v7175 = vmax.f32 %v6995, %v7079
        %v7176 = vmax.f32 %v6996, %v7081
        %v7177 = vmax.f32 %v6997, %v7080
        %v7178 = vmax.f32 %v6998, %v7082
        %v7179 = vmax.f32 %v6999, %v7084
        %v7180 = vmax.f32 %v7000, %v7083
        %v7181 = vmax.f32 %v7001, %v7085
        %v7182 = vmax.f32 %v7002, %v7087
        %v7183 = vmax.f32 %v7003, %v7086
        %v7184 = vmax.f32 %v7004, %v7088
        %v7185 = vmax.f32 %v7005, %v7090
        %v7186 = vmax.f32 %v7006, %v7089
        %v7187 = vmax.f32 %v7139, %v6956
        %v7188 = vmax.f32 %v7140, %v6957
        %v7189 = vmax.f32 %v7141, %v6958
        %v7190 = vmax.f32 %v7142, %v6959
        %v7191 = vmax.f32 %v7143, %v6960
        %v7192 = vmax.f32 %v7144, %v6961
        %v7193 = vmax.f32 %v7145, %v6962
        %v7194 = vmax.f32 %v7146, %v6963
        %v7195 = vmax.f32 %v7147, %v6964
        %v7196 = vmax.f32 %v7148, %v6965
        %v7197 = vmax.f32 %v7149, %v6966
        %v7198 = vmax.f32 %v7150, %v6967
        %v7199 = vmax.f32 %v7151, %v6968
        %v7200 = vmax.f32 %v7152, %v6969
        %v7201 = vmax.f32 %v7153, %v6970
        %v7202 = vmax.f32 %v7154, %v6971
        %v7203 = vmax.f32 %v7155, %v6972
        %v7204 = vmax.f32 %v7156, %v6973
        %v7205 = vmax.f32 %v7157, %v6974
        %v7206 = vmax.f32 %v7158, %v6975
        %v7207 = vmax.f32 %v7159, %v6976
        %v7208 = vmax.f32 %v7160, %v6977
        %v7209 = vmax.f32 %v7161, %v6978
        %v7210 = vmax.f32 %v7162, %v6979
        %v7211 = vmax.f32 %v7163, %v6980
        %v7212 = vmax.f32 %v7164, %v6981
        %v7213 = vmax.f32 %v7165, %v6982
        %v7214 = vmax.f32 %v7166, %v6983
        %v7215 = vmax.f32 %v7167, %v6984
        %v7216 = vmax.f32 %v7168, %v6985
        %v7217 = vmax.f32 %v7169, %v6986
        %v7218 = vmax.f32 %v7170, %v6987
        %v7219 = vmax.f32 %v7171, %v6988
        %v7220 = vmax.f32 %v7172, %v6989
        %v7221 = vmax.f32 %v7173, %v6990
        %v7222 = vmax.f32 %v7174, %v6991
        %v7223 = vmax.f32 %v7175, %v6992
        %v7224 = vmax.f32 %v7176, %v6993
        %v7225 = vmax.f32 %v7177, %v6994
        %v7226 = vmax.f32 %v7178, %v6995
        %v7227 = vmax.f32 %v7179, %v6996
        %v7228 = vmax.f32 %v7180, %v6997
        %v7229 = vmax.f32 %v7181, %v6998
        %v7230 = vmax.f32 %v7182, %v6999
        %v7231 = vmax.f32 %v7183, %v7000
        %v7232 = vmax.f32 %v7184, %v7001
        %v7233 = vmax.f32 %v7185, %v7002
        %v7234 = vmax.f32 %v7186, %v7003
        %v7251 = vrot.slane %v6956, 1
        %v7252 = vrot.slane %v6957, 1
        %v7253 = vsel %vm1048, %v7251, %v7252
        %v7254 = vrot.slane %v6958, 1
        %v7255 = vsel %vm1048, %v7252, %v7254
        %v7256 = vrot.slane %v6959, 1
        %v7257 = vrot.slane %v6960, 1
        %v7258 = vsel %vm1048, %v7256, %v7257
        %v7259 = vrot.slane %v6961, 1
        %v7260 = vsel %vm1048, %v7257, %v7259
        %v7261 = vrot.slane %v6962, 1
        %v7262 = vrot.slane %v6963, 1
        %v7263 = vsel %vm1048, %v7261, %v7262
        %v7264 = vrot.slane %v6964, 1
        %v7265 = vsel %vm1048, %v7262, %v7264
        %v7266 = vrot.slane %v6965, 1
        %v7267 = vrot.slane %v6966, 1
        %v7268 = vsel %vm1048, %v7266, %v7267
        %v7269 = vrot.slane %v6967, 1
        %v7270 = vsel %vm1048, %v7267, %v7269
        %v7271 = vrot.slane %v6968, 1
        %v7272 = vrot.slane %v6969, 1
        %v7273 = vsel %vm1048, %v7271, %v7272
        %v7274 = vrot.slane %v6970, 1
        %v7275 = vsel %vm1048, %v7272, %v7274
        %v7276 = vrot.slane %v6971, 1
        %v7277 = vrot.slane %v6972, 1
        %v7278 = vsel %vm1048, %v7276, %v7277
        %v7279 = vrot.slane %v6973, 1
        %v7280 = vsel %vm1048, %v7277, %v7279
        %v7281 = vrot.slane %v6974, 1
        %v7282 = vrot.slane %v6975, 1
        %v7283 = vsel %vm1048, %v7281, %v7282
        %v7284 = vrot.slane %v6976, 1
        %v7285 = vsel %vm1048, %v7282, %v7284
        %v7286 = vrot.slane %v6977, 1
        %v7287 = vrot.slane %v6978, 1
        %v7288 = vsel %vm1048, %v7286, %v7287
        %v7289 = vrot.slane %v6979, 1
        %v7290 = vsel %vm1048, %v7287, %v7289
        %v7291 = vrot.slane %v6980, 1
        %v7292 = vrot.slane %v6981, 1
        %v7293 = vsel %vm1048, %v7291, %v7292
        %v7294 = vrot.slane %v6982, 1
        %v7295 = vsel %vm1048, %v7292, %v7294
        %v7296 = vrot.slane %v6983, 1
        %v7297 = vrot.slane %v6984, 1
        %v7298 = vsel %vm1048, %v7296, %v7297
        %v7299 = vrot.slane %v6985, 1
        %v7300 = vsel %vm1048, %v7297, %v7299
        %v7301 = vrot.slane %v6986, 1
        %v7302 = vrot.slane %v6987, 1
        %v7303 = vsel %vm1048, %v7301, %v7302
        %v7304 = vrot.slane %v6988, 1
        %v7305 = vsel %vm1048, %v7302, %v7304
        %v7306 = vrot.slane %v6989, 1
        %v7307 = vrot.slane %v6990, 1
        %v7308 = vsel %vm1048, %v7306, %v7307
        %v7309 = vrot.slane %v6991, 1
        %v7310 = vsel %vm1048, %v7307, %v7309
        %v7311 = vrot.slane %v6992, 1
        %v7312 = vrot.slane %v6993, 1
        %v7313 = vsel %vm1048, %v7311, %v7312
        %v7314 = vrot.slane %v6994, 1
        %v7315 = vsel %vm1048, %v7312, %v7314
        %v7316 = vrot.slane %v6995, 1
        %v7317 = vrot.slane %v6996, 1
        %v7318 = vsel %vm1048, %v7316, %v7317
        %v7319 = vrot.slane %v6997, 1
        %v7320 = vsel %vm1048, %v7317, %v7319
        %v7321 = vrot.slane %v6998, 1
        %v7322 = vrot.slane %v6999, 1
        %v7323 = vsel %vm1048, %v7321, %v7322
        %v7324 = vrot.slane %v7000, 1
        %v7325 = vsel %vm1048, %v7322, %v7324
        %v7326 = vrot.slane %v7001, 1
        %v7327 = vrot.slane %v7002, 1
        %v7328 = vsel %vm1048, %v7326, %v7327
        %v7329 = vrot.slane %v7003, 1
        %v7330 = vsel %vm1048, %v7327, %v7329
        %v7379 = vmax.f32 %v7187, %v7253
        %v7380 = vmax.f32 %v7188, %v7255
        %v7381 = vmax.f32 %v7189, %v7254
        %v7382 = vmax.f32 %v7190, %v7258
        %v7383 = vmax.f32 %v7191, %v7260
        %v7384 = vmax.f32 %v7192, %v7259
        %v7385 = vmax.f32 %v7193, %v7263
        %v7386 = vmax.f32 %v7194, %v7265
        %v7387 = vmax.f32 %v7195, %v7264
        %v7388 = vmax.f32 %v7196, %v7268
        %v7389 = vmax.f32 %v7197, %v7270
        %v7390 = vmax.f32 %v7198, %v7269
        %v7391 = vmax.f32 %v7199, %v7273
        %v7392 = vmax.f32 %v7200, %v7275
        %v7393 = vmax.f32 %v7201, %v7274
        %v7394 = vmax.f32 %v7202, %v7278
        %v7395 = vmax.f32 %v7203, %v7280
        %v7396 = vmax.f32 %v7204, %v7279
        %v7397 = vmax.f32 %v7205, %v7283
        %v7398 = vmax.f32 %v7206, %v7285
        %v7399 = vmax.f32 %v7207, %v7284
        %v7400 = vmax.f32 %v7208, %v7288
        %v7401 = vmax.f32 %v7209, %v7290
        %v7402 = vmax.f32 %v7210, %v7289
        %v7403 = vmax.f32 %v7211, %v7293
        %v7404 = vmax.f32 %v7212, %v7295
        %v7405 = vmax.f32 %v7213, %v7294
        %v7406 = vmax.f32 %v7214, %v7298
        %v7407 = vmax.f32 %v7215, %v7300
        %v7408 = vmax.f32 %v7216, %v7299
        %v7409 = vmax.f32 %v7217, %v7303
        %v7410 = vmax.f32 %v7218, %v7305
        %v7411 = vmax.f32 %v7219, %v7304
        %v7412 = vmax.f32 %v7220, %v7308
        %v7413 = vmax.f32 %v7221, %v7310
        %v7414 = vmax.f32 %v7222, %v7309
        %v7415 = vmax.f32 %v7223, %v7313
        %v7416 = vmax.f32 %v7224, %v7315
        %v7417 = vmax.f32 %v7225, %v7314
        %v7418 = vmax.f32 %v7226, %v7318
        %v7419 = vmax.f32 %v7227, %v7320
        %v7420 = vmax.f32 %v7228, %v7319
        %v7421 = vmax.f32 %v7229, %v7323
        %v7422 = vmax.f32 %v7230, %v7325
        %v7423 = vmax.f32 %v7231, %v7324
        %v7424 = vmax.f32 %v7232, %v7328
        %v7425 = vmax.f32 %v7233, %v7330
        %v7426 = vmax.f32 %v7234, %v7329
        %v7429 = vrot.slane %v7004, 7
        %v7430 = vrot.slane %v7005, 7
        %v7431 = vsel %vm7042, %v7429, %v7430
        %v7435 = vmax.f32 %v7379, %v7046
        %v7436 = vmax.f32 %v7380, %v7048
        %v7437 = vmax.f32 %v7381, %v7047
        %v7438 = vmax.f32 %v7382, %v7049
        %v7439 = vmax.f32 %v7383, %v7051
        %v7440 = vmax.f32 %v7384, %v7050
        %v7441 = vmax.f32 %v7385, %v7052
        %v7442 = vmax.f32 %v7386, %v7054
        %v7443 = vmax.f32 %v7387, %v7053
        %v7444 = vmax.f32 %v7388, %v7055
        %v7445 = vmax.f32 %v7389, %v7057
        %v7446 = vmax.f32 %v7390, %v7056
        %v7447 = vmax.f32 %v7391, %v7058
        %v7448 = vmax.f32 %v7392, %v7060
        %v7449 = vmax.f32 %v7393, %v7059
        %v7450 = vmax.f32 %v7394, %v7061
        %v7451 = vmax.f32 %v7395, %v7063
        %v7452 = vmax.f32 %v7396, %v7062
        %v7453 = vmax.f32 %v7397, %v7064
        %v7454 = vmax.f32 %v7398, %v7066
        %v7455 = vmax.f32 %v7399, %v7065
        %v7456 = vmax.f32 %v7400, %v7067
        %v7457 = vmax.f32 %v7401, %v7069
        %v7458 = vmax.f32 %v7402, %v7068
        %v7459 = vmax.f32 %v7403, %v7070
        %v7460 = vmax.f32 %v7404, %v7072
        %v7461 = vmax.f32 %v7405, %v7071
        %v7462 = vmax.f32 %v7406, %v7073
        %v7463 = vmax.f32 %v7407, %v7075
        %v7464 = vmax.f32 %v7408, %v7074
        %v7465 = vmax.f32 %v7409, %v7076
        %v7466 = vmax.f32 %v7410, %v7078
        %v7467 = vmax.f32 %v7411, %v7077
        %v7468 = vmax.f32 %v7412, %v7079
        %v7469 = vmax.f32 %v7413, %v7081
        %v7470 = vmax.f32 %v7414, %v7080
        %v7471 = vmax.f32 %v7415, %v7082
        %v7472 = vmax.f32 %v7416, %v7084
        %v7473 = vmax.f32 %v7417, %v7083
        %v7474 = vmax.f32 %v7418, %v7085
        %v7475 = vmax.f32 %v7419, %v7087
        %v7476 = vmax.f32 %v7420, %v7086
        %v7477 = vmax.f32 %v7421, %v7088
        %v7478 = vmax.f32 %v7422, %v7090
        %v7479 = vmax.f32 %v7423, %v7089
        %v7480 = vmax.f32 %v7424, %v7429
        %v7481 = vmax.f32 %v7425, %v7431
        %v7482 = vmax.f32 %v7426, %v7430
        %v7484 = vrot.slane %v7004, 1
        %v7485 = vrot.slane %v7005, 1
        %v7486 = vsel %vm1048, %v7484, %v7485
        %v7487 = vrot.slane %v7006, 1
        %v7488 = vsel %vm1048, %v7485, %v7487
        %v7492 = vmax.f32 %v7435, %v7258
        %v7493 = vmax.f32 %v7436, %v7260
        %v7494 = vmax.f32 %v7437, %v7259
        %v7495 = vmax.f32 %v7438, %v7263
        %v7496 = vmax.f32 %v7439, %v7265
        %v7497 = vmax.f32 %v7440, %v7264
        %v7498 = vmax.f32 %v7441, %v7268
        %v7499 = vmax.f32 %v7442, %v7270
        %v7500 = vmax.f32 %v7443, %v7269
        %v7501 = vmax.f32 %v7444, %v7273
        %v7502 = vmax.f32 %v7445, %v7275
        %v7503 = vmax.f32 %v7446, %v7274
        %v7504 = vmax.f32 %v7447, %v7278
        %v7505 = vmax.f32 %v7448, %v7280
        %v7506 = vmax.f32 %v7449, %v7279
        %v7507 = vmax.f32 %v7450, %v7283
        %v7508 = vmax.f32 %v7451, %v7285
        %v7509 = vmax.f32 %v7452, %v7284
        %v7510 = vmax.f32 %v7453, %v7288
        %v7511 = vmax.f32 %v7454, %v7290
        %v7512 = vmax.f32 %v7455, %v7289
        %v7513 = vmax.f32 %v7456, %v7293
        %v7514 = vmax.f32 %v7457, %v7295
        %v7515 = vmax.f32 %v7458, %v7294
        %v7516 = vmax.f32 %v7459, %v7298
        %v7517 = vmax.f32 %v7460, %v7300
        %v7518 = vmax.f32 %v7461, %v7299
        %v7519 = vmax.f32 %v7462, %v7303
        %v7520 = vmax.f32 %v7463, %v7305
        %v7521 = vmax.f32 %v7464, %v7304
        %v7522 = vmax.f32 %v7465, %v7308
        %v7523 = vmax.f32 %v7466, %v7310
        %v7524 = vmax.f32 %v7467, %v7309
        %v7525 = vmax.f32 %v7468, %v7313
        %v7526 = vmax.f32 %v7469, %v7315
        %v7527 = vmax.f32 %v7470, %v7314
        %v7528 = vmax.f32 %v7471, %v7318
        %v7529 = vmax.f32 %v7472, %v7320
        %v7530 = vmax.f32 %v7473, %v7319
        %v7531 = vmax.f32 %v7474, %v7323
        %v7532 = vmax.f32 %v7475, %v7325
        %v7533 = vmax.f32 %v7476, %v7324
        %v7534 = vmax.f32 %v7477, %v7328
        %v7535 = vmax.f32 %v7478, %v7330
        %v7536 = vmax.f32 %v7479, %v7329
        %v7537 = vmax.f32 %v7480, %v7486
        %v7538 = vmax.f32 %v7481, %v7488
        %v7539 = vmax.f32 %v7482, %v7487
        %v7542 = vrot.slane %v7007, 7
        %v7543 = vrot.slane %v7008, 7
        %v7544 = vsel %vm7042, %v7542, %v7543
        %v7548 = vmax.f32 %v7492, %v7049
        %v7549 = vmax.f32 %v7493, %v7051
        %v7550 = vmax.f32 %v7494, %v7050
        %v7551 = vmax.f32 %v7495, %v7052
        %v7552 = vmax.f32 %v7496, %v7054
        %v7553 = vmax.f32 %v7497, %v7053
        %v7554 = vmax.f32 %v7498, %v7055
        %v7555 = vmax.f32 %v7499, %v7057
        %v7556 = vmax.f32 %v7500, %v7056
        %v7557 = vmax.f32 %v7501, %v7058
        %v7558 = vmax.f32 %v7502, %v7060
        %v7559 = vmax.f32 %v7503, %v7059
        %v7560 = vmax.f32 %v7504, %v7061
        %v7561 = vmax.f32 %v7505, %v7063
        %v7562 = vmax.f32 %v7506, %v7062
        %v7563 = vmax.f32 %v7507, %v7064
        %v7564 = vmax.f32 %v7508, %v7066
        %v7565 = vmax.f32 %v7509, %v7065
        %v7566 = vmax.f32 %v7510, %v7067
        %v7567 = vmax.f32 %v7511, %v7069
        %v7568 = vmax.f32 %v7512, %v7068
        %v7569 = vmax.f32 %v7513, %v7070
        %v7570 = vmax.f32 %v7514, %v7072
        %v7571 = vmax.f32 %v7515, %v7071
        %v7572 = vmax.f32 %v7516, %v7073
        %v7573 = vmax.f32 %v7517, %v7075
        %v7574 = vmax.f32 %v7518, %v7074
        %v7575 = vmax.f32 %v7519, %v7076
        %v7576 = vmax.f32 %v7520, %v7078
        %v7577 = vmax.f32 %v7521, %v7077
        %v7578 = vmax.f32 %v7522, %v7079
        %v7579 = vmax.f32 %v7523, %v7081
        %v7580 = vmax.f32 %v7524, %v7080
        %v7581 = vmax.f32 %v7525, %v7082
        %v7582 = vmax.f32 %v7526, %v7084
        %v7583 = vmax.f32 %v7527, %v7083
        %v7584 = vmax.f32 %v7528, %v7085
        %v7585 = vmax.f32 %v7529, %v7087
        %v7586 = vmax.f32 %v7530, %v7086
        %v7587 = vmax.f32 %v7531, %v7088
        %v7588 = vmax.f32 %v7532, %v7090
        %v7589 = vmax.f32 %v7533, %v7089
        %v7590 = vmax.f32 %v7534, %v7429
        %v7591 = vmax.f32 %v7535, %v7431
        %v7592 = vmax.f32 %v7536, %v7430
        %v7593 = vmax.f32 %v7537, %v7542
        %v7594 = vmax.f32 %v7538, %v7544
        %v7595 = vmax.f32 %v7539, %v7543
        %v7596 = vmax.f32 %v7548, %v6962
        %v7597 = vmax.f32 %v7549, %v6963
        %v7598 = vmax.f32 %v7550, %v6964
        %v7599 = vmax.f32 %v7551, %v6965
        %v7600 = vmax.f32 %v7552, %v6966
        %v7601 = vmax.f32 %v7553, %v6967
        %v7602 = vmax.f32 %v7554, %v6968
        %v7603 = vmax.f32 %v7555, %v6969
        %v7604 = vmax.f32 %v7556, %v6970
        %v7605 = vmax.f32 %v7557, %v6971
        %v7606 = vmax.f32 %v7558, %v6972
        %v7607 = vmax.f32 %v7559, %v6973
        %v7608 = vmax.f32 %v7560, %v6974
        %v7609 = vmax.f32 %v7561, %v6975
        %v7610 = vmax.f32 %v7562, %v6976
        %v7611 = vmax.f32 %v7563, %v6977
        %v7612 = vmax.f32 %v7564, %v6978
        %v7613 = vmax.f32 %v7565, %v6979
        %v7614 = vmax.f32 %v7566, %v6980
        %v7615 = vmax.f32 %v7567, %v6981
        %v7616 = vmax.f32 %v7568, %v6982
        %v7617 = vmax.f32 %v7569, %v6983
        %v7618 = vmax.f32 %v7570, %v6984
        %v7619 = vmax.f32 %v7571, %v6985
        %v7620 = vmax.f32 %v7572, %v6986
        %v7621 = vmax.f32 %v7573, %v6987
        %v7622 = vmax.f32 %v7574, %v6988
        %v7623 = vmax.f32 %v7575, %v6989
        %v7624 = vmax.f32 %v7576, %v6990
        %v7625 = vmax.f32 %v7577, %v6991
        %v7626 = vmax.f32 %v7578, %v6992
        %v7627 = vmax.f32 %v7579, %v6993
        %v7628 = vmax.f32 %v7580, %v6994
        %v7629 = vmax.f32 %v7581, %v6995
        %v7630 = vmax.f32 %v7582, %v6996
        %v7631 = vmax.f32 %v7583, %v6997
        %v7632 = vmax.f32 %v7584, %v6998
        %v7633 = vmax.f32 %v7585, %v6999
        %v7634 = vmax.f32 %v7586, %v7000
        %v7635 = vmax.f32 %v7587, %v7001
        %v7636 = vmax.f32 %v7588, %v7002
        %v7637 = vmax.f32 %v7589, %v7003
        %v7638 = vmax.f32 %v7590, %v7004
        %v7639 = vmax.f32 %v7591, %v7005
        %v7640 = vmax.f32 %v7592, %v7006
        %v7641 = vmax.f32 %v7593, %v7007
        %v7642 = vmax.f32 %v7594, %v7008
        %v7643 = vmax.f32 %v7595, %v7009
        %v7645 = vrot.slane %v7007, 1
        %v7646 = vrot.slane %v7008, 1
        %v7647 = vsel %vm1048, %v7645, %v7646
        %v7648 = vrot.slane %v7009, 1
        %v7649 = vsel %vm1048, %v7646, %v7648
        %v7653 = vmax.f32 %v7596, %v7263
        %v7654 = vmax.f32 %v7597, %v7265
        %v7655 = vmax.f32 %v7598, %v7264
        %v7656 = vmax.f32 %v7599, %v7268
        %v7657 = vmax.f32 %v7600, %v7270
        %v7658 = vmax.f32 %v7601, %v7269
        %v7659 = vmax.f32 %v7602, %v7273
        %v7660 = vmax.f32 %v7603, %v7275
        %v7661 = vmax.f32 %v7604, %v7274
        %v7662 = vmax.f32 %v7605, %v7278
        %v7663 = vmax.f32 %v7606, %v7280
        %v7664 = vmax.f32 %v7607, %v7279
        %v7665 = vmax.f32 %v7608, %v7283
        %v7666 = vmax.f32 %v7609, %v7285
        %v7667 = vmax.f32 %v7610, %v7284
        %v7668 = vmax.f32 %v7611, %v7288
        %v7669 = vmax.f32 %v7612, %v7290
        %v7670 = vmax.f32 %v7613, %v7289
        %v7671 = vmax.f32 %v7614, %v7293
        %v7672 = vmax.f32 %v7615, %v7295
        %v7673 = vmax.f32 %v7616, %v7294
        %v7674 = vmax.f32 %v7617, %v7298
        %v7675 = vmax.f32 %v7618, %v7300
        %v7676 = vmax.f32 %v7619, %v7299
        %v7677 = vmax.f32 %v7620, %v7303
        %v7678 = vmax.f32 %v7621, %v7305
        %v7679 = vmax.f32 %v7622, %v7304
        %v7680 = vmax.f32 %v7623, %v7308
        %v7681 = vmax.f32 %v7624, %v7310
        %v7682 = vmax.f32 %v7625, %v7309
        %v7683 = vmax.f32 %v7626, %v7313
        %v7684 = vmax.f32 %v7627, %v7315
        %v7685 = vmax.f32 %v7628, %v7314
        %v7686 = vmax.f32 %v7629, %v7318
        %v7687 = vmax.f32 %v7630, %v7320
        %v7688 = vmax.f32 %v7631, %v7319
        %v7689 = vmax.f32 %v7632, %v7323
        %v7690 = vmax.f32 %v7633, %v7325
        %v7691 = vmax.f32 %v7634, %v7324
        %v7692 = vmax.f32 %v7635, %v7328
        %v7693 = vmax.f32 %v7636, %v7330
        %v7694 = vmax.f32 %v7637, %v7329
        %v7695 = vmax.f32 %v7638, %v7486
        %v7696 = vmax.f32 %v7639, %v7488
        %v7697 = vmax.f32 %v7640, %v7487
        %v7698 = vmax.f32 %v7641, %v7647
        %v7699 = vmax.f32 %v7642, %v7649
        %v7700 = vmax.f32 %v7643, %v7648
        %v7749 = vrot.slane %v7653, 1
        %v7750 = vrot.slane %v7654, 1
        %v7751 = vsel %vm1048, %v7749, %v7750
        %v7752 = vrot.slane %v7655, 1
        %v7753 = vsel %vm1048, %v7750, %v7752
        %v7754 = vrot.slane %v7656, 1
        %v7755 = vrot.slane %v7657, 1
        %v7756 = vsel %vm1048, %v7754, %v7755
        %v7757 = vrot.slane %v7658, 1
        %v7758 = vsel %vm1048, %v7755, %v7757
        %v7759 = vrot.slane %v7659, 1
        %v7760 = vrot.slane %v7660, 1
        %v7761 = vsel %vm1048, %v7759, %v7760
        %v7762 = vrot.slane %v7661, 1
        %v7763 = vsel %vm1048, %v7760, %v7762
        %v7764 = vrot.slane %v7662, 1
        %v7765 = vrot.slane %v7663, 1
        %v7766 = vsel %vm1048, %v7764, %v7765
        %v7767 = vrot.slane %v7664, 1
        %v7768 = vsel %vm1048, %v7765, %v7767
        %v7769 = vrot.slane %v7665, 1
        %v7770 = vrot.slane %v7666, 1
        %v7771 = vsel %vm1048, %v7769, %v7770
        %v7772 = vrot.slane %v7667, 1
        %v7773 = vsel %vm1048, %v7770, %v7772
        %v7774 = vrot.slane %v7668, 1
        %v7775 = vrot.slane %v7669, 1
        %v7776 = vsel %vm1048, %v7774, %v7775
        %v7777 = vrot.slane %v7670, 1
        %v7778 = vsel %vm1048, %v7775, %v7777
        %v7779 = vrot.slane %v7671, 1
        %v7780 = vrot.slane %v7672, 1
        %v7781 = vsel %vm1048, %v7779, %v7780
        %v7782 = vrot.slane %v7673, 1
        %v7783 = vsel %vm1048, %v7780, %v7782
        %v7784 = vrot.slane %v7674, 1
        %v7785 = vrot.slane %v7675, 1
        %v7786 = vsel %vm1048, %v7784, %v7785
        %v7787 = vrot.slane %v7676, 1
        %v7788 = vsel %vm1048, %v7785, %v7787
        %v7789 = vrot.slane %v7677, 1
        %v7790 = vrot.slane %v7678, 1
        %v7791 = vsel %vm1048, %v7789, %v7790
        %v7792 = vrot.slane %v7679, 1
        %v7793 = vsel %vm1048, %v7790, %v7792
        %v7794 = vrot.slane %v7680, 1
        %v7795 = vrot.slane %v7681, 1
        %v7796 = vsel %vm1048, %v7794, %v7795
        %v7797 = vrot.slane %v7682, 1
        %v7798 = vsel %vm1048, %v7795, %v7797
        %v7799 = vrot.slane %v7683, 1
        %v7800 = vrot.slane %v7684, 1
        %v7801 = vsel %vm1048, %v7799, %v7800
        %v7802 = vrot.slane %v7685, 1
        %v7803 = vsel %vm1048, %v7800, %v7802
        %v7804 = vrot.slane %v7686, 1
        %v7805 = vrot.slane %v7687, 1
        %v7806 = vsel %vm1048, %v7804, %v7805
        %v7807 = vrot.slane %v7688, 1
        %v7808 = vsel %vm1048, %v7805, %v7807
        %v7809 = vrot.slane %v7689, 1
        %v7810 = vrot.slane %v7690, 1
        %v7811 = vsel %vm1048, %v7809, %v7810
        %v7812 = vrot.slane %v7691, 1
        %v7813 = vsel %vm1048, %v7810, %v7812
        %v7814 = vrot.slane %v7692, 1
        %v7815 = vrot.slane %v7693, 1
        %v7816 = vsel %vm1048, %v7814, %v7815
        %v7817 = vrot.slane %v7694, 1
        %v7818 = vsel %vm1048, %v7815, %v7817
        %v7819 = vrot.slane %v7695, 1
        %v7820 = vrot.slane %v7696, 1
        %v7821 = vsel %vm1048, %v7819, %v7820
        %v7822 = vrot.slane %v7697, 1
        %v7823 = vsel %vm1048, %v7820, %v7822
        %v7824 = vrot.slane %v7698, 1
        %v7825 = vrot.slane %v7699, 1
        %v7826 = vsel %vm1048, %v7824, %v7825
        %v7827 = vrot.slane %v7700, 1
        %v7828 = vsel %vm1048, %v7825, %v7827
        %v7829 = vld [vmem:[%s7] sm:$0xf]
        %v7830 = vld [vmem:[%s8] sm:$0x1]
        %v7832 = vlaneseq
        %v7833 = vshrl.u32 %v7832, 7
        %v7834 = vsub.s32 0, %v7833
        %v7835 = vrot.slane %v7830, %v7834
        %v7837 = vsel %vm371, %v7751, 0
        %v7839 = vsel %vm371, %v7753, 0
        %v7841 = vsel %vm371, %v7756, 0
        %v7843 = vsel %vm371, %v7758, 0
        %v7845 = vsel %vm371, %v7761, 0
        %v7847 = vsel %vm371, %v7763, 0
        %v7849 = vsel %vm371, %v7766, 0
        %v7851 = vsel %vm371, %v7768, 0
        %v7853 = vsel %vm371, %v7771, 0
        %v7855 = vsel %vm371, %v7773, 0
        %v7857 = vsel %vm371, %v7776, 0
        %v7859 = vsel %vm371, %v7778, 0
        %v7861 = vsel %vm371, %v7781, 0
        %v7863 = vsel %vm371, %v7783, 0
        %v7865 = vsel %vm371, %v7786, 0
        %v7867 = vsel %vm371, %v7788, 0
        %v7869 = vsel %vm371, %v7791, 0
        %v7871 = vsel %vm371, %v7793, 0
        %v7873 = vsel %vm371, %v7796, 0
        %v7875 = vsel %vm371, %v7798, 0
        %v7877 = vsel %vm371, %v7801, 0
        %v7879 = vsel %vm371, %v7803, 0
        %v7881 = vsel %vm371, %v7806, 0
        %v7883 = vsel %vm371, %v7808, 0
        %v7885 = vsel %vm371, %v7811, 0
        %v7887 = vsel %vm371, %v7813, 0
        %v7889 = vsel %vm371, %v7816, 0
        %v7891 = vsel %vm371, %v7818, 0
        %v7893 = vsel %vm371, %v7821, 0
        %v7895 = vsel %vm371, %v7823, 0
        %v7897 = vsel %vm371, %v7826, 0
        %v7899 = vsel %vm371, %v7828, 0
        %v7902 = vsel %vm468, %v7829, 0
        %7904 = vmatprep.subr.mxu0 0.0
        %7905 = vmatpush1.msra.mxu0 %v7902
        %7906 = vmatprep.subr.mxu0 0.0
        %7907 = vmatpush1.msra.mxu0 0.0
        %7908 = vmatprep.subr.mxu0 0.0
        %7909 = vmatpush1.msra.mxu0 0.0
        %7910 = vmatprep.subr.mxu0 0.0
        %7911 = vmatpush1.msra.mxu0 0.0
        %7912 = vmatprep.subr.mxu0 0.0
        %7913 = vmatpush1.msra.mxu0 0.0
        %7914 = vmatprep.subr.mxu0 0.0
        %7915 = vmatpush1.msra.mxu0 0.0
        %7916 = vmatprep.subr.mxu0 0.0
        %7917 = vmatpush1.msra.mxu0 0.0
        %7918 = vmatprep.subr.mxu0 0.0
        %7919 = vmatpush1.msra.mxu0 0.0
        %7920 = vmatprep.subr.mxu0 0.0
        %7921 = vmatpush1.msra.mxu0 0.0
        %7922 = vmatprep.subr.mxu0 0.0
        %7923 = vmatpush1.msra.mxu0 0.0
        %7924 = vmatprep.subr.mxu0 0.0
        %7925 = vmatpush1.msra.mxu0 0.0
        %7926 = vmatprep.subr.mxu0 0.0
        %7927 = vmatpush1.msra.mxu0 0.0
        %7928 = vmatprep.subr.mxu0 0.0
        %7929 = vmatpush1.msra.mxu0 0.0
        %7930 = vmatprep.subr.mxu0 0.0
        %7931 = vmatpush1.msra.mxu0 0.0
        %7932 = vmatprep.subr.mxu0 0.0
        %7933 = vmatpush1.msra.mxu0 0.0
        %7934 = vmatprep.subr.mxu0 0.0
        %7935 = vmatpush1.msra.mxu0 0.0
        %7936 = vmatprep.subr.mxu0 0.0
        %7937 = vmatpush1.msra.mxu0 0.0
        %7938 = vmatprep.subr.mxu0 0.0
        %7939 = vmatpush1.msra.mxu0 0.0
        %7940 = vmatprep.subr.mxu0 0.0
        %7941 = vmatpush1.msra.mxu0 0.0
        %7942 = vmatprep.subr.mxu0 0.0
        %7943 = vmatpush1.msra.mxu0 0.0
        %7944 = vmatprep.subr.mxu0 0.0
        %7945 = vmatpush1.msra.mxu0 0.0
        %7946 = vmatprep.subr.mxu0 0.0
        %7947 = vmatpush1.msra.mxu0 0.0
        %7948 = vmatprep.subr.mxu0 0.0
        %7949 = vmatpush1.msra.mxu0 0.0
        %7950 = vmatprep.subr.mxu0 0.0
        %7951 = vmatpush1.msra.mxu0 0.0
        %7952 = vmatprep.subr.mxu0 0.0
        %7953 = vmatpush1.msra.mxu0 0.0
        %7954 = vmatprep.subr.mxu0 0.0
        %7955 = vmatpush1.msra.mxu0 0.0
        %7956 = vmatprep.subr.mxu0 0.0
        %7957 = vmatpush1.msra.mxu0 0.0
        %7958 = vmatprep.subr.mxu0 0.0
        %7959 = vmatpush1.msra.mxu0 0.0
        %7960 = vmatprep.subr.mxu0 0.0
        %7961 = vmatpush1.msra.mxu0 0.0
        %7962 = vmatprep.subr.mxu0 0.0
        %7963 = vmatpush1.msra.mxu0 0.0
        %7964 = vmatprep.subr.mxu0 0.0
        %7965 = vmatpush1.msra.mxu0 0.0
        %7966 = vmatprep.subr.mxu0 0.0
        %7967 = vmatpush1.msra.mxu0 0.0
        %7968 = vmatprep.mubr.f32.mxu0 0.0
        %7969 = vmatmul.mubr.f32.gmra.mrb[0].mxu0 %v7837
        %v7970 = vpop.f32.mrb[0].mxu0
        %v7971 = vadd.f32 %v7835, %v7970
        %v7972 = vpop.f32.mrb[0].mxu0
        %7973 = vmatprep.mubr.f32.mxu0 0.0
        %7974 = vmatmul.mubr.f32.gmra.mrb[0].mxu0 %v7839
        %v7975 = vpop.f32.mrb[0].mxu0
        %v7976 = vadd.f32 %v7835, %v7975
        %v7977 = vpop.f32.mrb[0].mxu0
        %7978 = vmatprep.mubr.f32.mxu0 0.0
        %7979 = vmatmul.mubr.f32.gmra.mrb[0].mxu0 %v7841
        %v7980 = vpop.f32.mrb[0].mxu0
        %v7981 = vadd.f32 %v7835, %v7980
        %v7982 = vpop.f32.mrb[0].mxu0
        %7983 = vmatprep.mubr.f32.mxu0 0.0
        %7984 = vmatmul.mubr.f32.gmra.mrb[0].mxu0 %v7843
        %v7985 = vpop.f32.mrb[0].mxu0
        %v7986 = vadd.f32 %v7835, %v7985
        %v7987 = vpop.f32.mrb[0].mxu0
        %7988 = vmatprep.mubr.f32.mxu0 0.0
        %7989 = vmatmul.mubr.f32.gmra.mrb[0].mxu0 %v7845
        %v7990 = vpop.f32.mrb[0].mxu0
        %v7991 = vadd.f32 %v7835, %v7990
        %v7992 = vpop.f32.mrb[0].mxu0
        %7993 = vmatprep.mubr.f32.mxu0 0.0
        %7994 = vmatmul.mubr.f32.gmra.mrb[0].mxu0 %v7847
        %v7995 = vpop.f32.mrb[0].mxu0
        %v7996 = vadd.f32 %v7835, %v7995
        %v7997 = vpop.f32.mrb[0].mxu0
        %7998 = vmatprep.mubr.f32.mxu0 0.0
        %7999 = vmatmul.mubr.f32.gmra.mrb[0].mxu0 %v7849
        %v8000 = vpop.f32.mrb[0].mxu0
        %v8001 = vadd.f32 %v7835, %v8000
        %v8002 = vpop.f32.mrb[0].mxu0
        %8003 = vmatprep.mubr.f32.mxu0 0.0
        %8004 = vmatmul.mubr.f32.gmra.mrb[0].mxu0 %v7851
        %v8005 = vpop.f32.mrb[0].mxu0
        %v8006 = vadd.f32 %v7835, %v8005
        %v8007 = vpop.f32.mrb[0].mxu0
        %8008 = vmatprep.mubr.f32.mxu0 0.0
        %8009 = vmatmul.mubr.f32.gmra.mrb[0].mxu0 %v7853
        %v8010 = vpop.f32.mrb[0].mxu0
        %v8011 = vadd.f32 %v7835, %v8010
        %v8012 = vpop.f32.mrb[0].mxu0
        %8013 = vmatprep.mubr.f32.mxu0 0.0
        %8014 = vmatmul.mubr.f32.gmra.mrb[0].mxu0 %v7855
        %v8015 = vpop.f32.mrb[0].mxu0
        %v8016 = vadd.f32 %v7835, %v8015
        %v8017 = vpop.f32.mrb[0].mxu0
        %8018 = vmatprep.mubr.f32.mxu0 0.0
        %8019 = vmatmul.mubr.f32.gmra.mrb[0].mxu0 %v7857
        %v8020 = vpop.f32.mrb[0].mxu0
        %v8021 = vadd.f32 %v7835, %v8020
        %v8022 = vpop.f32.mrb[0].mxu0
        %8023 = vmatprep.mubr.f32.mxu0 0.0
        %8024 = vmatmul.mubr.f32.gmra.mrb[0].mxu0 %v7859
        %v8025 = vpop.f32.mrb[0].mxu0
        %v8026 = vadd.f32 %v7835, %v8025
        %v8027 = vpop.f32.mrb[0].mxu0
        %8028 = vmatprep.mubr.f32.mxu0 0.0
        %8029 = vmatmul.mubr.f32.gmra.mrb[0].mxu0 %v7861
        %v8030 = vpop.f32.mrb[0].mxu0
        %v8031 = vadd.f32 %v7835, %v8030
        %v8032 = vpop.f32.mrb[0].mxu0
        %8033 = vmatprep.mubr.f32.mxu0 0.0
        %8034 = vmatmul.mubr.f32.gmra.mrb[0].mxu0 %v7863
        %v8035 = vpop.f32.mrb[0].mxu0
        %v8036 = vadd.f32 %v7835, %v8035
        %v8037 = vpop.f32.mrb[0].mxu0
        %8038 = vmatprep.mubr.f32.mxu0 0.0
        %8039 = vmatmul.mubr.f32.gmra.mrb[0].mxu0 %v7865
        %v8040 = vpop.f32.mrb[0].mxu0
        %v8041 = vadd.f32 %v7835, %v8040
        %v8042 = vpop.f32.mrb[0].mxu0
        %8043 = vmatprep.mubr.f32.mxu0 0.0
        %8044 = vmatmul.mubr.f32.gmra.mrb[0].mxu0 %v7867
        %v8045 = vpop.f32.mrb[0].mxu0
        %v8046 = vadd.f32 %v7835, %v8045
        %v8047 = vpop.f32.mrb[0].mxu0
        %8048 = vmatprep.mubr.f32.mxu0 0.0
        %8049 = vmatmul.mubr.f32.gmra.mrb[0].mxu0 %v7869
        %v8050 = vpop.f32.mrb[0].mxu0
        %v8051 = vadd.f32 %v7835, %v8050
        %v8052 = vpop.f32.mrb[0].mxu0
        %8053 = vmatprep.mubr.f32.mxu0 0.0
        %8054 = vmatmul.mubr.f32.gmra.mrb[0].mxu0 %v7871
        %v8055 = vpop.f32.mrb[0].mxu0
        %v8056 = vadd.f32 %v7835, %v8055
        %v8057 = vpop.f32.mrb[0].mxu0
        %8058 = vmatprep.mubr.f32.mxu0 0.0
        %8059 = vmatmul.mubr.f32.gmra.mrb[0].mxu0 %v7873
        %v8060 = vpop.f32.mrb[0].mxu0
        %v8061 = vadd.f32 %v7835, %v8060
        %v8062 = vpop.f32.mrb[0].mxu0
        %8063 = vmatprep.mubr.f32.mxu0 0.0
        %8064 = vmatmul.mubr.f32.gmra.mrb[0].mxu0 %v7875
        %v8065 = vpop.f32.mrb[0].mxu0
        %v8066 = vadd.f32 %v7835, %v8065
        %v8067 = vpop.f32.mrb[0].mxu0
        %8068 = vmatprep.mubr.f32.mxu0 0.0
        %8069 = vmatmul.mubr.f32.gmra.mrb[0].mxu0 %v7877
        %v8070 = vpop.f32.mrb[0].mxu0
        %v8071 = vadd.f32 %v7835, %v8070
        %v8072 = vpop.f32.mrb[0].mxu0
        %8073 = vmatprep.mubr.f32.mxu0 0.0
        %8074 = vmatmul.mubr.f32.gmra.mrb[0].mxu0 %v7879
        %v8075 = vpop.f32.mrb[0].mxu0
        %v8076 = vadd.f32 %v7835, %v8075
        %v8077 = vpop.f32.mrb[0].mxu0
        %8078 = vmatprep.mubr.f32.mxu0 0.0
        %8079 = vmatmul.mubr.f32.gmra.mrb[0].mxu0 %v7881
        %v8080 = vpop.f32.mrb[0].mxu0
        %v8081 = vadd.f32 %v7835, %v8080
        %v8082 = vpop.f32.mrb[0].mxu0
        %8083 = vmatprep.mubr.f32.mxu0 0.0
        %8084 = vmatmul.mubr.f32.gmra.mrb[0].mxu0 %v7883
        %v8085 = vpop.f32.mrb[0].mxu0
        %v8086 = vadd.f32 %v7835, %v8085
        %v8087 = vpop.f32.mrb[0].mxu0
        %8088 = vmatprep.mubr.f32.mxu0 0.0
        %8089 = vmatmul.mubr.f32.gmra.mrb[0].mxu0 %v7885
        %v8090 = vpop.f32.mrb[0].mxu0
        %v8091 = vadd.f32 %v7835, %v8090
        %v8092 = vpop.f32.mrb[0].mxu0
        %8093 = vmatprep.mubr.f32.mxu0 0.0
        %8094 = vmatmul.mubr.f32.gmra.mrb[0].mxu0 %v7887
        %v8095 = vpop.f32.mrb[0].mxu0
        %v8096 = vadd.f32 %v7835, %v8095
        %v8097 = vpop.f32.mrb[0].mxu0
        %8098 = vmatprep.mubr.f32.mxu0 0.0
        %8099 = vmatmul.mubr.f32.gmra.mrb[0].mxu0 %v7889
        %v8100 = vpop.f32.mrb[0].mxu0
        %v8101 = vadd.f32 %v7835, %v8100
        %v8102 = vpop.f32.mrb[0].mxu0
        %8103 = vmatprep.mubr.f32.mxu0 0.0
        %8104 = vmatmul.mubr.f32.gmra.mrb[0].mxu0 %v7891
        %v8105 = vpop.f32.mrb[0].mxu0
        %v8106 = vadd.f32 %v7835, %v8105
        %v8107 = vpop.f32.mrb[0].mxu0
        %8108 = vmatprep.mubr.f32.mxu0 0.0
        %8109 = vmatmul.mubr.f32.gmra.mrb[0].mxu0 %v7893
        %v8110 = vpop.f32.mrb[0].mxu0
        %v8111 = vadd.f32 %v7835, %v8110
        %v8112 = vpop.f32.mrb[0].mxu0
        %8113 = vmatprep.mubr.f32.mxu0 0.0
        %8114 = vmatmul.mubr.f32.gmra.mrb[0].mxu0 %v7895
        %v8115 = vpop.f32.mrb[0].mxu0
        %v8116 = vadd.f32 %v7835, %v8115
        %v8117 = vpop.f32.mrb[0].mxu0
        %8118 = vmatprep.mubr.f32.mxu0 0.0
        %8119 = vmatmul.mubr.f32.gmra.mrb[0].mxu0 %v7897
        %v8120 = vpop.f32.mrb[0].mxu0
        %v8121 = vadd.f32 %v7835, %v8120
        %v8122 = vpop.f32.mrb[0].mxu0
        %8123 = vmatprep.mubr.f32.mxu0 0.0
        %8124 = vmatmul.mubr.f32.gmra.mrb[0].mxu0 %v7899
        %v8125 = vpop.f32.mrb[0].mxu0
        %v8126 = vadd.f32 %v7835, %v8125
        %v8127 = vpop.f32.mrb[0].mxu0
        %8128 = vdwg.mxu0
        %v8129 = vmax.f32 %v7971, 0.0
        %v8130 = vmax.f32 %v7976, 0.0
        %v8131 = vmax.f32 %v7981, 0.0
        %v8132 = vmax.f32 %v7986, 0.0
        %v8133 = vmax.f32 %v7991, 0.0
        %v8134 = vmax.f32 %v7996, 0.0
        %v8135 = vmax.f32 %v8001, 0.0
        %v8136 = vmax.f32 %v8006, 0.0
        %v8137 = vmax.f32 %v8011, 0.0
        %v8138 = vmax.f32 %v8016, 0.0
        %v8139 = vmax.f32 %v8021, 0.0
        %v8140 = vmax.f32 %v8026, 0.0
        %v8141 = vmax.f32 %v8031, 0.0
        %v8142 = vmax.f32 %v8036, 0.0
        %v8143 = vmax.f32 %v8041, 0.0
        %v8144 = vmax.f32 %v8046, 0.0
        %v8145 = vmax.f32 %v8051, 0.0
        %v8146 = vmax.f32 %v8056, 0.0
        %v8147 = vmax.f32 %v8061, 0.0
        %v8148 = vmax.f32 %v8066, 0.0
        %v8149 = vmax.f32 %v8071, 0.0
        %v8150 = vmax.f32 %v8076, 0.0
        %v8151 = vmax.f32 %v8081, 0.0
        %v8152 = vmax.f32 %v8086, 0.0
        %v8153 = vmax.f32 %v8091, 0.0
        %v8154 = vmax.f32 %v8096, 0.0
        %v8155 = vmax.f32 %v8101, 0.0
        %v8156 = vmax.f32 %v8106, 0.0
        %v8157 = vmax.f32 %v8111, 0.0
        %v8158 = vmax.f32 %v8116, 0.0
        %v8159 = vmax.f32 %v8121, 0.0
        %v8160 = vmax.f32 %v8126, 0.0
        %8193 = vrot.lane.b32.xlu0 %v2605, 8
        %v8194 = vpop.permute.xlu0 %8193
        %8195 = vrot.lane.b32.xlu0 %v2606, 8
        %v8196 = vpop.permute.xlu0 %8195
        %8197 = vrot.lane.b32.xlu0 %v2607, 8
        %v8198 = vpop.permute.xlu0 %8197
        %8199 = vrot.lane.b32.xlu0 %v2608, 8
        %v8200 = vpop.permute.xlu0 %8199
        %8201 = vrot.lane.b32.xlu0 %v2609, 8
        %v8202 = vpop.permute.xlu0 %8201
        %8203 = vrot.lane.b32.xlu0 %v2610, 8
        %v8204 = vpop.permute.xlu0 %8203
        %8205 = vrot.lane.b32.xlu0 %v2611, 8
        %v8206 = vpop.permute.xlu0 %8205
        %8207 = vrot.lane.b32.xlu0 %v2612, 8
        %v8208 = vpop.permute.xlu0 %8207
        %8209 = vrot.lane.b32.xlu0 %v2613, 8
        %v8210 = vpop.permute.xlu0 %8209
        %8211 = vrot.lane.b32.xlu0 %v2614, 8
        %v8212 = vpop.permute.xlu0 %8211
        %8213 = vrot.lane.b32.xlu0 %v2615, 8
        %v8214 = vpop.permute.xlu0 %8213
        %8215 = vrot.lane.b32.xlu0 %v2616, 8
        %v8216 = vpop.permute.xlu0 %8215
        %8217 = vrot.lane.b32.xlu0 %v2617, 8
        %v8218 = vpop.permute.xlu0 %8217
        %8219 = vrot.lane.b32.xlu0 %v2618, 8
        %v8220 = vpop.permute.xlu0 %8219
        %8221 = vrot.lane.b32.xlu0 %v2619, 8
        %v8222 = vpop.permute.xlu0 %8221
        %8223 = vrot.lane.b32.xlu0 %v2620, 8
        %v8224 = vpop.permute.xlu0 %8223
        %8225 = vrot.lane.b32.xlu0 %v2621, 8
        %v8226 = vpop.permute.xlu0 %8225
        %8227 = vrot.lane.b32.xlu0 %v2622, 8
        %v8228 = vpop.permute.xlu0 %8227
        %8229 = vrot.lane.b32.xlu0 %v2623, 8
        %v8230 = vpop.permute.xlu0 %8229
        %8231 = vrot.lane.b32.xlu0 %v2624, 8
        %v8232 = vpop.permute.xlu0 %8231
        %8233 = vrot.lane.b32.xlu0 %v2625, 8
        %v8234 = vpop.permute.xlu0 %8233
        %8235 = vrot.lane.b32.xlu0 %v2626, 8
        %v8236 = vpop.permute.xlu0 %8235
        %8237 = vrot.lane.b32.xlu0 %v2627, 8
        %v8238 = vpop.permute.xlu0 %8237
        %8239 = vrot.lane.b32.xlu0 %v2628, 8
        %v8240 = vpop.permute.xlu0 %8239
        %8241 = vrot.lane.b32.xlu0 %v2629, 8
        %v8242 = vpop.permute.xlu0 %8241
        %8243 = vrot.lane.b32.xlu0 %v2630, 8
        %v8244 = vpop.permute.xlu0 %8243
        %8245 = vrot.lane.b32.xlu0 %v2631, 8
        %v8246 = vpop.permute.xlu0 %8245
        %8247 = vrot.lane.b32.xlu0 %v2632, 8
        %v8248 = vpop.permute.xlu0 %8247
        %8249 = vrot.lane.b32.xlu0 %v2633, 8
        %v8250 = vpop.permute.xlu0 %8249
        %8251 = vrot.lane.b32.xlu0 %v2634, 8
        %v8252 = vpop.permute.xlu0 %8251
        %8253 = vrot.lane.b32.xlu0 %v2635, 8
        %v8254 = vpop.permute.xlu0 %8253
        %8255 = vrot.lane.b32.xlu0 %v2636, 8
        %v8256 = vpop.permute.xlu0 %8255
        %8321 = vrot.lane.b32.xlu0 %v6836, 24
        %v8322 = vpop.permute.xlu0 %8321
        %8323 = vrot.lane.b32.xlu0 %v6837, 24
        %v8324 = vpop.permute.xlu0 %8323
        %8325 = vrot.lane.b32.xlu0 %v6838, 24
        %v8326 = vpop.permute.xlu0 %8325
        %8327 = vrot.lane.b32.xlu0 %v6839, 24
        %v8328 = vpop.permute.xlu0 %8327
        %8329 = vrot.lane.b32.xlu0 %v6840, 24
        %v8330 = vpop.permute.xlu0 %8329
        %8331 = vrot.lane.b32.xlu0 %v6841, 24
        %v8332 = vpop.permute.xlu0 %8331
        %8333 = vrot.lane.b32.xlu0 %v6842, 24
        %v8334 = vpop.permute.xlu0 %8333
        %8335 = vrot.lane.b32.xlu0 %v6843, 24
        %v8336 = vpop.permute.xlu0 %8335
        %8337 = vrot.lane.b32.xlu0 %v6844, 24
        %v8338 = vpop.permute.xlu0 %8337
        %8339 = vrot.lane.b32.xlu0 %v6845, 24
        %v8340 = vpop.permute.xlu0 %8339
        %8341 = vrot.lane.b32.xlu0 %v6846, 24
        %v8342 = vpop.permute.xlu0 %8341
        %8343 = vrot.lane.b32.xlu0 %v6847, 24
        %v8344 = vpop.permute.xlu0 %8343
        %8345 = vrot.lane.b32.xlu0 %v6848, 24
        %v8346 = vpop.permute.xlu0 %8345
        %8347 = vrot.lane.b32.xlu0 %v6849, 24
        %v8348 = vpop.permute.xlu0 %8347
        %8349 = vrot.lane.b32.xlu0 %v6850, 24
        %v8350 = vpop.permute.xlu0 %8349
        %8351 = vrot.lane.b32.xlu0 %v6851, 24
        %v8352 = vpop.permute.xlu0 %8351
        %8353 = vrot.lane.b32.xlu0 %v6852, 24
        %v8354 = vpop.permute.xlu0 %8353
        %8355 = vrot.lane.b32.xlu0 %v6853, 24
        %v8356 = vpop.permute.xlu0 %8355
        %8357 = vrot.lane.b32.xlu0 %v6854, 24
        %v8358 = vpop.permute.xlu0 %8357
        %8359 = vrot.lane.b32.xlu0 %v6855, 24
        %v8360 = vpop.permute.xlu0 %8359
        %8361 = vrot.lane.b32.xlu0 %v6856, 24
        %v8362 = vpop.permute.xlu0 %8361
        %8363 = vrot.lane.b32.xlu0 %v6857, 24
        %v8364 = vpop.permute.xlu0 %8363
        %8365 = vrot.lane.b32.xlu0 %v6858, 24
        %v8366 = vpop.permute.xlu0 %8365
        %8367 = vrot.lane.b32.xlu0 %v6859, 24
        %v8368 = vpop.permute.xlu0 %8367
        %8369 = vrot.lane.b32.xlu0 %v6860, 24
        %v8370 = vpop.permute.xlu0 %8369
        %8371 = vrot.lane.b32.xlu0 %v6861, 24
        %v8372 = vpop.permute.xlu0 %8371
        %8373 = vrot.lane.b32.xlu0 %v6862, 24
        %v8374 = vpop.permute.xlu0 %8373
        %8375 = vrot.lane.b32.xlu0 %v6863, 24
        %v8376 = vpop.permute.xlu0 %8375
        %8377 = vrot.lane.b32.xlu0 %v6864, 24
        %v8378 = vpop.permute.xlu0 %8377
        %8379 = vrot.lane.b32.xlu0 %v6865, 24
        %v8380 = vpop.permute.xlu0 %8379
        %8381 = vrot.lane.b32.xlu0 %v6866, 24
        %v8382 = vpop.permute.xlu0 %8381
        %8383 = vrot.lane.b32.xlu0 %v6867, 24
        %v8384 = vpop.permute.xlu0 %8383
        %8449 = vrot.lane.b32.xlu0 %v8129, 32
        %v8450 = vpop.permute.xlu0 %8449
        %8451 = vrot.lane.b32.xlu0 %v8130, 32
        %v8452 = vpop.permute.xlu0 %8451
        %8453 = vrot.lane.b32.xlu0 %v8131, 32
        %v8454 = vpop.permute.xlu0 %8453
        %8455 = vrot.lane.b32.xlu0 %v8132, 32
        %v8456 = vpop.permute.xlu0 %8455
        %8457 = vrot.lane.b32.xlu0 %v8133, 32
        %v8458 = vpop.permute.xlu0 %8457
        %8459 = vrot.lane.b32.xlu0 %v8134, 32
        %v8460 = vpop.permute.xlu0 %8459
        %8461 = vrot.lane.b32.xlu0 %v8135, 32
        %v8462 = vpop.permute.xlu0 %8461
        %8463 = vrot.lane.b32.xlu0 %v8136, 32
        %v8464 = vpop.permute.xlu0 %8463
        %8465 = vrot.lane.b32.xlu0 %v8137, 32
        %v8466 = vpop.permute.xlu0 %8465
        %8467 = vrot.lane.b32.xlu0 %v8138, 32
        %v8468 = vpop.permute.xlu0 %8467
        %8469 = vrot.lane.b32.xlu0 %v8139, 32
        %v8470 = vpop.permute.xlu0 %8469
        %8471 = vrot.lane.b32.xlu0 %v8140, 32
        %v8472 = vpop.permute.xlu0 %8471
        %8473 = vrot.lane.b32.xlu0 %v8141, 32
        %v8474 = vpop.permute.xlu0 %8473
        %8475 = vrot.lane.b32.xlu0 %v8142, 32
        %v8476 = vpop.permute.xlu0 %8475
        %8477 = vrot.lane.b32.xlu0 %v8143, 32
        %v8478 = vpop.permute.xlu0 %8477
        %8479 = vrot.lane.b32.xlu0 %v8144, 32
        %v8480 = vpop.permute.xlu0 %8479
        %8481 = vrot.lane.b32.xlu0 %v8145, 32
        %v8482 = vpop.permute.xlu0 %8481
        %8483 = vrot.lane.b32.xlu0 %v8146, 32
        %v8484 = vpop.permute.xlu0 %8483
        %8485 = vrot.lane.b32.xlu0 %v8147, 32
        %v8486 = vpop.permute.xlu0 %8485
        %8487 = vrot.lane.b32.xlu0 %v8148, 32
        %v8488 = vpop.permute.xlu0 %8487
        %8489 = vrot.lane.b32.xlu0 %v8149, 32
        %v8490 = vpop.permute.xlu0 %8489
        %8491 = vrot.lane.b32.xlu0 %v8150, 32
        %v8492 = vpop.permute.xlu0 %8491
        %8493 = vrot.lane.b32.xlu0 %v8151, 32
        %v8494 = vpop.permute.xlu0 %8493
        %8495 = vrot.lane.b32.xlu0 %v8152, 32
        %v8496 = vpop.permute.xlu0 %8495
        %8497 = vrot.lane.b32.xlu0 %v8153, 32
        %v8498 = vpop.permute.xlu0 %8497
        %8499 = vrot.lane.b32.xlu0 %v8154, 32
        %v8500 = vpop.permute.xlu0 %8499
        %8501 = vrot.lane.b32.xlu0 %v8155, 32
        %v8502 = vpop.permute.xlu0 %8501
        %8503 = vrot.lane.b32.xlu0 %v8156, 32
        %v8504 = vpop.permute.xlu0 %8503
        %8505 = vrot.lane.b32.xlu0 %v8157, 32
        %v8506 = vpop.permute.xlu0 %8505
        %8507 = vrot.lane.b32.xlu0 %v8158, 32
        %v8508 = vpop.permute.xlu0 %8507
        %8509 = vrot.lane.b32.xlu0 %v8159, 32
        %v8510 = vpop.permute.xlu0 %8509
        %8511 = vrot.lane.b32.xlu0 %v8160, 32
        %v8512 = vpop.permute.xlu0 %8511
        %v8545 = vsel %vm729, %v697, %v8194
        %v8546 = vsel %vm729, %v698, %v8196
        %v8547 = vsel %vm729, %v699, %v8198
        %v8548 = vsel %vm729, %v700, %v8200
        %v8549 = vsel %vm729, %v701, %v8202
        %v8550 = vsel %vm729, %v702, %v8204
        %v8551 = vsel %vm729, %v703, %v8206
        %v8552 = vsel %vm729, %v704, %v8208
        %v8553 = vsel %vm729, %v705, %v8210
        %v8554 = vsel %vm729, %v706, %v8212
        %v8555 = vsel %vm729, %v707, %v8214
        %v8556 = vsel %vm729, %v708, %v8216
        %v8557 = vsel %vm729, %v709, %v8218
        %v8558 = vsel %vm729, %v710, %v8220
        %v8559 = vsel %vm729, %v711, %v8222
        %v8560 = vsel %vm729, %v712, %v8224
        %v8561 = vsel %vm729, %v713, %v8226
        %v8562 = vsel %vm729, %v714, %v8228
        %v8563 = vsel %vm729, %v715, %v8230
        %v8564 = vsel %vm729, %v716, %v8232
        %v8565 = vsel %vm729, %v717, %v8234
        %v8566 = vsel %vm729, %v718, %v8236
        %v8567 = vsel %vm729, %v719, %v8238
        %v8568 = vsel %vm729, %v720, %v8240
        %v8569 = vsel %vm729, %v721, %v8242
        %v8570 = vsel %vm729, %v722, %v8244
        %v8571 = vsel %vm729, %v723, %v8246
        %v8572 = vsel %vm729, %v724, %v8248
        %v8573 = vsel %vm729, %v725, %v8250
        %v8574 = vsel %vm729, %v726, %v8252
        %v8575 = vsel %vm729, %v727, %v8254
        %v8576 = vsel %vm729, %v728, %v8256
        %v8577 = vsel %vm2069, %v8545, %v8322
        %v8578 = vsel %vm2069, %v8546, %v8324
        %v8579 = vsel %vm2069, %v8547, %v8326
        %v8580 = vsel %vm2069, %v8548, %v8328
        %v8581 = vsel %vm2069, %v8549, %v8330
        %v8582 = vsel %vm2069, %v8550, %v8332
        %v8583 = vsel %vm2069, %v8551, %v8334
        %v8584 = vsel %vm2069, %v8552, %v8336
        %v8585 = vsel %vm2069, %v8553, %v8338
        %v8586 = vsel %vm2069, %v8554, %v8340
        %v8587 = vsel %vm2069, %v8555, %v8342
        %v8588 = vsel %vm2069, %v8556, %v8344
        %v8589 = vsel %vm2069, %v8557, %v8346
        %v8590 = vsel %vm2069, %v8558, %v8348
        %v8591 = vsel %vm2069, %v8559, %v8350
        %v8592 = vsel %vm2069, %v8560, %v8352
        %v8593 = vsel %vm2069, %v8561, %v8354
        %v8594 = vsel %vm2069, %v8562, %v8356
        %v8595 = vsel %vm2069, %v8563, %v8358
        %v8596 = vsel %vm2069, %v8564, %v8360
        %v8597 = vsel %vm2069, %v8565, %v8362
        %v8598 = vsel %vm2069, %v8566, %v8364
        %v8599 = vsel %vm2069, %v8567, %v8366
        %v8600 = vsel %vm2069, %v8568, %v8368
        %v8601 = vsel %vm2069, %v8569, %v8370
        %v8602 = vsel %vm2069, %v8570, %v8372
        %v8603 = vsel %vm2069, %v8571, %v8374
        %v8604 = vsel %vm2069, %v8572, %v8376
        %v8605 = vsel %vm2069, %v8573, %v8378
        %v8606 = vsel %vm2069, %v8574, %v8380
        %v8607 = vsel %vm2069, %v8575, %v8382
        %v8608 = vsel %vm2069, %v8576, %v8384
        %v8609 = vsel %vm2102, %v8577, %v8450
        %v8610 = vsel %vm2102, %v8578, %v8452
        %v8611 = vsel %vm2102, %v8579, %v8454
        %v8612 = vsel %vm2102, %v8580, %v8456
        %v8613 = vsel %vm2102, %v8581, %v8458
        %v8614 = vsel %vm2102, %v8582, %v8460
        %v8615 = vsel %vm2102, %v8583, %v8462
        %v8616 = vsel %vm2102, %v8584, %v8464
        %v8617 = vsel %vm2102, %v8585, %v8466
        %v8618 = vsel %vm2102, %v8586, %v8468
        %v8619 = vsel %vm2102, %v8587, %v8470
        %v8620 = vsel %vm2102, %v8588, %v8472
        %v8621 = vsel %vm2102, %v8589, %v8474
        %v8622 = vsel %vm2102, %v8590, %v8476
        %v8623 = vsel %vm2102, %v8591, %v8478
        %v8624 = vsel %vm2102, %v8592, %v8480
        %v8625 = vsel %vm2102, %v8593, %v8482
        %v8626 = vsel %vm2102, %v8594, %v8484
        %v8627 = vsel %vm2102, %v8595, %v8486
        %v8628 = vsel %vm2102, %v8596, %v8488
        %v8629 = vsel %vm2102, %v8597, %v8490
        %v8630 = vsel %vm2102, %v8598, %v8492
        %v8631 = vsel %vm2102, %v8599, %v8494
        %v8632 = vsel %vm2102, %v8600, %v8496
        %v8633 = vsel %vm2102, %v8601, %v8498
        %v8634 = vsel %vm2102, %v8602, %v8500
        %v8635 = vsel %vm2102, %v8603, %v8502
        %v8636 = vsel %vm2102, %v8604, %v8504
        %v8637 = vsel %vm2102, %v8605, %v8506
        %v8638 = vsel %vm2102, %v8606, %v8508
        %v8639 = vsel %vm2102, %v8607, %v8510
        %v8640 = vsel %vm2102, %v8608, %v8512
        %8641 = vst.msk [vmem:[%s325] sm:$0xff] %vm2135, %v8609
        %8642 = vst.msk [vmem:[%s325 + $0x8] sm:$0xff] %vm2135, %v8610
        %8643 = vst.msk [vmem:[%s325 + $0x10] sm:$0xff] %vm2135, %v8611
        %8644 = vst.msk [vmem:[%s325 + $0x18] sm:$0xff] %vm2135, %v8612
        %8645 = vst.msk [vmem:[%s325 + $0x20] sm:$0xff] %vm2135, %v8613
        %8646 = vst.msk [vmem:[%s325 + $0x28] sm:$0xff] %vm2135, %v8614
        %8647 = vst.msk [vmem:[%s325 + $0x30] sm:$0xff] %vm2135, %v8615
        %8648 = vst.msk [vmem:[%s325 + $0x38] sm:$0xff] %vm2135, %v8616
        %8649 = vst.msk [vmem:[%s325 + $0x40] sm:$0xff] %vm2135, %v8617
        %8650 = vst.msk [vmem:[%s325 + $0x48] sm:$0xff] %vm2135, %v8618
        %8651 = vst.msk [vmem:[%s325 + $0x50] sm:$0xff] %vm2135, %v8619
        %8652 = vst.msk [vmem:[%s325 + $0x58] sm:$0xff] %vm2135, %v8620
        %8653 = vst.msk [vmem:[%s325 + $0x60] sm:$0xff] %vm2135, %v8621
        %8654 = vst.msk [vmem:[%s325 + $0x68] sm:$0xff] %vm2135, %v8622
        %8655 = vst.msk [vmem:[%s325 + $0x70] sm:$0xff] %vm2135, %v8623
        %8656 = vst.msk [vmem:[%s325 + $0x78] sm:$0xff] %vm2135, %v8624
        %8657 = vst.msk [vmem:[%s325 + $0x80] sm:$0xff] %vm2135, %v8625
        %8658 = vst.msk [vmem:[%s325 + $0x88] sm:$0xff] %vm2135, %v8626
        %8659 = vst.msk [vmem:[%s325 + $0x90] sm:$0xff] %vm2135, %v8627
        %8660 = vst.msk [vmem:[%s325 + $0x98] sm:$0xff] %vm2135, %v8628
        %8661 = vst.msk [vmem:[%s325 + $0xa0] sm:$0xff] %vm2135, %v8629
        %8662 = vst.msk [vmem:[%s325 + $0xa8] sm:$0xff] %vm2135, %v8630
        %8663 = vst.msk [vmem:[%s325 + $0xb0] sm:$0xff] %vm2135, %v8631
        %8664 = vst.msk [vmem:[%s325 + $0xb8] sm:$0xff] %vm2135, %v8632
        %8665 = vst.msk [vmem:[%s325 + $0xc0] sm:$0xff] %vm2135, %v8633
        %8666 = vst.msk [vmem:[%s325 + $0xc8] sm:$0xff] %vm2135, %v8634
        %8667 = vst.msk [vmem:[%s325 + $0xd0] sm:$0xff] %vm2135, %v8635
        %8668 = vst.msk [vmem:[%s325 + $0xd8] sm:$0xff] %vm2135, %v8636
        %8669 = vst.msk [vmem:[%s325 + $0xe0] sm:$0xff] %vm2135, %v8637
        %8670 = vst.msk [vmem:[%s325 + $0xe8] sm:$0xff] %vm2135, %v8638
        %8671 = vst.msk [vmem:[%s325 + $0xf0] sm:$0xff] %vm2135, %v8639
        %8672 = vst.msk [vmem:[%s325 + $0xf8] sm:$0xff] %vm2135, %v8640
        %s8673 = sand.u32 %s225, 1
        %s8674 = scalar_lea.sflag [#allocation6], %s8673
        %s8675 = sand.u32 %s225, 1
        %s8676 = smul.addr %s8675, 256
        %s8677 = scalar_lea.vmem [#allocation5], %s8676
        // Predicated region
        $region57: #{inception_forward.1} parent=55 // pred_check
          %p8678 = pneg %p235
        $region58: #{inception_forward.1} parent=55 // pred_check_branch
          %8680 = sbr.rel (%p8678) target = $region60
        $region59: #{inception_forward.1} parent=55 // pred_region
          %s8682 = ssub.s32 4096, 4096
          %8683 = vsyncadd %s8674, %s8682
          %s8684 = smul.addr %s23, 32
          %s8685 = smul.addr %s8684, 128
          %s8686 = scalar_lea.hbm %s9, %s8685
          %s8687 = sshll.u32 %s8677, 4
          %s8688 = int_to_ptr.vmem [resolvable:$true] %s8687
          %8693 = dma.vmem_to_hbm [thread:$0]  %s8688, 4096, %s8686, %s8674, 128, 128, 8
        $region60: #{inception_forward.1} parent=55 // pred_fallthru
          _
      $region56: #{inception_forward.1} parent=5 // pred_fallthru
        _
      %p8694 = scmp.le.s32.totalorder 2, %s18
      // Predicated region
      $region61: #{inception_forward.1} parent=5 // pred_check
        %p8695 = pneg %p8694
      $region62: #{inception_forward.1} parent=5 // pred_check_branch
        %8697 = sbr.rel (%p8695) target = $region64
      $region63: #{inception_forward.1} parent=5 // pred_region
        %s8698 = ssub.s32 %s18, 2
        // Predicated region
        $region65: #{inception_forward.1} parent=63 // pred_check
          %p8699 = pneg %p241
        $region66: #{inception_forward.1} parent=63 // pred_check_branch
          %8701 = sbr.rel (%p8699) target = $region68
        $region67: #{inception_forward.1} parent=63 // pred_region
          %s8702 = sand.u32 %s226, 1
          %s8703 = scalar_lea.sflag [#allocation6], %s8702
          %s8704 = sand.u32 %s226, 1
          %s8705 = smul.addr %s8704, 256
          %s8706 = scalar_lea.vmem [#allocation5], %s8705
          %8707 = dma.done %s8703, 4096
        $region68: #{inception_forward.1} parent=63 // pred_fallthru
          _
      $region64: #{inception_forward.1} parent=5 // pred_fallthru
        _
    $region6: #{inception_forward.1} parent=1 // loop_footer
      %s22 = sadd.s32 1, %s18
    $region7: #{inception_forward.1} parent=1 // loop_footer_branch
      %17 = sbr.rel target = $region3
    $region8: #{inception_forward.1} parent=1 // loop_exit
      _
    %8708 = vsyncpa [#allocation6], 1
    %s8709 = scalar_lea.sflag [#allocation6], 1
    %8710 = vsyncpa %s8709, 1

</llo_original>
